<compile_context>
chip_gen: v5e
topology: v5e:2x2
jax: 0.10.0
libtpu: 0.0.40
codegen_flags: <defaults>
</compile_context>

<pallas_src>
import functools
import math

import jax
import jax.numpy as jnp
from jax import lax
from jax.experimental import pallas as pl
from jax.experimental.pallas import tpu as pltpu

# ----- module hyper-parameters (mirrors BSM.__init__ defaults) -----
D_MODEL = 32
D_STATE = 16
D_CONV = 4
EXPAND = 2
D_INNER = EXPAND * D_MODEL                  # 64
DT_RANK = math.ceil(D_MODEL / 16)           # 2
EPS = 1e-5


def _sigmoid(x):
    # tanh-based logistic: numerically stable, one EUP transcendental.
    return 0.5 * (jnp.tanh(0.5 * x) + 1.0)


def _softplus(x):
    return jnp.maximum(x, 0.0) + jnp.log1p(jnp.exp(-jnp.abs(x)))


def _bsm_kernel(h_ref, inprojw_ref, inprojb_ref, convw_ref, convbias_ref,
                wdelta_ref, dtbias_ref, wbexp_ref, wcexp_ref, A_ref,
                Dskip_ref, outproj_ref, normfw_ref,
                out_ref,
                convf_ref, convr_ref, dA_ref, dBu_ref, cexp_ref,
                yf_ref, yb_ref,
                *, T, Bb, pad_rows, chunks):
    f32 = jnp.float32
    bf16 = jnp.bfloat16
    M, D = h_ref.shape                      # M = T * Bb, rows are time-major
    twoE = convw_ref.shape[1]
    E = twoE // 2
    N = A_ref.shape[0]
    W = convw_ref.shape[0]
    NS = N + 1                              # +1 virtual slot carrying D*u skip
    Tc_max = dA_ref.shape[0]

    h = h_ref[...].astype(f32)              # (M, D)
    residual = h                            # residual_in_fp32

    # ---- prenorm LayerNorm; weight/bias already folded into in_proj ----
    mu = jnp.mean(h, axis=-1, keepdims=True)
    var = jnp.mean((h - mu) ** 2, axis=-1, keepdims=True)
    h_hat = (h - mu) * lax.rsqrt(var + EPS)

    # ---- in_proj (bf16 MXU, f32 accumulate) ----
    xz = jnp.dot(h_hat.astype(bf16), inprojw_ref[...],
                 preferred_element_type=f32) + inprojb_ref[...]
    x = xz[:, :E]                           # (M, E)
    z = xz[:, E:]

    # ---- conv inputs: forward copy + time-reversed copy (no rev matmul) ----
    convf_ref[:pad_rows, :] = jnp.zeros((pad_rows, E), f32)
    convr_ref[:pad_rows, :] = jnp.zeros((pad_rows, E), f32)
    convf_ref[pad_rows:, :] = x

    def flip_in(t, carry):                  # reversed Bb-row block copies
        src = pl.multiple_of(pad_rows + t * Bb, Bb)
        dst = pl.multiple_of(pad_rows + (T - 1 - t) * Bb, Bb)
        convr_ref[pl.ds(dst, Bb), :] = convf_ref[pl.ds(src, Bb), :]
        return carry
    lax.fori_loop(0, T, flip_in, 0, unroll=min(T, 8))

    # ---- depthwise causal conv: shifted reads of padded scratches ----
    cw = convw_ref[...]
    cb = convbias_ref[...]
    accf = jnp.broadcast_to(cb[:, :E], (M, E))
    accb = jnp.broadcast_to(cb[:, E:], (M, E))
    for k in range(W):
        start = pad_rows - (W - 1 - k) * Bb          # multiple of 8 (Bb == 8)
        accf = accf + cw[k:k + 1, :E] * convf_ref[start:start + M, :]
        accb = accb + cw[k:k + 1, E:] * convr_ref[start:start + M, :]
    xc2 = jnp.concatenate([accf, accb], axis=-1)      # (M, 2E)
    xc2 = xc2 * _sigmoid(xc2)                         # SiLU

    # ---- delta (dt_proj folded into x_proj host-side), softplus ----
    delta = jnp.dot(xc2, wdelta_ref[...], preferred_element_type=f32)
    delta = _softplus(delta + dtbias_ref[...])
    du = delta * xc2
    xc2_bf = xc2.astype(bf16)

    # ---- constant virtual-state slot: dA=0, C=D  ->  y gets +D*u for free ----
    dA_ref[:, N, :, :] = jnp.zeros((Tc_max, Bb, twoE), f32)
    cexp_ref[:, N, :, :] = jnp.broadcast_to(Dskip_ref[...], (Tc_max, Bb, twoE))

    A_rows = A_ref[...]                               # (N, 2E)
    wbexp = wbexp_ref[...]
    wcexp = wcexp_ref[...]

    # ---- chunked slab build + serial selective scan ----
    state = jnp.zeros((NS, Bb, twoE), f32)
    for (t0, tc) in chunks:
        r0 = t0 * Bb
        mc = tc * Bb
        delta_c = delta[r0:r0 + mc, :]
        du_c = du[r0:r0 + mc, :]
        bexp_c = jnp.dot(xc2_bf[r0:r0 + mc, :], wbexp,
                         preferred_element_type=f32)  # (mc, N*2E)
        cexp_c = jnp.dot(xc2_bf[r0:r0 + mc, :], wcexp,
                         preferred_element_type=f32)

        # dense full-tile slab writes (lane-group slices are vreg-aligned)
        # TODO(synk): if A keeps the A_n=-(n+1) parameterization, the N exps
        # could be replaced by repeated multiplies; not valid for learned A.
        for n in range(N):
            dA_ref[:tc, n, :, :] = jnp.exp(
                delta_c * A_rows[n:n + 1, :]).reshape(tc, Bb, twoE)
            dBu_ref[:tc, n, :, :] = (
                bexp_c[:, n * twoE:(n + 1) * twoE] * du_c).reshape(tc, Bb, twoE)
            cexp_ref[:tc, n, :, :] = (
                cexp_c[:, n * twoE:(n + 1) * twoE]).reshape(tc, Bb, twoE)
        dBu_ref[:tc, N, :, :] = xc2[r0:r0 + mc, :].reshape(tc, Bb, twoE)

        def scan_step(i, st, t0=t0):
            st = st * dA_ref[i] + dBu_ref[i]                  # (NS, Bb, 2E)
            y_t = jnp.sum(cexp_ref[i] * st, axis=0)           # (Bb, 2E), incl D*u
            g = t0 + i
            fwd = pl.multiple_of(g * Bb, Bb)
            bwd = pl.multiple_of((T - 1 - g) * Bb, Bb)
            yf_ref[pl.ds(fwd, Bb), :] = y_t[:, :E]            # original order
            yb_ref[pl.ds(bwd, Bb), :] = y_t[:, E:]            # un-flipped write
            return st
        state = lax.fori_loop(0, tc, scan_step, state, unroll=min(tc, 8))

    # ---- gate with silu(z), out_proj (bf16 MXU) ----
    y_sum = (yf_ref[...] + yb_ref[...]) * (z * _sigmoid(z))
    out = jnp.dot(y_sum.astype(bf16), outproj_ref[...],
                  preferred_element_type=f32)                  # (M, D)

    # ---- fused residual add + RMSNorm (norm_f) ----
    # TODO(synk): DropPath(0.1) is stochastic depth; identity in eval mode.
    pre = out + residual
    rms = lax.rsqrt(jnp.mean(pre * pre, axis=-1, keepdims=True) + EPS)
    out_ref[...] = (pre * rms * normfw_ref[...]).astype(out_ref.dtype)


def _fuse_params(p):
    """Host-side weight fusion: fold LayerNorm + dt_proj into the projections,
    stack the two directions along the lane axis, pre-expand B/C columns, and
    cast the MXU-heavy weights to bf16."""
    E, N, R = D_INNER, D_STATE, DT_RANK
    f32 = jnp.float32
    bf16 = jnp.bfloat16

    def block_diag(a, b):
        za = jnp.zeros((a.shape[0], b.shape[1]), f32)
        zb = jnp.zeros((b.shape[0], a.shape[1]), f32)
        return jnp.concatenate(
            [jnp.concatenate([a, za], axis=1),
             jnp.concatenate([zb, b], axis=1)], axis=0)

    def expand_bc(col_f, col_b):
        # (E, N) x2 -> (2E, N*2E); column n*2E + e holds state n of the matching
        # direction replicated across that direction's E lanes (zeros kept so
        # every downstream slab write is a dense 128-lane store).
        top = jnp.concatenate(
            [jnp.broadcast_to(col_f[:, :, None], (E, N, E)),
             jnp.zeros((E, N, E), f32)], axis=2)
        bot = jnp.concatenate(
            [jnp.zeros((E, N, E), f32),
             jnp.broadcast_to(col_b[:, :, None], (E, N, E))], axis=2)
        return jnp.concatenate([top, bot], axis=0).reshape(2 * E, N * 2 * E)

    xp_f, xp_b = p["xproj_wT_f"], p["xproj_wT_b"]        # (E, R + 2N)
    dt_f, dt_b = p["dtproj_wT_f"], p["dtproj_wT_b"]      # (R, E)

    inproj_w = p["in_proj_wT"] * p["norm_w"].reshape(-1, 1)   # LN weight folded
    inproj_b = p["norm_b"] @ p["in_proj_wT"]                  # LN bias folded

    return {
        "inproj_w": inproj_w.astype(bf16),
        "inproj_b": inproj_b.astype(f32),
        "conv_w2": jnp.concatenate([p["conv_w_f"], p["conv_w_b"]], axis=1),
        "conv_b2": jnp.concatenate([p["conv_b_f"], p["conv_b_b"]], axis=1),
        "w_delta": block_diag(xp_f[:, :R] @ dt_f, xp_b[:, :R] @ dt_b),
        "dt_bias2": jnp.concatenate([p["dt_bias_f"], p["dt_bias_b"]], axis=1),
        "w_bexp": expand_bc(xp_f[:, R:R + N], xp_b[:, R:R + N]).astype(bf16),
        "w_cexp": expand_bc(xp_f[:, R + N:R + 2 * N],
                            xp_b[:, R + N:R + 2 * N]).astype(bf16),
        "A2": jnp.concatenate([p["A_f"], p["A_b"]], axis=1),
        "D2": jnp.concatenate([p["D_f"], p["D_b"]], axis=1),
        "outproj_w": p["out_proj_wT"].astype(bf16),
        "normf_w": p["normf_w"],
    }


def bsm_forward(h, params, *, chunk_t=32):
    B, T, D = h.shape
    Bb = 8                                   # fixed: sublane-aligned rows/step
    B_pad = ((B + Bb - 1) // Bb) * Bb        # pad batch so every offset is *8
    if B_pad != B:
        h = jnp.concatenate([h, jnp.zeros((B_pad - B, T, D), h.dtype)], axis=0)
    G = B_pad // Bb                          # for v7x prefer inputs with G >= 2
    M = T * Bb
    E, N, Wc = D_INNER, D_STATE, D_CONV
    twoE = 2 * E
    pad_rows = (Wc - 1) * Bb                 # multiple of 8 since Bb == 8

    # Time chunking keeps the (Tc, N+1, Bb, 2E) slabs bounded in VMEM.
    Tc = max(1, min(T, chunk_t))
    chunks = tuple((t0, min(Tc, T - t0)) for t0 in range(0, T, Tc))
    Tc_max = max(tc for _, tc in chunks)

    # Wrapper-side layout plumbing: group Bb sequences per grid step with
    # time-major rows (m = t*Bb + b) so conv/flip shifts never cross sequences.
    hg = h.reshape(G, Bb, T, D).transpose(0, 2, 1, 3).reshape(G, M, D)
    fused = _fuse_params(params)

    args = [
        fused["inproj_w"], fused["inproj_b"],
        fused["conv_w2"], fused["conv_b2"],
        fused["w_delta"], fused["dt_bias2"],
        fused["w_bexp"], fused["w_cexp"],
        fused["A2"], fused["D2"],
        fused["outproj_w"], fused["normf_w"],
    ]

    kernel = functools.partial(_bsm_kernel, T=T, Bb=Bb, pad_rows=pad_rows,
                               chunks=chunks)
    out = pl.pallas_call(
        kernel,
        out_shape=jax.ShapeDtypeStruct((G, M, D), jnp.float32),
        grid=(G,),
        in_specs=[pl.BlockSpec((None, M, D), lambda g: (g, 0, 0))]
                 + [pl.BlockSpec(a.shape, lambda g: (0, 0)) for a in args],
        out_specs=pl.BlockSpec((None, M, D), lambda g: (g, 0, 0)),
        scratch_shapes=[
            pltpu.VMEM((pad_rows + M, E), jnp.float32),          # conv in, fwd
            pltpu.VMEM((pad_rows + M, E), jnp.float32),          # conv in, flipped
            pltpu.VMEM((Tc_max, N + 1, Bb, twoE), jnp.float32),  # dA chunk slab
            pltpu.VMEM((Tc_max, N + 1, Bb, twoE), jnp.float32),  # dB*u chunk slab
            pltpu.VMEM((Tc_max, N + 1, Bb, twoE), jnp.float32),  # C chunk slab
            pltpu.VMEM((M, E), jnp.float32),                     # y forward
            pltpu.VMEM((M, E), jnp.float32),                     # y backward (un-flipped)
        ],
        compiler_params=pltpu.CompilerParams(
            dimension_semantics=("parallel",),
            vmem_limit_bytes=64 * 1024 * 1024),
    )(hg, *args)

    out = out.reshape(G, T, Bb, D).transpose(0, 2, 1, 3).reshape(B_pad, T, D)
    return out[:B]


def init_params(key):
    """Deterministic synthetic init matching BSM.__init__ parameter shapes."""
    D, E, N, R, W = D_MODEL, D_INNER, D_STATE, DT_RANK, D_CONV
    ks = jax.random.split(key, 12)
    dt_init_std = R ** (-0.5)

    def dt_bias(k):
        dt = jnp.exp(jax.random.uniform(k, (E,), dtype=jnp.float32)
                     * (math.log(0.1) - math.log(0.001)) + math.log(0.001))
        dt = jnp.maximum(dt, 1e-4)
        inv_dt = dt + jnp.log(-jnp.expm1(-dt))            # inverse softplus
        return inv_dt.reshape(1, E)

    # A_log[d, n] = log(n+1)  ->  A = -exp(A_log); kernel wants A^T (N, E)
    A_log = jnp.log(jnp.broadcast_to(
        jnp.arange(1, N + 1, dtype=jnp.float32), (E, N)))
    A_NE = (-jnp.exp(A_log)).T.astype(jnp.float32)

    params = {
        "norm_w": jnp.ones((1, D), jnp.float32),          # LayerNorm weight
        "norm_b": jnp.zeros((1, D), jnp.float32),         # LayerNorm bias
        # in_proj.weight: (2E, D) -> pass (D, 2E)
        "in_proj_wT": (jax.random.normal(ks[0], (2 * E, D), jnp.float32) * 0.02).T,
        # conv1d.weight: (E, 1, W) -> pass (W, E)
        "conv_w_f": (jax.random.normal(ks[1], (E, W), jnp.float32) * 0.3).T,
        "conv_b_f": (jax.random.normal(ks[2], (E,), jnp.float32) * 0.02).reshape(1, E),
        # x_proj.weight: (R+2N, E) -> pass (E, R+2N)
        "xproj_wT_f": (jax.random.normal(ks[3], (R + 2 * N, E), jnp.float32) * 0.05).T,
        # dt_proj.weight: (E, R) ~ U(-std, std) -> pass (R, E)
        "dtproj_wT_f": jax.random.uniform(ks[4], (E, R), jnp.float32,
                                          -dt_init_std, dt_init_std).T,
        "dt_bias_f": dt_bias(ks[5]),
        "A_f": A_NE,
        "D_f": jnp.ones((1, E), jnp.float32),
        "conv_w_b": (jax.random.normal(ks[6], (E, W), jnp.float32) * 0.3).T,
        "conv_b_b": (jax.random.normal(ks[7], (E,), jnp.float32) * 0.02).reshape(1, E),
        "xproj_wT_b": (jax.random.normal(ks[8], (R + 2 * N, E), jnp.float32) * 0.05).T,
        "dtproj_wT_b": jax.random.uniform(ks[9], (E, R), jnp.float32,
                                          -dt_init_std, dt_init_std).T,
        "dt_bias_b": dt_bias(ks[10]),
        "A_b": A_NE,
        "D_b": jnp.ones((1, E), jnp.float32),
        # out_proj.weight: (D, E) -> pass (E, D)
        "out_proj_wT": (jax.random.normal(ks[11], (D, E), jnp.float32) * 0.02).T,
        "normf_w": jnp.ones((1, D), jnp.float32),         # RMSNorm weight
    }
    return params


if __name__ == "__main__":
    B, T = 2, 8
    key = jax.random.PRNGKey(0)
    k_h, k_p = jax.random.split(key)
    hidden_states = jax.random.normal(k_h, (B, T, D_MODEL), dtype=jnp.float32)
    params = init_params(k_p)

    out = bsm_forward(hidden_states, params)
    out = jax.block_until_ready(out)

    assert out.shape == (B, T, D_MODEL), out.shape
    assert bool(jnp.all(jnp.isfinite(out)))
    print("KERNEL_OK")
</pallas_src>

<mosaic_0001>
module attributes {stable_mosaic.version = 11 : i64} {
  func.func @_bsm_kernel(%arg0: i32, %arg1: memref<1x64x32xf32, #tpu.memory_space<vmem>>, %arg2: memref<32x128xbf16, #tpu.memory_space<vmem>>, %arg3: memref<1x128xf32, #tpu.memory_space<vmem>>, %arg4: memref<4x128xf32, #tpu.memory_space<vmem>>, %arg5: memref<1x128xf32, #tpu.memory_space<vmem>>, %arg6: memref<128x128xf32, #tpu.memory_space<vmem>>, %arg7: memref<1x128xf32, #tpu.memory_space<vmem>>, %arg8: memref<128x2048xbf16, #tpu.memory_space<vmem>>, %arg9: memref<128x2048xbf16, #tpu.memory_space<vmem>>, %arg10: memref<16x128xf32, #tpu.memory_space<vmem>>, %arg11: memref<1x128xf32, #tpu.memory_space<vmem>>, %arg12: memref<64x32xbf16, #tpu.memory_space<vmem>>, %arg13: memref<1x32xf32, #tpu.memory_space<vmem>>, %arg14: memref<1x64x32xf32, #tpu.memory_space<vmem>>, %arg15: memref<88x64xf32, #tpu.memory_space<vmem>>, %arg16: memref<88x64xf32, #tpu.memory_space<vmem>>, %arg17: memref<8x17x8x128xf32, #tpu.memory_space<vmem>>, %arg18: memref<8x17x8x128xf32, #tpu.memory_space<vmem>>, %arg19: memref<8x17x8x128xf32, #tpu.memory_space<vmem>>, %arg20: memref<64x64xf32, #tpu.memory_space<vmem>>, %arg21: memref<64x64xf32, #tpu.memory_space<vmem>>) attributes {dimension_semantics = [#tpu.dimension_semantics<parallel>], iteration_bounds = array<i64: 1>, scalar_prefetch = 0 : i64, scratch_operands = 7 : i64, tpu.core_type = #tpu.core_type<tc>, window_params = [{transform_indices = @transform_0, window_bounds = array<i64: 1, 64, 32>}, {pipeline_mode = #tpu.pipeline_mode<synchronous>, transform_indices = @transform_1, window_bounds = array<i64: 32, 128>}, {pipeline_mode = #tpu.pipeline_mode<synchronous>, transform_indices = @transform_2, window_bounds = array<i64: 1, 128>}, {pipeline_mode = #tpu.pipeline_mode<synchronous>, transform_indices = @transform_3, window_bounds = array<i64: 4, 128>}, {pipeline_mode = #tpu.pipeline_mode<synchronous>, transform_indices = @transform_4, window_bounds = array<i64: 1, 128>}, {pipeline_mode = #tpu.pipeline_mode<synchronous>, transform_indices = @transform_5, window_bounds = array<i64: 128, 128>}, {pipeline_mode = #tpu.pipeline_mode<synchronous>, transform_indices = @transform_6, window_bounds = array<i64: 1, 128>}, {pipeline_mode = #tpu.pipeline_mode<synchronous>, transform_indices = @transform_7, window_bounds = array<i64: 128, 2048>}, {pipeline_mode = #tpu.pipeline_mode<synchronous>, transform_indices = @transform_8, window_bounds = array<i64: 128, 2048>}, {pipeline_mode = #tpu.pipeline_mode<synchronous>, transform_indices = @transform_9, window_bounds = array<i64: 16, 128>}, {pipeline_mode = #tpu.pipeline_mode<synchronous>, transform_indices = @transform_10, window_bounds = array<i64: 1, 128>}, {pipeline_mode = #tpu.pipeline_mode<synchronous>, transform_indices = @transform_11, window_bounds = array<i64: 64, 32>}, {pipeline_mode = #tpu.pipeline_mode<synchronous>, transform_indices = @transform_12, window_bounds = array<i64: 1, 32>}, {transform_indices = @transform_13, window_bounds = array<i64: 1, 64, 32>}]} {
    %c0 = arith.constant 0 : index
    %c0_0 = arith.constant 0 : index
    %c0_1 = arith.constant 0 : index
    %0 = vector.load %arg1[%c0, %c0_0, %c0_1] : memref<1x64x32xf32, #tpu.memory_space<vmem>>, vector<1x64x32xf32>
    %1 = vector.shape_cast %0 : vector<1x64x32xf32> to vector<64x32xf32>
    %cst = arith.constant dense<0.000000e+00> : vector<64xf32>
    %2 = vector.multi_reduction <add>, %1, %cst [1] : vector<64x32xf32> to vector<64xf32>
    %3 = vector.shape_cast %2 : vector<64xf32> to vector<64x1xf32>
    %cst_2 = arith.constant 3.200000e+01 : f32
    %4 = vector.broadcast %cst_2 : f32 to vector<64x1xf32>
    %5 = arith.divf %3, %4 : vector<64x1xf32>
    %6 = vector.broadcast %5 : vector<64x1xf32> to vector<64x32xf32>
    %7 = arith.subf %1, %6 : vector<64x32xf32>
    %8 = arith.mulf %7, %7 : vector<64x32xf32>
    %cst_3 = arith.constant dense<0.000000e+00> : vector<64xf32>
    %9 = vector.multi_reduction <add>, %8, %cst_3 [1] : vector<64x32xf32> to vector<64xf32>
    %10 = vector.shape_cast %9 : vector<64xf32> to vector<64x1xf32>
    %cst_4 = arith.constant 3.200000e+01 : f32
    %11 = vector.broadcast %cst_4 : f32 to vector<64x1xf32>
    %12 = arith.divf %10, %11 : vector<64x1xf32>
    %13 = vector.broadcast %5 : vector<64x1xf32> to vector<64x32xf32>
    %14 = arith.subf %1, %13 : vector<64x32xf32>
    %cst_5 = arith.constant 9.99999974E-6 : f32
    %15 = vector.broadcast %cst_5 : f32 to vector<64x1xf32>
    %16 = arith.addf %12, %15 : vector<64x1xf32>
    %17 = math.rsqrt %16 : vector<64x1xf32>
    %18 = vector.broadcast %17 : vector<64x1xf32> to vector<64x32xf32>
    %19 = arith.mulf %14, %18 : vector<64x32xf32>
    %20 = arith.truncf %19 : vector<64x32xf32> to vector<64x32xbf16>
    %c0_6 = arith.constant 0 : index
    %c0_7 = arith.constant 0 : index
    %21 = vector.load %arg2[%c0_6, %c0_7] : memref<32x128xbf16, #tpu.memory_space<vmem>>, vector<32x128xbf16>
    %cst_8 = arith.constant dense<0.000000e+00> : vector<64x128xf32>
    %22 = tpu.matmul %20, %21, %cst_8 {dimension_numbers = #tpu.dot_dimension_numbers<[1], [0], [0], [1], [0, 0, 1, 1], [], []>} : vector<64x32xbf16>, vector<32x128xbf16>, vector<64x128xf32> -> vector<64x128xf32>
    %c0_9 = arith.constant 0 : index
    %c0_10 = arith.constant 0 : index
    %23 = vector.load %arg3[%c0_9, %c0_10] : memref<1x128xf32, #tpu.memory_space<vmem>>, vector<1x128xf32>
    %24 = vector.broadcast %23 : vector<1x128xf32> to vector<64x128xf32>
    %25 = arith.addf %22, %24 : vector<64x128xf32>
    %26 = vector.extract_strided_slice %25 {offsets = [0, 0], sizes = [64, 64], strides = [1, 1]} : vector<64x128xf32> to vector<64x64xf32>
    %27 = vector.extract_strided_slice %25 {offsets = [0, 64], sizes = [64, 64], strides = [1, 1]} : vector<64x128xf32> to vector<64x64xf32>
    %cst_11 = arith.constant 0.000000e+00 : f32
    %28 = vector.broadcast %cst_11 : f32 to vector<24x64xf32>
    %c0_12 = arith.constant 0 : index
    %c0_13 = arith.constant 0 : index
    %29 = vector.load %arg15[%c0_12, %c0_13] : memref<88x64xf32, #tpu.memory_space<vmem>>, vector<24x64xf32>
    tpu.vector_store %arg15[%c0_12, %c0_13], %28 {strides = array<i32>} : memref<88x64xf32, #tpu.memory_space<vmem>>, vector<24x64xf32>,
    %cst_14 = arith.constant 0.000000e+00 : f32
    %30 = vector.broadcast %cst_14 : f32 to vector<24x64xf32>
    %c0_15 = arith.constant 0 : index
    %c0_16 = arith.constant 0 : index
    %31 = vector.load %arg16[%c0_15, %c0_16] : memref<88x64xf32, #tpu.memory_space<vmem>>, vector<24x64xf32>
    tpu.vector_store %arg16[%c0_15, %c0_16], %30 {strides = array<i32>} : memref<88x64xf32, #tpu.memory_space<vmem>>, vector<24x64xf32>,
    %c24 = arith.constant 24 : index
    %c0_17 = arith.constant 0 : index
    %32 = vector.load %arg15[%c24, %c0_17] : memref<88x64xf32, #tpu.memory_space<vmem>>, vector<64x64xf32>
    tpu.vector_store %arg15[%c24, %c0_17], %26 {strides = array<i32>} : memref<88x64xf32, #tpu.memory_space<vmem>>, vector<64x64xf32>,
    %c0_i32 = arith.constant 0 : i32
    %c8_i32 = arith.constant 8 : i32
    %33 = arith.muli %c0_i32, %c8_i32 : i32
    %c24_i32 = arith.constant 24 : i32
    %34 = arith.addi %c24_i32, %33 : i32
    %35 = tpu.assume_multiple %34, 8 : i32
    %c7_i32 = arith.constant 7 : i32
    %36 = arith.subi %c7_i32, %c0_i32 : i32
    %c8_i32_18 = arith.constant 8 : i32
    %37 = arith.muli %36, %c8_i32_18 : i32
    %c24_i32_19 = arith.constant 24 : i32
    %38 = arith.addi %c24_i32_19, %37 : i32
    %39 = tpu.assume_multiple %38, 8 : i32
    %40 = arith.index_cast %35 : i32 to index
    %c0_20 = arith.constant 0 : index
    %41 = vector.load %arg15[%40, %c0_20] : memref<88x64xf32, #tpu.memory_space<vmem>>, vector<8x64xf32>
    %42 = arith.index_cast %39 : i32 to index
    %c0_21 = arith.constant 0 : index
    %43 = vector.load %arg16[%42, %c0_21] : memref<88x64xf32, #tpu.memory_space<vmem>>, vector<8x64xf32>
    tpu.vector_store %arg16[%42, %c0_21], %41 {strides = array<i32>} : memref<88x64xf32, #tpu.memory_space<vmem>>, vector<8x64xf32>,
    %c1_i32 = arith.constant 1 : i32
    %c8_i32_22 = arith.constant 8 : i32
    %44 = arith.muli %c1_i32, %c8_i32_22 : i32
    %c24_i32_23 = arith.constant 24 : i32
    %45 = arith.addi %c24_i32_23, %44 : i32
    %46 = tpu.assume_multiple %45, 8 : i32
    %c7_i32_24 = arith.constant 7 : i32
    %47 = arith.subi %c7_i32_24, %c1_i32 : i32
    %c8_i32_25 = arith.constant 8 : i32
    %48 = arith.muli %47, %c8_i32_25 : i32
    %c24_i32_26 = arith.constant 24 : i32
    %49 = arith.addi %c24_i32_26, %48 : i32
    %50 = tpu.assume_multiple %49, 8 : i32
    %51 = arith.index_cast %46 : i32 to index
    %c0_27 = arith.constant 0 : index
    %52 = vector.load %arg15[%51, %c0_27] : memref<88x64xf32, #tpu.memory_space<vmem>>, vector<8x64xf32>
    %53 = arith.index_cast %50 : i32 to index
    %c0_28 = arith.constant 0 : index
    %54 = vector.load %arg16[%53, %c0_28] : memref<88x64xf32, #tpu.memory_space<vmem>>, vector<8x64xf32>
    tpu.vector_store %arg16[%53, %c0_28], %52 {strides = array<i32>} : memref<88x64xf32, #tpu.memory_space<vmem>>, vector<8x64xf32>,
    %c2_i32 = arith.constant 2 : i32
    %c8_i32_29 = arith.constant 8 : i32
    %55 = arith.muli %c2_i32, %c8_i32_29 : i32
    %c24_i32_30 = arith.constant 24 : i32
    %56 = arith.addi %c24_i32_30, %55 : i32
    %57 = tpu.assume_multiple %56, 8 : i32
    %c7_i32_31 = arith.constant 7 : i32
    %58 = arith.subi %c7_i32_31, %c2_i32 : i32
    %c8_i32_32 = arith.constant 8 : i32
    %59 = arith.muli %58, %c8_i32_32 : i32
    %c24_i32_33 = arith.constant 24 : i32
    %60 = arith.addi %c24_i32_33, %59 : i32
    %61 = tpu.assume_multiple %60, 8 : i32
    %62 = arith.index_cast %57 : i32 to index
    %c0_34 = arith.constant 0 : index
    %63 = vector.load %arg15[%62, %c0_34] : memref<88x64xf32, #tpu.memory_space<vmem>>, vector<8x64xf32>
    %64 = arith.index_cast %61 : i32 to index
    %c0_35 = arith.constant 0 : index
    %65 = vector.load %arg16[%64, %c0_35] : memref<88x64xf32, #tpu.memory_space<vmem>>, vector<8x64xf32>
    tpu.vector_store %arg16[%64, %c0_35], %63 {strides = array<i32>} : memref<88x64xf32, #tpu.memory_space<vmem>>, vector<8x64xf32>,
    %c3_i32 = arith.constant 3 : i32
    %c8_i32_36 = arith.constant 8 : i32
    %66 = arith.muli %c3_i32, %c8_i32_36 : i32
    %c24_i32_37 = arith.constant 24 : i32
    %67 = arith.addi %c24_i32_37, %66 : i32
    %68 = tpu.assume_multiple %67, 8 : i32
    %c7_i32_38 = arith.constant 7 : i32
    %69 = arith.subi %c7_i32_38, %c3_i32 : i32
    %c8_i32_39 = arith.constant 8 : i32
    %70 = arith.muli %69, %c8_i32_39 : i32
    %c24_i32_40 = arith.constant 24 : i32
    %71 = arith.addi %c24_i32_40, %70 : i32
    %72 = tpu.assume_multiple %71, 8 : i32
    %73 = arith.index_cast %68 : i32 to index
    %c0_41 = arith.constant 0 : index
    %74 = vector.load %arg15[%73, %c0_41] : memref<88x64xf32, #tpu.memory_space<vmem>>, vector<8x64xf32>
    %75 = arith.index_cast %72 : i32 to index
    %c0_42 = arith.constant 0 : index
    %76 = vector.load %arg16[%75, %c0_42] : memref<88x64xf32, #tpu.memory_space<vmem>>, vector<8x64xf32>
    tpu.vector_store %arg16[%75, %c0_42], %74 {strides = array<i32>} : memref<88x64xf32, #tpu.memory_space<vmem>>, vector<8x64xf32>,
    %c4_i32 = arith.constant 4 : i32
    %c8_i32_43 = arith.constant 8 : i32
    %77 = arith.muli %c4_i32, %c8_i32_43 : i32
    %c24_i32_44 = arith.constant 24 : i32
    %78 = arith.addi %c24_i32_44, %77 : i32
    %79 = tpu.assume_multiple %78, 8 : i32
    %c7_i32_45 = arith.constant 7 : i32
    %80 = arith.subi %c7_i32_45, %c4_i32 : i32
    %c8_i32_46 = arith.constant 8 : i32
    %81 = arith.muli %80, %c8_i32_46 : i32
    %c24_i32_47 = arith.constant 24 : i32
    %82 = arith.addi %c24_i32_47, %81 : i32
    %83 = tpu.assume_multiple %82, 8 : i32
    %84 = arith.index_cast %79 : i32 to index
    %c0_48 = arith.constant 0 : index
    %85 = vector.load %arg15[%84, %c0_48] : memref<88x64xf32, #tpu.memory_space<vmem>>, vector<8x64xf32>
    %86 = arith.index_cast %83 : i32 to index
    %c0_49 = arith.constant 0 : index
    %87 = vector.load %arg16[%86, %c0_49] : memref<88x64xf32, #tpu.memory_space<vmem>>, vector<8x64xf32>
    tpu.vector_store %arg16[%86, %c0_49], %85 {strides = array<i32>} : memref<88x64xf32, #tpu.memory_space<vmem>>, vector<8x64xf32>,
    %c5_i32 = arith.constant 5 : i32
    %c8_i32_50 = arith.constant 8 : i32
    %88 = arith.muli %c5_i32, %c8_i32_50 : i32
    %c24_i32_51 = arith.constant 24 : i32
    %89 = arith.addi %c24_i32_51, %88 : i32
    %90 = tpu.assume_multiple %89, 8 : i32
    %c7_i32_52 = arith.constant 7 : i32
    %91 = arith.subi %c7_i32_52, %c5_i32 : i32
    %c8_i32_53 = arith.constant 8 : i32
    %92 = arith.muli %91, %c8_i32_53 : i32
    %c24_i32_54 = arith.constant 24 : i32
    %93 = arith.addi %c24_i32_54, %92 : i32
    %94 = tpu.assume_multiple %93, 8 : i32
    %95 = arith.index_cast %90 : i32 to index
    %c0_55 = arith.constant 0 : index
    %96 = vector.load %arg15[%95, %c0_55] : memref<88x64xf32, #tpu.memory_space<vmem>>, vector<8x64xf32>
    %97 = arith.index_cast %94 : i32 to index
    %c0_56 = arith.constant 0 : index
    %98 = vector.load %arg16[%97, %c0_56] : memref<88x64xf32, #tpu.memory_space<vmem>>, vector<8x64xf32>
    tpu.vector_store %arg16[%97, %c0_56], %96 {strides = array<i32>} : memref<88x64xf32, #tpu.memory_space<vmem>>, vector<8x64xf32>,
    %c6_i32 = arith.constant 6 : i32
    %c8_i32_57 = arith.constant 8 : i32
    %99 = arith.muli %c6_i32, %c8_i32_57 : i32
    %c24_i32_58 = arith.constant 24 : i32
    %100 = arith.addi %c24_i32_58, %99 : i32
    %101 = tpu.assume_multiple %100, 8 : i32
    %c7_i32_59 = arith.constant 7 : i32
    %102 = arith.subi %c7_i32_59, %c6_i32 : i32
    %c8_i32_60 = arith.constant 8 : i32
    %103 = arith.muli %102, %c8_i32_60 : i32
    %c24_i32_61 = arith.constant 24 : i32
    %104 = arith.addi %c24_i32_61, %103 : i32
    %105 = tpu.assume_multiple %104, 8 : i32
    %106 = arith.index_cast %101 : i32 to index
    %c0_62 = arith.constant 0 : index
    %107 = vector.load %arg15[%106, %c0_62] : memref<88x64xf32, #tpu.memory_space<vmem>>, vector<8x64xf32>
    %108 = arith.index_cast %105 : i32 to index
    %c0_63 = arith.constant 0 : index
    %109 = vector.load %arg16[%108, %c0_63] : memref<88x64xf32, #tpu.memory_space<vmem>>, vector<8x64xf32>
    tpu.vector_store %arg16[%108, %c0_63], %107 {strides = array<i32>} : memref<88x64xf32, #tpu.memory_space<vmem>>, vector<8x64xf32>,
    %c7_i32_64 = arith.constant 7 : i32
    %c8_i32_65 = arith.constant 8 : i32
    %110 = arith.muli %c7_i32_64, %c8_i32_65 : i32
    %c24_i32_66 = arith.constant 24 : i32
    %111 = arith.addi %c24_i32_66, %110 : i32
    %112 = tpu.assume_multiple %111, 8 : i32
    %c7_i32_67 = arith.constant 7 : i32
    %113 = arith.subi %c7_i32_67, %c7_i32_64 : i32
    %c8_i32_68 = arith.constant 8 : i32
    %114 = arith.muli %113, %c8_i32_68 : i32
    %c24_i32_69 = arith.constant 24 : i32
    %115 = arith.addi %c24_i32_69, %114 : i32
    %116 = tpu.assume_multiple %115, 8 : i32
    %117 = arith.index_cast %112 : i32 to index
    %c0_70 = arith.constant 0 : index
    %118 = vector.load %arg15[%117, %c0_70] : memref<88x64xf32, #tpu.memory_space<vmem>>, vector<8x64xf32>
    %119 = arith.index_cast %116 : i32 to index
    %c0_71 = arith.constant 0 : index
    %120 = vector.load %arg16[%119, %c0_71] : memref<88x64xf32, #tpu.memory_space<vmem>>, vector<8x64xf32>
    tpu.vector_store %arg16[%119, %c0_71], %118 {strides = array<i32>} : memref<88x64xf32, #tpu.memory_space<vmem>>, vector<8x64xf32>,
    %c8_i32_72 = arith.constant 8 : i32
    %c0_73 = arith.constant 0 : index
    %c0_74 = arith.constant 0 : index
    %121 = vector.load %arg4[%c0_73, %c0_74] : memref<4x128xf32, #tpu.memory_space<vmem>>, vector<4x128xf32>
    %c0_75 = arith.constant 0 : index
    %c0_76 = arith.constant 0 : index
    %122 = vector.load %arg5[%c0_75, %c0_76] : memref<1x128xf32, #tpu.memory_space<vmem>>, vector<1x128xf32>
    %123 = vector.extract_strided_slice %122 {offsets = [0, 0], sizes = [1, 64], strides = [1, 1]} : vector<1x128xf32> to vector<1x64xf32>
    %124 = vector.shape_cast %123 : vector<1x64xf32> to vector<1x64xf32>
    %125 = vector.broadcast %124 : vector<1x64xf32> to vector<64x64xf32>
    %126 = vector.extract_strided_slice %122 {offsets = [0, 64], sizes = [1, 64], strides = [1, 1]} : vector<1x128xf32> to vector<1x64xf32>
    %127 = vector.shape_cast %126 : vector<1x64xf32> to vector<1x64xf32>
    %128 = vector.broadcast %127 : vector<1x64xf32> to vector<64x64xf32>
    %129 = vector.extract_strided_slice %121 {offsets = [0, 0], sizes = [1, 64], strides = [1, 1]} : vector<4x128xf32> to vector<1x64xf32>
    %c0_77 = arith.constant 0 : index
    %c0_78 = arith.constant 0 : index
    %130 = vector.load %arg15[%c0_77, %c0_78] : memref<88x64xf32, #tpu.memory_space<vmem>>, vector<64x64xf32>
    %131 = vector.broadcast %129 : vector<1x64xf32> to vector<64x64xf32>
    %132 = arith.mulf %131, %130 : vector<64x64xf32>
    %133 = arith.addf %125, %132 : vector<64x64xf32>
    %134 = vector.extract_strided_slice %121 {offsets = [0, 64], sizes = [1, 64], strides = [1, 1]} : vector<4x128xf32> to vector<1x64xf32>
    %c0_79 = arith.constant 0 : index
    %c0_80 = arith.constant 0 : index
    %135 = vector.load %arg16[%c0_79, %c0_80] : memref<88x64xf32, #tpu.memory_space<vmem>>, vector<64x64xf32>
    %136 = vector.broadcast %134 : vector<1x64xf32> to vector<64x64xf32>
    %137 = arith.mulf %136, %135 : vector<64x64xf32>
    %138 = arith.addf %128, %137 : vector<64x64xf32>
    %139 = vector.extract_strided_slice %121 {offsets = [1, 0], sizes = [1, 64], strides = [1, 1]} : vector<4x128xf32> to vector<1x64xf32>
    %c8 = arith.constant 8 : index
    %c0_81 = arith.constant 0 : index
    %140 = vector.load %arg15[%c8, %c0_81] : memref<88x64xf32, #tpu.memory_space<vmem>>, vector<64x64xf32>
    %141 = vector.broadcast %139 : vector<1x64xf32> to vector<64x64xf32>
    %142 = arith.mulf %141, %140 : vector<64x64xf32>
    %143 = arith.addf %133, %142 : vector<64x64xf32>
    %144 = vector.extract_strided_slice %121 {offsets = [1, 64], sizes = [1, 64], strides = [1, 1]} : vector<4x128xf32> to vector<1x64xf32>
    %c8_82 = arith.constant 8 : index
    %c0_83 = arith.constant 0 : index
    %145 = vector.load %arg16[%c8_82, %c0_83] : memref<88x64xf32, #tpu.memory_space<vmem>>, vector<64x64xf32>
    %146 = vector.broadcast %144 : vector<1x64xf32> to vector<64x64xf32>
    %147 = arith.mulf %146, %145 : vector<64x64xf32>
    %148 = arith.addf %138, %147 : vector<64x64xf32>
    %149 = vector.extract_strided_slice %121 {offsets = [2, 0], sizes = [1, 64], strides = [1, 1]} : vector<4x128xf32> to vector<1x64xf32>
    %c16 = arith.constant 16 : index
    %c0_84 = arith.constant 0 : index
    %150 = vector.load %arg15[%c16, %c0_84] : memref<88x64xf32, #tpu.memory_space<vmem>>, vector<64x64xf32>
    %151 = vector.broadcast %149 : vector<1x64xf32> to vector<64x64xf32>
    %152 = arith.mulf %151, %150 : vector<64x64xf32>
    %153 = arith.addf %143, %152 : vector<64x64xf32>
    %154 = vector.extract_strided_slice %121 {offsets = [2, 64], sizes = [1, 64], strides = [1, 1]} : vector<4x128xf32> to vector<1x64xf32>
    %c16_85 = arith.constant 16 : index
    %c0_86 = arith.constant 0 : index
    %155 = vector.load %arg16[%c16_85, %c0_86] : memref<88x64xf32, #tpu.memory_space<vmem>>, vector<64x64xf32>
    %156 = vector.broadcast %154 : vector<1x64xf32> to vector<64x64xf32>
    %157 = arith.mulf %156, %155 : vector<64x64xf32>
    %158 = arith.addf %148, %157 : vector<64x64xf32>
    %159 = vector.extract_strided_slice %121 {offsets = [3, 0], sizes = [1, 64], strides = [1, 1]} : vector<4x128xf32> to vector<1x64xf32>
    %c24_87 = arith.constant 24 : index
    %c0_88 = arith.constant 0 : index
    %160 = vector.load %arg15[%c24_87, %c0_88] : memref<88x64xf32, #tpu.memory_space<vmem>>, vector<64x64xf32>
    %161 = vector.broadcast %159 : vector<1x64xf32> to vector<64x64xf32>
    %162 = arith.mulf %161, %160 : vector<64x64xf32>
    %163 = arith.addf %153, %162 : vector<64x64xf32>
    %164 = vector.extract_strided_slice %121 {offsets = [3, 64], sizes = [1, 64], strides = [1, 1]} : vector<4x128xf32> to vector<1x64xf32>
    %c24_89 = arith.constant 24 : index
    %c0_90 = arith.constant 0 : index
    %165 = vector.load %arg16[%c24_89, %c0_90] : memref<88x64xf32, #tpu.memory_space<vmem>>, vector<64x64xf32>
    %166 = vector.broadcast %164 : vector<1x64xf32> to vector<64x64xf32>
    %167 = arith.mulf %166, %165 : vector<64x64xf32>
    %168 = arith.addf %158, %167 : vector<64x64xf32>
    %169 = tpu.concatenate %163, %168 in 1 : vector<64x64xf32>, vector<64x64xf32> -> vector<64x128xf32>
    %cst_91 = arith.constant 5.000000e-01 : f32
    %170 = vector.broadcast %cst_91 : f32 to vector<64x128xf32>
    %171 = arith.mulf %170, %169 : vector<64x128xf32>
    %172 = math.tanh %171 : vector<64x128xf32>
    %cst_92 = arith.constant 1.000000e+00 : f32
    %173 = vector.broadcast %cst_92 : f32 to vector<64x128xf32>
    %174 = arith.addf %172, %173 : vector<64x128xf32>
    %cst_93 = arith.constant 5.000000e-01 : f32
    %175 = vector.broadcast %cst_93 : f32 to vector<64x128xf32>
    %176 = arith.mulf %175, %174 : vector<64x128xf32>
    %177 = arith.mulf %169, %176 : vector<64x128xf32>
    %c0_94 = arith.constant 0 : index
    %c0_95 = arith.constant 0 : index
    %178 = vector.load %arg6[%c0_94, %c0_95] : memref<128x128xf32, #tpu.memory_space<vmem>>, vector<128x128xf32>
    %cst_96 = arith.constant dense<0.000000e+00> : vector<64x128xf32>
    %179 = tpu.matmul %177, %178, %cst_96 {dimension_numbers = #tpu.dot_dimension_numbers<[1], [0], [0], [1], [0, 0, 1, 1], [], []>} : vector<64x128xf32>, vector<128x128xf32>, vector<64x128xf32> -> vector<64x128xf32>
    %c0_97 = arith.constant 0 : index
    %c0_98 = arith.constant 0 : index
    %180 = vector.load %arg7[%c0_97, %c0_98] : memref<1x128xf32, #tpu.memory_space<vmem>>, vector<1x128xf32>
    %181 = vector.broadcast %180 : vector<1x128xf32> to vector<64x128xf32>
    %182 = arith.addf %179, %181 : vector<64x128xf32>
    %cst_99 = arith.constant 0.000000e+00 : f32
    %183 = vector.broadcast %cst_99 : f32 to vector<64x128xf32>
    %184 = arith.maximumf %182, %183 : vector<64x128xf32>
    %185 = math.absf %182 : vector<64x128xf32>
    %cst_100 = arith.constant 0.000000e+00 : f32
    %186 = vector.broadcast %cst_100 : f32 to vector<64x128xf32>
    %187 = arith.subf %186, %185 : vector<64x128xf32>
    %188 = math.exp %187 : vector<64x128xf32>
    %189 = math.log1p %188 : vector<64x128xf32>
    %190 = arith.addf %184, %189 : vector<64x128xf32>
    %191 = arith.mulf %190, %177 : vector<64x128xf32>
    %192 = arith.truncf %177 : vector<64x128xf32> to vector<64x128xbf16>
    %cst_101 = arith.constant 0.000000e+00 : f32
    %193 = vector.broadcast %cst_101 : f32 to vector<8x8x128xf32>
    %c0_102 = arith.constant 0 : index
    %c16_103 = arith.constant 16 : index
    %c0_104 = arith.constant 0 : index
    %c0_105 = arith.constant 0 : index
    %194 = vector.load %arg17[%c0_102, %c16_103, %c0_104, %c0_105] : memref<8x17x8x128xf32, #tpu.memory_space<vmem>>, vector<8x1x8x128xf32>
    %195 = vector.shape_cast %194 : vector<8x1x8x128xf32> to vector<8x8x128xf32>
    %196 = vector.shape_cast %193 : vector<8x8x128xf32> to vector<8x1x8x128xf32>
    tpu.vector_store %arg17[%c0_102, %c16_103, %c0_104, %c0_105], %196 {strides = array<i32>} : memref<8x17x8x128xf32, #tpu.memory_space<vmem>>, vector<8x1x8x128xf32>,
    %c0_106 = arith.constant 0 : index
    %c0_107 = arith.constant 0 : index
    %197 = vector.load %arg11[%c0_106, %c0_107] : memref<1x128xf32, #tpu.memory_space<vmem>>, vector<1x128xf32>
    %198 = vector.shape_cast %197 : vector<1x128xf32> to vector<1x1x128xf32>
    %199 = vector.broadcast %198 : vector<1x1x128xf32> to vector<8x8x128xf32>
    %c0_108 = arith.constant 0 : index
    %c16_109 = arith.constant 16 : index
    %c0_110 = arith.constant 0 : index
    %c0_111 = arith.constant 0 : index
    %200 = vector.load %arg19[%c0_108, %c16_109, %c0_110, %c0_111] : memref<8x17x8x128xf32, #tpu.memory_space<vmem>>, vector<8x1x8x128xf32>
    %201 = vector.shape_cast %200 : vector<8x1x8x128xf32> to vector<8x8x128xf32>
    %202 = vector.shape_cast %199 : vector<8x8x128xf32> to vector<8x1x8x128xf32>
    tpu.vector_store %arg19[%c0_108, %c16_109, %c0_110, %c0_111], %202 {strides = array<i32>} : memref<8x17x8x128xf32, #tpu.memory_space<vmem>>, vector<8x1x8x128xf32>,
    %c0_112 = arith.constant 0 : index
    %c0_113 = arith.constant 0 : index
    %203 = vector.load %arg10[%c0_112, %c0_113] : memref<16x128xf32, #tpu.memory_space<vmem>>, vector<16x128xf32>
    %c0_114 = arith.constant 0 : index
    %c0_115 = arith.constant 0 : index
    %204 = vector.load %arg8[%c0_114, %c0_115] : memref<128x2048xbf16, #tpu.memory_space<vmem>>, vector<128x2048xbf16>
    %c0_116 = arith.constant 0 : index
    %c0_117 = arith.constant 0 : index
    %205 = vector.load %arg9[%c0_116, %c0_117] : memref<128x2048xbf16, #tpu.memory_space<vmem>>, vector<128x2048xbf16>
    %cst_118 = arith.constant 0.000000e+00 : f32
    %206 = vector.broadcast %cst_118 : f32 to vector<17x8x128xf32>
    %cst_119 = arith.constant dense<0.000000e+00> : vector<64x2048xf32>
    %207 = tpu.matmul %192, %204, %cst_119 {dimension_numbers = #tpu.dot_dimension_numbers<[1], [0], [0], [1], [0, 0, 1, 1], [], []>} : vector<64x128xbf16>, vector<128x2048xbf16>, vector<64x2048xf32> -> vector<64x2048xf32>
    %cst_120 = arith.constant dense<0.000000e+00> : vector<64x2048xf32>
    %208 = tpu.matmul %192, %205, %cst_120 {dimension_numbers = #tpu.dot_dimension_numbers<[1], [0], [0], [1], [0, 0, 1, 1], [], []>} : vector<64x128xbf16>, vector<128x2048xbf16>, vector<64x2048xf32> -> vector<64x2048xf32>
    %209 = vector.extract_strided_slice %203 {offsets = [0, 0], sizes = [1, 128], strides = [1, 1]} : vector<16x128xf32> to vector<1x128xf32>
    %210 = vector.broadcast %209 : vector<1x128xf32> to vector<64x128xf32>
    %211 = arith.mulf %190, %210 : vector<64x128xf32>
    %212 = math.exp %211 : vector<64x128xf32>
    %213 = vector.shape_cast %212 : vector<64x128xf32> to vector<8x8x128xf32>
    %c0_121 = arith.constant 0 : index
    %c0_122 = arith.constant 0 : index
    %c0_123 = arith.constant 0 : index
    %c0_124 = arith.constant 0 : index
    %214 = vector.load %arg17[%c0_121, %c0_122, %c0_123, %c0_124] : memref<8x17x8x128xf32, #tpu.memory_space<vmem>>, vector<8x1x8x128xf32>
    %215 = vector.shape_cast %214 : vector<8x1x8x128xf32> to vector<8x8x128xf32>
    %216 = vector.shape_cast %213 : vector<8x8x128xf32> to vector<8x1x8x128xf32>
    tpu.vector_store %arg17[%c0_121, %c0_122, %c0_123, %c0_124], %216 {strides = array<i32>} : memref<8x17x8x128xf32, #tpu.memory_space<vmem>>, vector<8x1x8x128xf32>,
    %217 = vector.extract_strided_slice %207 {offsets = [0, 0], sizes = [64, 128], strides = [1, 1]} : vector<64x2048xf32> to vector<64x128xf32>
    %218 = arith.mulf %217, %191 : vector<64x128xf32>
    %219 = vector.shape_cast %218 : vector<64x128xf32> to vector<8x8x128xf32>
    %c0_125 = arith.constant 0 : index
    %c0_126 = arith.constant 0 : index
    %c0_127 = arith.constant 0 : index
    %c0_128 = arith.constant 0 : index
    %220 = vector.load %arg18[%c0_125, %c0_126, %c0_127, %c0_128] : memref<8x17x8x128xf32, #tpu.memory_space<vmem>>, vector<8x1x8x128xf32>
    %221 = vector.shape_cast %220 : vector<8x1x8x128xf32> to vector<8x8x128xf32>
    %222 = vector.shape_cast %219 : vector<8x8x128xf32> to vector<8x1x8x128xf32>
    tpu.vector_store %arg18[%c0_125, %c0_126, %c0_127, %c0_128], %222 {strides = array<i32>} : memref<8x17x8x128xf32, #tpu.memory_space<vmem>>, vector<8x1x8x128xf32>,
    %223 = vector.extract_strided_slice %208 {offsets = [0, 0], sizes = [64, 128], strides = [1, 1]} : vector<64x2048xf32> to vector<64x128xf32>
    %224 = vector.shape_cast %223 : vector<64x128xf32> to vector<8x8x128xf32>
    %c0_129 = arith.constant 0 : index
    %c0_130 = arith.constant 0 : index
    %c0_131 = arith.constant 0 : index
    %c0_132 = arith.constant 0 : index
    %225 = vector.load %arg19[%c0_129, %c0_130, %c0_131, %c0_132] : memref<8x17x8x128xf32, #tpu.memory_space<vmem>>, vector<8x1x8x128xf32>
    %226 = vector.shape_cast %225 : vector<8x1x8x128xf32> to vector<8x8x128xf32>
    %227 = vector.shape_cast %224 : vector<8x8x128xf32> to vector<8x1x8x128xf32>
    tpu.vector_store %arg19[%c0_129, %c0_130, %c0_131, %c0_132], %227 {strides = array<i32>} : memref<8x17x8x128xf32, #tpu.memory_space<vmem>>, vector<8x1x8x128xf32>,
    %228 = vector.extract_strided_slice %203 {offsets = [1, 0], sizes = [1, 128], strides = [1, 1]} : vector<16x128xf32> to vector<1x128xf32>
    %229 = vector.broadcast %228 : vector<1x128xf32> to vector<64x128xf32>
    %230 = arith.mulf %190, %229 : vector<64x128xf32>
    %231 = math.exp %230 : vector<64x128xf32>
    %232 = vector.shape_cast %231 : vector<64x128xf32> to vector<8x8x128xf32>
    %c0_133 = arith.constant 0 : index
    %c1 = arith.constant 1 : index
    %c0_134 = arith.constant 0 : index
    %c0_135 = arith.constant 0 : index
    %233 = vector.load %arg17[%c0_133, %c1, %c0_134, %c0_135] : memref<8x17x8x128xf32, #tpu.memory_space<vmem>>, vector<8x1x8x128xf32>
    %234 = vector.shape_cast %233 : vector<8x1x8x128xf32> to vector<8x8x128xf32>
    %235 = vector.shape_cast %232 : vector<8x8x128xf32> to vector<8x1x8x128xf32>
    tpu.vector_store %arg17[%c0_133, %c1, %c0_134, %c0_135], %235 {strides = array<i32>} : memref<8x17x8x128xf32, #tpu.memory_space<vmem>>, vector<8x1x8x128xf32>,
    %236 = vector.extract_strided_slice %207 {offsets = [0, 128], sizes = [64, 128], strides = [1, 1]} : vector<64x2048xf32> to vector<64x128xf32>
    %237 = arith.mulf %236, %191 : vector<64x128xf32>
    %238 = vector.shape_cast %237 : vector<64x128xf32> to vector<8x8x128xf32>
    %c0_136 = arith.constant 0 : index
    %c1_137 = arith.constant 1 : index
    %c0_138 = arith.constant 0 : index
    %c0_139 = arith.constant 0 : index
    %239 = vector.load %arg18[%c0_136, %c1_137, %c0_138, %c0_139] : memref<8x17x8x128xf32, #tpu.memory_space<vmem>>, vector<8x1x8x128xf32>
    %240 = vector.shape_cast %239 : vector<8x1x8x128xf32> to vector<8x8x128xf32>
    %241 = vector.shape_cast %238 : vector<8x8x128xf32> to vector<8x1x8x128xf32>
    tpu.vector_store %arg18[%c0_136, %c1_137, %c0_138, %c0_139], %241 {strides = array<i32>} : memref<8x17x8x128xf32, #tpu.memory_space<vmem>>, vector<8x1x8x128xf32>,
    %242 = vector.extract_strided_slice %208 {offsets = [0, 128], sizes = [64, 128], strides = [1, 1]} : vector<64x2048xf32> to vector<64x128xf32>
    %243 = vector.shape_cast %242 : vector<64x128xf32> to vector<8x8x128xf32>
    %c0_140 = arith.constant 0 : index
    %c1_141 = arith.constant 1 : index
    %c0_142 = arith.constant 0 : index
    %c0_143 = arith.constant 0 : index
    %244 = vector.load %arg19[%c0_140, %c1_141, %c0_142, %c0_143] : memref<8x17x8x128xf32, #tpu.memory_space<vmem>>, vector<8x1x8x128xf32>
    %245 = vector.shape_cast %244 : vector<8x1x8x128xf32> to vector<8x8x128xf32>
    %246 = vector.shape_cast %243 : vector<8x8x128xf32> to vector<8x1x8x128xf32>
    tpu.vector_store %arg19[%c0_140, %c1_141, %c0_142, %c0_143], %246 {strides = array<i32>} : memref<8x17x8x128xf32, #tpu.memory_space<vmem>>, vector<8x1x8x128xf32>,
    %247 = vector.extract_strided_slice %203 {offsets = [2, 0], sizes = [1, 128], strides = [1, 1]} : vector<16x128xf32> to vector<1x128xf32>
    %248 = vector.broadcast %247 : vector<1x128xf32> to vector<64x128xf32>
    %249 = arith.mulf %190, %248 : vector<64x128xf32>
    %250 = math.exp %249 : vector<64x128xf32>
    %251 = vector.shape_cast %250 : vector<64x128xf32> to vector<8x8x128xf32>
    %c0_144 = arith.constant 0 : index
    %c2 = arith.constant 2 : index
    %c0_145 = arith.constant 0 : index
    %c0_146 = arith.constant 0 : index
    %252 = vector.load %arg17[%c0_144, %c2, %c0_145, %c0_146] : memref<8x17x8x128xf32, #tpu.memory_space<vmem>>, vector<8x1x8x128xf32>
    %253 = vector.shape_cast %252 : vector<8x1x8x128xf32> to vector<8x8x128xf32>
    %254 = vector.shape_cast %251 : vector<8x8x128xf32> to vector<8x1x8x128xf32>
    tpu.vector_store %arg17[%c0_144, %c2, %c0_145, %c0_146], %254 {strides = array<i32>} : memref<8x17x8x128xf32, #tpu.memory_space<vmem>>, vector<8x1x8x128xf32>,
    %255 = vector.extract_strided_slice %207 {offsets = [0, 256], sizes = [64, 128], strides = [1, 1]} : vector<64x2048xf32> to vector<64x128xf32>
    %256 = arith.mulf %255, %191 : vector<64x128xf32>
    %257 = vector.shape_cast %256 : vector<64x128xf32> to vector<8x8x128xf32>
    %c0_147 = arith.constant 0 : index
    %c2_148 = arith.constant 2 : index
    %c0_149 = arith.constant 0 : index
    %c0_150 = arith.constant 0 : index
    %258 = vector.load %arg18[%c0_147, %c2_148, %c0_149, %c0_150] : memref<8x17x8x128xf32, #tpu.memory_space<vmem>>, vector<8x1x8x128xf32>
    %259 = vector.shape_cast %258 : vector<8x1x8x128xf32> to vector<8x8x128xf32>
    %260 = vector.shape_cast %257 : vector<8x8x128xf32> to vector<8x1x8x128xf32>
    tpu.vector_store %arg18[%c0_147, %c2_148, %c0_149, %c0_150], %260 {strides = array<i32>} : memref<8x17x8x128xf32, #tpu.memory_space<vmem>>, vector<8x1x8x128xf32>,
    %261 = vector.extract_strided_slice %208 {offsets = [0, 256], sizes = [64, 128], strides = [1, 1]} : vector<64x2048xf32> to vector<64x128xf32>
    %262 = vector.shape_cast %261 : vector<64x128xf32> to vector<8x8x128xf32>
    %c0_151 = arith.constant 0 : index
    %c2_152 = arith.constant 2 : index
    %c0_153 = arith.constant 0 : index
    %c0_154 = arith.constant 0 : index
    %263 = vector.load %arg19[%c0_151, %c2_152, %c0_153, %c0_154] : memref<8x17x8x128xf32, #tpu.memory_space<vmem>>, vector<8x1x8x128xf32>
    %264 = vector.shape_cast %263 : vector<8x1x8x128xf32> to vector<8x8x128xf32>
    %265 = vector.shape_cast %262 : vector<8x8x128xf32> to vector<8x1x8x128xf32>
    tpu.vector_store %arg19[%c0_151, %c2_152, %c0_153, %c0_154], %265 {strides = array<i32>} : memref<8x17x8x128xf32, #tpu.memory_space<vmem>>, vector<8x1x8x128xf32>,
    %266 = vector.extract_strided_slice %203 {offsets = [3, 0], sizes = [1, 128], strides = [1, 1]} : vector<16x128xf32> to vector<1x128xf32>
    %267 = vector.broadcast %266 : vector<1x128xf32> to vector<64x128xf32>
    %268 = arith.mulf %190, %267 : vector<64x128xf32>
    %269 = math.exp %268 : vector<64x128xf32>
    %270 = vector.shape_cast %269 : vector<64x128xf32> to vector<8x8x128xf32>
    %c0_155 = arith.constant 0 : index
    %c3 = arith.constant 3 : index
    %c0_156 = arith.constant 0 : index
    %c0_157 = arith.constant 0 : index
    %271 = vector.load %arg17[%c0_155, %c3, %c0_156, %c0_157] : memref<8x17x8x128xf32, #tpu.memory_space<vmem>>, vector<8x1x8x128xf32>
    %272 = vector.shape_cast %271 : vector<8x1x8x128xf32> to vector<8x8x128xf32>
    %273 = vector.shape_cast %270 : vector<8x8x128xf32> to vector<8x1x8x128xf32>
    tpu.vector_store %arg17[%c0_155, %c3, %c0_156, %c0_157], %273 {strides = array<i32>} : memref<8x17x8x128xf32, #tpu.memory_space<vmem>>, vector<8x1x8x128xf32>,
    %274 = vector.extract_strided_slice %207 {offsets = [0, 384], sizes = [64, 128], strides = [1, 1]} : vector<64x2048xf32> to vector<64x128xf32>
    %275 = arith.mulf %274, %191 : vector<64x128xf32>
    %276 = vector.shape_cast %275 : vector<64x128xf32> to vector<8x8x128xf32>
    %c0_158 = arith.constant 0 : index
    %c3_159 = arith.constant 3 : index
    %c0_160 = arith.constant 0 : index
    %c0_161 = arith.constant 0 : index
    %277 = vector.load %arg18[%c0_158, %c3_159, %c0_160, %c0_161] : memref<8x17x8x128xf32, #tpu.memory_space<vmem>>, vector<8x1x8x128xf32>
    %278 = vector.shape_cast %277 : vector<8x1x8x128xf32> to vector<8x8x128xf32>
    %279 = vector.shape_cast %276 : vector<8x8x128xf32> to vector<8x1x8x128xf32>
    tpu.vector_store %arg18[%c0_158, %c3_159, %c0_160, %c0_161], %279 {strides = array<i32>} : memref<8x17x8x128xf32, #tpu.memory_space<vmem>>, vector<8x1x8x128xf32>,
    %280 = vector.extract_strided_slice %208 {offsets = [0, 384], sizes = [64, 128], strides = [1, 1]} : vector<64x2048xf32> to vector<64x128xf32>
    %281 = vector.shape_cast %280 : vector<64x128xf32> to vector<8x8x128xf32>
    %c0_162 = arith.constant 0 : index
    %c3_163 = arith.constant 3 : index
    %c0_164 = arith.constant 0 : index
    %c0_165 = arith.constant 0 : index
    %282 = vector.load %arg19[%c0_162, %c3_163, %c0_164, %c0_165] : memref<8x17x8x128xf32, #tpu.memory_space<vmem>>, vector<8x1x8x128xf32>
    %283 = vector.shape_cast %282 : vector<8x1x8x128xf32> to vector<8x8x128xf32>
    %284 = vector.shape_cast %281 : vector<8x8x128xf32> to vector<8x1x8x128xf32>
    tpu.vector_store %arg19[%c0_162, %c3_163, %c0_164, %c0_165], %284 {strides = array<i32>} : memref<8x17x8x128xf32, #tpu.memory_space<vmem>>, vector<8x1x8x128xf32>,
    %285 = vector.extract_strided_slice %203 {offsets = [4, 0], sizes = [1, 128], strides = [1, 1]} : vector<16x128xf32> to vector<1x128xf32>
    %286 = vector.broadcast %285 : vector<1x128xf32> to vector<64x128xf32>
    %287 = arith.mulf %190, %286 : vector<64x128xf32>
    %288 = math.exp %287 : vector<64x128xf32>
    %289 = vector.shape_cast %288 : vector<64x128xf32> to vector<8x8x128xf32>
    %c0_166 = arith.constant 0 : index
    %c4 = arith.constant 4 : index
    %c0_167 = arith.constant 0 : index
    %c0_168 = arith.constant 0 : index
    %290 = vector.load %arg17[%c0_166, %c4, %c0_167, %c0_168] : memref<8x17x8x128xf32, #tpu.memory_space<vmem>>, vector<8x1x8x128xf32>
    %291 = vector.shape_cast %290 : vector<8x1x8x128xf32> to vector<8x8x128xf32>
    %292 = vector.shape_cast %289 : vector<8x8x128xf32> to vector<8x1x8x128xf32>
    tpu.vector_store %arg17[%c0_166, %c4, %c0_167, %c0_168], %292 {strides = array<i32>} : memref<8x17x8x128xf32, #tpu.memory_space<vmem>>, vector<8x1x8x128xf32>,
    %293 = vector.extract_strided_slice %207 {offsets = [0, 512], sizes = [64, 128], strides = [1, 1]} : vector<64x2048xf32> to vector<64x128xf32>
    %294 = arith.mulf %293, %191 : vector<64x128xf32>
    %295 = vector.shape_cast %294 : vector<64x128xf32> to vector<8x8x128xf32>
    %c0_169 = arith.constant 0 : index
    %c4_170 = arith.constant 4 : index
    %c0_171 = arith.constant 0 : index
    %c0_172 = arith.constant 0 : index
    %296 = vector.load %arg18[%c0_169, %c4_170, %c0_171, %c0_172] : memref<8x17x8x128xf32, #tpu.memory_space<vmem>>, vector<8x1x8x128xf32>
    %297 = vector.shape_cast %296 : vector<8x1x8x128xf32> to vector<8x8x128xf32>
    %298 = vector.shape_cast %295 : vector<8x8x128xf32> to vector<8x1x8x128xf32>
    tpu.vector_store %arg18[%c0_169, %c4_170, %c0_171, %c0_172], %298 {strides = array<i32>} : memref<8x17x8x128xf32, #tpu.memory_space<vmem>>, vector<8x1x8x128xf32>,
    %299 = vector.extract_strided_slice %208 {offsets = [0, 512], sizes = [64, 128], strides = [1, 1]} : vector<64x2048xf32> to vector<64x128xf32>
    %300 = vector.shape_cast %299 : vector<64x128xf32> to vector<8x8x128xf32>
    %c0_173 = arith.constant 0 : index
    %c4_174 = arith.constant 4 : index
    %c0_175 = arith.constant 0 : index
    %c0_176 = arith.constant 0 : index
    %301 = vector.load %arg19[%c0_173, %c4_174, %c0_175, %c0_176] : memref<8x17x8x128xf32, #tpu.memory_space<vmem>>, vector<8x1x8x128xf32>
    %302 = vector.shape_cast %301 : vector<8x1x8x128xf32> to vector<8x8x128xf32>
    %303 = vector.shape_cast %300 : vector<8x8x128xf32> to vector<8x1x8x128xf32>
    tpu.vector_store %arg19[%c0_173, %c4_174, %c0_175, %c0_176], %303 {strides = array<i32>} : memref<8x17x8x128xf32, #tpu.memory_space<vmem>>, vector<8x1x8x128xf32>,
    %304 = vector.extract_strided_slice %203 {offsets = [5, 0], sizes = [1, 128], strides = [1, 1]} : vector<16x128xf32> to vector<1x128xf32>
    %305 = vector.broadcast %304 : vector<1x128xf32> to vector<64x128xf32>
    %306 = arith.mulf %190, %305 : vector<64x128xf32>
    %307 = math.exp %306 : vector<64x128xf32>
    %308 = vector.shape_cast %307 : vector<64x128xf32> to vector<8x8x128xf32>
    %c0_177 = arith.constant 0 : index
    %c5 = arith.constant 5 : index
    %c0_178 = arith.constant 0 : index
    %c0_179 = arith.constant 0 : index
    %309 = vector.load %arg17[%c0_177, %c5, %c0_178, %c0_179] : memref<8x17x8x128xf32, #tpu.memory_space<vmem>>, vector<8x1x8x128xf32>
    %310 = vector.shape_cast %309 : vector<8x1x8x128xf32> to vector<8x8x128xf32>
    %311 = vector.shape_cast %308 : vector<8x8x128xf32> to vector<8x1x8x128xf32>
    tpu.vector_store %arg17[%c0_177, %c5, %c0_178, %c0_179], %311 {strides = array<i32>} : memref<8x17x8x128xf32, #tpu.memory_space<vmem>>, vector<8x1x8x128xf32>,
    %312 = vector.extract_strided_slice %207 {offsets = [0, 640], sizes = [64, 128], strides = [1, 1]} : vector<64x2048xf32> to vector<64x128xf32>
    %313 = arith.mulf %312, %191 : vector<64x128xf32>
    %314 = vector.shape_cast %313 : vector<64x128xf32> to vector<8x8x128xf32>
    %c0_180 = arith.constant 0 : index
    %c5_181 = arith.constant 5 : index
    %c0_182 = arith.constant 0 : index
    %c0_183 = arith.constant 0 : index
    %315 = vector.load %arg18[%c0_180, %c5_181, %c0_182, %c0_183] : memref<8x17x8x128xf32, #tpu.memory_space<vmem>>, vector<8x1x8x128xf32>
    %316 = vector.shape_cast %315 : vector<8x1x8x128xf32> to vector<8x8x128xf32>
    %317 = vector.shape_cast %314 : vector<8x8x128xf32> to vector<8x1x8x128xf32>
    tpu.vector_store %arg18[%c0_180, %c5_181, %c0_182, %c0_183], %317 {strides = array<i32>} : memref<8x17x8x128xf32, #tpu.memory_space<vmem>>, vector<8x1x8x128xf32>,
    %318 = vector.extract_strided_slice %208 {offsets = [0, 640], sizes = [64, 128], strides = [1, 1]} : vector<64x2048xf32> to vector<64x128xf32>
    %319 = vector.shape_cast %318 : vector<64x128xf32> to vector<8x8x128xf32>
    %c0_184 = arith.constant 0 : index
    %c5_185 = arith.constant 5 : index
    %c0_186 = arith.constant 0 : index
    %c0_187 = arith.constant 0 : index
    %320 = vector.load %arg19[%c0_184, %c5_185, %c0_186, %c0_187] : memref<8x17x8x128xf32, #tpu.memory_space<vmem>>, vector<8x1x8x128xf32>
    %321 = vector.shape_cast %320 : vector<8x1x8x128xf32> to vector<8x8x128xf32>
    %322 = vector.shape_cast %319 : vector<8x8x128xf32> to vector<8x1x8x128xf32>
    tpu.vector_store %arg19[%c0_184, %c5_185, %c0_186, %c0_187], %322 {strides = array<i32>} : memref<8x17x8x128xf32, #tpu.memory_space<vmem>>, vector<8x1x8x128xf32>,
    %323 = vector.extract_strided_slice %203 {offsets = [6, 0], sizes = [1, 128], strides = [1, 1]} : vector<16x128xf32> to vector<1x128xf32>
    %324 = vector.broadcast %323 : vector<1x128xf32> to vector<64x128xf32>
    %325 = arith.mulf %190, %324 : vector<64x128xf32>
    %326 = math.exp %325 : vector<64x128xf32>
    %327 = vector.shape_cast %326 : vector<64x128xf32> to vector<8x8x128xf32>
    %c0_188 = arith.constant 0 : index
    %c6 = arith.constant 6 : index
    %c0_189 = arith.constant 0 : index
    %c0_190 = arith.constant 0 : index
    %328 = vector.load %arg17[%c0_188, %c6, %c0_189, %c0_190] : memref<8x17x8x128xf32, #tpu.memory_space<vmem>>, vector<8x1x8x128xf32>
    %329 = vector.shape_cast %328 : vector<8x1x8x128xf32> to vector<8x8x128xf32>
    %330 = vector.shape_cast %327 : vector<8x8x128xf32> to vector<8x1x8x128xf32>
    tpu.vector_store %arg17[%c0_188, %c6, %c0_189, %c0_190], %330 {strides = array<i32>} : memref<8x17x8x128xf32, #tpu.memory_space<vmem>>, vector<8x1x8x128xf32>,
    %331 = vector.extract_strided_slice %207 {offsets = [0, 768], sizes = [64, 128], strides = [1, 1]} : vector<64x2048xf32> to vector<64x128xf32>
    %332 = arith.mulf %331, %191 : vector<64x128xf32>
    %333 = vector.shape_cast %332 : vector<64x128xf32> to vector<8x8x128xf32>
    %c0_191 = arith.constant 0 : index
    %c6_192 = arith.constant 6 : index
    %c0_193 = arith.constant 0 : index
    %c0_194 = arith.constant 0 : index
    %334 = vector.load %arg18[%c0_191, %c6_192, %c0_193, %c0_194] : memref<8x17x8x128xf32, #tpu.memory_space<vmem>>, vector<8x1x8x128xf32>
    %335 = vector.shape_cast %334 : vector<8x1x8x128xf32> to vector<8x8x128xf32>
    %336 = vector.shape_cast %333 : vector<8x8x128xf32> to vector<8x1x8x128xf32>
    tpu.vector_store %arg18[%c0_191, %c6_192, %c0_193, %c0_194], %336 {strides = array<i32>} : memref<8x17x8x128xf32, #tpu.memory_space<vmem>>, vector<8x1x8x128xf32>,
    %337 = vector.extract_strided_slice %208 {offsets = [0, 768], sizes = [64, 128], strides = [1, 1]} : vector<64x2048xf32> to vector<64x128xf32>
    %338 = vector.shape_cast %337 : vector<64x128xf32> to vector<8x8x128xf32>
    %c0_195 = arith.constant 0 : index
    %c6_196 = arith.constant 6 : index
    %c0_197 = arith.constant 0 : index
    %c0_198 = arith.constant 0 : index
    %339 = vector.load %arg19[%c0_195, %c6_196, %c0_197, %c0_198] : memref<8x17x8x128xf32, #tpu.memory_space<vmem>>, vector<8x1x8x128xf32>
    %340 = vector.shape_cast %339 : vector<8x1x8x128xf32> to vector<8x8x128xf32>
    %341 = vector.shape_cast %338 : vector<8x8x128xf32> to vector<8x1x8x128xf32>
    tpu.vector_store %arg19[%c0_195, %c6_196, %c0_197, %c0_198], %341 {strides = array<i32>} : memref<8x17x8x128xf32, #tpu.memory_space<vmem>>, vector<8x1x8x128xf32>,
    %342 = vector.extract_strided_slice %203 {offsets = [7, 0], sizes = [1, 128], strides = [1, 1]} : vector<16x128xf32> to vector<1x128xf32>
    %343 = vector.broadcast %342 : vector<1x128xf32> to vector<64x128xf32>
    %344 = arith.mulf %190, %343 : vector<64x128xf32>
    %345 = math.exp %344 : vector<64x128xf32>
    %346 = vector.shape_cast %345 : vector<64x128xf32> to vector<8x8x128xf32>
    %c0_199 = arith.constant 0 : index
    %c7 = arith.constant 7 : index
    %c0_200 = arith.constant 0 : index
    %c0_201 = arith.constant 0 : index
    %347 = vector.load %arg17[%c0_199, %c7, %c0_200, %c0_201] : memref<8x17x8x128xf32, #tpu.memory_space<vmem>>, vector<8x1x8x128xf32>
    %348 = vector.shape_cast %347 : vector<8x1x8x128xf32> to vector<8x8x128xf32>
    %349 = vector.shape_cast %346 : vector<8x8x128xf32> to vector<8x1x8x128xf32>
    tpu.vector_store %arg17[%c0_199, %c7, %c0_200, %c0_201], %349 {strides = array<i32>} : memref<8x17x8x128xf32, #tpu.memory_space<vmem>>, vector<8x1x8x128xf32>,
    %350 = vector.extract_strided_slice %207 {offsets = [0, 896], sizes = [64, 128], strides = [1, 1]} : vector<64x2048xf32> to vector<64x128xf32>
    %351 = arith.mulf %350, %191 : vector<64x128xf32>
    %352 = vector.shape_cast %351 : vector<64x128xf32> to vector<8x8x128xf32>
    %c0_202 = arith.constant 0 : index
    %c7_203 = arith.constant 7 : index
    %c0_204 = arith.constant 0 : index
    %c0_205 = arith.constant 0 : index
    %353 = vector.load %arg18[%c0_202, %c7_203, %c0_204, %c0_205] : memref<8x17x8x128xf32, #tpu.memory_space<vmem>>, vector<8x1x8x128xf32>
    %354 = vector.shape_cast %353 : vector<8x1x8x128xf32> to vector<8x8x128xf32>
    %355 = vector.shape_cast %352 : vector<8x8x128xf32> to vector<8x1x8x128xf32>
    tpu.vector_store %arg18[%c0_202, %c7_203, %c0_204, %c0_205], %355 {strides = array<i32>} : memref<8x17x8x128xf32, #tpu.memory_space<vmem>>, vector<8x1x8x128xf32>,
    %356 = vector.extract_strided_slice %208 {offsets = [0, 896], sizes = [64, 128], strides = [1, 1]} : vector<64x2048xf32> to vector<64x128xf32>
    %357 = vector.shape_cast %356 : vector<64x128xf32> to vector<8x8x128xf32>
    %c0_206 = arith.constant 0 : index
    %c7_207 = arith.constant 7 : index
    %c0_208 = arith.constant 0 : index
    %c0_209 = arith.constant 0 : index
    %358 = vector.load %arg19[%c0_206, %c7_207, %c0_208, %c0_209] : memref<8x17x8x128xf32, #tpu.memory_space<vmem>>, vector<8x1x8x128xf32>
    %359 = vector.shape_cast %358 : vector<8x1x8x128xf32> to vector<8x8x128xf32>
    %360 = vector.shape_cast %357 : vector<8x8x128xf32> to vector<8x1x8x128xf32>
    tpu.vector_store %arg19[%c0_206, %c7_207, %c0_208, %c0_209], %360 {strides = array<i32>} : memref<8x17x8x128xf32, #tpu.memory_space<vmem>>, vector<8x1x8x128xf32>,
    %361 = vector.extract_strided_slice %203 {offsets = [8, 0], sizes = [1, 128], strides = [1, 1]} : vector<16x128xf32> to vector<1x128xf32>
    %362 = vector.broadcast %361 : vector<1x128xf32> to vector<64x128xf32>
    %363 = arith.mulf %190, %362 : vector<64x128xf32>
    %364 = math.exp %363 : vector<64x128xf32>
    %365 = vector.shape_cast %364 : vector<64x128xf32> to vector<8x8x128xf32>
    %c0_210 = arith.constant 0 : index
    %c8_211 = arith.constant 8 : index
    %c0_212 = arith.constant 0 : index
    %c0_213 = arith.constant 0 : index
    %366 = vector.load %arg17[%c0_210, %c8_211, %c0_212, %c0_213] : memref<8x17x8x128xf32, #tpu.memory_space<vmem>>, vector<8x1x8x128xf32>
    %367 = vector.shape_cast %366 : vector<8x1x8x128xf32> to vector<8x8x128xf32>
    %368 = vector.shape_cast %365 : vector<8x8x128xf32> to vector<8x1x8x128xf32>
    tpu.vector_store %arg17[%c0_210, %c8_211, %c0_212, %c0_213], %368 {strides = array<i32>} : memref<8x17x8x128xf32, #tpu.memory_space<vmem>>, vector<8x1x8x128xf32>,
    %369 = vector.extract_strided_slice %207 {offsets = [0, 1024], sizes = [64, 128], strides = [1, 1]} : vector<64x2048xf32> to vector<64x128xf32>
    %370 = arith.mulf %369, %191 : vector<64x128xf32>
    %371 = vector.shape_cast %370 : vector<64x128xf32> to vector<8x8x128xf32>
    %c0_214 = arith.constant 0 : index
    %c8_215 = arith.constant 8 : index
    %c0_216 = arith.constant 0 : index
    %c0_217 = arith.constant 0 : index
    %372 = vector.load %arg18[%c0_214, %c8_215, %c0_216, %c0_217] : memref<8x17x8x128xf32, #tpu.memory_space<vmem>>, vector<8x1x8x128xf32>
    %373 = vector.shape_cast %372 : vector<8x1x8x128xf32> to vector<8x8x128xf32>
    %374 = vector.shape_cast %371 : vector<8x8x128xf32> to vector<8x1x8x128xf32>
    tpu.vector_store %arg18[%c0_214, %c8_215, %c0_216, %c0_217], %374 {strides = array<i32>} : memref<8x17x8x128xf32, #tpu.memory_space<vmem>>, vector<8x1x8x128xf32>,
    %375 = vector.extract_strided_slice %208 {offsets = [0, 1024], sizes = [64, 128], strides = [1, 1]} : vector<64x2048xf32> to vector<64x128xf32>
    %376 = vector.shape_cast %375 : vector<64x128xf32> to vector<8x8x128xf32>
    %c0_218 = arith.constant 0 : index
    %c8_219 = arith.constant 8 : index
    %c0_220 = arith.constant 0 : index
    %c0_221 = arith.constant 0 : index
    %377 = vector.load %arg19[%c0_218, %c8_219, %c0_220, %c0_221] : memref<8x17x8x128xf32, #tpu.memory_space<vmem>>, vector<8x1x8x128xf32>
    %378 = vector.shape_cast %377 : vector<8x1x8x128xf32> to vector<8x8x128xf32>
    %379 = vector.shape_cast %376 : vector<8x8x128xf32> to vector<8x1x8x128xf32>
    tpu.vector_store %arg19[%c0_218, %c8_219, %c0_220, %c0_221], %379 {strides = array<i32>} : memref<8x17x8x128xf32, #tpu.memory_space<vmem>>, vector<8x1x8x128xf32>,
    %380 = vector.extract_strided_slice %203 {offsets = [9, 0], sizes = [1, 128], strides = [1, 1]} : vector<16x128xf32> to vector<1x128xf32>
    %381 = vector.broadcast %380 : vector<1x128xf32> to vector<64x128xf32>
    %382 = arith.mulf %190, %381 : vector<64x128xf32>
    %383 = math.exp %382 : vector<64x128xf32>
    %384 = vector.shape_cast %383 : vector<64x128xf32> to vector<8x8x128xf32>
    %c0_222 = arith.constant 0 : index
    %c9 = arith.constant 9 : index
    %c0_223 = arith.constant 0 : index
    %c0_224 = arith.constant 0 : index
    %385 = vector.load %arg17[%c0_222, %c9, %c0_223, %c0_224] : memref<8x17x8x128xf32, #tpu.memory_space<vmem>>, vector<8x1x8x128xf32>
    %386 = vector.shape_cast %385 : vector<8x1x8x128xf32> to vector<8x8x128xf32>
    %387 = vector.shape_cast %384 : vector<8x8x128xf32> to vector<8x1x8x128xf32>
    tpu.vector_store %arg17[%c0_222, %c9, %c0_223, %c0_224], %387 {strides = array<i32>} : memref<8x17x8x128xf32, #tpu.memory_space<vmem>>, vector<8x1x8x128xf32>,
    %388 = vector.extract_strided_slice %207 {offsets = [0, 1152], sizes = [64, 128], strides = [1, 1]} : vector<64x2048xf32> to vector<64x128xf32>
    %389 = arith.mulf %388, %191 : vector<64x128xf32>
    %390 = vector.shape_cast %389 : vector<64x128xf32> to vector<8x8x128xf32>
    %c0_225 = arith.constant 0 : index
    %c9_226 = arith.constant 9 : index
    %c0_227 = arith.constant 0 : index
    %c0_228 = arith.constant 0 : index
    %391 = vector.load %arg18[%c0_225, %c9_226, %c0_227, %c0_228] : memref<8x17x8x128xf32, #tpu.memory_space<vmem>>, vector<8x1x8x128xf32>
    %392 = vector.shape_cast %391 : vector<8x1x8x128xf32> to vector<8x8x128xf32>
    %393 = vector.shape_cast %390 : vector<8x8x128xf32> to vector<8x1x8x128xf32>
    tpu.vector_store %arg18[%c0_225, %c9_226, %c0_227, %c0_228], %393 {strides = array<i32>} : memref<8x17x8x128xf32, #tpu.memory_space<vmem>>, vector<8x1x8x128xf32>,
    %394 = vector.extract_strided_slice %208 {offsets = [0, 1152], sizes = [64, 128], strides = [1, 1]} : vector<64x2048xf32> to vector<64x128xf32>
    %395 = vector.shape_cast %394 : vector<64x128xf32> to vector<8x8x128xf32>
    %c0_229 = arith.constant 0 : index
    %c9_230 = arith.constant 9 : index
    %c0_231 = arith.constant 0 : index
    %c0_232 = arith.constant 0 : index
    %396 = vector.load %arg19[%c0_229, %c9_230, %c0_231, %c0_232] : memref<8x17x8x128xf32, #tpu.memory_space<vmem>>, vector<8x1x8x128xf32>
    %397 = vector.shape_cast %396 : vector<8x1x8x128xf32> to vector<8x8x128xf32>
    %398 = vector.shape_cast %395 : vector<8x8x128xf32> to vector<8x1x8x128xf32>
    tpu.vector_store %arg19[%c0_229, %c9_230, %c0_231, %c0_232], %398 {strides = array<i32>} : memref<8x17x8x128xf32, #tpu.memory_space<vmem>>, vector<8x1x8x128xf32>,
    %399 = vector.extract_strided_slice %203 {offsets = [10, 0], sizes = [1, 128], strides = [1, 1]} : vector<16x128xf32> to vector<1x128xf32>
    %400 = vector.broadcast %399 : vector<1x128xf32> to vector<64x128xf32>
    %401 = arith.mulf %190, %400 : vector<64x128xf32>
    %402 = math.exp %401 : vector<64x128xf32>
    %403 = vector.shape_cast %402 : vector<64x128xf32> to vector<8x8x128xf32>
    %c0_233 = arith.constant 0 : index
    %c10 = arith.constant 10 : index
    %c0_234 = arith.constant 0 : index
    %c0_235 = arith.constant 0 : index
    %404 = vector.load %arg17[%c0_233, %c10, %c0_234, %c0_235] : memref<8x17x8x128xf32, #tpu.memory_space<vmem>>, vector<8x1x8x128xf32>
    %405 = vector.shape_cast %404 : vector<8x1x8x128xf32> to vector<8x8x128xf32>
    %406 = vector.shape_cast %403 : vector<8x8x128xf32> to vector<8x1x8x128xf32>
    tpu.vector_store %arg17[%c0_233, %c10, %c0_234, %c0_235], %406 {strides = array<i32>} : memref<8x17x8x128xf32, #tpu.memory_space<vmem>>, vector<8x1x8x128xf32>,
    %407 = vector.extract_strided_slice %207 {offsets = [0, 1280], sizes = [64, 128], strides = [1, 1]} : vector<64x2048xf32> to vector<64x128xf32>
    %408 = arith.mulf %407, %191 : vector<64x128xf32>
    %409 = vector.shape_cast %408 : vector<64x128xf32> to vector<8x8x128xf32>
    %c0_236 = arith.constant 0 : index
    %c10_237 = arith.constant 10 : index
    %c0_238 = arith.constant 0 : index
    %c0_239 = arith.constant 0 : index
    %410 = vector.load %arg18[%c0_236, %c10_237, %c0_238, %c0_239] : memref<8x17x8x128xf32, #tpu.memory_space<vmem>>, vector<8x1x8x128xf32>
    %411 = vector.shape_cast %410 : vector<8x1x8x128xf32> to vector<8x8x128xf32>
    %412 = vector.shape_cast %409 : vector<8x8x128xf32> to vector<8x1x8x128xf32>
    tpu.vector_store %arg18[%c0_236, %c10_237, %c0_238, %c0_239], %412 {strides = array<i32>} : memref<8x17x8x128xf32, #tpu.memory_space<vmem>>, vector<8x1x8x128xf32>,
    %413 = vector.extract_strided_slice %208 {offsets = [0, 1280], sizes = [64, 128], strides = [1, 1]} : vector<64x2048xf32> to vector<64x128xf32>
    %414 = vector.shape_cast %413 : vector<64x128xf32> to vector<8x8x128xf32>
    %c0_240 = arith.constant 0 : index
    %c10_241 = arith.constant 10 : index
    %c0_242 = arith.constant 0 : index
    %c0_243 = arith.constant 0 : index
    %415 = vector.load %arg19[%c0_240, %c10_241, %c0_242, %c0_243] : memref<8x17x8x128xf32, #tpu.memory_space<vmem>>, vector<8x1x8x128xf32>
    %416 = vector.shape_cast %415 : vector<8x1x8x128xf32> to vector<8x8x128xf32>
    %417 = vector.shape_cast %414 : vector<8x8x128xf32> to vector<8x1x8x128xf32>
    tpu.vector_store %arg19[%c0_240, %c10_241, %c0_242, %c0_243], %417 {strides = array<i32>} : memref<8x17x8x128xf32, #tpu.memory_space<vmem>>, vector<8x1x8x128xf32>,
    %418 = vector.extract_strided_slice %203 {offsets = [11, 0], sizes = [1, 128], strides = [1, 1]} : vector<16x128xf32> to vector<1x128xf32>
    %419 = vector.broadcast %418 : vector<1x128xf32> to vector<64x128xf32>
    %420 = arith.mulf %190, %419 : vector<64x128xf32>
    %421 = math.exp %420 : vector<64x128xf32>
    %422 = vector.shape_cast %421 : vector<64x128xf32> to vector<8x8x128xf32>
    %c0_244 = arith.constant 0 : index
    %c11 = arith.constant 11 : index
    %c0_245 = arith.constant 0 : index
    %c0_246 = arith.constant 0 : index
    %423 = vector.load %arg17[%c0_244, %c11, %c0_245, %c0_246] : memref<8x17x8x128xf32, #tpu.memory_space<vmem>>, vector<8x1x8x128xf32>
    %424 = vector.shape_cast %423 : vector<8x1x8x128xf32> to vector<8x8x128xf32>
    %425 = vector.shape_cast %422 : vector<8x8x128xf32> to vector<8x1x8x128xf32>
    tpu.vector_store %arg17[%c0_244, %c11, %c0_245, %c0_246], %425 {strides = array<i32>} : memref<8x17x8x128xf32, #tpu.memory_space<vmem>>, vector<8x1x8x128xf32>,
    %426 = vector.extract_strided_slice %207 {offsets = [0, 1408], sizes = [64, 128], strides = [1, 1]} : vector<64x2048xf32> to vector<64x128xf32>
    %427 = arith.mulf %426, %191 : vector<64x128xf32>
    %428 = vector.shape_cast %427 : vector<64x128xf32> to vector<8x8x128xf32>
    %c0_247 = arith.constant 0 : index
    %c11_248 = arith.constant 11 : index
    %c0_249 = arith.constant 0 : index
    %c0_250 = arith.constant 0 : index
    %429 = vector.load %arg18[%c0_247, %c11_248, %c0_249, %c0_250] : memref<8x17x8x128xf32, #tpu.memory_space<vmem>>, vector<8x1x8x128xf32>
    %430 = vector.shape_cast %429 : vector<8x1x8x128xf32> to vector<8x8x128xf32>
    %431 = vector.shape_cast %428 : vector<8x8x128xf32> to vector<8x1x8x128xf32>
    tpu.vector_store %arg18[%c0_247, %c11_248, %c0_249, %c0_250], %431 {strides = array<i32>} : memref<8x17x8x128xf32, #tpu.memory_space<vmem>>, vector<8x1x8x128xf32>,
    %432 = vector.extract_strided_slice %208 {offsets = [0, 1408], sizes = [64, 128], strides = [1, 1]} : vector<64x2048xf32> to vector<64x128xf32>
    %433 = vector.shape_cast %432 : vector<64x128xf32> to vector<8x8x128xf32>
    %c0_251 = arith.constant 0 : index
    %c11_252 = arith.constant 11 : index
    %c0_253 = arith.constant 0 : index
    %c0_254 = arith.constant 0 : index
    %434 = vector.load %arg19[%c0_251, %c11_252, %c0_253, %c0_254] : memref<8x17x8x128xf32, #tpu.memory_space<vmem>>, vector<8x1x8x128xf32>
    %435 = vector.shape_cast %434 : vector<8x1x8x128xf32> to vector<8x8x128xf32>
    %436 = vector.shape_cast %433 : vector<8x8x128xf32> to vector<8x1x8x128xf32>
    tpu.vector_store %arg19[%c0_251, %c11_252, %c0_253, %c0_254], %436 {strides = array<i32>} : memref<8x17x8x128xf32, #tpu.memory_space<vmem>>, vector<8x1x8x128xf32>,
    %437 = vector.extract_strided_slice %203 {offsets = [12, 0], sizes = [1, 128], strides = [1, 1]} : vector<16x128xf32> to vector<1x128xf32>
    %438 = vector.broadcast %437 : vector<1x128xf32> to vector<64x128xf32>
    %439 = arith.mulf %190, %438 : vector<64x128xf32>
    %440 = math.exp %439 : vector<64x128xf32>
    %441 = vector.shape_cast %440 : vector<64x128xf32> to vector<8x8x128xf32>
    %c0_255 = arith.constant 0 : index
    %c12 = arith.constant 12 : index
    %c0_256 = arith.constant 0 : index
    %c0_257 = arith.constant 0 : index
    %442 = vector.load %arg17[%c0_255, %c12, %c0_256, %c0_257] : memref<8x17x8x128xf32, #tpu.memory_space<vmem>>, vector<8x1x8x128xf32>
    %443 = vector.shape_cast %442 : vector<8x1x8x128xf32> to vector<8x8x128xf32>
    %444 = vector.shape_cast %441 : vector<8x8x128xf32> to vector<8x1x8x128xf32>
    tpu.vector_store %arg17[%c0_255, %c12, %c0_256, %c0_257], %444 {strides = array<i32>} : memref<8x17x8x128xf32, #tpu.memory_space<vmem>>, vector<8x1x8x128xf32>,
    %445 = vector.extract_strided_slice %207 {offsets = [0, 1536], sizes = [64, 128], strides = [1, 1]} : vector<64x2048xf32> to vector<64x128xf32>
    %446 = arith.mulf %445, %191 : vector<64x128xf32>
    %447 = vector.shape_cast %446 : vector<64x128xf32> to vector<8x8x128xf32>
    %c0_258 = arith.constant 0 : index
    %c12_259 = arith.constant 12 : index
    %c0_260 = arith.constant 0 : index
    %c0_261 = arith.constant 0 : index
    %448 = vector.load %arg18[%c0_258, %c12_259, %c0_260, %c0_261] : memref<8x17x8x128xf32, #tpu.memory_space<vmem>>, vector<8x1x8x128xf32>
    %449 = vector.shape_cast %448 : vector<8x1x8x128xf32> to vector<8x8x128xf32>
    %450 = vector.shape_cast %447 : vector<8x8x128xf32> to vector<8x1x8x128xf32>
    tpu.vector_store %arg18[%c0_258, %c12_259, %c0_260, %c0_261], %450 {strides = array<i32>} : memref<8x17x8x128xf32, #tpu.memory_space<vmem>>, vector<8x1x8x128xf32>,
    %451 = vector.extract_strided_slice %208 {offsets = [0, 1536], sizes = [64, 128], strides = [1, 1]} : vector<64x2048xf32> to vector<64x128xf32>
    %452 = vector.shape_cast %451 : vector<64x128xf32> to vector<8x8x128xf32>
    %c0_262 = arith.constant 0 : index
    %c12_263 = arith.constant 12 : index
    %c0_264 = arith.constant 0 : index
    %c0_265 = arith.constant 0 : index
    %453 = vector.load %arg19[%c0_262, %c12_263, %c0_264, %c0_265] : memref<8x17x8x128xf32, #tpu.memory_space<vmem>>, vector<8x1x8x128xf32>
    %454 = vector.shape_cast %453 : vector<8x1x8x128xf32> to vector<8x8x128xf32>
    %455 = vector.shape_cast %452 : vector<8x8x128xf32> to vector<8x1x8x128xf32>
    tpu.vector_store %arg19[%c0_262, %c12_263, %c0_264, %c0_265], %455 {strides = array<i32>} : memref<8x17x8x128xf32, #tpu.memory_space<vmem>>, vector<8x1x8x128xf32>,
    %456 = vector.extract_strided_slice %203 {offsets = [13, 0], sizes = [1, 128], strides = [1, 1]} : vector<16x128xf32> to vector<1x128xf32>
    %457 = vector.broadcast %456 : vector<1x128xf32> to vector<64x128xf32>
    %458 = arith.mulf %190, %457 : vector<64x128xf32>
    %459 = math.exp %458 : vector<64x128xf32>
    %460 = vector.shape_cast %459 : vector<64x128xf32> to vector<8x8x128xf32>
    %c0_266 = arith.constant 0 : index
    %c13 = arith.constant 13 : index
    %c0_267 = arith.constant 0 : index
    %c0_268 = arith.constant 0 : index
    %461 = vector.load %arg17[%c0_266, %c13, %c0_267, %c0_268] : memref<8x17x8x128xf32, #tpu.memory_space<vmem>>, vector<8x1x8x128xf32>
    %462 = vector.shape_cast %461 : vector<8x1x8x128xf32> to vector<8x8x128xf32>
    %463 = vector.shape_cast %460 : vector<8x8x128xf32> to vector<8x1x8x128xf32>
    tpu.vector_store %arg17[%c0_266, %c13, %c0_267, %c0_268], %463 {strides = array<i32>} : memref<8x17x8x128xf32, #tpu.memory_space<vmem>>, vector<8x1x8x128xf32>,
    %464 = vector.extract_strided_slice %207 {offsets = [0, 1664], sizes = [64, 128], strides = [1, 1]} : vector<64x2048xf32> to vector<64x128xf32>
    %465 = arith.mulf %464, %191 : vector<64x128xf32>
    %466 = vector.shape_cast %465 : vector<64x128xf32> to vector<8x8x128xf32>
    %c0_269 = arith.constant 0 : index
    %c13_270 = arith.constant 13 : index
    %c0_271 = arith.constant 0 : index
    %c0_272 = arith.constant 0 : index
    %467 = vector.load %arg18[%c0_269, %c13_270, %c0_271, %c0_272] : memref<8x17x8x128xf32, #tpu.memory_space<vmem>>, vector<8x1x8x128xf32>
    %468 = vector.shape_cast %467 : vector<8x1x8x128xf32> to vector<8x8x128xf32>
    %469 = vector.shape_cast %466 : vector<8x8x128xf32> to vector<8x1x8x128xf32>
    tpu.vector_store %arg18[%c0_269, %c13_270, %c0_271, %c0_272], %469 {strides = array<i32>} : memref<8x17x8x128xf32, #tpu.memory_space<vmem>>, vector<8x1x8x128xf32>,
    %470 = vector.extract_strided_slice %208 {offsets = [0, 1664], sizes = [64, 128], strides = [1, 1]} : vector<64x2048xf32> to vector<64x128xf32>
    %471 = vector.shape_cast %470 : vector<64x128xf32> to vector<8x8x128xf32>
    %c0_273 = arith.constant 0 : index
    %c13_274 = arith.constant 13 : index
    %c0_275 = arith.constant 0 : index
    %c0_276 = arith.constant 0 : index
    %472 = vector.load %arg19[%c0_273, %c13_274, %c0_275, %c0_276] : memref<8x17x8x128xf32, #tpu.memory_space<vmem>>, vector<8x1x8x128xf32>
    %473 = vector.shape_cast %472 : vector<8x1x8x128xf32> to vector<8x8x128xf32>
    %474 = vector.shape_cast %471 : vector<8x8x128xf32> to vector<8x1x8x128xf32>
    tpu.vector_store %arg19[%c0_273, %c13_274, %c0_275, %c0_276], %474 {strides = array<i32>} : memref<8x17x8x128xf32, #tpu.memory_space<vmem>>, vector<8x1x8x128xf32>,
    %475 = vector.extract_strided_slice %203 {offsets = [14, 0], sizes = [1, 128], strides = [1, 1]} : vector<16x128xf32> to vector<1x128xf32>
    %476 = vector.broadcast %475 : vector<1x128xf32> to vector<64x128xf32>
    %477 = arith.mulf %190, %476 : vector<64x128xf32>
    %478 = math.exp %477 : vector<64x128xf32>
    %479 = vector.shape_cast %478 : vector<64x128xf32> to vector<8x8x128xf32>
    %c0_277 = arith.constant 0 : index
    %c14 = arith.constant 14 : index
    %c0_278 = arith.constant 0 : index
    %c0_279 = arith.constant 0 : index
    %480 = vector.load %arg17[%c0_277, %c14, %c0_278, %c0_279] : memref<8x17x8x128xf32, #tpu.memory_space<vmem>>, vector<8x1x8x128xf32>
    %481 = vector.shape_cast %480 : vector<8x1x8x128xf32> to vector<8x8x128xf32>
    %482 = vector.shape_cast %479 : vector<8x8x128xf32> to vector<8x1x8x128xf32>
    tpu.vector_store %arg17[%c0_277, %c14, %c0_278, %c0_279], %482 {strides = array<i32>} : memref<8x17x8x128xf32, #tpu.memory_space<vmem>>, vector<8x1x8x128xf32>,
    %483 = vector.extract_strided_slice %207 {offsets = [0, 1792], sizes = [64, 128], strides = [1, 1]} : vector<64x2048xf32> to vector<64x128xf32>
    %484 = arith.mulf %483, %191 : vector<64x128xf32>
    %485 = vector.shape_cast %484 : vector<64x128xf32> to vector<8x8x128xf32>
    %c0_280 = arith.constant 0 : index
    %c14_281 = arith.constant 14 : index
    %c0_282 = arith.constant 0 : index
    %c0_283 = arith.constant 0 : index
    %486 = vector.load %arg18[%c0_280, %c14_281, %c0_282, %c0_283] : memref<8x17x8x128xf32, #tpu.memory_space<vmem>>, vector<8x1x8x128xf32>
    %487 = vector.shape_cast %486 : vector<8x1x8x128xf32> to vector<8x8x128xf32>
    %488 = vector.shape_cast %485 : vector<8x8x128xf32> to vector<8x1x8x128xf32>
    tpu.vector_store %arg18[%c0_280, %c14_281, %c0_282, %c0_283], %488 {strides = array<i32>} : memref<8x17x8x128xf32, #tpu.memory_space<vmem>>, vector<8x1x8x128xf32>,
    %489 = vector.extract_strided_slice %208 {offsets = [0, 1792], sizes = [64, 128], strides = [1, 1]} : vector<64x2048xf32> to vector<64x128xf32>
    %490 = vector.shape_cast %489 : vector<64x128xf32> to vector<8x8x128xf32>
    %c0_284 = arith.constant 0 : index
    %c14_285 = arith.constant 14 : index
    %c0_286 = arith.constant 0 : index
    %c0_287 = arith.constant 0 : index
    %491 = vector.load %arg19[%c0_284, %c14_285, %c0_286, %c0_287] : memref<8x17x8x128xf32, #tpu.memory_space<vmem>>, vector<8x1x8x128xf32>
    %492 = vector.shape_cast %491 : vector<8x1x8x128xf32> to vector<8x8x128xf32>
    %493 = vector.shape_cast %490 : vector<8x8x128xf32> to vector<8x1x8x128xf32>
    tpu.vector_store %arg19[%c0_284, %c14_285, %c0_286, %c0_287], %493 {strides = array<i32>} : memref<8x17x8x128xf32, #tpu.memory_space<vmem>>, vector<8x1x8x128xf32>,
    %494 = vector.extract_strided_slice %203 {offsets = [15, 0], sizes = [1, 128], strides = [1, 1]} : vector<16x128xf32> to vector<1x128xf32>
    %495 = vector.broadcast %494 : vector<1x128xf32> to vector<64x128xf32>
    %496 = arith.mulf %190, %495 : vector<64x128xf32>
    %497 = math.exp %496 : vector<64x128xf32>
    %498 = vector.shape_cast %497 : vector<64x128xf32> to vector<8x8x128xf32>
    %c0_288 = arith.constant 0 : index
    %c15 = arith.constant 15 : index
    %c0_289 = arith.constant 0 : index
    %c0_290 = arith.constant 0 : index
    %499 = vector.load %arg17[%c0_288, %c15, %c0_289, %c0_290] : memref<8x17x8x128xf32, #tpu.memory_space<vmem>>, vector<8x1x8x128xf32>
    %500 = vector.shape_cast %499 : vector<8x1x8x128xf32> to vector<8x8x128xf32>
    %501 = vector.shape_cast %498 : vector<8x8x128xf32> to vector<8x1x8x128xf32>
    tpu.vector_store %arg17[%c0_288, %c15, %c0_289, %c0_290], %501 {strides = array<i32>} : memref<8x17x8x128xf32, #tpu.memory_space<vmem>>, vector<8x1x8x128xf32>,
    %502 = vector.extract_strided_slice %207 {offsets = [0, 1920], sizes = [64, 128], strides = [1, 1]} : vector<64x2048xf32> to vector<64x128xf32>
    %503 = arith.mulf %502, %191 : vector<64x128xf32>
    %504 = vector.shape_cast %503 : vector<64x128xf32> to vector<8x8x128xf32>
    %c0_291 = arith.constant 0 : index
    %c15_292 = arith.constant 15 : index
    %c0_293 = arith.constant 0 : index
    %c0_294 = arith.constant 0 : index
    %505 = vector.load %arg18[%c0_291, %c15_292, %c0_293, %c0_294] : memref<8x17x8x128xf32, #tpu.memory_space<vmem>>, vector<8x1x8x128xf32>
    %506 = vector.shape_cast %505 : vector<8x1x8x128xf32> to vector<8x8x128xf32>
    %507 = vector.shape_cast %504 : vector<8x8x128xf32> to vector<8x1x8x128xf32>
    tpu.vector_store %arg18[%c0_291, %c15_292, %c0_293, %c0_294], %507 {strides = array<i32>} : memref<8x17x8x128xf32, #tpu.memory_space<vmem>>, vector<8x1x8x128xf32>,
    %508 = vector.extract_strided_slice %208 {offsets = [0, 1920], sizes = [64, 128], strides = [1, 1]} : vector<64x2048xf32> to vector<64x128xf32>
    %509 = vector.shape_cast %508 : vector<64x128xf32> to vector<8x8x128xf32>
    %c0_295 = arith.constant 0 : index
    %c15_296 = arith.constant 15 : index
    %c0_297 = arith.constant 0 : index
    %c0_298 = arith.constant 0 : index
    %510 = vector.load %arg19[%c0_295, %c15_296, %c0_297, %c0_298] : memref<8x17x8x128xf32, #tpu.memory_space<vmem>>, vector<8x1x8x128xf32>
    %511 = vector.shape_cast %510 : vector<8x1x8x128xf32> to vector<8x8x128xf32>
    %512 = vector.shape_cast %509 : vector<8x8x128xf32> to vector<8x1x8x128xf32>
    tpu.vector_store %arg19[%c0_295, %c15_296, %c0_297, %c0_298], %512 {strides = array<i32>} : memref<8x17x8x128xf32, #tpu.memory_space<vmem>>, vector<8x1x8x128xf32>,
    %513 = vector.shape_cast %177 : vector<64x128xf32> to vector<8x8x128xf32>
    %c0_299 = arith.constant 0 : index
    %c16_300 = arith.constant 16 : index
    %c0_301 = arith.constant 0 : index
    %c0_302 = arith.constant 0 : index
    %514 = vector.load %arg18[%c0_299, %c16_300, %c0_301, %c0_302] : memref<8x17x8x128xf32, #tpu.memory_space<vmem>>, vector<8x1x8x128xf32>
    %515 = vector.shape_cast %514 : vector<8x1x8x128xf32> to vector<8x8x128xf32>
    %516 = vector.shape_cast %513 : vector<8x8x128xf32> to vector<8x1x8x128xf32>
    tpu.vector_store %arg18[%c0_299, %c16_300, %c0_301, %c0_302], %516 {strides = array<i32>} : memref<8x17x8x128xf32, #tpu.memory_space<vmem>>, vector<8x1x8x128xf32>,
    %c0_i32_303 = arith.constant 0 : i32
    %517 = arith.index_cast %c0_i32_303 : i32 to index
    %c0_304 = arith.constant 0 : index
    %c0_305 = arith.constant 0 : index
    %c0_306 = arith.constant 0 : index
    %518 = vector.load %arg17[%517, %c0_304, %c0_305, %c0_306] : memref<8x17x8x128xf32, #tpu.memory_space<vmem>>, vector<1x17x8x128xf32>
    %519 = vector.shape_cast %518 : vector<1x17x8x128xf32> to vector<17x8x128xf32>
    %520 = arith.mulf %206, %519 : vector<17x8x128xf32>
    %521 = arith.index_cast %c0_i32_303 : i32 to index
    %c0_307 = arith.constant 0 : index
    %c0_308 = arith.constant 0 : index
    %c0_309 = arith.constant 0 : index
    %522 = vector.load %arg18[%521, %c0_307, %c0_308, %c0_309] : memref<8x17x8x128xf32, #tpu.memory_space<vmem>>, vector<1x17x8x128xf32>
    %523 = vector.shape_cast %522 : vector<1x17x8x128xf32> to vector<17x8x128xf32>
    %524 = arith.addf %520, %523 : vector<17x8x128xf32>
    %525 = arith.index_cast %c0_i32_303 : i32 to index
    %c0_310 = arith.constant 0 : index
    %c0_311 = arith.constant 0 : index
    %c0_312 = arith.constant 0 : index
    %526 = vector.load %arg19[%525, %c0_310, %c0_311, %c0_312] : memref<8x17x8x128xf32, #tpu.memory_space<vmem>>, vector<1x17x8x128xf32>
    %527 = vector.shape_cast %526 : vector<1x17x8x128xf32> to vector<17x8x128xf32>
    %528 = arith.mulf %527, %524 : vector<17x8x128xf32>
    %cst_313 = arith.constant dense<0.000000e+00> : vector<8x128xf32>
    %529 = vector.multi_reduction <add>, %528, %cst_313 [0] : vector<17x8x128xf32> to vector<8x128xf32>
    %c0_i32_314 = arith.constant 0 : i32
    %530 = arith.addi %c0_i32_314, %c0_i32_303 : i32
    %c8_i32_315 = arith.constant 8 : i32
    %531 = arith.muli %530, %c8_i32_315 : i32
    %532 = tpu.assume_multiple %531, 8 : i32
    %c7_i32_316 = arith.constant 7 : i32
    %533 = arith.subi %c7_i32_316, %530 : i32
    %c8_i32_317 = arith.constant 8 : i32
    %534 = arith.muli %533, %c8_i32_317 : i32
    %535 = tpu.assume_multiple %534, 8 : i32
    %536 = vector.extract_strided_slice %529 {offsets = [0, 0], sizes = [8, 64], strides = [1, 1]} : vector<8x128xf32> to vector<8x64xf32>
    %537 = arith.index_cast %532 : i32 to index
    %c0_318 = arith.constant 0 : index
    %538 = vector.load %arg20[%537, %c0_318] : memref<64x64xf32, #tpu.memory_space<vmem>>, vector<8x64xf32>
    tpu.vector_store %arg20[%537, %c0_318], %536 {strides = array<i32>} : memref<64x64xf32, #tpu.memory_space<vmem>>, vector<8x64xf32>,
    %539 = vector.extract_strided_slice %529 {offsets = [0, 64], sizes = [8, 64], strides = [1, 1]} : vector<8x128xf32> to vector<8x64xf32>
    %540 = arith.index_cast %535 : i32 to index
    %c0_319 = arith.constant 0 : index
    %541 = vector.load %arg21[%540, %c0_319] : memref<64x64xf32, #tpu.memory_space<vmem>>, vector<8x64xf32>
    tpu.vector_store %arg21[%540, %c0_319], %539 {strides = array<i32>} : memref<64x64xf32, #tpu.memory_space<vmem>>, vector<8x64xf32>,
    %c1_i32_320 = arith.constant 1 : i32
    %542 = arith.index_cast %c1_i32_320 : i32 to index
    %c0_321 = arith.constant 0 : index
    %c0_322 = arith.constant 0 : index
    %c0_323 = arith.constant 0 : index
    %543 = vector.load %arg17[%542, %c0_321, %c0_322, %c0_323] : memref<8x17x8x128xf32, #tpu.memory_space<vmem>>, vector<1x17x8x128xf32>
    %544 = vector.shape_cast %543 : vector<1x17x8x128xf32> to vector<17x8x128xf32>
    %545 = arith.mulf %524, %544 : vector<17x8x128xf32>
    %546 = arith.index_cast %c1_i32_320 : i32 to index
    %c0_324 = arith.constant 0 : index
    %c0_325 = arith.constant 0 : index
    %c0_326 = arith.constant 0 : index
    %547 = vector.load %arg18[%546, %c0_324, %c0_325, %c0_326] : memref<8x17x8x128xf32, #tpu.memory_space<vmem>>, vector<1x17x8x128xf32>
    %548 = vector.shape_cast %547 : vector<1x17x8x128xf32> to vector<17x8x128xf32>
    %549 = arith.addf %545, %548 : vector<17x8x128xf32>
    %550 = arith.index_cast %c1_i32_320 : i32 to index
    %c0_327 = arith.constant 0 : index
    %c0_328 = arith.constant 0 : index
    %c0_329 = arith.constant 0 : index
    %551 = vector.load %arg19[%550, %c0_327, %c0_328, %c0_329] : memref<8x17x8x128xf32, #tpu.memory_space<vmem>>, vector<1x17x8x128xf32>
    %552 = vector.shape_cast %551 : vector<1x17x8x128xf32> to vector<17x8x128xf32>
    %553 = arith.mulf %552, %549 : vector<17x8x128xf32>
    %cst_330 = arith.constant dense<0.000000e+00> : vector<8x128xf32>
    %554 = vector.multi_reduction <add>, %553, %cst_330 [0] : vector<17x8x128xf32> to vector<8x128xf32>
    %c0_i32_331 = arith.constant 0 : i32
    %555 = arith.addi %c0_i32_331, %c1_i32_320 : i32
    %c8_i32_332 = arith.constant 8 : i32
    %556 = arith.muli %555, %c8_i32_332 : i32
    %557 = tpu.assume_multiple %556, 8 : i32
    %c7_i32_333 = arith.constant 7 : i32
    %558 = arith.subi %c7_i32_333, %555 : i32
    %c8_i32_334 = arith.constant 8 : i32
    %559 = arith.muli %558, %c8_i32_334 : i32
    %560 = tpu.assume_multiple %559, 8 : i32
    %561 = vector.extract_strided_slice %554 {offsets = [0, 0], sizes = [8, 64], strides = [1, 1]} : vector<8x128xf32> to vector<8x64xf32>
    %562 = arith.index_cast %557 : i32 to index
    %c0_335 = arith.constant 0 : index
    %563 = vector.load %arg20[%562, %c0_335] : memref<64x64xf32, #tpu.memory_space<vmem>>, vector<8x64xf32>
    tpu.vector_store %arg20[%562, %c0_335], %561 {strides = array<i32>} : memref<64x64xf32, #tpu.memory_space<vmem>>, vector<8x64xf32>,
    %564 = vector.extract_strided_slice %554 {offsets = [0, 64], sizes = [8, 64], strides = [1, 1]} : vector<8x128xf32> to vector<8x64xf32>
    %565 = arith.index_cast %560 : i32 to index
    %c0_336 = arith.constant 0 : index
    %566 = vector.load %arg21[%565, %c0_336] : memref<64x64xf32, #tpu.memory_space<vmem>>, vector<8x64xf32>
    tpu.vector_store %arg21[%565, %c0_336], %564 {strides = array<i32>} : memref<64x64xf32, #tpu.memory_space<vmem>>, vector<8x64xf32>,
    %c2_i32_337 = arith.constant 2 : i32
    %567 = arith.index_cast %c2_i32_337 : i32 to index
    %c0_338 = arith.constant 0 : index
    %c0_339 = arith.constant 0 : index
    %c0_340 = arith.constant 0 : index
    %568 = vector.load %arg17[%567, %c0_338, %c0_339, %c0_340] : memref<8x17x8x128xf32, #tpu.memory_space<vmem>>, vector<1x17x8x128xf32>
    %569 = vector.shape_cast %568 : vector<1x17x8x128xf32> to vector<17x8x128xf32>
    %570 = arith.mulf %549, %569 : vector<17x8x128xf32>
    %571 = arith.index_cast %c2_i32_337 : i32 to index
    %c0_341 = arith.constant 0 : index
    %c0_342 = arith.constant 0 : index
    %c0_343 = arith.constant 0 : index
    %572 = vector.load %arg18[%571, %c0_341, %c0_342, %c0_343] : memref<8x17x8x128xf32, #tpu.memory_space<vmem>>, vector<1x17x8x128xf32>
    %573 = vector.shape_cast %572 : vector<1x17x8x128xf32> to vector<17x8x128xf32>
    %574 = arith.addf %570, %573 : vector<17x8x128xf32>
    %575 = arith.index_cast %c2_i32_337 : i32 to index
    %c0_344 = arith.constant 0 : index
    %c0_345 = arith.constant 0 : index
    %c0_346 = arith.constant 0 : index
    %576 = vector.load %arg19[%575, %c0_344, %c0_345, %c0_346] : memref<8x17x8x128xf32, #tpu.memory_space<vmem>>, vector<1x17x8x128xf32>
    %577 = vector.shape_cast %576 : vector<1x17x8x128xf32> to vector<17x8x128xf32>
    %578 = arith.mulf %577, %574 : vector<17x8x128xf32>
    %cst_347 = arith.constant dense<0.000000e+00> : vector<8x128xf32>
    %579 = vector.multi_reduction <add>, %578, %cst_347 [0] : vector<17x8x128xf32> to vector<8x128xf32>
    %c0_i32_348 = arith.constant 0 : i32
    %580 = arith.addi %c0_i32_348, %c2_i32_337 : i32
    %c8_i32_349 = arith.constant 8 : i32
    %581 = arith.muli %580, %c8_i32_349 : i32
    %582 = tpu.assume_multiple %581, 8 : i32
    %c7_i32_350 = arith.constant 7 : i32
    %583 = arith.subi %c7_i32_350, %580 : i32
    %c8_i32_351 = arith.constant 8 : i32
    %584 = arith.muli %583, %c8_i32_351 : i32
    %585 = tpu.assume_multiple %584, 8 : i32
    %586 = vector.extract_strided_slice %579 {offsets = [0, 0], sizes = [8, 64], strides = [1, 1]} : vector<8x128xf32> to vector<8x64xf32>
    %587 = arith.index_cast %582 : i32 to index
    %c0_352 = arith.constant 0 : index
    %588 = vector.load %arg20[%587, %c0_352] : memref<64x64xf32, #tpu.memory_space<vmem>>, vector<8x64xf32>
    tpu.vector_store %arg20[%587, %c0_352], %586 {strides = array<i32>} : memref<64x64xf32, #tpu.memory_space<vmem>>, vector<8x64xf32>,
    %589 = vector.extract_strided_slice %579 {offsets = [0, 64], sizes = [8, 64], strides = [1, 1]} : vector<8x128xf32> to vector<8x64xf32>
    %590 = arith.index_cast %585 : i32 to index
    %c0_353 = arith.constant 0 : index
    %591 = vector.load %arg21[%590, %c0_353] : memref<64x64xf32, #tpu.memory_space<vmem>>, vector<8x64xf32>
    tpu.vector_store %arg21[%590, %c0_353], %589 {strides = array<i32>} : memref<64x64xf32, #tpu.memory_space<vmem>>, vector<8x64xf32>,
    %c3_i32_354 = arith.constant 3 : i32
    %592 = arith.index_cast %c3_i32_354 : i32 to index
    %c0_355 = arith.constant 0 : index
    %c0_356 = arith.constant 0 : index
    %c0_357 = arith.constant 0 : index
    %593 = vector.load %arg17[%592, %c0_355, %c0_356, %c0_357] : memref<8x17x8x128xf32, #tpu.memory_space<vmem>>, vector<1x17x8x128xf32>
    %594 = vector.shape_cast %593 : vector<1x17x8x128xf32> to vector<17x8x128xf32>
    %595 = arith.mulf %574, %594 : vector<17x8x128xf32>
    %596 = arith.index_cast %c3_i32_354 : i32 to index
    %c0_358 = arith.constant 0 : index
    %c0_359 = arith.constant 0 : index
    %c0_360 = arith.constant 0 : index
    %597 = vector.load %arg18[%596, %c0_358, %c0_359, %c0_360] : memref<8x17x8x128xf32, #tpu.memory_space<vmem>>, vector<1x17x8x128xf32>
    %598 = vector.shape_cast %597 : vector<1x17x8x128xf32> to vector<17x8x128xf32>
    %599 = arith.addf %595, %598 : vector<17x8x128xf32>
    %600 = arith.index_cast %c3_i32_354 : i32 to index
    %c0_361 = arith.constant 0 : index
    %c0_362 = arith.constant 0 : index
    %c0_363 = arith.constant 0 : index
    %601 = vector.load %arg19[%600, %c0_361, %c0_362, %c0_363] : memref<8x17x8x128xf32, #tpu.memory_space<vmem>>, vector<1x17x8x128xf32>
    %602 = vector.shape_cast %601 : vector<1x17x8x128xf32> to vector<17x8x128xf32>
    %603 = arith.mulf %602, %599 : vector<17x8x128xf32>
    %cst_364 = arith.constant dense<0.000000e+00> : vector<8x128xf32>
    %604 = vector.multi_reduction <add>, %603, %cst_364 [0] : vector<17x8x128xf32> to vector<8x128xf32>
    %c0_i32_365 = arith.constant 0 : i32
    %605 = arith.addi %c0_i32_365, %c3_i32_354 : i32
    %c8_i32_366 = arith.constant 8 : i32
    %606 = arith.muli %605, %c8_i32_366 : i32
    %607 = tpu.assume_multiple %606, 8 : i32
    %c7_i32_367 = arith.constant 7 : i32
    %608 = arith.subi %c7_i32_367, %605 : i32
    %c8_i32_368 = arith.constant 8 : i32
    %609 = arith.muli %608, %c8_i32_368 : i32
    %610 = tpu.assume_multiple %609, 8 : i32
    %611 = vector.extract_strided_slice %604 {offsets = [0, 0], sizes = [8, 64], strides = [1, 1]} : vector<8x128xf32> to vector<8x64xf32>
    %612 = arith.index_cast %607 : i32 to index
    %c0_369 = arith.constant 0 : index
    %613 = vector.load %arg20[%612, %c0_369] : memref<64x64xf32, #tpu.memory_space<vmem>>, vector<8x64xf32>
    tpu.vector_store %arg20[%612, %c0_369], %611 {strides = array<i32>} : memref<64x64xf32, #tpu.memory_space<vmem>>, vector<8x64xf32>,
    %614 = vector.extract_strided_slice %604 {offsets = [0, 64], sizes = [8, 64], strides = [1, 1]} : vector<8x128xf32> to vector<8x64xf32>
    %615 = arith.index_cast %610 : i32 to index
    %c0_370 = arith.constant 0 : index
    %616 = vector.load %arg21[%615, %c0_370] : memref<64x64xf32, #tpu.memory_space<vmem>>, vector<8x64xf32>
    tpu.vector_store %arg21[%615, %c0_370], %614 {strides = array<i32>} : memref<64x64xf32, #tpu.memory_space<vmem>>, vector<8x64xf32>,
    %c4_i32_371 = arith.constant 4 : i32
    %617 = arith.index_cast %c4_i32_371 : i32 to index
    %c0_372 = arith.constant 0 : index
    %c0_373 = arith.constant 0 : index
    %c0_374 = arith.constant 0 : index
    %618 = vector.load %arg17[%617, %c0_372, %c0_373, %c0_374] : memref<8x17x8x128xf32, #tpu.memory_space<vmem>>, vector<1x17x8x128xf32>
    %619 = vector.shape_cast %618 : vector<1x17x8x128xf32> to vector<17x8x128xf32>
    %620 = arith.mulf %599, %619 : vector<17x8x128xf32>
    %621 = arith.index_cast %c4_i32_371 : i32 to index
    %c0_375 = arith.constant 0 : index
    %c0_376 = arith.constant 0 : index
    %c0_377 = arith.constant 0 : index
    %622 = vector.load %arg18[%621, %c0_375, %c0_376, %c0_377] : memref<8x17x8x128xf32, #tpu.memory_space<vmem>>, vector<1x17x8x128xf32>
    %623 = vector.shape_cast %622 : vector<1x17x8x128xf32> to vector<17x8x128xf32>
    %624 = arith.addf %620, %623 : vector<17x8x128xf32>
    %625 = arith.index_cast %c4_i32_371 : i32 to index
    %c0_378 = arith.constant 0 : index
    %c0_379 = arith.constant 0 : index
    %c0_380 = arith.constant 0 : index
    %626 = vector.load %arg19[%625, %c0_378, %c0_379, %c0_380] : memref<8x17x8x128xf32, #tpu.memory_space<vmem>>, vector<1x17x8x128xf32>
    %627 = vector.shape_cast %626 : vector<1x17x8x128xf32> to vector<17x8x128xf32>
    %628 = arith.mulf %627, %624 : vector<17x8x128xf32>
    %cst_381 = arith.constant dense<0.000000e+00> : vector<8x128xf32>
    %629 = vector.multi_reduction <add>, %628, %cst_381 [0] : vector<17x8x128xf32> to vector<8x128xf32>
    %c0_i32_382 = arith.constant 0 : i32
    %630 = arith.addi %c0_i32_382, %c4_i32_371 : i32
    %c8_i32_383 = arith.constant 8 : i32
    %631 = arith.muli %630, %c8_i32_383 : i32
    %632 = tpu.assume_multiple %631, 8 : i32
    %c7_i32_384 = arith.constant 7 : i32
    %633 = arith.subi %c7_i32_384, %630 : i32
    %c8_i32_385 = arith.constant 8 : i32
    %634 = arith.muli %633, %c8_i32_385 : i32
    %635 = tpu.assume_multiple %634, 8 : i32
    %636 = vector.extract_strided_slice %629 {offsets = [0, 0], sizes = [8, 64], strides = [1, 1]} : vector<8x128xf32> to vector<8x64xf32>
    %637 = arith.index_cast %632 : i32 to index
    %c0_386 = arith.constant 0 : index
    %638 = vector.load %arg20[%637, %c0_386] : memref<64x64xf32, #tpu.memory_space<vmem>>, vector<8x64xf32>
    tpu.vector_store %arg20[%637, %c0_386], %636 {strides = array<i32>} : memref<64x64xf32, #tpu.memory_space<vmem>>, vector<8x64xf32>,
    %639 = vector.extract_strided_slice %629 {offsets = [0, 64], sizes = [8, 64], strides = [1, 1]} : vector<8x128xf32> to vector<8x64xf32>
    %640 = arith.index_cast %635 : i32 to index
    %c0_387 = arith.constant 0 : index
    %641 = vector.load %arg21[%640, %c0_387] : memref<64x64xf32, #tpu.memory_space<vmem>>, vector<8x64xf32>
    tpu.vector_store %arg21[%640, %c0_387], %639 {strides = array<i32>} : memref<64x64xf32, #tpu.memory_space<vmem>>, vector<8x64xf32>,
    %c5_i32_388 = arith.constant 5 : i32
    %642 = arith.index_cast %c5_i32_388 : i32 to index
    %c0_389 = arith.constant 0 : index
    %c0_390 = arith.constant 0 : index
    %c0_391 = arith.constant 0 : index
    %643 = vector.load %arg17[%642, %c0_389, %c0_390, %c0_391] : memref<8x17x8x128xf32, #tpu.memory_space<vmem>>, vector<1x17x8x128xf32>
    %644 = vector.shape_cast %643 : vector<1x17x8x128xf32> to vector<17x8x128xf32>
    %645 = arith.mulf %624, %644 : vector<17x8x128xf32>
    %646 = arith.index_cast %c5_i32_388 : i32 to index
    %c0_392 = arith.constant 0 : index
    %c0_393 = arith.constant 0 : index
    %c0_394 = arith.constant 0 : index
    %647 = vector.load %arg18[%646, %c0_392, %c0_393, %c0_394] : memref<8x17x8x128xf32, #tpu.memory_space<vmem>>, vector<1x17x8x128xf32>
    %648 = vector.shape_cast %647 : vector<1x17x8x128xf32> to vector<17x8x128xf32>
    %649 = arith.addf %645, %648 : vector<17x8x128xf32>
    %650 = arith.index_cast %c5_i32_388 : i32 to index
    %c0_395 = arith.constant 0 : index
    %c0_396 = arith.constant 0 : index
    %c0_397 = arith.constant 0 : index
    %651 = vector.load %arg19[%650, %c0_395, %c0_396, %c0_397] : memref<8x17x8x128xf32, #tpu.memory_space<vmem>>, vector<1x17x8x128xf32>
    %652 = vector.shape_cast %651 : vector<1x17x8x128xf32> to vector<17x8x128xf32>
    %653 = arith.mulf %652, %649 : vector<17x8x128xf32>
    %cst_398 = arith.constant dense<0.000000e+00> : vector<8x128xf32>
    %654 = vector.multi_reduction <add>, %653, %cst_398 [0] : vector<17x8x128xf32> to vector<8x128xf32>
    %c0_i32_399 = arith.constant 0 : i32
    %655 = arith.addi %c0_i32_399, %c5_i32_388 : i32
    %c8_i32_400 = arith.constant 8 : i32
    %656 = arith.muli %655, %c8_i32_400 : i32
    %657 = tpu.assume_multiple %656, 8 : i32
    %c7_i32_401 = arith.constant 7 : i32
    %658 = arith.subi %c7_i32_401, %655 : i32
    %c8_i32_402 = arith.constant 8 : i32
    %659 = arith.muli %658, %c8_i32_402 : i32
    %660 = tpu.assume_multiple %659, 8 : i32
    %661 = vector.extract_strided_slice %654 {offsets = [0, 0], sizes = [8, 64], strides = [1, 1]} : vector<8x128xf32> to vector<8x64xf32>
    %662 = arith.index_cast %657 : i32 to index
    %c0_403 = arith.constant 0 : index
    %663 = vector.load %arg20[%662, %c0_403] : memref<64x64xf32, #tpu.memory_space<vmem>>, vector<8x64xf32>
    tpu.vector_store %arg20[%662, %c0_403], %661 {strides = array<i32>} : memref<64x64xf32, #tpu.memory_space<vmem>>, vector<8x64xf32>,
    %664 = vector.extract_strided_slice %654 {offsets = [0, 64], sizes = [8, 64], strides = [1, 1]} : vector<8x128xf32> to vector<8x64xf32>
    %665 = arith.index_cast %660 : i32 to index
    %c0_404 = arith.constant 0 : index
    %666 = vector.load %arg21[%665, %c0_404] : memref<64x64xf32, #tpu.memory_space<vmem>>, vector<8x64xf32>
    tpu.vector_store %arg21[%665, %c0_404], %664 {strides = array<i32>} : memref<64x64xf32, #tpu.memory_space<vmem>>, vector<8x64xf32>,
    %c6_i32_405 = arith.constant 6 : i32
    %667 = arith.index_cast %c6_i32_405 : i32 to index
    %c0_406 = arith.constant 0 : index
    %c0_407 = arith.constant 0 : index
    %c0_408 = arith.constant 0 : index
    %668 = vector.load %arg17[%667, %c0_406, %c0_407, %c0_408] : memref<8x17x8x128xf32, #tpu.memory_space<vmem>>, vector<1x17x8x128xf32>
    %669 = vector.shape_cast %668 : vector<1x17x8x128xf32> to vector<17x8x128xf32>
    %670 = arith.mulf %649, %669 : vector<17x8x128xf32>
    %671 = arith.index_cast %c6_i32_405 : i32 to index
    %c0_409 = arith.constant 0 : index
    %c0_410 = arith.constant 0 : index
    %c0_411 = arith.constant 0 : index
    %672 = vector.load %arg18[%671, %c0_409, %c0_410, %c0_411] : memref<8x17x8x128xf32, #tpu.memory_space<vmem>>, vector<1x17x8x128xf32>
    %673 = vector.shape_cast %672 : vector<1x17x8x128xf32> to vector<17x8x128xf32>
    %674 = arith.addf %670, %673 : vector<17x8x128xf32>
    %675 = arith.index_cast %c6_i32_405 : i32 to index
    %c0_412 = arith.constant 0 : index
    %c0_413 = arith.constant 0 : index
    %c0_414 = arith.constant 0 : index
    %676 = vector.load %arg19[%675, %c0_412, %c0_413, %c0_414] : memref<8x17x8x128xf32, #tpu.memory_space<vmem>>, vector<1x17x8x128xf32>
    %677 = vector.shape_cast %676 : vector<1x17x8x128xf32> to vector<17x8x128xf32>
    %678 = arith.mulf %677, %674 : vector<17x8x128xf32>
    %cst_415 = arith.constant dense<0.000000e+00> : vector<8x128xf32>
    %679 = vector.multi_reduction <add>, %678, %cst_415 [0] : vector<17x8x128xf32> to vector<8x128xf32>
    %c0_i32_416 = arith.constant 0 : i32
    %680 = arith.addi %c0_i32_416, %c6_i32_405 : i32
    %c8_i32_417 = arith.constant 8 : i32
    %681 = arith.muli %680, %c8_i32_417 : i32
    %682 = tpu.assume_multiple %681, 8 : i32
    %c7_i32_418 = arith.constant 7 : i32
    %683 = arith.subi %c7_i32_418, %680 : i32
    %c8_i32_419 = arith.constant 8 : i32
    %684 = arith.muli %683, %c8_i32_419 : i32
    %685 = tpu.assume_multiple %684, 8 : i32
    %686 = vector.extract_strided_slice %679 {offsets = [0, 0], sizes = [8, 64], strides = [1, 1]} : vector<8x128xf32> to vector<8x64xf32>
    %687 = arith.index_cast %682 : i32 to index
    %c0_420 = arith.constant 0 : index
    %688 = vector.load %arg20[%687, %c0_420] : memref<64x64xf32, #tpu.memory_space<vmem>>, vector<8x64xf32>
    tpu.vector_store %arg20[%687, %c0_420], %686 {strides = array<i32>} : memref<64x64xf32, #tpu.memory_space<vmem>>, vector<8x64xf32>,
    %689 = vector.extract_strided_slice %679 {offsets = [0, 64], sizes = [8, 64], strides = [1, 1]} : vector<8x128xf32> to vector<8x64xf32>
    %690 = arith.index_cast %685 : i32 to index
    %c0_421 = arith.constant 0 : index
    %691 = vector.load %arg21[%690, %c0_421] : memref<64x64xf32, #tpu.memory_space<vmem>>, vector<8x64xf32>
    tpu.vector_store %arg21[%690, %c0_421], %689 {strides = array<i32>} : memref<64x64xf32, #tpu.memory_space<vmem>>, vector<8x64xf32>,
    %c7_i32_422 = arith.constant 7 : i32
    %692 = arith.index_cast %c7_i32_422 : i32 to index
    %c0_423 = arith.constant 0 : index
    %c0_424 = arith.constant 0 : index
    %c0_425 = arith.constant 0 : index
    %693 = vector.load %arg17[%692, %c0_423, %c0_424, %c0_425] : memref<8x17x8x128xf32, #tpu.memory_space<vmem>>, vector<1x17x8x128xf32>
    %694 = vector.shape_cast %693 : vector<1x17x8x128xf32> to vector<17x8x128xf32>
    %695 = arith.mulf %674, %694 : vector<17x8x128xf32>
    %696 = arith.index_cast %c7_i32_422 : i32 to index
    %c0_426 = arith.constant 0 : index
    %c0_427 = arith.constant 0 : index
    %c0_428 = arith.constant 0 : index
    %697 = vector.load %arg18[%696, %c0_426, %c0_427, %c0_428] : memref<8x17x8x128xf32, #tpu.memory_space<vmem>>, vector<1x17x8x128xf32>
    %698 = vector.shape_cast %697 : vector<1x17x8x128xf32> to vector<17x8x128xf32>
    %699 = arith.addf %695, %698 : vector<17x8x128xf32>
    %700 = arith.index_cast %c7_i32_422 : i32 to index
    %c0_429 = arith.constant 0 : index
    %c0_430 = arith.constant 0 : index
    %c0_431 = arith.constant 0 : index
    %701 = vector.load %arg19[%700, %c0_429, %c0_430, %c0_431] : memref<8x17x8x128xf32, #tpu.memory_space<vmem>>, vector<1x17x8x128xf32>
    %702 = vector.shape_cast %701 : vector<1x17x8x128xf32> to vector<17x8x128xf32>
    %703 = arith.mulf %702, %699 : vector<17x8x128xf32>
    %cst_432 = arith.constant dense<0.000000e+00> : vector<8x128xf32>
    %704 = vector.multi_reduction <add>, %703, %cst_432 [0] : vector<17x8x128xf32> to vector<8x128xf32>
    %c0_i32_433 = arith.constant 0 : i32
    %705 = arith.addi %c0_i32_433, %c7_i32_422 : i32
    %c8_i32_434 = arith.constant 8 : i32
    %706 = arith.muli %705, %c8_i32_434 : i32
    %707 = tpu.assume_multiple %706, 8 : i32
    %c7_i32_435 = arith.constant 7 : i32
    %708 = arith.subi %c7_i32_435, %705 : i32
    %c8_i32_436 = arith.constant 8 : i32
    %709 = arith.muli %708, %c8_i32_436 : i32
    %710 = tpu.assume_multiple %709, 8 : i32
    %711 = vector.extract_strided_slice %704 {offsets = [0, 0], sizes = [8, 64], strides = [1, 1]} : vector<8x128xf32> to vector<8x64xf32>
    %712 = arith.index_cast %707 : i32 to index
    %c0_437 = arith.constant 0 : index
    %713 = vector.load %arg20[%712, %c0_437] : memref<64x64xf32, #tpu.memory_space<vmem>>, vector<8x64xf32>
    tpu.vector_store %arg20[%712, %c0_437], %711 {strides = array<i32>} : memref<64x64xf32, #tpu.memory_space<vmem>>, vector<8x64xf32>,
    %714 = vector.extract_strided_slice %704 {offsets = [0, 64], sizes = [8, 64], strides = [1, 1]} : vector<8x128xf32> to vector<8x64xf32>
    %715 = arith.index_cast %710 : i32 to index
    %c0_438 = arith.constant 0 : index
    %716 = vector.load %arg21[%715, %c0_438] : memref<64x64xf32, #tpu.memory_space<vmem>>, vector<8x64xf32>
    tpu.vector_store %arg21[%715, %c0_438], %714 {strides = array<i32>} : memref<64x64xf32, #tpu.memory_space<vmem>>, vector<8x64xf32>,
    %c8_i32_439 = arith.constant 8 : i32
    %c0_440 = arith.constant 0 : index
    %c0_441 = arith.constant 0 : index
    %717 = vector.load %arg20[%c0_440, %c0_441] : memref<64x64xf32, #tpu.memory_space<vmem>>, vector<64x64xf32>
    %c0_442 = arith.constant 0 : index
    %c0_443 = arith.constant 0 : index
    %718 = vector.load %arg21[%c0_442, %c0_443] : memref<64x64xf32, #tpu.memory_space<vmem>>, vector<64x64xf32>
    %719 = arith.addf %717, %718 : vector<64x64xf32>
    %cst_444 = arith.constant 5.000000e-01 : f32
    %720 = vector.broadcast %cst_444 : f32 to vector<64x64xf32>
    %721 = arith.mulf %720, %27 : vector<64x64xf32>
    %722 = math.tanh %721 : vector<64x64xf32>
    %cst_445 = arith.constant 1.000000e+00 : f32
    %723 = vector.broadcast %cst_445 : f32 to vector<64x64xf32>
    %724 = arith.addf %722, %723 : vector<64x64xf32>
    %cst_446 = arith.constant 5.000000e-01 : f32
    %725 = vector.broadcast %cst_446 : f32 to vector<64x64xf32>
    %726 = arith.mulf %725, %724 : vector<64x64xf32>
    %727 = arith.mulf %27, %726 : vector<64x64xf32>
    %728 = arith.mulf %719, %727 : vector<64x64xf32>
    %729 = arith.truncf %728 : vector<64x64xf32> to vector<64x64xbf16>
    %c0_447 = arith.constant 0 : index
    %c0_448 = arith.constant 0 : index
    %730 = vector.load %arg12[%c0_447, %c0_448] : memref<64x32xbf16, #tpu.memory_space<vmem>>, vector<64x32xbf16>
    %cst_449 = arith.constant dense<0.000000e+00> : vector<64x32xf32>
    %731 = tpu.matmul %729, %730, %cst_449 {dimension_numbers = #tpu.dot_dimension_numbers<[1], [0], [0], [1], [0, 0, 1, 1], [], []>} : vector<64x64xbf16>, vector<64x32xbf16>, vector<64x32xf32> -> vector<64x32xf32>
    %732 = arith.addf %731, %1 : vector<64x32xf32>
    %733 = arith.mulf %732, %732 : vector<64x32xf32>
    %cst_450 = arith.constant dense<0.000000e+00> : vector<64xf32>
    %734 = vector.multi_reduction <add>, %733, %cst_450 [1] : vector<64x32xf32> to vector<64xf32>
    %735 = vector.shape_cast %734 : vector<64xf32> to vector<64x1xf32>
    %cst_451 = arith.constant 3.200000e+01 : f32
    %736 = vector.broadcast %cst_451 : f32 to vector<64x1xf32>
    %737 = arith.divf %735, %736 : vector<64x1xf32>
    %cst_452 = arith.constant 9.99999974E-6 : f32
    %738 = vector.broadcast %cst_452 : f32 to vector<64x1xf32>
    %739 = arith.addf %737, %738 : vector<64x1xf32>
    %740 = math.rsqrt %739 : vector<64x1xf32>
    %741 = vector.broadcast %740 : vector<64x1xf32> to vector<64x32xf32>
    %742 = arith.mulf %732, %741 : vector<64x32xf32>
    %c0_453 = arith.constant 0 : index
    %c0_454 = arith.constant 0 : index
    %743 = vector.load %arg13[%c0_453, %c0_454] : memref<1x32xf32, #tpu.memory_space<vmem>>, vector<1x32xf32>
    %744 = vector.broadcast %743 : vector<1x32xf32> to vector<64x32xf32>
    %745 = arith.mulf %742, %744 : vector<64x32xf32>
    %c0_455 = arith.constant 0 : index
    %c0_456 = arith.constant 0 : index
    %c0_457 = arith.constant 0 : index
    %746 = vector.load %arg14[%c0_455, %c0_456, %c0_457] : memref<1x64x32xf32, #tpu.memory_space<vmem>>, vector<1x64x32xf32>
    %747 = vector.shape_cast %746 : vector<1x64x32xf32> to vector<64x32xf32>
    %748 = vector.shape_cast %745 : vector<64x32xf32> to vector<1x64x32xf32>
    tpu.vector_store %arg14[%c0_455, %c0_456, %c0_457], %748 {strides = array<i32>} : memref<1x64x32xf32, #tpu.memory_space<vmem>>, vector<1x64x32xf32>,
    return
  }
  func.func @transform_0(%arg0: i32) -> (i32, i32, i32) {
    %c0_i32 = arith.constant 0 : i32
    %c0_i32_0 = arith.constant 0 : i32
    %c0_i32_1 = arith.constant 0 : i32
    return %arg0, %c0_i32, %c0_i32_0 : i32, i32, i32
  }
  func.func @transform_1(%arg0: i32) -> (i32, i32) {
    %c0_i32 = arith.constant 0 : i32
    %c0_i32_0 = arith.constant 0 : i32
    %c0_i32_1 = arith.constant 0 : i32
    return %c0_i32, %c0_i32_0 : i32, i32
  }
  func.func @transform_2(%arg0: i32) -> (i32, i32) {
    %c0_i32 = arith.constant 0 : i32
    %c0_i32_0 = arith.constant 0 : i32
    %c0_i32_1 = arith.constant 0 : i32
    return %c0_i32, %c0_i32_0 : i32, i32
  }
  func.func @transform_3(%arg0: i32) -> (i32, i32) {
    %c0_i32 = arith.constant 0 : i32
    %c0_i32_0 = arith.constant 0 : i32
    %c0_i32_1 = arith.constant 0 : i32
    return %c0_i32, %c0_i32_0 : i32, i32
  }
  func.func @transform_4(%arg0: i32) -> (i32, i32) {
    %c0_i32 = arith.constant 0 : i32
    %c0_i32_0 = arith.constant 0 : i32
    %c0_i32_1 = arith.constant 0 : i32
    return %c0_i32, %c0_i32_0 : i32, i32
  }
  func.func @transform_5(%arg0: i32) -> (i32, i32) {
    %c0_i32 = arith.constant 0 : i32
    %c0_i32_0 = arith.constant 0 : i32
    %c0_i32_1 = arith.constant 0 : i32
    return %c0_i32, %c0_i32_0 : i32, i32
  }
  func.func @transform_6(%arg0: i32) -> (i32, i32) {
    %c0_i32 = arith.constant 0 : i32
    %c0_i32_0 = arith.constant 0 : i32
    %c0_i32_1 = arith.constant 0 : i32
    return %c0_i32, %c0_i32_0 : i32, i32
  }
  func.func @transform_7(%arg0: i32) -> (i32, i32) {
    %c0_i32 = arith.constant 0 : i32
    %c0_i32_0 = arith.constant 0 : i32
    %c0_i32_1 = arith.constant 0 : i32
    return %c0_i32, %c0_i32_0 : i32, i32
  }
  func.func @transform_8(%arg0: i32) -> (i32, i32) {
    %c0_i32 = arith.constant 0 : i32
    %c0_i32_0 = arith.constant 0 : i32
    %c0_i32_1 = arith.constant 0 : i32
    return %c0_i32, %c0_i32_0 : i32, i32
  }
  func.func @transform_9(%arg0: i32) -> (i32, i32) {
    %c0_i32 = arith.constant 0 : i32
    %c0_i32_0 = arith.constant 0 : i32
    %c0_i32_1 = arith.constant 0 : i32
    return %c0_i32, %c0_i32_0 : i32, i32
  }
  func.func @transform_10(%arg0: i32) -> (i32, i32) {
    %c0_i32 = arith.constant 0 : i32
    %c0_i32_0 = arith.constant 0 : i32
    %c0_i32_1 = arith.constant 0 : i32
    return %c0_i32, %c0_i32_0 : i32, i32
  }
  func.func @transform_11(%arg0: i32) -> (i32, i32) {
    %c0_i32 = arith.constant 0 : i32
    %c0_i32_0 = arith.constant 0 : i32
    %c0_i32_1 = arith.constant 0 : i32
    return %c0_i32, %c0_i32_0 : i32, i32
  }
  func.func @transform_12(%arg0: i32) -> (i32, i32) {
    %c0_i32 = arith.constant 0 : i32
    %c0_i32_0 = arith.constant 0 : i32
    %c0_i32_1 = arith.constant 0 : i32
    return %c0_i32, %c0_i32_0 : i32, i32
  }
  func.func @transform_13(%arg0: i32) -> (i32, i32, i32) {
    %c0_i32 = arith.constant 0 : i32
    %c0_i32_0 = arith.constant 0 : i32
    %c0_i32_1 = arith.constant 0 : i32
    return %arg0, %c0_i32, %c0_i32_0 : i32, i32, i32
  }
}

</mosaic_0001>

<llo_original>
// kernel: tpu_custom_call.1
$region0: #{tpu_custom_call.1}
  #allocation0 [shape = 'u32[]', space=smem, size = 0x4, offset = 0x4, fixed_abs, tag = 'smem constant byte address 0x4 - core index']
  #allocation1 [shape = 'u32[72,128]{1,0:T(1,128)}', space=vmem, size = 0x9000, scoped, tag = 'internal scratch']
  #allocation2 [shape = 'f32[88,64]{1,0:T(8,128)}', space=vmem, size = 0xb000, scoped, tag = 'scratch operand']
  #allocation3 [shape = 'f32[88,64]{1,0:T(8,128)}', space=vmem, size = 0xb000, scoped, tag = 'scratch operand']
  #allocation4 [shape = 'f32[8,17,8,128]{3,2,1,0:T(8,128)}', space=vmem, size = 0x88000, scoped, tag = 'scratch operand']
  #allocation5 [shape = 'f32[8,17,8,128]{3,2,1,0:T(8,128)}', space=vmem, size = 0x88000, scoped, tag = 'scratch operand']
  #allocation6 [shape = 'f32[8,17,8,128]{3,2,1,0:T(8,128)}', space=vmem, size = 0x88000, scoped, tag = 'scratch operand']
  #allocation7 [shape = 'f32[64,64]{1,0:T(8,128)}', space=vmem, size = 0x8000, scoped, tag = 'scratch operand']
  #allocation8 [shape = 'f32[64,64]{1,0:T(8,128)}', space=vmem, size = 0x8000, scoped, tag = 'scratch operand']
  %s0 = inlined_call_operand.vmem [shape: f32[1,64,32], index: 0, kind: input, shape index: {}]
  %s1 = inlined_call_operand.vmem [shape: bf16[32,128], index: 1, kind: input, shape index: {}]
  %s2 = inlined_call_operand.vmem [shape: f32[1,128], index: 2, kind: input, shape index: {}]
  %s3 = inlined_call_operand.vmem [shape: f32[4,128], index: 3, kind: input, shape index: {}]
  %s4 = inlined_call_operand.vmem [shape: f32[1,128], index: 4, kind: input, shape index: {}]
  %s5 = inlined_call_operand.hbm [shape: f32[128,128], index: 5, kind: input, shape index: {}]
  %s6 = inlined_call_operand.vmem [shape: f32[1,128], index: 6, kind: input, shape index: {}]
  %s7 = inlined_call_operand.hbm [shape: bf16[128,2048], index: 7, kind: input, shape index: {}]
  %s8 = inlined_call_operand.hbm [shape: bf16[128,2048], index: 8, kind: input, shape index: {}]
  %s9 = inlined_call_operand.vmem [shape: f32[16,128], index: 9, kind: input, shape index: {}]
  %s10 = inlined_call_operand.vmem [shape: f32[1,128], index: 10, kind: input, shape index: {}]
  %s11 = inlined_call_operand.vmem [shape: bf16[64,32], index: 11, kind: input, shape index: {}]
  %s12 = inlined_call_operand.vmem [shape: f32[1,32], index: 12, kind: input, shape index: {}]
  %s13 = inlined_call_operand.vmem [shape: f32[1,64,32], index: 13, kind: output, shape index: {}]
  %s14 = sld [smem:[#allocation0]]
  $region74: #{tpu_custom_call.1} parent=0
    _
  %s16 = ssub.s32 1, %s14
  %s17 = scalar_select 0, %s16, %s14
  $region1: #{tpu_custom_call.1} parent=0
    #allocation9 [shape = 'u8[65536]{0}', space=vmem, size = 0x10000, scoped, tag = 'input window, operand 5, single buffered']
    #allocation10 [shape = 's32[1]{0}', space=sflag, size = 0x4, scoped, tag = 'scoped memory for tpu_custom_call.1']
    #allocation11 [shape = 'u8[524288]{0}', space=vmem, size = 0x80000, scoped, tag = 'input window, operand 7, single buffered']
    #allocation12 [shape = 's32[1]{0}', space=sflag, size = 0x4, scoped, tag = 'scoped memory for tpu_custom_call.1']
    #allocation13 [shape = 'u8[524288]{0}', space=vmem, size = 0x80000, scoped, tag = 'input window, operand 8, single buffered']
    %18 = vsyncpa [#allocation10], 0
    %19 = vsyncpa [#allocation12], 0
    // Predicated region
    $region2: #{tpu_custom_call.1} parent=1 // pred_check
      _
    $region3: #{tpu_custom_call.1} parent=1 // pred_check_branch
      %21 = sbr.rel (0) target = $region5
    $region4: #{tpu_custom_call.1} parent=1 // pred_region
      _
    $region5: #{tpu_custom_call.1} parent=1 // pred_fallthru
      _
    // Predicated region
    $region6: #{tpu_custom_call.1} parent=1 // pred_check
      _
    $region7: #{tpu_custom_call.1} parent=1 // pred_check_branch
      %23 = sbr.rel (0) target = $region9
    $region8: #{tpu_custom_call.1} parent=1 // pred_region
      _
    $region9: #{tpu_custom_call.1} parent=1 // pred_fallthru
      _
    // Predicated region
    $region10: #{tpu_custom_call.1} parent=1 // pred_check
      _
    $region11: #{tpu_custom_call.1} parent=1 // pred_check_branch
      %25 = sbr.rel (0) target = $region13
    $region12: #{tpu_custom_call.1} parent=1 // pred_region
      _
    $region13: #{tpu_custom_call.1} parent=1 // pred_fallthru
      _
    // Predicated region
    $region14: #{tpu_custom_call.1} parent=1 // pred_check
      _
    $region15: #{tpu_custom_call.1} parent=1 // pred_check_branch
      %27 = sbr.rel (0) target = $region17
    $region16: #{tpu_custom_call.1} parent=1 // pred_region
      _
    $region17: #{tpu_custom_call.1} parent=1 // pred_fallthru
      _
    // Predicated region
    $region18: #{tpu_custom_call.1} parent=1 // pred_check
      _
    $region19: #{tpu_custom_call.1} parent=1 // pred_check_branch
      %29 = sbr.rel (0) target = $region21
    $region20: #{tpu_custom_call.1} parent=1 // pred_region
      _
    $region21: #{tpu_custom_call.1} parent=1 // pred_fallthru
      _
    // Predicated region
    $region22: #{tpu_custom_call.1} parent=1 // pred_check
      _
    $region23: #{tpu_custom_call.1} parent=1 // pred_check_branch
      %31 = sbr.rel (0) target = $region25
    $region24: #{tpu_custom_call.1} parent=1 // pred_region
      %33 = vsyncadd [#allocation10], 0
      %s34 = sshll.u32 %s5, 4
      %s35 = int_to_ptr.hbm [resolvable:$true] %s34
      %s36 = sshll.u32 [#allocation9], 4
      %s37 = int_to_ptr.vmem [resolvable:$true] %s36
      %42 = dma.hbm_to_vmem [thread:$0]  %s35, 2048, %s37, [#allocation10], 128, 128, 8
    $region25: #{tpu_custom_call.1} parent=1 // pred_fallthru
      _
    // Predicated region
    $region26: #{tpu_custom_call.1} parent=1 // pred_check
      _
    $region27: #{tpu_custom_call.1} parent=1 // pred_check_branch
      %44 = sbr.rel (0) target = $region29
    $region28: #{tpu_custom_call.1} parent=1 // pred_region
      _
    $region29: #{tpu_custom_call.1} parent=1 // pred_fallthru
      _
    // Predicated region
    $region30: #{tpu_custom_call.1} parent=1 // pred_check
      _
    $region31: #{tpu_custom_call.1} parent=1 // pred_check_branch
      %46 = sbr.rel (0) target = $region33
    $region32: #{tpu_custom_call.1} parent=1 // pred_region
      %48 = vsyncadd [#allocation12], 0
      %s49 = sshll.u32 %s7, 4
      %s50 = int_to_ptr.hbm [resolvable:$true] %s49
      %s51 = sshll.u32 [#allocation11], 4
      %s52 = int_to_ptr.vmem [resolvable:$true] %s51
      %57 = dma.hbm_to_vmem [thread:$0]  %s50, 16384, %s52, [#allocation12], 1024, 1024, 64
    $region33: #{tpu_custom_call.1} parent=1 // pred_fallthru
      _
    // Predicated region
    $region34: #{tpu_custom_call.1} parent=1 // pred_check
      _
    $region35: #{tpu_custom_call.1} parent=1 // pred_check_branch
      %59 = sbr.rel (0) target = $region37
    $region36: #{tpu_custom_call.1} parent=1 // pred_region
      %61 = vsyncadd [#allocation12], 0
      %s62 = sshll.u32 %s8, 4
      %s63 = int_to_ptr.hbm [resolvable:$true] %s62
      %s64 = sshll.u32 [#allocation13], 4
      %s65 = int_to_ptr.vmem [resolvable:$true] %s64
      %70 = dma.hbm_to_vmem [thread:$0]  %s63, 16384, %s65, [#allocation12], 1024, 1024, 64
    $region37: #{tpu_custom_call.1} parent=1 // pred_fallthru
      _
    // Predicated region
    $region38: #{tpu_custom_call.1} parent=1 // pred_check
      _
    $region39: #{tpu_custom_call.1} parent=1 // pred_check_branch
      %72 = sbr.rel (0) target = $region41
    $region40: #{tpu_custom_call.1} parent=1 // pred_region
      _
    $region41: #{tpu_custom_call.1} parent=1 // pred_fallthru
      _
    // Predicated region
    $region42: #{tpu_custom_call.1} parent=1 // pred_check
      _
    $region43: #{tpu_custom_call.1} parent=1 // pred_check_branch
      %74 = sbr.rel (0) target = $region45
    $region44: #{tpu_custom_call.1} parent=1 // pred_region
      _
    $region45: #{tpu_custom_call.1} parent=1 // pred_fallthru
      _
    // Predicated region
    $region46: #{tpu_custom_call.1} parent=1 // pred_check
      _
    $region47: #{tpu_custom_call.1} parent=1 // pred_check_branch
      %76 = sbr.rel (0) target = $region49
    $region48: #{tpu_custom_call.1} parent=1 // pred_region
      _
    $region49: #{tpu_custom_call.1} parent=1 // pred_fallthru
      _
    // Predicated region
    $region50: #{tpu_custom_call.1} parent=1 // pred_check
      _
    $region51: #{tpu_custom_call.1} parent=1 // pred_check_branch
      %78 = sbr.rel (0) target = $region53
    $region52: #{tpu_custom_call.1} parent=1 // pred_region
      _
    $region53: #{tpu_custom_call.1} parent=1 // pred_fallthru
      _
    // Predicated region
    $region54: #{tpu_custom_call.1} parent=1 // pred_check
      _
    $region55: #{tpu_custom_call.1} parent=1 // pred_check_branch
      %80 = sbr.rel (0) target = $region57
    $region56: #{tpu_custom_call.1} parent=1 // pred_region
      %82 = dma.done [#allocation10], 2048
    $region57: #{tpu_custom_call.1} parent=1 // pred_fallthru
      _
    // Predicated region
    $region58: #{tpu_custom_call.1} parent=1 // pred_check
      _
    $region59: #{tpu_custom_call.1} parent=1 // pred_check_branch
      %84 = sbr.rel (0) target = $region61
    $region60: #{tpu_custom_call.1} parent=1 // pred_region
      %86 = dma.done [#allocation12], 16384
    $region61: #{tpu_custom_call.1} parent=1 // pred_fallthru
      _
    // Predicated region
    $region62: #{tpu_custom_call.1} parent=1 // pred_check
      _
    $region63: #{tpu_custom_call.1} parent=1 // pred_check_branch
      %88 = sbr.rel (0) target = $region65
    $region64: #{tpu_custom_call.1} parent=1 // pred_region
      %90 = dma.done [#allocation12], 16384
    $region65: #{tpu_custom_call.1} parent=1 // pred_fallthru
      _
    %v92 = vld [vmem:[%s0] sm:$0xff]
    %v93 = vld [vmem:[%s0 + $0x8] sm:$0xff]
    %v94 = vld [vmem:[%s0 + $0x10] sm:$0xff]
    %v95 = vld [vmem:[%s0 + $0x18] sm:$0xff]
    %v96 = vld [vmem:[%s0 + $0x20] sm:$0xff]
    %v97 = vld [vmem:[%s0 + $0x28] sm:$0xff]
    %v98 = vld [vmem:[%s0 + $0x30] sm:$0xff]
    %v99 = vld [vmem:[%s0 + $0x38] sm:$0xff]
    %vm100 = vcmask 261120
    %v101 = vsel %vm100, %v92, 0.0
    %102 = vadd.xlane.f32.xlu0 %v101
    %v103 = vpop.xlane.xlu0 %102
    %v104 = vsel %vm100, %v93, 0.0
    %105 = vadd.xlane.f32.xlu0 %v104
    %v106 = vpop.xlane.xlu0 %105
    %v107 = vsel %vm100, %v94, 0.0
    %108 = vadd.xlane.f32.xlu0 %v107
    %v109 = vpop.xlane.xlu0 %108
    %v110 = vsel %vm100, %v95, 0.0
    %111 = vadd.xlane.f32.xlu0 %v110
    %v112 = vpop.xlane.xlu0 %111
    %v113 = vsel %vm100, %v96, 0.0
    %114 = vadd.xlane.f32.xlu0 %v113
    %v115 = vpop.xlane.xlu0 %114
    %v116 = vsel %vm100, %v97, 0.0
    %117 = vadd.xlane.f32.xlu0 %v116
    %v118 = vpop.xlane.xlu0 %117
    %v119 = vsel %vm100, %v98, 0.0
    %120 = vadd.xlane.f32.xlu0 %v119
    %v121 = vpop.xlane.xlu0 %120
    %v122 = vsel %vm100, %v99, 0.0
    %123 = vadd.xlane.f32.xlu0 %v122
    %v124 = vpop.xlane.xlu0 %123
    %v125 = vrcp.pop 32.0
    %v126 = vmul.f32 32.0, %v125
    %v127 = vsub.f32 1.0, %v126
    %v128 = vmul.f32 %v125, %v127
    %v129 = vadd.f32 %v125, %v128
    %vm130 = vweird.f32 %v125
    %v131 = vsel %vm130, %v125, %v129
    %v132 = vmul.f32 %v103, %v131
    %v133 = vmul.f32 %v106, %v131
    %v134 = vmul.f32 %v109, %v131
    %v135 = vmul.f32 %v112, %v131
    %v136 = vmul.f32 %v115, %v131
    %v137 = vmul.f32 %v118, %v131
    %v138 = vmul.f32 %v121, %v131
    %v139 = vmul.f32 %v124, %v131
    %v140 = vsub.f32 %v92, %v132
    %v141 = vsub.f32 %v93, %v133
    %v142 = vsub.f32 %v94, %v134
    %v143 = vsub.f32 %v95, %v135
    %v144 = vsub.f32 %v96, %v136
    %v145 = vsub.f32 %v97, %v137
    %v146 = vsub.f32 %v98, %v138
    %v147 = vsub.f32 %v99, %v139
    %v148 = vmul.f32 %v140, %v140
    %v149 = vmul.f32 %v141, %v141
    %v150 = vmul.f32 %v142, %v142
    %v151 = vmul.f32 %v143, %v143
    %v152 = vmul.f32 %v144, %v144
    %v153 = vmul.f32 %v145, %v145
    %v154 = vmul.f32 %v146, %v146
    %v155 = vmul.f32 %v147, %v147
    %v156 = vsel %vm100, %v148, 0.0
    %157 = vadd.xlane.f32.xlu0 %v156
    %v158 = vpop.xlane.xlu0 %157
    %v159 = vsel %vm100, %v149, 0.0
    %160 = vadd.xlane.f32.xlu0 %v159
    %v161 = vpop.xlane.xlu0 %160
    %v162 = vsel %vm100, %v150, 0.0
    %163 = vadd.xlane.f32.xlu0 %v162
    %v164 = vpop.xlane.xlu0 %163
    %v165 = vsel %vm100, %v151, 0.0
    %166 = vadd.xlane.f32.xlu0 %v165
    %v167 = vpop.xlane.xlu0 %166
    %v168 = vsel %vm100, %v152, 0.0
    %169 = vadd.xlane.f32.xlu0 %v168
    %v170 = vpop.xlane.xlu0 %169
    %v171 = vsel %vm100, %v153, 0.0
    %172 = vadd.xlane.f32.xlu0 %v171
    %v173 = vpop.xlane.xlu0 %172
    %v174 = vsel %vm100, %v154, 0.0
    %175 = vadd.xlane.f32.xlu0 %v174
    %v176 = vpop.xlane.xlu0 %175
    %v177 = vsel %vm100, %v155, 0.0
    %178 = vadd.xlane.f32.xlu0 %v177
    %v179 = vpop.xlane.xlu0 %178
    %v180 = vmul.f32 %v158, %v131
    %v181 = vmul.f32 %v161, %v131
    %v182 = vmul.f32 %v164, %v131
    %v183 = vmul.f32 %v167, %v131
    %v184 = vmul.f32 %v170, %v131
    %v185 = vmul.f32 %v173, %v131
    %v186 = vmul.f32 %v176, %v131
    %v187 = vmul.f32 %v179, %v131
    %v188 = vadd.f32 %v180, 1e-05
    %v189 = vadd.f32 %v181, 1e-05
    %v190 = vadd.f32 %v182, 1e-05
    %v191 = vadd.f32 %v183, 1e-05
    %v192 = vadd.f32 %v184, 1e-05
    %v193 = vadd.f32 %v185, 1e-05
    %v194 = vadd.f32 %v186, 1e-05
    %v195 = vadd.f32 %v187, 1e-05
    %v196 = vrsqrt.pop %v188
    %v197 = vmul.f32 %v196, %v188
    %v198 = vmul.f32 %v197, %v196
    %v199 = vmul.f32 0.5, %v198
    %v200 = vsub.f32 1.5, %v199
    %v201 = vmul.f32 %v196, %v200
    %vm202 = vweird.f32 %v188
    %vm203 = vweird.f32 %v196
    %vm204 = vmor %vm202, %vm203
    %v205 = vsel %vm204, %v196, %v201
    %v206 = vrsqrt.pop %v189
    %v207 = vmul.f32 %v206, %v189
    %v208 = vmul.f32 %v207, %v206
    %v209 = vmul.f32 0.5, %v208
    %v210 = vsub.f32 1.5, %v209
    %v211 = vmul.f32 %v206, %v210
    %vm212 = vweird.f32 %v189
    %vm213 = vweird.f32 %v206
    %vm214 = vmor %vm212, %vm213
    %v215 = vsel %vm214, %v206, %v211
    %v216 = vrsqrt.pop %v190
    %v217 = vmul.f32 %v216, %v190
    %v218 = vmul.f32 %v217, %v216
    %v219 = vmul.f32 0.5, %v218
    %v220 = vsub.f32 1.5, %v219
    %v221 = vmul.f32 %v216, %v220
    %vm222 = vweird.f32 %v190
    %vm223 = vweird.f32 %v216
    %vm224 = vmor %vm222, %vm223
    %v225 = vsel %vm224, %v216, %v221
    %v226 = vrsqrt.pop %v191
    %v227 = vmul.f32 %v226, %v191
    %v228 = vmul.f32 %v227, %v226
    %v229 = vmul.f32 0.5, %v228
    %v230 = vsub.f32 1.5, %v229
    %v231 = vmul.f32 %v226, %v230
    %vm232 = vweird.f32 %v191
    %vm233 = vweird.f32 %v226
    %vm234 = vmor %vm232, %vm233
    %v235 = vsel %vm234, %v226, %v231
    %v236 = vrsqrt.pop %v192
    %v237 = vmul.f32 %v236, %v192
    %v238 = vmul.f32 %v237, %v236
    %v239 = vmul.f32 0.5, %v238
    %v240 = vsub.f32 1.5, %v239
    %v241 = vmul.f32 %v236, %v240
    %vm242 = vweird.f32 %v192
    %vm243 = vweird.f32 %v236
    %vm244 = vmor %vm242, %vm243
    %v245 = vsel %vm244, %v236, %v241
    %v246 = vrsqrt.pop %v193
    %v247 = vmul.f32 %v246, %v193
    %v248 = vmul.f32 %v247, %v246
    %v249 = vmul.f32 0.5, %v248
    %v250 = vsub.f32 1.5, %v249
    %v251 = vmul.f32 %v246, %v250
    %vm252 = vweird.f32 %v193
    %vm253 = vweird.f32 %v246
    %vm254 = vmor %vm252, %vm253
    %v255 = vsel %vm254, %v246, %v251
    %v256 = vrsqrt.pop %v194
    %v257 = vmul.f32 %v256, %v194
    %v258 = vmul.f32 %v257, %v256
    %v259 = vmul.f32 0.5, %v258
    %v260 = vsub.f32 1.5, %v259
    %v261 = vmul.f32 %v256, %v260
    %vm262 = vweird.f32 %v194
    %vm263 = vweird.f32 %v256
    %vm264 = vmor %vm262, %vm263
    %v265 = vsel %vm264, %v256, %v261
    %v266 = vrsqrt.pop %v195
    %v267 = vmul.f32 %v266, %v195
    %v268 = vmul.f32 %v267, %v266
    %v269 = vmul.f32 0.5, %v268
    %v270 = vsub.f32 1.5, %v269
    %v271 = vmul.f32 %v266, %v270
    %vm272 = vweird.f32 %v195
    %vm273 = vweird.f32 %v266
    %vm274 = vmor %vm272, %vm273
    %v275 = vsel %vm274, %v266, %v271
    %v276 = vmul.f32 %v140, %v205
    %v277 = vmul.f32 %v141, %v215
    %v278 = vmul.f32 %v142, %v225
    %v279 = vmul.f32 %v143, %v235
    %v280 = vmul.f32 %v144, %v245
    %v281 = vmul.f32 %v145, %v255
    %v282 = vmul.f32 %v146, %v265
    %v283 = vmul.f32 %v147, %v275
    %v284 = vpack.c.bf16 %v277, %v276
    %v285 = vpack.c.bf16 %v279, %v278
    %v286 = vpack.c.bf16 %v281, %v280
    %v287 = vpack.c.bf16 %v283, %v282
    %v288 = vld [vmem:[%s1] sm:$0xf]
    %v289 = vld [vmem:[%s1 + $0x4] sm:$0xf]
    %v290 = vld [vmem:[%s1 + $0x8] sm:$0xf]
    %v291 = vld [vmem:[%s1 + $0xc] sm:$0xf]
    %v292 = vld [vmem:[%s2] sm:$0x1]
    %v294 = vperm.slane %v292, 0
    %v300 = vunpack.c.l.b16 %v288
    %v301 = vunpack.c.l.b16 %v289
    %v302 = vunpack.c.l.b16 %v290
    %v303 = vunpack.c.l.b16 %v291
    %v304 = vpack.c.b16 %v301, %v300
    %v305 = vpack.c.b16 %v303, %v302
    %v309 = vsel %vm100, %v284, 0
    %v312 = vsel %vm100, %v285, 0
    %v315 = vsel %vm100, %v286, 0
    %v318 = vsel %vm100, %v287, 0
    %320 = vmatpush.bf16.msra.mxu0 0
    %321 = vmatpush.bf16.msra.mxu0 0
    %322 = vmatpush.bf16.msra.mxu0 0
    %323 = vmatpush.bf16.msra.mxu0 0
    %324 = vmatpush.bf16.msra.mxu0 0
    %325 = vmatpush.bf16.msra.mxu0 0
    %326 = vmatpush.bf16.msra.mxu0 %v305
    %327 = vmatpush.bf16.msra.mxu0 %v304
    %328 = vmatmul.bf16.gmra.mxu0 %v309
    %v329 = vpop.f32.mrf.mxu0
    %v330 = vadd.f32 %v294, %v329
    %v331 = vpop.f32.mrf.mxu0
    %v332 = vadd.f32 %v294, %v331
    %333 = vmatmul.bf16.gmra.mxu0 %v312
    %v334 = vpop.f32.mrf.mxu0
    %v335 = vadd.f32 %v294, %v334
    %v336 = vpop.f32.mrf.mxu0
    %v337 = vadd.f32 %v294, %v336
    %338 = vmatmul.bf16.gmra.mxu0 %v315
    %v339 = vpop.f32.mrf.mxu0
    %v340 = vadd.f32 %v294, %v339
    %v341 = vpop.f32.mrf.mxu0
    %v342 = vadd.f32 %v294, %v341
    %343 = vmatmul.bf16.gmra.mxu0 %v318
    %v344 = vpop.f32.mrf.mxu0
    %v345 = vadd.f32 %v294, %v344
    %v346 = vpop.f32.mrf.mxu0
    %v347 = vadd.f32 %v294, %v346
    %348 = vdwg.mxu0
    %vm349 = vcmask 523264
    %350 = vst.msk [vmem:[#allocation2] sm:$0xff] %vm349, 0.0
    %351 = vst.msk [vmem:[#allocation2 + $0x8] sm:$0xff] %vm349, 0.0
    %352 = vst.msk [vmem:[#allocation2 + $0x10] sm:$0xff] %vm349, 0.0
    %353 = vst.msk [vmem:[#allocation3] sm:$0xff] %vm349, 0.0
    %354 = vst.msk [vmem:[#allocation3 + $0x8] sm:$0xff] %vm349, 0.0
    %355 = vst.msk [vmem:[#allocation3 + $0x10] sm:$0xff] %vm349, 0.0
    %356 = vst.msk [vmem:[#allocation2 + $0x18] sm:$0xff] %vm349, %v330
    %357 = vst.msk [vmem:[#allocation2 + $0x20] sm:$0xff] %vm349, %v332
    %358 = vst.msk [vmem:[#allocation2 + $0x28] sm:$0xff] %vm349, %v335
    %359 = vst.msk [vmem:[#allocation2 + $0x30] sm:$0xff] %vm349, %v337
    %360 = vst.msk [vmem:[#allocation2 + $0x38] sm:$0xff] %vm349, %v340
    %361 = vst.msk [vmem:[#allocation2 + $0x40] sm:$0xff] %vm349, %v342
    %362 = vst.msk [vmem:[#allocation2 + $0x48] sm:$0xff] %vm349, %v345
    %363 = vst.msk [vmem:[#allocation2 + $0x50] sm:$0xff] %vm349, %v347
    %s364 = scalar_lea.vmem [#allocation2], 24
    %v365 = vld [vmem:[%s364] sm:$0xff]
    %s366 = scalar_lea.vmem [#allocation3], 80
    %367 = vst.msk [vmem:[%s366] sm:$0xff] %vm349, %v365
    %s368 = scalar_lea.vmem [#allocation2], 32
    %v369 = vld [vmem:[%s368] sm:$0xff]
    %s370 = scalar_lea.vmem [#allocation3], 72
    %371 = vst.msk [vmem:[%s370] sm:$0xff] %vm349, %v369
    %s372 = scalar_lea.vmem [#allocation2], 40
    %v373 = vld [vmem:[%s372] sm:$0xff]
    %s374 = scalar_lea.vmem [#allocation3], 64
    %375 = vst.msk [vmem:[%s374] sm:$0xff] %vm349, %v373
    %s376 = scalar_lea.vmem [#allocation2], 48
    %v377 = vld [vmem:[%s376] sm:$0xff]
    %s378 = scalar_lea.vmem [#allocation3], 56
    %379 = vst.msk [vmem:[%s378] sm:$0xff] %vm349, %v377
    %s380 = scalar_lea.vmem [#allocation2], 56
    %v381 = vld [vmem:[%s380] sm:$0xff]
    %s382 = scalar_lea.vmem [#allocation3], 48
    %383 = vst.msk [vmem:[%s382] sm:$0xff] %vm349, %v381
    %s384 = scalar_lea.vmem [#allocation2], 64
    %v385 = vld [vmem:[%s384] sm:$0xff]
    %s386 = scalar_lea.vmem [#allocation3], 40
    %387 = vst.msk [vmem:[%s386] sm:$0xff] %vm349, %v385
    %s388 = scalar_lea.vmem [#allocation2], 72
    %v389 = vld [vmem:[%s388] sm:$0xff]
    %s390 = scalar_lea.vmem [#allocation3], 32
    %391 = vst.msk [vmem:[%s390] sm:$0xff] %vm349, %v389
    %s392 = scalar_lea.vmem [#allocation2], 80
    %v393 = vld [vmem:[%s392] sm:$0xff]
    %s394 = scalar_lea.vmem [#allocation3], 24
    %395 = vst.msk [vmem:[%s394] sm:$0xff] %vm349, %v393
    %v396 = vld [vmem:[%s3] sm:$0xf]
    %v397 = vld [vmem:[%s4] sm:$0x1]
    %v399 = vperm.slane %v397, 0
    %v401 = vld [vmem:[#allocation2] sm:$0xff]
    %v402 = vld [vmem:[#allocation2 + $0x8] sm:$0xff]
    %v403 = vld [vmem:[#allocation2 + $0x10] sm:$0xff]
    %v404 = vld [vmem:[#allocation2 + $0x18] sm:$0xff]
    %v405 = vld [vmem:[#allocation2 + $0x20] sm:$0xff]
    %v406 = vld [vmem:[#allocation2 + $0x28] sm:$0xff]
    %v407 = vld [vmem:[#allocation2 + $0x30] sm:$0xff]
    %v408 = vld [vmem:[#allocation2 + $0x38] sm:$0xff]
    %v409 = vperm.slane %v396, 0
    %v410 = vmul.f32 %v409, %v401
    %v411 = vmul.f32 %v409, %v402
    %v412 = vmul.f32 %v409, %v403
    %v413 = vmul.f32 %v409, %v404
    %v414 = vmul.f32 %v409, %v405
    %v415 = vmul.f32 %v409, %v406
    %v416 = vmul.f32 %v409, %v407
    %v417 = vmul.f32 %v409, %v408
    %v418 = vadd.f32 %v399, %v410
    %v419 = vadd.f32 %v399, %v411
    %v420 = vadd.f32 %v399, %v412
    %v421 = vadd.f32 %v399, %v413
    %v422 = vadd.f32 %v399, %v414
    %v423 = vadd.f32 %v399, %v415
    %v424 = vadd.f32 %v399, %v416
    %v425 = vadd.f32 %v399, %v417
    %v426 = vld [vmem:[#allocation3] sm:$0xff]
    %v427 = vld [vmem:[#allocation3 + $0x8] sm:$0xff]
    %v428 = vld [vmem:[#allocation3 + $0x10] sm:$0xff]
    %v429 = vld [vmem:[#allocation3 + $0x18] sm:$0xff]
    %v430 = vld [vmem:[#allocation3 + $0x20] sm:$0xff]
    %v431 = vld [vmem:[#allocation3 + $0x28] sm:$0xff]
    %v432 = vld [vmem:[#allocation3 + $0x30] sm:$0xff]
    %v433 = vld [vmem:[#allocation3 + $0x38] sm:$0xff]
    %442 = vrot.lane.b32.xlu0 %v426, 64
    %v443 = vpop.permute.xlu0 %442
    %444 = vrot.lane.b32.xlu0 %v427, 64
    %v445 = vpop.permute.xlu0 %444
    %446 = vrot.lane.b32.xlu0 %v428, 64
    %v447 = vpop.permute.xlu0 %446
    %448 = vrot.lane.b32.xlu0 %v429, 64
    %v449 = vpop.permute.xlu0 %448
    %450 = vrot.lane.b32.xlu0 %v430, 64
    %v451 = vpop.permute.xlu0 %450
    %452 = vrot.lane.b32.xlu0 %v431, 64
    %v453 = vpop.permute.xlu0 %452
    %454 = vrot.lane.b32.xlu0 %v432, 64
    %v455 = vpop.permute.xlu0 %454
    %456 = vrot.lane.b32.xlu0 %v433, 64
    %v457 = vpop.permute.xlu0 %456
    %v466 = vmul.f32 %v409, %v443
    %v467 = vmul.f32 %v409, %v445
    %v468 = vmul.f32 %v409, %v447
    %v469 = vmul.f32 %v409, %v449
    %v470 = vmul.f32 %v409, %v451
    %v471 = vmul.f32 %v409, %v453
    %v472 = vmul.f32 %v409, %v455
    %v473 = vmul.f32 %v409, %v457
    %v474 = vadd.f32 %v399, %v466
    %v475 = vadd.f32 %v399, %v467
    %v476 = vadd.f32 %v399, %v468
    %v477 = vadd.f32 %v399, %v469
    %v478 = vadd.f32 %v399, %v470
    %v479 = vadd.f32 %v399, %v471
    %v480 = vadd.f32 %v399, %v472
    %v481 = vadd.f32 %v399, %v473
    %v482 = vld [vmem:[#allocation2 + $0x40] sm:$0xff]
    %v483 = vperm.slane %v396, 1
    %v484 = vmul.f32 %v483, %v402
    %v485 = vmul.f32 %v483, %v403
    %v486 = vmul.f32 %v483, %v404
    %v487 = vmul.f32 %v483, %v405
    %v488 = vmul.f32 %v483, %v406
    %v489 = vmul.f32 %v483, %v407
    %v490 = vmul.f32 %v483, %v408
    %v491 = vmul.f32 %v483, %v482
    %v492 = vadd.f32 %v418, %v484
    %v493 = vadd.f32 %v419, %v485
    %v494 = vadd.f32 %v420, %v486
    %v495 = vadd.f32 %v421, %v487
    %v496 = vadd.f32 %v422, %v488
    %v497 = vadd.f32 %v423, %v489
    %v498 = vadd.f32 %v424, %v490
    %v499 = vadd.f32 %v425, %v491
    %v500 = vld [vmem:[#allocation3 + $0x40] sm:$0xff]
    %502 = vrot.lane.b32.xlu0 %v500, 64
    %v503 = vpop.permute.xlu0 %502
    %v505 = vmul.f32 %v483, %v445
    %v506 = vmul.f32 %v483, %v447
    %v507 = vmul.f32 %v483, %v449
    %v508 = vmul.f32 %v483, %v451
    %v509 = vmul.f32 %v483, %v453
    %v510 = vmul.f32 %v483, %v455
    %v511 = vmul.f32 %v483, %v457
    %v512 = vmul.f32 %v483, %v503
    %v513 = vadd.f32 %v474, %v505
    %v514 = vadd.f32 %v475, %v506
    %v515 = vadd.f32 %v476, %v507
    %v516 = vadd.f32 %v477, %v508
    %v517 = vadd.f32 %v478, %v509
    %v518 = vadd.f32 %v479, %v510
    %v519 = vadd.f32 %v480, %v511
    %v520 = vadd.f32 %v481, %v512
    %v521 = vld [vmem:[#allocation2 + $0x48] sm:$0xff]
    %v522 = vperm.slane %v396, 2
    %v523 = vmul.f32 %v522, %v403
    %v524 = vmul.f32 %v522, %v404
    %v525 = vmul.f32 %v522, %v405
    %v526 = vmul.f32 %v522, %v406
    %v527 = vmul.f32 %v522, %v407
    %v528 = vmul.f32 %v522, %v408
    %v529 = vmul.f32 %v522, %v482
    %v530 = vmul.f32 %v522, %v521
    %v531 = vadd.f32 %v492, %v523
    %v532 = vadd.f32 %v493, %v524
    %v533 = vadd.f32 %v494, %v525
    %v534 = vadd.f32 %v495, %v526
    %v535 = vadd.f32 %v496, %v527
    %v536 = vadd.f32 %v497, %v528
    %v537 = vadd.f32 %v498, %v529
    %v538 = vadd.f32 %v499, %v530
    %v539 = vld [vmem:[#allocation3 + $0x48] sm:$0xff]
    %541 = vrot.lane.b32.xlu0 %v539, 64
    %v542 = vpop.permute.xlu0 %541
    %v544 = vmul.f32 %v522, %v447
    %v545 = vmul.f32 %v522, %v449
    %v546 = vmul.f32 %v522, %v451
    %v547 = vmul.f32 %v522, %v453
    %v548 = vmul.f32 %v522, %v455
    %v549 = vmul.f32 %v522, %v457
    %v550 = vmul.f32 %v522, %v503
    %v551 = vmul.f32 %v522, %v542
    %v552 = vadd.f32 %v513, %v544
    %v553 = vadd.f32 %v514, %v545
    %v554 = vadd.f32 %v515, %v546
    %v555 = vadd.f32 %v516, %v547
    %v556 = vadd.f32 %v517, %v548
    %v557 = vadd.f32 %v518, %v549
    %v558 = vadd.f32 %v519, %v550
    %v559 = vadd.f32 %v520, %v551
    %v560 = vld [vmem:[#allocation2 + $0x50] sm:$0xff]
    %v561 = vperm.slane %v396, 3
    %v562 = vmul.f32 %v561, %v404
    %v563 = vmul.f32 %v561, %v405
    %v564 = vmul.f32 %v561, %v406
    %v565 = vmul.f32 %v561, %v407
    %v566 = vmul.f32 %v561, %v408
    %v567 = vmul.f32 %v561, %v482
    %v568 = vmul.f32 %v561, %v521
    %v569 = vmul.f32 %v561, %v560
    %v570 = vadd.f32 %v531, %v562
    %v571 = vadd.f32 %v532, %v563
    %v572 = vadd.f32 %v533, %v564
    %v573 = vadd.f32 %v534, %v565
    %v574 = vadd.f32 %v535, %v566
    %v575 = vadd.f32 %v536, %v567
    %v576 = vadd.f32 %v537, %v568
    %v577 = vadd.f32 %v538, %v569
    %v578 = vld [vmem:[#allocation3 + $0x50] sm:$0xff]
    %580 = vrot.lane.b32.xlu0 %v578, 64
    %v581 = vpop.permute.xlu0 %580
    %v583 = vmul.f32 %v561, %v449
    %v584 = vmul.f32 %v561, %v451
    %v585 = vmul.f32 %v561, %v453
    %v586 = vmul.f32 %v561, %v455
    %v587 = vmul.f32 %v561, %v457
    %v588 = vmul.f32 %v561, %v503
    %v589 = vmul.f32 %v561, %v542
    %v590 = vmul.f32 %v561, %v581
    %v591 = vadd.f32 %v552, %v583
    %v592 = vadd.f32 %v553, %v584
    %v593 = vadd.f32 %v554, %v585
    %v594 = vadd.f32 %v555, %v586
    %v595 = vadd.f32 %v556, %v587
    %v596 = vadd.f32 %v557, %v588
    %v597 = vadd.f32 %v558, %v589
    %v598 = vadd.f32 %v559, %v590
    %v599 = vsel %vm349, %v570, %v591
    %v600 = vsel %vm349, %v571, %v592
    %v601 = vsel %vm349, %v572, %v593
    %v602 = vsel %vm349, %v573, %v594
    %v603 = vsel %vm349, %v574, %v595
    %v604 = vsel %vm349, %v575, %v596
    %v605 = vsel %vm349, %v576, %v597
    %v606 = vsel %vm349, %v577, %v598
    %v607 = vmul.f32 %v599, 0.5
    %v608 = vmul.f32 %v600, 0.5
    %v609 = vmul.f32 %v601, 0.5
    %v610 = vmul.f32 %v602, 0.5
    %v611 = vmul.f32 %v603, 0.5
    %v612 = vmul.f32 %v604, 0.5
    %v613 = vmul.f32 %v605, 0.5
    %v614 = vmul.f32 %v606, 0.5
    %v615 = vtanh.pop %v607
    %v616 = vtanh.pop %v608
    %v617 = vtanh.pop %v609
    %v618 = vtanh.pop %v610
    %v619 = vtanh.pop %v611
    %v620 = vtanh.pop %v612
    %v621 = vtanh.pop %v613
    %v622 = vtanh.pop %v614
    %v623 = vadd.f32 %v615, 1.0
    %v624 = vadd.f32 %v616, 1.0
    %v625 = vadd.f32 %v617, 1.0
    %v626 = vadd.f32 %v618, 1.0
    %v627 = vadd.f32 %v619, 1.0
    %v628 = vadd.f32 %v620, 1.0
    %v629 = vadd.f32 %v621, 1.0
    %v630 = vadd.f32 %v622, 1.0
    %v631 = vmul.f32 %v623, 0.5
    %v632 = vmul.f32 %v624, 0.5
    %v633 = vmul.f32 %v625, 0.5
    %v634 = vmul.f32 %v626, 0.5
    %v635 = vmul.f32 %v627, 0.5
    %v636 = vmul.f32 %v628, 0.5
    %v637 = vmul.f32 %v629, 0.5
    %v638 = vmul.f32 %v630, 0.5
    %v639 = vmul.f32 %v599, %v631
    %v640 = vmul.f32 %v600, %v632
    %v641 = vmul.f32 %v601, %v633
    %v642 = vmul.f32 %v602, %v634
    %v643 = vmul.f32 %v603, %v635
    %v644 = vmul.f32 %v604, %v636
    %v645 = vmul.f32 %v605, %v637
    %v646 = vmul.f32 %v606, %v638
    %v647 = vld [vmem:[#allocation9] sm:$0xff]
    %v648 = vld [vmem:[#allocation9 + $0x8] sm:$0xff]
    %v649 = vld [vmem:[#allocation9 + $0x10] sm:$0xff]
    %v650 = vld [vmem:[#allocation9 + $0x18] sm:$0xff]
    %v651 = vld [vmem:[#allocation9 + $0x20] sm:$0xff]
    %v652 = vld [vmem:[#allocation9 + $0x28] sm:$0xff]
    %v653 = vld [vmem:[#allocation9 + $0x30] sm:$0xff]
    %v654 = vld [vmem:[#allocation9 + $0x38] sm:$0xff]
    %v655 = vld [vmem:[#allocation9 + $0x40] sm:$0xff]
    %v656 = vld [vmem:[#allocation9 + $0x48] sm:$0xff]
    %v657 = vld [vmem:[#allocation9 + $0x50] sm:$0xff]
    %v658 = vld [vmem:[#allocation9 + $0x58] sm:$0xff]
    %v659 = vld [vmem:[#allocation9 + $0x60] sm:$0xff]
    %v660 = vld [vmem:[#allocation9 + $0x68] sm:$0xff]
    %v661 = vld [vmem:[#allocation9 + $0x70] sm:$0xff]
    %v662 = vld [vmem:[#allocation9 + $0x78] sm:$0xff]
    %v663 = vld [vmem:[%s6] sm:$0x1]
    %v665 = vperm.slane %v663, 0
    %667 = vmatpush.msra.mxu0 %v662
    %668 = vmatpush.msra.mxu0 %v661
    %669 = vmatpush.msra.mxu0 %v660
    %670 = vmatpush.msra.mxu0 %v659
    %671 = vmatpush.msra.mxu0 %v658
    %672 = vmatpush.msra.mxu0 %v657
    %673 = vmatpush.msra.mxu0 %v656
    %674 = vmatpush.msra.mxu0 %v655
    %675 = vmatpush.msra.mxu0 %v654
    %676 = vmatpush.msra.mxu0 %v653
    %677 = vmatpush.msra.mxu0 %v652
    %678 = vmatpush.msra.mxu0 %v651
    %679 = vmatpush.msra.mxu0 %v650
    %680 = vmatpush.msra.mxu0 %v649
    %681 = vmatpush.msra.mxu0 %v648
    %682 = vmatpush.msra.mxu0 %v647
    %683 = vmatmul.f32.gmra.mxu0 %v639
    %v684 = vpop.f32.mrf.mxu0
    %v685 = vadd.f32 %v665, %v684
    %686 = vmatmul.f32.gmra.mxu0 %v640
    %v687 = vpop.f32.mrf.mxu0
    %v688 = vadd.f32 %v665, %v687
    %689 = vmatmul.f32.gmra.mxu0 %v641
    %v690 = vpop.f32.mrf.mxu0
    %v691 = vadd.f32 %v665, %v690
    %692 = vmatmul.f32.gmra.mxu0 %v642
    %v693 = vpop.f32.mrf.mxu0
    %v694 = vadd.f32 %v665, %v693
    %695 = vmatmul.f32.gmra.mxu0 %v643
    %v696 = vpop.f32.mrf.mxu0
    %v697 = vadd.f32 %v665, %v696
    %698 = vmatmul.f32.gmra.mxu0 %v644
    %v699 = vpop.f32.mrf.mxu0
    %v700 = vadd.f32 %v665, %v699
    %701 = vmatmul.f32.gmra.mxu0 %v645
    %v702 = vpop.f32.mrf.mxu0
    %v703 = vadd.f32 %v665, %v702
    %704 = vmatmul.f32.gmra.mxu0 %v646
    %v705 = vpop.f32.mrf.mxu0
    %v706 = vadd.f32 %v665, %v705
    %707 = vdwg.mxu0
    %v708 = vmax.f32 %v685, 0.0
    %v709 = vmax.f32 %v688, 0.0
    %v710 = vmax.f32 %v691, 0.0
    %v711 = vmax.f32 %v694, 0.0
    %v712 = vmax.f32 %v697, 0.0
    %v713 = vmax.f32 %v700, 0.0
    %v714 = vmax.f32 %v703, 0.0
    %v715 = vmax.f32 %v706, 0.0
    %v716 = vand.u32 2147483647, %v685
    %v717 = vand.u32 2147483647, %v688
    %v718 = vand.u32 2147483647, %v691
    %v719 = vand.u32 2147483647, %v694
    %v720 = vand.u32 2147483647, %v697
    %v721 = vand.u32 2147483647, %v700
    %v722 = vand.u32 2147483647, %v703
    %v723 = vand.u32 2147483647, %v706
    %v724 = vsub.f32 0.0, %v716
    %v725 = vsub.f32 0.0, %v717
    %v726 = vsub.f32 0.0, %v718
    %v727 = vsub.f32 0.0, %v719
    %v728 = vsub.f32 0.0, %v720
    %v729 = vsub.f32 0.0, %v721
    %v730 = vsub.f32 0.0, %v722
    %v731 = vsub.f32 0.0, %v723
    %v732 = vmul.f32 %v724, 1.442695
    %v733 = vpow.pop %v732
    %v734 = vmul.f32 %v725, 1.442695
    %v735 = vpow.pop %v734
    %v736 = vmul.f32 %v726, 1.442695
    %v737 = vpow.pop %v736
    %v738 = vmul.f32 %v727, 1.442695
    %v739 = vpow.pop %v738
    %v740 = vmul.f32 %v728, 1.442695
    %v741 = vpow.pop %v740
    %v742 = vmul.f32 %v729, 1.442695
    %v743 = vpow.pop %v742
    %v744 = vmul.f32 %v730, 1.442695
    %v745 = vpow.pop %v744
    %v746 = vmul.f32 %v731, 1.442695
    %v747 = vpow.pop %v746
    %v748 = vadd.f32 %v733, 1.0
    %v749 = vlog2.pop %v748
    %v750 = vmul.f32 %v749, 0.6931472
    %v751 = vmul.f32 -0.5, %v733
    %v752 = vadd.f32 %v751, 1.0
    %v753 = vmul.f32 %v752, %v733
    %v754 = vand.u32 2147483647, %v733
    %vm755 = vcmp.lt.f32.partialorder %v754, 0.0004427343
    %v756 = vsel %vm755, %v753, %v750
    %v757 = vadd.f32 %v735, 1.0
    %v758 = vlog2.pop %v757
    %v759 = vmul.f32 %v758, 0.6931472
    %v760 = vmul.f32 -0.5, %v735
    %v761 = vadd.f32 %v760, 1.0
    %v762 = vmul.f32 %v761, %v735
    %v763 = vand.u32 2147483647, %v735
    %vm764 = vcmp.lt.f32.partialorder %v763, 0.0004427343
    %v765 = vsel %vm764, %v762, %v759
    %v766 = vadd.f32 %v737, 1.0
    %v767 = vlog2.pop %v766
    %v768 = vmul.f32 %v767, 0.6931472
    %v769 = vmul.f32 -0.5, %v737
    %v770 = vadd.f32 %v769, 1.0
    %v771 = vmul.f32 %v770, %v737
    %v772 = vand.u32 2147483647, %v737
    %vm773 = vcmp.lt.f32.partialorder %v772, 0.0004427343
    %v774 = vsel %vm773, %v771, %v768
    %v775 = vadd.f32 %v739, 1.0
    %v776 = vlog2.pop %v775
    %v777 = vmul.f32 %v776, 0.6931472
    %v778 = vmul.f32 -0.5, %v739
    %v779 = vadd.f32 %v778, 1.0
    %v780 = vmul.f32 %v779, %v739
    %v781 = vand.u32 2147483647, %v739
    %vm782 = vcmp.lt.f32.partialorder %v781, 0.0004427343
    %v783 = vsel %vm782, %v780, %v777
    %v784 = vadd.f32 %v741, 1.0
    %v785 = vlog2.pop %v784
    %v786 = vmul.f32 %v785, 0.6931472
    %v787 = vmul.f32 -0.5, %v741
    %v788 = vadd.f32 %v787, 1.0
    %v789 = vmul.f32 %v788, %v741
    %v790 = vand.u32 2147483647, %v741
    %vm791 = vcmp.lt.f32.partialorder %v790, 0.0004427343
    %v792 = vsel %vm791, %v789, %v786
    %v793 = vadd.f32 %v743, 1.0
    %v794 = vlog2.pop %v793
    %v795 = vmul.f32 %v794, 0.6931472
    %v796 = vmul.f32 -0.5, %v743
    %v797 = vadd.f32 %v796, 1.0
    %v798 = vmul.f32 %v797, %v743
    %v799 = vand.u32 2147483647, %v743
    %vm800 = vcmp.lt.f32.partialorder %v799, 0.0004427343
    %v801 = vsel %vm800, %v798, %v795
    %v802 = vadd.f32 %v745, 1.0
    %v803 = vlog2.pop %v802
    %v804 = vmul.f32 %v803, 0.6931472
    %v805 = vmul.f32 -0.5, %v745
    %v806 = vadd.f32 %v805, 1.0
    %v807 = vmul.f32 %v806, %v745
    %v808 = vand.u32 2147483647, %v745
    %vm809 = vcmp.lt.f32.partialorder %v808, 0.0004427343
    %v810 = vsel %vm809, %v807, %v804
    %v811 = vadd.f32 %v747, 1.0
    %v812 = vlog2.pop %v811
    %v813 = vmul.f32 %v812, 0.6931472
    %v814 = vmul.f32 -0.5, %v747
    %v815 = vadd.f32 %v814, 1.0
    %v816 = vmul.f32 %v815, %v747
    %v817 = vand.u32 2147483647, %v747
    %vm818 = vcmp.lt.f32.partialorder %v817, 0.0004427343
    %v819 = vsel %vm818, %v816, %v813
    %v820 = vadd.f32 %v708, %v756
    %v821 = vadd.f32 %v709, %v765
    %v822 = vadd.f32 %v710, %v774
    %v823 = vadd.f32 %v711, %v783
    %v824 = vadd.f32 %v712, %v792
    %v825 = vadd.f32 %v713, %v801
    %v826 = vadd.f32 %v714, %v810
    %v827 = vadd.f32 %v715, %v819
    %v828 = vmul.f32 %v820, %v639
    %v829 = vmul.f32 %v821, %v640
    %v830 = vmul.f32 %v822, %v641
    %v831 = vmul.f32 %v823, %v642
    %v832 = vmul.f32 %v824, %v643
    %v833 = vmul.f32 %v825, %v644
    %v834 = vmul.f32 %v826, %v645
    %v835 = vmul.f32 %v827, %v646
    %v836 = vpack.c.bf16 %v640, %v639
    %v837 = vpack.c.bf16 %v642, %v641
    %v838 = vpack.c.bf16 %v644, %v643
    %v839 = vpack.c.bf16 %v646, %v645
    %s840 = scalar_lea.vmem [#allocation4], 128
    %841 = vst [vmem:[%s840] sm:$0xff] 0.0
    %842 = vst [vmem:[%s840 + $0x88] sm:$0xff] 0.0
    %843 = vst [vmem:[%s840 + $0x110] sm:$0xff] 0.0
    %844 = vst [vmem:[%s840 + $0x198] sm:$0xff] 0.0
    %845 = vst [vmem:[%s840 + $0x220] sm:$0xff] 0.0
    %846 = vst [vmem:[%s840 + $0x2a8] sm:$0xff] 0.0
    %847 = vst [vmem:[%s840 + $0x330] sm:$0xff] 0.0
    %848 = vst [vmem:[%s840 + $0x3b8] sm:$0xff] 0.0
    %v849 = vld [vmem:[%s10] sm:$0x1]
    %v851 = vperm.slane %v849, 0
    %s853 = scalar_lea.vmem [#allocation6], 128
    %854 = vst [vmem:[%s853] sm:$0xff] %v851
    %855 = vst [vmem:[%s853 + $0x88] sm:$0xff] %v851
    %856 = vst [vmem:[%s853 + $0x110] sm:$0xff] %v851
    %857 = vst [vmem:[%s853 + $0x198] sm:$0xff] %v851
    %858 = vst [vmem:[%s853 + $0x220] sm:$0xff] %v851
    %859 = vst [vmem:[%s853 + $0x2a8] sm:$0xff] %v851
    %860 = vst [vmem:[%s853 + $0x330] sm:$0xff] %v851
    %861 = vst [vmem:[%s853 + $0x3b8] sm:$0xff] %v851
    %v862 = vld [vmem:[%s9] sm:$0xff]
    %v863 = vld [vmem:[%s9 + $0x8] sm:$0xff]
    %v864 = vld [vmem:[#allocation11] sm:$0xff]
    %v865 = vld [vmem:[#allocation11 + $0x8] sm:$0xff]
    %v866 = vld [vmem:[#allocation11 + $0x10] sm:$0xff]
    %v867 = vld [vmem:[#allocation11 + $0x18] sm:$0xff]
    %v868 = vld [vmem:[#allocation11 + $0x20] sm:$0xff]
    %v869 = vld [vmem:[#allocation11 + $0x28] sm:$0xff]
    %v870 = vld [vmem:[#allocation11 + $0x30] sm:$0xff]
    %v871 = vld [vmem:[#allocation11 + $0x38] sm:$0xff]
    %v872 = vld [vmem:[#allocation11 + $0x40] sm:$0xff]
    %v873 = vld [vmem:[#allocation11 + $0x48] sm:$0xff]
    %v874 = vld [vmem:[#allocation11 + $0x50] sm:$0xff]
    %v875 = vld [vmem:[#allocation11 + $0x58] sm:$0xff]
    %v876 = vld [vmem:[#allocation11 + $0x60] sm:$0xff]
    %v877 = vld [vmem:[#allocation11 + $0x68] sm:$0xff]
    %v878 = vld [vmem:[#allocation11 + $0x70] sm:$0xff]
    %v879 = vld [vmem:[#allocation11 + $0x78] sm:$0xff]
    %v880 = vld [vmem:[#allocation11 + $0x80] sm:$0xff]
    %v881 = vld [vmem:[#allocation11 + $0x88] sm:$0xff]
    %v882 = vld [vmem:[#allocation11 + $0x90] sm:$0xff]
    %v883 = vld [vmem:[#allocation11 + $0x98] sm:$0xff]
    %v884 = vld [vmem:[#allocation11 + $0xa0] sm:$0xff]
    %v885 = vld [vmem:[#allocation11 + $0xa8] sm:$0xff]
    %v886 = vld [vmem:[#allocation11 + $0xb0] sm:$0xff]
    %v887 = vld [vmem:[#allocation11 + $0xb8] sm:$0xff]
    %v888 = vld [vmem:[#allocation11 + $0xc0] sm:$0xff]
    %v889 = vld [vmem:[#allocation11 + $0xc8] sm:$0xff]
    %v890 = vld [vmem:[#allocation11 + $0xd0] sm:$0xff]
    %v891 = vld [vmem:[#allocation11 + $0xd8] sm:$0xff]
    %v892 = vld [vmem:[#allocation11 + $0xe0] sm:$0xff]
    %v893 = vld [vmem:[#allocation11 + $0xe8] sm:$0xff]
    %v894 = vld [vmem:[#allocation11 + $0xf0] sm:$0xff]
    %v895 = vld [vmem:[#allocation11 + $0xf8] sm:$0xff]
    %v896 = vld [vmem:[#allocation11 + $0x100] sm:$0xff]
    %v897 = vld [vmem:[#allocation11 + $0x108] sm:$0xff]
    %v898 = vld [vmem:[#allocation11 + $0x110] sm:$0xff]
    %v899 = vld [vmem:[#allocation11 + $0x118] sm:$0xff]
    %v900 = vld [vmem:[#allocation11 + $0x120] sm:$0xff]
    %v901 = vld [vmem:[#allocation11 + $0x128] sm:$0xff]
    %v902 = vld [vmem:[#allocation11 + $0x130] sm:$0xff]
    %v903 = vld [vmem:[#allocation11 + $0x138] sm:$0xff]
    %v904 = vld [vmem:[#allocation11 + $0x140] sm:$0xff]
    %v905 = vld [vmem:[#allocation11 + $0x148] sm:$0xff]
    %v906 = vld [vmem:[#allocation11 + $0x150] sm:$0xff]
    %v907 = vld [vmem:[#allocation11 + $0x158] sm:$0xff]
    %v908 = vld [vmem:[#allocation11 + $0x160] sm:$0xff]
    %v909 = vld [vmem:[#allocation11 + $0x168] sm:$0xff]
    %v910 = vld [vmem:[#allocation11 + $0x170] sm:$0xff]
    %v911 = vld [vmem:[#allocation11 + $0x178] sm:$0xff]
    %v912 = vld [vmem:[#allocation11 + $0x180] sm:$0xff]
    %v913 = vld [vmem:[#allocation11 + $0x188] sm:$0xff]
    %v914 = vld [vmem:[#allocation11 + $0x190] sm:$0xff]
    %v915 = vld [vmem:[#allocation11 + $0x198] sm:$0xff]
    %v916 = vld [vmem:[#allocation11 + $0x1a0] sm:$0xff]
    %v917 = vld [vmem:[#allocation11 + $0x1a8] sm:$0xff]
    %v918 = vld [vmem:[#allocation11 + $0x1b0] sm:$0xff]
    %v919 = vld [vmem:[#allocation11 + $0x1b8] sm:$0xff]
    %v920 = vld [vmem:[#allocation11 + $0x1c0] sm:$0xff]
    %v921 = vld [vmem:[#allocation11 + $0x1c8] sm:$0xff]
    %v922 = vld [vmem:[#allocation11 + $0x1d0] sm:$0xff]
    %v923 = vld [vmem:[#allocation11 + $0x1d8] sm:$0xff]
    %v924 = vld [vmem:[#allocation11 + $0x1e0] sm:$0xff]
    %v925 = vld [vmem:[#allocation11 + $0x1e8] sm:$0xff]
    %v926 = vld [vmem:[#allocation11 + $0x1f0] sm:$0xff]
    %v927 = vld [vmem:[#allocation11 + $0x1f8] sm:$0xff]
    %v928 = vld [vmem:[#allocation11 + $0x200] sm:$0xff]
    %v929 = vld [vmem:[#allocation11 + $0x208] sm:$0xff]
    %v930 = vld [vmem:[#allocation11 + $0x210] sm:$0xff]
    %v931 = vld [vmem:[#allocation11 + $0x218] sm:$0xff]
    %v932 = vld [vmem:[#allocation11 + $0x220] sm:$0xff]
    %v933 = vld [vmem:[#allocation11 + $0x228] sm:$0xff]
    %v934 = vld [vmem:[#allocation11 + $0x230] sm:$0xff]
    %v935 = vld [vmem:[#allocation11 + $0x238] sm:$0xff]
    %v936 = vld [vmem:[#allocation11 + $0x240] sm:$0xff]
    %v937 = vld [vmem:[#allocation11 + $0x248] sm:$0xff]
    %v938 = vld [vmem:[#allocation11 + $0x250] sm:$0xff]
    %v939 = vld [vmem:[#allocation11 + $0x258] sm:$0xff]
    %v940 = vld [vmem:[#allocation11 + $0x260] sm:$0xff]
    %v941 = vld [vmem:[#allocation11 + $0x268] sm:$0xff]
    %v942 = vld [vmem:[#allocation11 + $0x270] sm:$0xff]
    %v943 = vld [vmem:[#allocation11 + $0x278] sm:$0xff]
    %v944 = vld [vmem:[#allocation11 + $0x280] sm:$0xff]
    %v945 = vld [vmem:[#allocation11 + $0x288] sm:$0xff]
    %v946 = vld [vmem:[#allocation11 + $0x290] sm:$0xff]
    %v947 = vld [vmem:[#allocation11 + $0x298] sm:$0xff]
    %v948 = vld [vmem:[#allocation11 + $0x2a0] sm:$0xff]
    %v949 = vld [vmem:[#allocation11 + $0x2a8] sm:$0xff]
    %v950 = vld [vmem:[#allocation11 + $0x2b0] sm:$0xff]
    %v951 = vld [vmem:[#allocation11 + $0x2b8] sm:$0xff]
    %v952 = vld [vmem:[#allocation11 + $0x2c0] sm:$0xff]
    %v953 = vld [vmem:[#allocation11 + $0x2c8] sm:$0xff]
    %v954 = vld [vmem:[#allocation11 + $0x2d0] sm:$0xff]
    %v955 = vld [vmem:[#allocation11 + $0x2d8] sm:$0xff]
    %v956 = vld [vmem:[#allocation11 + $0x2e0] sm:$0xff]
    %v957 = vld [vmem:[#allocation11 + $0x2e8] sm:$0xff]
    %v958 = vld [vmem:[#allocation11 + $0x2f0] sm:$0xff]
    %v959 = vld [vmem:[#allocation11 + $0x2f8] sm:$0xff]
    %v960 = vld [vmem:[#allocation11 + $0x300] sm:$0xff]
    %v961 = vld [vmem:[#allocation11 + $0x308] sm:$0xff]
    %v962 = vld [vmem:[#allocation11 + $0x310] sm:$0xff]
    %v963 = vld [vmem:[#allocation11 + $0x318] sm:$0xff]
    %v964 = vld [vmem:[#allocation11 + $0x320] sm:$0xff]
    %v965 = vld [vmem:[#allocation11 + $0x328] sm:$0xff]
    %v966 = vld [vmem:[#allocation11 + $0x330] sm:$0xff]
    %v967 = vld [vmem:[#allocation11 + $0x338] sm:$0xff]
    %v968 = vld [vmem:[#allocation11 + $0x340] sm:$0xff]
    %v969 = vld [vmem:[#allocation11 + $0x348] sm:$0xff]
    %v970 = vld [vmem:[#allocation11 + $0x350] sm:$0xff]
    %v971 = vld [vmem:[#allocation11 + $0x358] sm:$0xff]
    %v972 = vld [vmem:[#allocation11 + $0x360] sm:$0xff]
    %v973 = vld [vmem:[#allocation11 + $0x368] sm:$0xff]
    %v974 = vld [vmem:[#allocation11 + $0x370] sm:$0xff]
    %v975 = vld [vmem:[#allocation11 + $0x378] sm:$0xff]
    %v976 = vld [vmem:[#allocation11 + $0x380] sm:$0xff]
    %v977 = vld [vmem:[#allocation11 + $0x388] sm:$0xff]
    %v978 = vld [vmem:[#allocation11 + $0x390] sm:$0xff]
    %v979 = vld [vmem:[#allocation11 + $0x398] sm:$0xff]
    %v980 = vld [vmem:[#allocation11 + $0x3a0] sm:$0xff]
    %v981 = vld [vmem:[#allocation11 + $0x3a8] sm:$0xff]
    %v982 = vld [vmem:[#allocation11 + $0x3b0] sm:$0xff]
    %v983 = vld [vmem:[#allocation11 + $0x3b8] sm:$0xff]
    %v984 = vld [vmem:[#allocation11 + $0x3c0] sm:$0xff]
    %v985 = vld [vmem:[#allocation11 + $0x3c8] sm:$0xff]
    %v986 = vld [vmem:[#allocation11 + $0x3d0] sm:$0xff]
    %v987 = vld [vmem:[#allocation11 + $0x3d8] sm:$0xff]
    %v988 = vld [vmem:[#allocation11 + $0x3e0] sm:$0xff]
    %v989 = vld [vmem:[#allocation11 + $0x3e8] sm:$0xff]
    %v990 = vld [vmem:[#allocation11 + $0x3f0] sm:$0xff]
    %v991 = vld [vmem:[#allocation11 + $0x3f8] sm:$0xff]
    %v992 = vld [vmem:[#allocation13] sm:$0xff]
    %v993 = vld [vmem:[#allocation13 + $0x8] sm:$0xff]
    %v994 = vld [vmem:[#allocation13 + $0x10] sm:$0xff]
    %v995 = vld [vmem:[#allocation13 + $0x18] sm:$0xff]
    %v996 = vld [vmem:[#allocation13 + $0x20] sm:$0xff]
    %v997 = vld [vmem:[#allocation13 + $0x28] sm:$0xff]
    %v998 = vld [vmem:[#allocation13 + $0x30] sm:$0xff]
    %v999 = vld [vmem:[#allocation13 + $0x38] sm:$0xff]
    %v1000 = vld [vmem:[#allocation13 + $0x40] sm:$0xff]
    %v1001 = vld [vmem:[#allocation13 + $0x48] sm:$0xff]
    %v1002 = vld [vmem:[#allocation13 + $0x50] sm:$0xff]
    %v1003 = vld [vmem:[#allocation13 + $0x58] sm:$0xff]
    %v1004 = vld [vmem:[#allocation13 + $0x60] sm:$0xff]
    %v1005 = vld [vmem:[#allocation13 + $0x68] sm:$0xff]
    %v1006 = vld [vmem:[#allocation13 + $0x70] sm:$0xff]
    %v1007 = vld [vmem:[#allocation13 + $0x78] sm:$0xff]
    %v1008 = vld [vmem:[#allocation13 + $0x80] sm:$0xff]
    %v1009 = vld [vmem:[#allocation13 + $0x88] sm:$0xff]
    %v1010 = vld [vmem:[#allocation13 + $0x90] sm:$0xff]
    %v1011 = vld [vmem:[#allocation13 + $0x98] sm:$0xff]
    %v1012 = vld [vmem:[#allocation13 + $0xa0] sm:$0xff]
    %v1013 = vld [vmem:[#allocation13 + $0xa8] sm:$0xff]
    %v1014 = vld [vmem:[#allocation13 + $0xb0] sm:$0xff]
    %v1015 = vld [vmem:[#allocation13 + $0xb8] sm:$0xff]
    %v1016 = vld [vmem:[#allocation13 + $0xc0] sm:$0xff]
    %v1017 = vld [vmem:[#allocation13 + $0xc8] sm:$0xff]
    %v1018 = vld [vmem:[#allocation13 + $0xd0] sm:$0xff]
    %v1019 = vld [vmem:[#allocation13 + $0xd8] sm:$0xff]
    %v1020 = vld [vmem:[#allocation13 + $0xe0] sm:$0xff]
    %v1021 = vld [vmem:[#allocation13 + $0xe8] sm:$0xff]
    %v1022 = vld [vmem:[#allocation13 + $0xf0] sm:$0xff]
    %v1023 = vld [vmem:[#allocation13 + $0xf8] sm:$0xff]
    %v1024 = vld [vmem:[#allocation13 + $0x100] sm:$0xff]
    %v1025 = vld [vmem:[#allocation13 + $0x108] sm:$0xff]
    %v1026 = vld [vmem:[#allocation13 + $0x110] sm:$0xff]
    %v1027 = vld [vmem:[#allocation13 + $0x118] sm:$0xff]
    %v1028 = vld [vmem:[#allocation13 + $0x120] sm:$0xff]
    %v1029 = vld [vmem:[#allocation13 + $0x128] sm:$0xff]
    %v1030 = vld [vmem:[#allocation13 + $0x130] sm:$0xff]
    %v1031 = vld [vmem:[#allocation13 + $0x138] sm:$0xff]
    %v1032 = vld [vmem:[#allocation13 + $0x140] sm:$0xff]
    %v1033 = vld [vmem:[#allocation13 + $0x148] sm:$0xff]
    %v1034 = vld [vmem:[#allocation13 + $0x150] sm:$0xff]
    %v1035 = vld [vmem:[#allocation13 + $0x158] sm:$0xff]
    %v1036 = vld [vmem:[#allocation13 + $0x160] sm:$0xff]
    %v1037 = vld [vmem:[#allocation13 + $0x168] sm:$0xff]
    %v1038 = vld [vmem:[#allocation13 + $0x170] sm:$0xff]
    %v1039 = vld [vmem:[#allocation13 + $0x178] sm:$0xff]
    %v1040 = vld [vmem:[#allocation13 + $0x180] sm:$0xff]
    %v1041 = vld [vmem:[#allocation13 + $0x188] sm:$0xff]
    %v1042 = vld [vmem:[#allocation13 + $0x190] sm:$0xff]
    %v1043 = vld [vmem:[#allocation13 + $0x198] sm:$0xff]
    %v1044 = vld [vmem:[#allocation13 + $0x1a0] sm:$0xff]
    %v1045 = vld [vmem:[#allocation13 + $0x1a8] sm:$0xff]
    %v1046 = vld [vmem:[#allocation13 + $0x1b0] sm:$0xff]
    %v1047 = vld [vmem:[#allocation13 + $0x1b8] sm:$0xff]
    %v1048 = vld [vmem:[#allocation13 + $0x1c0] sm:$0xff]
    %v1049 = vld [vmem:[#allocation13 + $0x1c8] sm:$0xff]
    %v1050 = vld [vmem:[#allocation13 + $0x1d0] sm:$0xff]
    %v1051 = vld [vmem:[#allocation13 + $0x1d8] sm:$0xff]
    %v1052 = vld [vmem:[#allocation13 + $0x1e0] sm:$0xff]
    %v1053 = vld [vmem:[#allocation13 + $0x1e8] sm:$0xff]
    %v1054 = vld [vmem:[#allocation13 + $0x1f0] sm:$0xff]
    %v1055 = vld [vmem:[#allocation13 + $0x1f8] sm:$0xff]
    %v1056 = vld [vmem:[#allocation13 + $0x200] sm:$0xff]
    %v1057 = vld [vmem:[#allocation13 + $0x208] sm:$0xff]
    %v1058 = vld [vmem:[#allocation13 + $0x210] sm:$0xff]
    %v1059 = vld [vmem:[#allocation13 + $0x218] sm:$0xff]
    %v1060 = vld [vmem:[#allocation13 + $0x220] sm:$0xff]
    %v1061 = vld [vmem:[#allocation13 + $0x228] sm:$0xff]
    %v1062 = vld [vmem:[#allocation13 + $0x230] sm:$0xff]
    %v1063 = vld [vmem:[#allocation13 + $0x238] sm:$0xff]
    %v1064 = vld [vmem:[#allocation13 + $0x240] sm:$0xff]
    %v1065 = vld [vmem:[#allocation13 + $0x248] sm:$0xff]
    %v1066 = vld [vmem:[#allocation13 + $0x250] sm:$0xff]
    %v1067 = vld [vmem:[#allocation13 + $0x258] sm:$0xff]
    %v1068 = vld [vmem:[#allocation13 + $0x260] sm:$0xff]
    %v1069 = vld [vmem:[#allocation13 + $0x268] sm:$0xff]
    %v1070 = vld [vmem:[#allocation13 + $0x270] sm:$0xff]
    %v1071 = vld [vmem:[#allocation13 + $0x278] sm:$0xff]
    %v1072 = vld [vmem:[#allocation13 + $0x280] sm:$0xff]
    %v1073 = vld [vmem:[#allocation13 + $0x288] sm:$0xff]
    %v1074 = vld [vmem:[#allocation13 + $0x290] sm:$0xff]
    %v1075 = vld [vmem:[#allocation13 + $0x298] sm:$0xff]
    %v1076 = vld [vmem:[#allocation13 + $0x2a0] sm:$0xff]
    %v1077 = vld [vmem:[#allocation13 + $0x2a8] sm:$0xff]
    %v1078 = vld [vmem:[#allocation13 + $0x2b0] sm:$0xff]
    %v1079 = vld [vmem:[#allocation13 + $0x2b8] sm:$0xff]
    %v1080 = vld [vmem:[#allocation13 + $0x2c0] sm:$0xff]
    %v1081 = vld [vmem:[#allocation13 + $0x2c8] sm:$0xff]
    %v1082 = vld [vmem:[#allocation13 + $0x2d0] sm:$0xff]
    %v1083 = vld [vmem:[#allocation13 + $0x2d8] sm:$0xff]
    %v1084 = vld [vmem:[#allocation13 + $0x2e0] sm:$0xff]
    %v1085 = vld [vmem:[#allocation13 + $0x2e8] sm:$0xff]
    %v1086 = vld [vmem:[#allocation13 + $0x2f0] sm:$0xff]
    %v1087 = vld [vmem:[#allocation13 + $0x2f8] sm:$0xff]
    %v1088 = vld [vmem:[#allocation13 + $0x300] sm:$0xff]
    %v1089 = vld [vmem:[#allocation13 + $0x308] sm:$0xff]
    %v1090 = vld [vmem:[#allocation13 + $0x310] sm:$0xff]
    %v1091 = vld [vmem:[#allocation13 + $0x318] sm:$0xff]
    %v1092 = vld [vmem:[#allocation13 + $0x320] sm:$0xff]
    %v1093 = vld [vmem:[#allocation13 + $0x328] sm:$0xff]
    %v1094 = vld [vmem:[#allocation13 + $0x330] sm:$0xff]
    %v1095 = vld [vmem:[#allocation13 + $0x338] sm:$0xff]
    %v1096 = vld [vmem:[#allocation13 + $0x340] sm:$0xff]
    %v1097 = vld [vmem:[#allocation13 + $0x348] sm:$0xff]
    %v1098 = vld [vmem:[#allocation13 + $0x350] sm:$0xff]
    %v1099 = vld [vmem:[#allocation13 + $0x358] sm:$0xff]
    %v1100 = vld [vmem:[#allocation13 + $0x360] sm:$0xff]
    %v1101 = vld [vmem:[#allocation13 + $0x368] sm:$0xff]
    %v1102 = vld [vmem:[#allocation13 + $0x370] sm:$0xff]
    %v1103 = vld [vmem:[#allocation13 + $0x378] sm:$0xff]
    %v1104 = vld [vmem:[#allocation13 + $0x380] sm:$0xff]
    %v1105 = vld [vmem:[#allocation13 + $0x388] sm:$0xff]
    %v1106 = vld [vmem:[#allocation13 + $0x390] sm:$0xff]
    %v1107 = vld [vmem:[#allocation13 + $0x398] sm:$0xff]
    %v1108 = vld [vmem:[#allocation13 + $0x3a0] sm:$0xff]
    %v1109 = vld [vmem:[#allocation13 + $0x3a8] sm:$0xff]
    %v1110 = vld [vmem:[#allocation13 + $0x3b0] sm:$0xff]
    %v1111 = vld [vmem:[#allocation13 + $0x3b8] sm:$0xff]
    %v1112 = vld [vmem:[#allocation13 + $0x3c0] sm:$0xff]
    %v1113 = vld [vmem:[#allocation13 + $0x3c8] sm:$0xff]
    %v1114 = vld [vmem:[#allocation13 + $0x3d0] sm:$0xff]
    %v1115 = vld [vmem:[#allocation13 + $0x3d8] sm:$0xff]
    %v1116 = vld [vmem:[#allocation13 + $0x3e0] sm:$0xff]
    %v1117 = vld [vmem:[#allocation13 + $0x3e8] sm:$0xff]
    %v1118 = vld [vmem:[#allocation13 + $0x3f0] sm:$0xff]
    %v1119 = vld [vmem:[#allocation13 + $0x3f8] sm:$0xff]
    %v1248 = vunpack.c.l.b16 %v864
    %v1249 = vunpack.c.h.b16 %v864
    %v1250 = vunpack.c.l.b16 %v865
    %v1251 = vunpack.c.h.b16 %v865
    %v1252 = vunpack.c.l.b16 %v866
    %v1253 = vunpack.c.h.b16 %v866
    %v1254 = vunpack.c.l.b16 %v867
    %v1255 = vunpack.c.h.b16 %v867
    %v1256 = vunpack.c.l.b16 %v868
    %v1257 = vunpack.c.h.b16 %v868
    %v1258 = vunpack.c.l.b16 %v869
    %v1259 = vunpack.c.h.b16 %v869
    %v1260 = vunpack.c.l.b16 %v870
    %v1261 = vunpack.c.h.b16 %v870
    %v1262 = vunpack.c.l.b16 %v871
    %v1263 = vunpack.c.h.b16 %v871
    %v1264 = vunpack.c.l.b16 %v872
    %v1265 = vunpack.c.h.b16 %v872
    %v1266 = vunpack.c.l.b16 %v873
    %v1267 = vunpack.c.h.b16 %v873
    %v1268 = vunpack.c.l.b16 %v874
    %v1269 = vunpack.c.h.b16 %v874
    %v1270 = vunpack.c.l.b16 %v875
    %v1271 = vunpack.c.h.b16 %v875
    %v1272 = vunpack.c.l.b16 %v876
    %v1273 = vunpack.c.h.b16 %v876
    %v1274 = vunpack.c.l.b16 %v877
    %v1275 = vunpack.c.h.b16 %v877
    %v1276 = vunpack.c.l.b16 %v878
    %v1277 = vunpack.c.h.b16 %v878
    %v1278 = vunpack.c.l.b16 %v879
    %v1279 = vunpack.c.h.b16 %v879
    %v1280 = vunpack.c.l.b16 %v880
    %v1281 = vunpack.c.h.b16 %v880
    %v1282 = vunpack.c.l.b16 %v881
    %v1283 = vunpack.c.h.b16 %v881
    %v1284 = vunpack.c.l.b16 %v882
    %v1285 = vunpack.c.h.b16 %v882
    %v1286 = vunpack.c.l.b16 %v883
    %v1287 = vunpack.c.h.b16 %v883
    %v1288 = vunpack.c.l.b16 %v884
    %v1289 = vunpack.c.h.b16 %v884
    %v1290 = vunpack.c.l.b16 %v885
    %v1291 = vunpack.c.h.b16 %v885
    %v1292 = vunpack.c.l.b16 %v886
    %v1293 = vunpack.c.h.b16 %v886
    %v1294 = vunpack.c.l.b16 %v887
    %v1295 = vunpack.c.h.b16 %v887
    %v1296 = vunpack.c.l.b16 %v888
    %v1297 = vunpack.c.h.b16 %v888
    %v1298 = vunpack.c.l.b16 %v889
    %v1299 = vunpack.c.h.b16 %v889
    %v1300 = vunpack.c.l.b16 %v890
    %v1301 = vunpack.c.h.b16 %v890
    %v1302 = vunpack.c.l.b16 %v891
    %v1303 = vunpack.c.h.b16 %v891
    %v1304 = vunpack.c.l.b16 %v892
    %v1305 = vunpack.c.h.b16 %v892
    %v1306 = vunpack.c.l.b16 %v893
    %v1307 = vunpack.c.h.b16 %v893
    %v1308 = vunpack.c.l.b16 %v894
    %v1309 = vunpack.c.h.b16 %v894
    %v1310 = vunpack.c.l.b16 %v895
    %v1311 = vunpack.c.h.b16 %v895
    %v1312 = vunpack.c.l.b16 %v896
    %v1313 = vunpack.c.h.b16 %v896
    %v1314 = vunpack.c.l.b16 %v897
    %v1315 = vunpack.c.h.b16 %v897
    %v1316 = vunpack.c.l.b16 %v898
    %v1317 = vunpack.c.h.b16 %v898
    %v1318 = vunpack.c.l.b16 %v899
    %v1319 = vunpack.c.h.b16 %v899
    %v1320 = vunpack.c.l.b16 %v900
    %v1321 = vunpack.c.h.b16 %v900
    %v1322 = vunpack.c.l.b16 %v901
    %v1323 = vunpack.c.h.b16 %v901
    %v1324 = vunpack.c.l.b16 %v902
    %v1325 = vunpack.c.h.b16 %v902
    %v1326 = vunpack.c.l.b16 %v903
    %v1327 = vunpack.c.h.b16 %v903
    %v1328 = vunpack.c.l.b16 %v904
    %v1329 = vunpack.c.h.b16 %v904
    %v1330 = vunpack.c.l.b16 %v905
    %v1331 = vunpack.c.h.b16 %v905
    %v1332 = vunpack.c.l.b16 %v906
    %v1333 = vunpack.c.h.b16 %v906
    %v1334 = vunpack.c.l.b16 %v907
    %v1335 = vunpack.c.h.b16 %v907
    %v1336 = vunpack.c.l.b16 %v908
    %v1337 = vunpack.c.h.b16 %v908
    %v1338 = vunpack.c.l.b16 %v909
    %v1339 = vunpack.c.h.b16 %v909
    %v1340 = vunpack.c.l.b16 %v910
    %v1341 = vunpack.c.h.b16 %v910
    %v1342 = vunpack.c.l.b16 %v911
    %v1343 = vunpack.c.h.b16 %v911
    %v1344 = vunpack.c.l.b16 %v912
    %v1345 = vunpack.c.h.b16 %v912
    %v1346 = vunpack.c.l.b16 %v913
    %v1347 = vunpack.c.h.b16 %v913
    %v1348 = vunpack.c.l.b16 %v914
    %v1349 = vunpack.c.h.b16 %v914
    %v1350 = vunpack.c.l.b16 %v915
    %v1351 = vunpack.c.h.b16 %v915
    %v1352 = vunpack.c.l.b16 %v916
    %v1353 = vunpack.c.h.b16 %v916
    %v1354 = vunpack.c.l.b16 %v917
    %v1355 = vunpack.c.h.b16 %v917
    %v1356 = vunpack.c.l.b16 %v918
    %v1357 = vunpack.c.h.b16 %v918
    %v1358 = vunpack.c.l.b16 %v919
    %v1359 = vunpack.c.h.b16 %v919
    %v1360 = vunpack.c.l.b16 %v920
    %v1361 = vunpack.c.h.b16 %v920
    %v1362 = vunpack.c.l.b16 %v921
    %v1363 = vunpack.c.h.b16 %v921
    %v1364 = vunpack.c.l.b16 %v922
    %v1365 = vunpack.c.h.b16 %v922
    %v1366 = vunpack.c.l.b16 %v923
    %v1367 = vunpack.c.h.b16 %v923
    %v1368 = vunpack.c.l.b16 %v924
    %v1369 = vunpack.c.h.b16 %v924
    %v1370 = vunpack.c.l.b16 %v925
    %v1371 = vunpack.c.h.b16 %v925
    %v1372 = vunpack.c.l.b16 %v926
    %v1373 = vunpack.c.h.b16 %v926
    %v1374 = vunpack.c.l.b16 %v927
    %v1375 = vunpack.c.h.b16 %v927
    %v1376 = vunpack.c.l.b16 %v928
    %v1377 = vunpack.c.h.b16 %v928
    %v1378 = vunpack.c.l.b16 %v929
    %v1379 = vunpack.c.h.b16 %v929
    %v1380 = vunpack.c.l.b16 %v930
    %v1381 = vunpack.c.h.b16 %v930
    %v1382 = vunpack.c.l.b16 %v931
    %v1383 = vunpack.c.h.b16 %v931
    %v1384 = vunpack.c.l.b16 %v932
    %v1385 = vunpack.c.h.b16 %v932
    %v1386 = vunpack.c.l.b16 %v933
    %v1387 = vunpack.c.h.b16 %v933
    %v1388 = vunpack.c.l.b16 %v934
    %v1389 = vunpack.c.h.b16 %v934
    %v1390 = vunpack.c.l.b16 %v935
    %v1391 = vunpack.c.h.b16 %v935
    %v1392 = vunpack.c.l.b16 %v936
    %v1393 = vunpack.c.h.b16 %v936
    %v1394 = vunpack.c.l.b16 %v937
    %v1395 = vunpack.c.h.b16 %v937
    %v1396 = vunpack.c.l.b16 %v938
    %v1397 = vunpack.c.h.b16 %v938
    %v1398 = vunpack.c.l.b16 %v939
    %v1399 = vunpack.c.h.b16 %v939
    %v1400 = vunpack.c.l.b16 %v940
    %v1401 = vunpack.c.h.b16 %v940
    %v1402 = vunpack.c.l.b16 %v941
    %v1403 = vunpack.c.h.b16 %v941
    %v1404 = vunpack.c.l.b16 %v942
    %v1405 = vunpack.c.h.b16 %v942
    %v1406 = vunpack.c.l.b16 %v943
    %v1407 = vunpack.c.h.b16 %v943
    %v1408 = vunpack.c.l.b16 %v944
    %v1409 = vunpack.c.h.b16 %v944
    %v1410 = vunpack.c.l.b16 %v945
    %v1411 = vunpack.c.h.b16 %v945
    %v1412 = vunpack.c.l.b16 %v946
    %v1413 = vunpack.c.h.b16 %v946
    %v1414 = vunpack.c.l.b16 %v947
    %v1415 = vunpack.c.h.b16 %v947
    %v1416 = vunpack.c.l.b16 %v948
    %v1417 = vunpack.c.h.b16 %v948
    %v1418 = vunpack.c.l.b16 %v949
    %v1419 = vunpack.c.h.b16 %v949
    %v1420 = vunpack.c.l.b16 %v950
    %v1421 = vunpack.c.h.b16 %v950
    %v1422 = vunpack.c.l.b16 %v951
    %v1423 = vunpack.c.h.b16 %v951
    %v1424 = vunpack.c.l.b16 %v952
    %v1425 = vunpack.c.h.b16 %v952
    %v1426 = vunpack.c.l.b16 %v953
    %v1427 = vunpack.c.h.b16 %v953
    %v1428 = vunpack.c.l.b16 %v954
    %v1429 = vunpack.c.h.b16 %v954
    %v1430 = vunpack.c.l.b16 %v955
    %v1431 = vunpack.c.h.b16 %v955
    %v1432 = vunpack.c.l.b16 %v956
    %v1433 = vunpack.c.h.b16 %v956
    %v1434 = vunpack.c.l.b16 %v957
    %v1435 = vunpack.c.h.b16 %v957
    %v1436 = vunpack.c.l.b16 %v958
    %v1437 = vunpack.c.h.b16 %v958
    %v1438 = vunpack.c.l.b16 %v959
    %v1439 = vunpack.c.h.b16 %v959
    %v1440 = vunpack.c.l.b16 %v960
    %v1441 = vunpack.c.h.b16 %v960
    %v1442 = vunpack.c.l.b16 %v961
    %v1443 = vunpack.c.h.b16 %v961
    %v1444 = vunpack.c.l.b16 %v962
    %v1445 = vunpack.c.h.b16 %v962
    %v1446 = vunpack.c.l.b16 %v963
    %v1447 = vunpack.c.h.b16 %v963
    %v1448 = vunpack.c.l.b16 %v964
    %v1449 = vunpack.c.h.b16 %v964
    %v1450 = vunpack.c.l.b16 %v965
    %v1451 = vunpack.c.h.b16 %v965
    %v1452 = vunpack.c.l.b16 %v966
    %v1453 = vunpack.c.h.b16 %v966
    %v1454 = vunpack.c.l.b16 %v967
    %v1455 = vunpack.c.h.b16 %v967
    %v1456 = vunpack.c.l.b16 %v968
    %v1457 = vunpack.c.h.b16 %v968
    %v1458 = vunpack.c.l.b16 %v969
    %v1459 = vunpack.c.h.b16 %v969
    %v1460 = vunpack.c.l.b16 %v970
    %v1461 = vunpack.c.h.b16 %v970
    %v1462 = vunpack.c.l.b16 %v971
    %v1463 = vunpack.c.h.b16 %v971
    %v1464 = vunpack.c.l.b16 %v972
    %v1465 = vunpack.c.h.b16 %v972
    %v1466 = vunpack.c.l.b16 %v973
    %v1467 = vunpack.c.h.b16 %v973
    %v1468 = vunpack.c.l.b16 %v974
    %v1469 = vunpack.c.h.b16 %v974
    %v1470 = vunpack.c.l.b16 %v975
    %v1471 = vunpack.c.h.b16 %v975
    %v1472 = vunpack.c.l.b16 %v976
    %v1473 = vunpack.c.h.b16 %v976
    %v1474 = vunpack.c.l.b16 %v977
    %v1475 = vunpack.c.h.b16 %v977
    %v1476 = vunpack.c.l.b16 %v978
    %v1477 = vunpack.c.h.b16 %v978
    %v1478 = vunpack.c.l.b16 %v979
    %v1479 = vunpack.c.h.b16 %v979
    %v1480 = vunpack.c.l.b16 %v980
    %v1481 = vunpack.c.h.b16 %v980
    %v1482 = vunpack.c.l.b16 %v981
    %v1483 = vunpack.c.h.b16 %v981
    %v1484 = vunpack.c.l.b16 %v982
    %v1485 = vunpack.c.h.b16 %v982
    %v1486 = vunpack.c.l.b16 %v983
    %v1487 = vunpack.c.h.b16 %v983
    %v1488 = vunpack.c.l.b16 %v984
    %v1489 = vunpack.c.h.b16 %v984
    %v1490 = vunpack.c.l.b16 %v985
    %v1491 = vunpack.c.h.b16 %v985
    %v1492 = vunpack.c.l.b16 %v986
    %v1493 = vunpack.c.h.b16 %v986
    %v1494 = vunpack.c.l.b16 %v987
    %v1495 = vunpack.c.h.b16 %v987
    %v1496 = vunpack.c.l.b16 %v988
    %v1497 = vunpack.c.h.b16 %v988
    %v1498 = vunpack.c.l.b16 %v989
    %v1499 = vunpack.c.h.b16 %v989
    %v1500 = vunpack.c.l.b16 %v990
    %v1501 = vunpack.c.h.b16 %v990
    %v1502 = vunpack.c.l.b16 %v991
    %v1503 = vunpack.c.h.b16 %v991
    %v1504 = vpack.c.b16 %v1264, %v1248
    %v1505 = vpack.c.b16 %v1265, %v1249
    %v1506 = vpack.c.b16 %v1266, %v1250
    %v1507 = vpack.c.b16 %v1267, %v1251
    %v1508 = vpack.c.b16 %v1268, %v1252
    %v1509 = vpack.c.b16 %v1269, %v1253
    %v1510 = vpack.c.b16 %v1270, %v1254
    %v1511 = vpack.c.b16 %v1271, %v1255
    %v1512 = vpack.c.b16 %v1272, %v1256
    %v1513 = vpack.c.b16 %v1273, %v1257
    %v1514 = vpack.c.b16 %v1274, %v1258
    %v1515 = vpack.c.b16 %v1275, %v1259
    %v1516 = vpack.c.b16 %v1276, %v1260
    %v1517 = vpack.c.b16 %v1277, %v1261
    %v1518 = vpack.c.b16 %v1278, %v1262
    %v1519 = vpack.c.b16 %v1279, %v1263
    %v1520 = vpack.c.b16 %v1296, %v1280
    %v1521 = vpack.c.b16 %v1297, %v1281
    %v1522 = vpack.c.b16 %v1298, %v1282
    %v1523 = vpack.c.b16 %v1299, %v1283
    %v1524 = vpack.c.b16 %v1300, %v1284
    %v1525 = vpack.c.b16 %v1301, %v1285
    %v1526 = vpack.c.b16 %v1302, %v1286
    %v1527 = vpack.c.b16 %v1303, %v1287
    %v1528 = vpack.c.b16 %v1304, %v1288
    %v1529 = vpack.c.b16 %v1305, %v1289
    %v1530 = vpack.c.b16 %v1306, %v1290
    %v1531 = vpack.c.b16 %v1307, %v1291
    %v1532 = vpack.c.b16 %v1308, %v1292
    %v1533 = vpack.c.b16 %v1309, %v1293
    %v1534 = vpack.c.b16 %v1310, %v1294
    %v1535 = vpack.c.b16 %v1311, %v1295
    %v1536 = vpack.c.b16 %v1328, %v1312
    %v1537 = vpack.c.b16 %v1329, %v1313
    %v1538 = vpack.c.b16 %v1330, %v1314
    %v1539 = vpack.c.b16 %v1331, %v1315
    %v1540 = vpack.c.b16 %v1332, %v1316
    %v1541 = vpack.c.b16 %v1333, %v1317
    %v1542 = vpack.c.b16 %v1334, %v1318
    %v1543 = vpack.c.b16 %v1335, %v1319
    %v1544 = vpack.c.b16 %v1336, %v1320
    %v1545 = vpack.c.b16 %v1337, %v1321
    %v1546 = vpack.c.b16 %v1338, %v1322
    %v1547 = vpack.c.b16 %v1339, %v1323
    %v1548 = vpack.c.b16 %v1340, %v1324
    %v1549 = vpack.c.b16 %v1341, %v1325
    %v1550 = vpack.c.b16 %v1342, %v1326
    %v1551 = vpack.c.b16 %v1343, %v1327
    %v1552 = vpack.c.b16 %v1360, %v1344
    %v1553 = vpack.c.b16 %v1361, %v1345
    %v1554 = vpack.c.b16 %v1362, %v1346
    %v1555 = vpack.c.b16 %v1363, %v1347
    %v1556 = vpack.c.b16 %v1364, %v1348
    %v1557 = vpack.c.b16 %v1365, %v1349
    %v1558 = vpack.c.b16 %v1366, %v1350
    %v1559 = vpack.c.b16 %v1367, %v1351
    %v1560 = vpack.c.b16 %v1368, %v1352
    %v1561 = vpack.c.b16 %v1369, %v1353
    %v1562 = vpack.c.b16 %v1370, %v1354
    %v1563 = vpack.c.b16 %v1371, %v1355
    %v1564 = vpack.c.b16 %v1372, %v1356
    %v1565 = vpack.c.b16 %v1373, %v1357
    %v1566 = vpack.c.b16 %v1374, %v1358
    %v1567 = vpack.c.b16 %v1375, %v1359
    %v1568 = vpack.c.b16 %v1392, %v1376
    %v1569 = vpack.c.b16 %v1393, %v1377
    %v1570 = vpack.c.b16 %v1394, %v1378
    %v1571 = vpack.c.b16 %v1395, %v1379
    %v1572 = vpack.c.b16 %v1396, %v1380
    %v1573 = vpack.c.b16 %v1397, %v1381
    %v1574 = vpack.c.b16 %v1398, %v1382
    %v1575 = vpack.c.b16 %v1399, %v1383
    %v1576 = vpack.c.b16 %v1400, %v1384
    %v1577 = vpack.c.b16 %v1401, %v1385
    %v1578 = vpack.c.b16 %v1402, %v1386
    %v1579 = vpack.c.b16 %v1403, %v1387
    %v1580 = vpack.c.b16 %v1404, %v1388
    %v1581 = vpack.c.b16 %v1405, %v1389
    %v1582 = vpack.c.b16 %v1406, %v1390
    %v1583 = vpack.c.b16 %v1407, %v1391
    %v1584 = vpack.c.b16 %v1424, %v1408
    %v1585 = vpack.c.b16 %v1425, %v1409
    %v1586 = vpack.c.b16 %v1426, %v1410
    %v1587 = vpack.c.b16 %v1427, %v1411
    %v1588 = vpack.c.b16 %v1428, %v1412
    %v1589 = vpack.c.b16 %v1429, %v1413
    %v1590 = vpack.c.b16 %v1430, %v1414
    %v1591 = vpack.c.b16 %v1431, %v1415
    %v1592 = vpack.c.b16 %v1432, %v1416
    %v1593 = vpack.c.b16 %v1433, %v1417
    %v1594 = vpack.c.b16 %v1434, %v1418
    %v1595 = vpack.c.b16 %v1435, %v1419
    %v1596 = vpack.c.b16 %v1436, %v1420
    %v1597 = vpack.c.b16 %v1437, %v1421
    %v1598 = vpack.c.b16 %v1438, %v1422
    %v1599 = vpack.c.b16 %v1439, %v1423
    %v1600 = vpack.c.b16 %v1456, %v1440
    %v1601 = vpack.c.b16 %v1457, %v1441
    %v1602 = vpack.c.b16 %v1458, %v1442
    %v1603 = vpack.c.b16 %v1459, %v1443
    %v1604 = vpack.c.b16 %v1460, %v1444
    %v1605 = vpack.c.b16 %v1461, %v1445
    %v1606 = vpack.c.b16 %v1462, %v1446
    %v1607 = vpack.c.b16 %v1463, %v1447
    %v1608 = vpack.c.b16 %v1464, %v1448
    %v1609 = vpack.c.b16 %v1465, %v1449
    %v1610 = vpack.c.b16 %v1466, %v1450
    %v1611 = vpack.c.b16 %v1467, %v1451
    %v1612 = vpack.c.b16 %v1468, %v1452
    %v1613 = vpack.c.b16 %v1469, %v1453
    %v1614 = vpack.c.b16 %v1470, %v1454
    %v1615 = vpack.c.b16 %v1471, %v1455
    %v1616 = vpack.c.b16 %v1488, %v1472
    %v1617 = vpack.c.b16 %v1489, %v1473
    %v1618 = vpack.c.b16 %v1490, %v1474
    %v1619 = vpack.c.b16 %v1491, %v1475
    %v1620 = vpack.c.b16 %v1492, %v1476
    %v1621 = vpack.c.b16 %v1493, %v1477
    %v1622 = vpack.c.b16 %v1494, %v1478
    %v1623 = vpack.c.b16 %v1495, %v1479
    %v1624 = vpack.c.b16 %v1496, %v1480
    %v1625 = vpack.c.b16 %v1497, %v1481
    %v1626 = vpack.c.b16 %v1498, %v1482
    %v1627 = vpack.c.b16 %v1499, %v1483
    %v1628 = vpack.c.b16 %v1500, %v1484
    %v1629 = vpack.c.b16 %v1501, %v1485
    %v1630 = vpack.c.b16 %v1502, %v1486
    %v1631 = vpack.c.b16 %v1503, %v1487
    %1760 = vmatpush.bf16.msra.mxu0 %v1616
    %1761 = vmatpush.bf16.msra.mxu0 %v1600
    %1762 = vmatpush.bf16.msra.mxu0 %v1584
    %1763 = vmatpush.bf16.msra.mxu0 %v1568
    %1764 = vmatpush.bf16.msra.mxu0 %v1552
    %1765 = vmatpush.bf16.msra.mxu0 %v1536
    %1766 = vmatpush.bf16.msra.mxu0 %v1520
    %1767 = vmatpush.bf16.msra.mxu0 %v1504
    %1768 = vmatmul.bf16.gmra.mxu0 %v836
    %v1769 = vpop.f32.mrf.mxu0
    %v1770 = vadd.f32 0.0, %v1769
    %v1771 = vpop.f32.mrf.mxu0
    %v1772 = vadd.f32 0.0, %v1771
    %1773 = vmatmul.bf16.gmra.mxu0 %v837
    %v1774 = vpop.f32.mrf.mxu0
    %v1775 = vadd.f32 0.0, %v1774
    %v1776 = vpop.f32.mrf.mxu0
    %v1777 = vadd.f32 0.0, %v1776
    %1778 = vmatmul.bf16.gmra.mxu0 %v838
    %v1779 = vpop.f32.mrf.mxu0
    %v1780 = vadd.f32 0.0, %v1779
    %v1781 = vpop.f32.mrf.mxu0
    %v1782 = vadd.f32 0.0, %v1781
    %1783 = vmatmul.bf16.gmra.mxu0 %v839
    %v1784 = vpop.f32.mrf.mxu0
    %v1785 = vadd.f32 0.0, %v1784
    %v1786 = vpop.f32.mrf.mxu0
    %v1787 = vadd.f32 0.0, %v1786
    %1788 = vdwg.mxu0
    %1789 = vmatpush.bf16.msra.mxu0 %v1617
    %1790 = vmatpush.bf16.msra.mxu0 %v1601
    %1791 = vmatpush.bf16.msra.mxu0 %v1585
    %1792 = vmatpush.bf16.msra.mxu0 %v1569
    %1793 = vmatpush.bf16.msra.mxu0 %v1553
    %1794 = vmatpush.bf16.msra.mxu0 %v1537
    %1795 = vmatpush.bf16.msra.mxu0 %v1521
    %1796 = vmatpush.bf16.msra.mxu0 %v1505
    %1797 = vmatmul.bf16.gmra.mxu0 %v836
    %v1798 = vpop.f32.mrf.mxu0
    %v1799 = vadd.f32 0.0, %v1798
    %v1800 = vpop.f32.mrf.mxu0
    %v1801 = vadd.f32 0.0, %v1800
    %1802 = vmatmul.bf16.gmra.mxu0 %v837
    %v1803 = vpop.f32.mrf.mxu0
    %v1804 = vadd.f32 0.0, %v1803
    %v1805 = vpop.f32.mrf.mxu0
    %v1806 = vadd.f32 0.0, %v1805
    %1807 = vmatmul.bf16.gmra.mxu0 %v838
    %v1808 = vpop.f32.mrf.mxu0
    %v1809 = vadd.f32 0.0, %v1808
    %v1810 = vpop.f32.mrf.mxu0
    %v1811 = vadd.f32 0.0, %v1810
    %1812 = vmatmul.bf16.gmra.mxu0 %v839
    %v1813 = vpop.f32.mrf.mxu0
    %v1814 = vadd.f32 0.0, %v1813
    %v1815 = vpop.f32.mrf.mxu0
    %v1816 = vadd.f32 0.0, %v1815
    %1817 = vdwg.mxu0
    %1818 = vmatpush.bf16.msra.mxu0 %v1618
    %1819 = vmatpush.bf16.msra.mxu0 %v1602
    %1820 = vmatpush.bf16.msra.mxu0 %v1586
    %1821 = vmatpush.bf16.msra.mxu0 %v1570
    %1822 = vmatpush.bf16.msra.mxu0 %v1554
    %1823 = vmatpush.bf16.msra.mxu0 %v1538
    %1824 = vmatpush.bf16.msra.mxu0 %v1522
    %1825 = vmatpush.bf16.msra.mxu0 %v1506
    %1826 = vmatmul.bf16.gmra.mxu0 %v836
    %v1827 = vpop.f32.mrf.mxu0
    %v1828 = vadd.f32 0.0, %v1827
    %v1829 = vpop.f32.mrf.mxu0
    %v1830 = vadd.f32 0.0, %v1829
    %1831 = vmatmul.bf16.gmra.mxu0 %v837
    %v1832 = vpop.f32.mrf.mxu0
    %v1833 = vadd.f32 0.0, %v1832
    %v1834 = vpop.f32.mrf.mxu0
    %v1835 = vadd.f32 0.0, %v1834
    %1836 = vmatmul.bf16.gmra.mxu0 %v838
    %v1837 = vpop.f32.mrf.mxu0
    %v1838 = vadd.f32 0.0, %v1837
    %v1839 = vpop.f32.mrf.mxu0
    %v1840 = vadd.f32 0.0, %v1839
    %1841 = vmatmul.bf16.gmra.mxu0 %v839
    %v1842 = vpop.f32.mrf.mxu0
    %v1843 = vadd.f32 0.0, %v1842
    %v1844 = vpop.f32.mrf.mxu0
    %v1845 = vadd.f32 0.0, %v1844
    %1846 = vdwg.mxu0
    %1847 = vmatpush.bf16.msra.mxu0 %v1619
    %1848 = vmatpush.bf16.msra.mxu0 %v1603
    %1849 = vmatpush.bf16.msra.mxu0 %v1587
    %1850 = vmatpush.bf16.msra.mxu0 %v1571
    %1851 = vmatpush.bf16.msra.mxu0 %v1555
    %1852 = vmatpush.bf16.msra.mxu0 %v1539
    %1853 = vmatpush.bf16.msra.mxu0 %v1523
    %1854 = vmatpush.bf16.msra.mxu0 %v1507
    %1855 = vmatmul.bf16.gmra.mxu0 %v836
    %v1856 = vpop.f32.mrf.mxu0
    %v1857 = vadd.f32 0.0, %v1856
    %v1858 = vpop.f32.mrf.mxu0
    %v1859 = vadd.f32 0.0, %v1858
    %1860 = vmatmul.bf16.gmra.mxu0 %v837
    %v1861 = vpop.f32.mrf.mxu0
    %v1862 = vadd.f32 0.0, %v1861
    %v1863 = vpop.f32.mrf.mxu0
    %v1864 = vadd.f32 0.0, %v1863
    %1865 = vmatmul.bf16.gmra.mxu0 %v838
    %v1866 = vpop.f32.mrf.mxu0
    %v1867 = vadd.f32 0.0, %v1866
    %v1868 = vpop.f32.mrf.mxu0
    %v1869 = vadd.f32 0.0, %v1868
    %1870 = vmatmul.bf16.gmra.mxu0 %v839
    %v1871 = vpop.f32.mrf.mxu0
    %v1872 = vadd.f32 0.0, %v1871
    %v1873 = vpop.f32.mrf.mxu0
    %v1874 = vadd.f32 0.0, %v1873
    %1875 = vdwg.mxu0
    %1876 = vmatpush.bf16.msra.mxu0 %v1620
    %1877 = vmatpush.bf16.msra.mxu0 %v1604
    %1878 = vmatpush.bf16.msra.mxu0 %v1588
    %1879 = vmatpush.bf16.msra.mxu0 %v1572
    %1880 = vmatpush.bf16.msra.mxu0 %v1556
    %1881 = vmatpush.bf16.msra.mxu0 %v1540
    %1882 = vmatpush.bf16.msra.mxu0 %v1524
    %1883 = vmatpush.bf16.msra.mxu0 %v1508
    %1884 = vmatmul.bf16.gmra.mxu0 %v836
    %v1885 = vpop.f32.mrf.mxu0
    %v1886 = vadd.f32 0.0, %v1885
    %v1887 = vpop.f32.mrf.mxu0
    %v1888 = vadd.f32 0.0, %v1887
    %1889 = vmatmul.bf16.gmra.mxu0 %v837
    %v1890 = vpop.f32.mrf.mxu0
    %v1891 = vadd.f32 0.0, %v1890
    %v1892 = vpop.f32.mrf.mxu0
    %v1893 = vadd.f32 0.0, %v1892
    %1894 = vmatmul.bf16.gmra.mxu0 %v838
    %v1895 = vpop.f32.mrf.mxu0
    %v1896 = vadd.f32 0.0, %v1895
    %v1897 = vpop.f32.mrf.mxu0
    %v1898 = vadd.f32 0.0, %v1897
    %1899 = vmatmul.bf16.gmra.mxu0 %v839
    %v1900 = vpop.f32.mrf.mxu0
    %v1901 = vadd.f32 0.0, %v1900
    %v1902 = vpop.f32.mrf.mxu0
    %v1903 = vadd.f32 0.0, %v1902
    %1904 = vdwg.mxu0
    %1905 = vmatpush.bf16.msra.mxu0 %v1621
    %1906 = vmatpush.bf16.msra.mxu0 %v1605
    %1907 = vmatpush.bf16.msra.mxu0 %v1589
    %1908 = vmatpush.bf16.msra.mxu0 %v1573
    %1909 = vmatpush.bf16.msra.mxu0 %v1557
    %1910 = vmatpush.bf16.msra.mxu0 %v1541
    %1911 = vmatpush.bf16.msra.mxu0 %v1525
    %1912 = vmatpush.bf16.msra.mxu0 %v1509
    %1913 = vmatmul.bf16.gmra.mxu0 %v836
    %v1914 = vpop.f32.mrf.mxu0
    %v1915 = vadd.f32 0.0, %v1914
    %v1916 = vpop.f32.mrf.mxu0
    %v1917 = vadd.f32 0.0, %v1916
    %1918 = vmatmul.bf16.gmra.mxu0 %v837
    %v1919 = vpop.f32.mrf.mxu0
    %v1920 = vadd.f32 0.0, %v1919
    %v1921 = vpop.f32.mrf.mxu0
    %v1922 = vadd.f32 0.0, %v1921
    %1923 = vmatmul.bf16.gmra.mxu0 %v838
    %v1924 = vpop.f32.mrf.mxu0
    %v1925 = vadd.f32 0.0, %v1924
    %v1926 = vpop.f32.mrf.mxu0
    %v1927 = vadd.f32 0.0, %v1926
    %1928 = vmatmul.bf16.gmra.mxu0 %v839
    %v1929 = vpop.f32.mrf.mxu0
    %v1930 = vadd.f32 0.0, %v1929
    %v1931 = vpop.f32.mrf.mxu0
    %v1932 = vadd.f32 0.0, %v1931
    %1933 = vdwg.mxu0
    %1934 = vmatpush.bf16.msra.mxu0 %v1622
    %1935 = vmatpush.bf16.msra.mxu0 %v1606
    %1936 = vmatpush.bf16.msra.mxu0 %v1590
    %1937 = vmatpush.bf16.msra.mxu0 %v1574
    %1938 = vmatpush.bf16.msra.mxu0 %v1558
    %1939 = vmatpush.bf16.msra.mxu0 %v1542
    %1940 = vmatpush.bf16.msra.mxu0 %v1526
    %1941 = vmatpush.bf16.msra.mxu0 %v1510
    %1942 = vmatmul.bf16.gmra.mxu0 %v836
    %v1943 = vpop.f32.mrf.mxu0
    %v1944 = vadd.f32 0.0, %v1943
    %v1945 = vpop.f32.mrf.mxu0
    %v1946 = vadd.f32 0.0, %v1945
    %1947 = vmatmul.bf16.gmra.mxu0 %v837
    %v1948 = vpop.f32.mrf.mxu0
    %v1949 = vadd.f32 0.0, %v1948
    %v1950 = vpop.f32.mrf.mxu0
    %v1951 = vadd.f32 0.0, %v1950
    %1952 = vmatmul.bf16.gmra.mxu0 %v838
    %v1953 = vpop.f32.mrf.mxu0
    %v1954 = vadd.f32 0.0, %v1953
    %v1955 = vpop.f32.mrf.mxu0
    %v1956 = vadd.f32 0.0, %v1955
    %1957 = vmatmul.bf16.gmra.mxu0 %v839
    %v1958 = vpop.f32.mrf.mxu0
    %v1959 = vadd.f32 0.0, %v1958
    %v1960 = vpop.f32.mrf.mxu0
    %v1961 = vadd.f32 0.0, %v1960
    %1962 = vdwg.mxu0
    %1963 = vmatpush.bf16.msra.mxu0 %v1623
    %1964 = vmatpush.bf16.msra.mxu0 %v1607
    %1965 = vmatpush.bf16.msra.mxu0 %v1591
    %1966 = vmatpush.bf16.msra.mxu0 %v1575
    %1967 = vmatpush.bf16.msra.mxu0 %v1559
    %1968 = vmatpush.bf16.msra.mxu0 %v1543
    %1969 = vmatpush.bf16.msra.mxu0 %v1527
    %1970 = vmatpush.bf16.msra.mxu0 %v1511
    %1971 = vmatmul.bf16.gmra.mxu0 %v836
    %v1972 = vpop.f32.mrf.mxu0
    %v1973 = vadd.f32 0.0, %v1972
    %v1974 = vpop.f32.mrf.mxu0
    %v1975 = vadd.f32 0.0, %v1974
    %1976 = vmatmul.bf16.gmra.mxu0 %v837
    %v1977 = vpop.f32.mrf.mxu0
    %v1978 = vadd.f32 0.0, %v1977
    %v1979 = vpop.f32.mrf.mxu0
    %v1980 = vadd.f32 0.0, %v1979
    %1981 = vmatmul.bf16.gmra.mxu0 %v838
    %v1982 = vpop.f32.mrf.mxu0
    %v1983 = vadd.f32 0.0, %v1982
    %v1984 = vpop.f32.mrf.mxu0
    %v1985 = vadd.f32 0.0, %v1984
    %1986 = vmatmul.bf16.gmra.mxu0 %v839
    %v1987 = vpop.f32.mrf.mxu0
    %v1988 = vadd.f32 0.0, %v1987
    %v1989 = vpop.f32.mrf.mxu0
    %v1990 = vadd.f32 0.0, %v1989
    %1991 = vdwg.mxu0
    %1992 = vmatpush.bf16.msra.mxu0 %v1624
    %1993 = vmatpush.bf16.msra.mxu0 %v1608
    %1994 = vmatpush.bf16.msra.mxu0 %v1592
    %1995 = vmatpush.bf16.msra.mxu0 %v1576
    %1996 = vmatpush.bf16.msra.mxu0 %v1560
    %1997 = vmatpush.bf16.msra.mxu0 %v1544
    %1998 = vmatpush.bf16.msra.mxu0 %v1528
    %1999 = vmatpush.bf16.msra.mxu0 %v1512
    %2000 = vmatmul.bf16.gmra.mxu0 %v836
    %v2001 = vpop.f32.mrf.mxu0
    %v2002 = vadd.f32 0.0, %v2001
    %v2003 = vpop.f32.mrf.mxu0
    %v2004 = vadd.f32 0.0, %v2003
    %2005 = vmatmul.bf16.gmra.mxu0 %v837
    %v2006 = vpop.f32.mrf.mxu0
    %v2007 = vadd.f32 0.0, %v2006
    %v2008 = vpop.f32.mrf.mxu0
    %v2009 = vadd.f32 0.0, %v2008
    %2010 = vmatmul.bf16.gmra.mxu0 %v838
    %v2011 = vpop.f32.mrf.mxu0
    %v2012 = vadd.f32 0.0, %v2011
    %v2013 = vpop.f32.mrf.mxu0
    %v2014 = vadd.f32 0.0, %v2013
    %2015 = vmatmul.bf16.gmra.mxu0 %v839
    %v2016 = vpop.f32.mrf.mxu0
    %v2017 = vadd.f32 0.0, %v2016
    %v2018 = vpop.f32.mrf.mxu0
    %v2019 = vadd.f32 0.0, %v2018
    %2020 = vdwg.mxu0
    %2021 = vmatpush.bf16.msra.mxu0 %v1625
    %2022 = vmatpush.bf16.msra.mxu0 %v1609
    %2023 = vmatpush.bf16.msra.mxu0 %v1593
    %2024 = vmatpush.bf16.msra.mxu0 %v1577
    %2025 = vmatpush.bf16.msra.mxu0 %v1561
    %2026 = vmatpush.bf16.msra.mxu0 %v1545
    %2027 = vmatpush.bf16.msra.mxu0 %v1529
    %2028 = vmatpush.bf16.msra.mxu0 %v1513
    %2029 = vmatmul.bf16.gmra.mxu0 %v836
    %v2030 = vpop.f32.mrf.mxu0
    %v2031 = vadd.f32 0.0, %v2030
    %v2032 = vpop.f32.mrf.mxu0
    %v2033 = vadd.f32 0.0, %v2032
    %2034 = vmatmul.bf16.gmra.mxu0 %v837
    %v2035 = vpop.f32.mrf.mxu0
    %v2036 = vadd.f32 0.0, %v2035
    %v2037 = vpop.f32.mrf.mxu0
    %v2038 = vadd.f32 0.0, %v2037
    %2039 = vmatmul.bf16.gmra.mxu0 %v838
    %v2040 = vpop.f32.mrf.mxu0
    %v2041 = vadd.f32 0.0, %v2040
    %v2042 = vpop.f32.mrf.mxu0
    %v2043 = vadd.f32 0.0, %v2042
    %2044 = vmatmul.bf16.gmra.mxu0 %v839
    %v2045 = vpop.f32.mrf.mxu0
    %v2046 = vadd.f32 0.0, %v2045
    %v2047 = vpop.f32.mrf.mxu0
    %v2048 = vadd.f32 0.0, %v2047
    %2049 = vdwg.mxu0
    %2050 = vmatpush.bf16.msra.mxu0 %v1626
    %2051 = vmatpush.bf16.msra.mxu0 %v1610
    %2052 = vmatpush.bf16.msra.mxu0 %v1594
    %2053 = vmatpush.bf16.msra.mxu0 %v1578
    %2054 = vmatpush.bf16.msra.mxu0 %v1562
    %2055 = vmatpush.bf16.msra.mxu0 %v1546
    %2056 = vmatpush.bf16.msra.mxu0 %v1530
    %2057 = vmatpush.bf16.msra.mxu0 %v1514
    %2058 = vmatmul.bf16.gmra.mxu0 %v836
    %v2059 = vpop.f32.mrf.mxu0
    %v2060 = vadd.f32 0.0, %v2059
    %v2061 = vpop.f32.mrf.mxu0
    %v2062 = vadd.f32 0.0, %v2061
    %2063 = vmatmul.bf16.gmra.mxu0 %v837
    %v2064 = vpop.f32.mrf.mxu0
    %v2065 = vadd.f32 0.0, %v2064
    %v2066 = vpop.f32.mrf.mxu0
    %v2067 = vadd.f32 0.0, %v2066
    %2068 = vmatmul.bf16.gmra.mxu0 %v838
    %v2069 = vpop.f32.mrf.mxu0
    %v2070 = vadd.f32 0.0, %v2069
    %v2071 = vpop.f32.mrf.mxu0
    %v2072 = vadd.f32 0.0, %v2071
    %2073 = vmatmul.bf16.gmra.mxu0 %v839
    %v2074 = vpop.f32.mrf.mxu0
    %v2075 = vadd.f32 0.0, %v2074
    %v2076 = vpop.f32.mrf.mxu0
    %v2077 = vadd.f32 0.0, %v2076
    %2078 = vdwg.mxu0
    %2079 = vmatpush.bf16.msra.mxu0 %v1627
    %2080 = vmatpush.bf16.msra.mxu0 %v1611
    %2081 = vmatpush.bf16.msra.mxu0 %v1595
    %2082 = vmatpush.bf16.msra.mxu0 %v1579
    %2083 = vmatpush.bf16.msra.mxu0 %v1563
    %2084 = vmatpush.bf16.msra.mxu0 %v1547
    %2085 = vmatpush.bf16.msra.mxu0 %v1531
    %2086 = vmatpush.bf16.msra.mxu0 %v1515
    %2087 = vmatmul.bf16.gmra.mxu0 %v836
    %v2088 = vpop.f32.mrf.mxu0
    %v2089 = vadd.f32 0.0, %v2088
    %v2090 = vpop.f32.mrf.mxu0
    %v2091 = vadd.f32 0.0, %v2090
    %2092 = vmatmul.bf16.gmra.mxu0 %v837
    %v2093 = vpop.f32.mrf.mxu0
    %v2094 = vadd.f32 0.0, %v2093
    %v2095 = vpop.f32.mrf.mxu0
    %v2096 = vadd.f32 0.0, %v2095
    %2097 = vmatmul.bf16.gmra.mxu0 %v838
    %v2098 = vpop.f32.mrf.mxu0
    %v2099 = vadd.f32 0.0, %v2098
    %v2100 = vpop.f32.mrf.mxu0
    %v2101 = vadd.f32 0.0, %v2100
    %2102 = vmatmul.bf16.gmra.mxu0 %v839
    %v2103 = vpop.f32.mrf.mxu0
    %v2104 = vadd.f32 0.0, %v2103
    %v2105 = vpop.f32.mrf.mxu0
    %v2106 = vadd.f32 0.0, %v2105
    %2107 = vdwg.mxu0
    %2108 = vmatpush.bf16.msra.mxu0 %v1628
    %2109 = vmatpush.bf16.msra.mxu0 %v1612
    %2110 = vmatpush.bf16.msra.mxu0 %v1596
    %2111 = vmatpush.bf16.msra.mxu0 %v1580
    %2112 = vmatpush.bf16.msra.mxu0 %v1564
    %2113 = vmatpush.bf16.msra.mxu0 %v1548
    %2114 = vmatpush.bf16.msra.mxu0 %v1532
    %2115 = vmatpush.bf16.msra.mxu0 %v1516
    %2116 = vmatmul.bf16.gmra.mxu0 %v836
    %v2117 = vpop.f32.mrf.mxu0
    %v2118 = vadd.f32 0.0, %v2117
    %v2119 = vpop.f32.mrf.mxu0
    %v2120 = vadd.f32 0.0, %v2119
    %2121 = vmatmul.bf16.gmra.mxu0 %v837
    %v2122 = vpop.f32.mrf.mxu0
    %v2123 = vadd.f32 0.0, %v2122
    %v2124 = vpop.f32.mrf.mxu0
    %v2125 = vadd.f32 0.0, %v2124
    %2126 = vmatmul.bf16.gmra.mxu0 %v838
    %v2127 = vpop.f32.mrf.mxu0
    %v2128 = vadd.f32 0.0, %v2127
    %v2129 = vpop.f32.mrf.mxu0
    %v2130 = vadd.f32 0.0, %v2129
    %2131 = vmatmul.bf16.gmra.mxu0 %v839
    %v2132 = vpop.f32.mrf.mxu0
    %v2133 = vadd.f32 0.0, %v2132
    %v2134 = vpop.f32.mrf.mxu0
    %v2135 = vadd.f32 0.0, %v2134
    %2136 = vdwg.mxu0
    %2137 = vmatpush.bf16.msra.mxu0 %v1629
    %2138 = vmatpush.bf16.msra.mxu0 %v1613
    %2139 = vmatpush.bf16.msra.mxu0 %v1597
    %2140 = vmatpush.bf16.msra.mxu0 %v1581
    %2141 = vmatpush.bf16.msra.mxu0 %v1565
    %2142 = vmatpush.bf16.msra.mxu0 %v1549
    %2143 = vmatpush.bf16.msra.mxu0 %v1533
    %2144 = vmatpush.bf16.msra.mxu0 %v1517
    %2145 = vmatmul.bf16.gmra.mxu0 %v836
    %v2146 = vpop.f32.mrf.mxu0
    %v2147 = vadd.f32 0.0, %v2146
    %v2148 = vpop.f32.mrf.mxu0
    %v2149 = vadd.f32 0.0, %v2148
    %2150 = vmatmul.bf16.gmra.mxu0 %v837
    %v2151 = vpop.f32.mrf.mxu0
    %v2152 = vadd.f32 0.0, %v2151
    %v2153 = vpop.f32.mrf.mxu0
    %v2154 = vadd.f32 0.0, %v2153
    %2155 = vmatmul.bf16.gmra.mxu0 %v838
    %v2156 = vpop.f32.mrf.mxu0
    %v2157 = vadd.f32 0.0, %v2156
    %v2158 = vpop.f32.mrf.mxu0
    %v2159 = vadd.f32 0.0, %v2158
    %2160 = vmatmul.bf16.gmra.mxu0 %v839
    %v2161 = vpop.f32.mrf.mxu0
    %v2162 = vadd.f32 0.0, %v2161
    %v2163 = vpop.f32.mrf.mxu0
    %v2164 = vadd.f32 0.0, %v2163
    %2165 = vdwg.mxu0
    %2166 = vmatpush.bf16.msra.mxu0 %v1630
    %2167 = vmatpush.bf16.msra.mxu0 %v1614
    %2168 = vmatpush.bf16.msra.mxu0 %v1598
    %2169 = vmatpush.bf16.msra.mxu0 %v1582
    %2170 = vmatpush.bf16.msra.mxu0 %v1566
    %2171 = vmatpush.bf16.msra.mxu0 %v1550
    %2172 = vmatpush.bf16.msra.mxu0 %v1534
    %2173 = vmatpush.bf16.msra.mxu0 %v1518
    %2174 = vmatmul.bf16.gmra.mxu0 %v836
    %v2175 = vpop.f32.mrf.mxu0
    %v2176 = vadd.f32 0.0, %v2175
    %v2177 = vpop.f32.mrf.mxu0
    %v2178 = vadd.f32 0.0, %v2177
    %2179 = vmatmul.bf16.gmra.mxu0 %v837
    %v2180 = vpop.f32.mrf.mxu0
    %v2181 = vadd.f32 0.0, %v2180
    %v2182 = vpop.f32.mrf.mxu0
    %v2183 = vadd.f32 0.0, %v2182
    %2184 = vmatmul.bf16.gmra.mxu0 %v838
    %v2185 = vpop.f32.mrf.mxu0
    %v2186 = vadd.f32 0.0, %v2185
    %v2187 = vpop.f32.mrf.mxu0
    %v2188 = vadd.f32 0.0, %v2187
    %2189 = vmatmul.bf16.gmra.mxu0 %v839
    %v2190 = vpop.f32.mrf.mxu0
    %v2191 = vadd.f32 0.0, %v2190
    %v2192 = vpop.f32.mrf.mxu0
    %v2193 = vadd.f32 0.0, %v2192
    %2194 = vdwg.mxu0
    %2195 = vmatpush.bf16.msra.mxu0 %v1631
    %2196 = vmatpush.bf16.msra.mxu0 %v1615
    %2197 = vmatpush.bf16.msra.mxu0 %v1599
    %2198 = vmatpush.bf16.msra.mxu0 %v1583
    %2199 = vmatpush.bf16.msra.mxu0 %v1567
    %2200 = vmatpush.bf16.msra.mxu0 %v1551
    %2201 = vmatpush.bf16.msra.mxu0 %v1535
    %2202 = vmatpush.bf16.msra.mxu0 %v1519
    %2203 = vmatmul.bf16.gmra.mxu0 %v836
    %v2204 = vpop.f32.mrf.mxu0
    %v2205 = vadd.f32 0.0, %v2204
    %v2206 = vpop.f32.mrf.mxu0
    %v2207 = vadd.f32 0.0, %v2206
    %2208 = vmatmul.bf16.gmra.mxu0 %v837
    %v2209 = vpop.f32.mrf.mxu0
    %v2210 = vadd.f32 0.0, %v2209
    %v2211 = vpop.f32.mrf.mxu0
    %v2212 = vadd.f32 0.0, %v2211
    %2213 = vmatmul.bf16.gmra.mxu0 %v838
    %v2214 = vpop.f32.mrf.mxu0
    %v2215 = vadd.f32 0.0, %v2214
    %v2216 = vpop.f32.mrf.mxu0
    %v2217 = vadd.f32 0.0, %v2216
    %2218 = vmatmul.bf16.gmra.mxu0 %v839
    %v2219 = vpop.f32.mrf.mxu0
    %v2220 = vadd.f32 0.0, %v2219
    %v2221 = vpop.f32.mrf.mxu0
    %v2222 = vadd.f32 0.0, %v2221
    %2223 = vdwg.mxu0
    %v2352 = vunpack.c.l.b16 %v992
    %v2353 = vunpack.c.h.b16 %v992
    %v2354 = vunpack.c.l.b16 %v993
    %v2355 = vunpack.c.h.b16 %v993
    %v2356 = vunpack.c.l.b16 %v994
    %v2357 = vunpack.c.h.b16 %v994
    %v2358 = vunpack.c.l.b16 %v995
    %v2359 = vunpack.c.h.b16 %v995
    %v2360 = vunpack.c.l.b16 %v996
    %v2361 = vunpack.c.h.b16 %v996
    %v2362 = vunpack.c.l.b16 %v997
    %v2363 = vunpack.c.h.b16 %v997
    %v2364 = vunpack.c.l.b16 %v998
    %v2365 = vunpack.c.h.b16 %v998
    %v2366 = vunpack.c.l.b16 %v999
    %v2367 = vunpack.c.h.b16 %v999
    %v2368 = vunpack.c.l.b16 %v1000
    %v2369 = vunpack.c.h.b16 %v1000
    %v2370 = vunpack.c.l.b16 %v1001
    %v2371 = vunpack.c.h.b16 %v1001
    %v2372 = vunpack.c.l.b16 %v1002
    %v2373 = vunpack.c.h.b16 %v1002
    %v2374 = vunpack.c.l.b16 %v1003
    %v2375 = vunpack.c.h.b16 %v1003
    %v2376 = vunpack.c.l.b16 %v1004
    %v2377 = vunpack.c.h.b16 %v1004
    %v2378 = vunpack.c.l.b16 %v1005
    %v2379 = vunpack.c.h.b16 %v1005
    %v2380 = vunpack.c.l.b16 %v1006
    %v2381 = vunpack.c.h.b16 %v1006
    %v2382 = vunpack.c.l.b16 %v1007
    %v2383 = vunpack.c.h.b16 %v1007
    %v2384 = vunpack.c.l.b16 %v1008
    %v2385 = vunpack.c.h.b16 %v1008
    %v2386 = vunpack.c.l.b16 %v1009
    %v2387 = vunpack.c.h.b16 %v1009
    %v2388 = vunpack.c.l.b16 %v1010
    %v2389 = vunpack.c.h.b16 %v1010
    %v2390 = vunpack.c.l.b16 %v1011
    %v2391 = vunpack.c.h.b16 %v1011
    %v2392 = vunpack.c.l.b16 %v1012
    %v2393 = vunpack.c.h.b16 %v1012
    %v2394 = vunpack.c.l.b16 %v1013
    %v2395 = vunpack.c.h.b16 %v1013
    %v2396 = vunpack.c.l.b16 %v1014
    %v2397 = vunpack.c.h.b16 %v1014
    %v2398 = vunpack.c.l.b16 %v1015
    %v2399 = vunpack.c.h.b16 %v1015
    %v2400 = vunpack.c.l.b16 %v1016
    %v2401 = vunpack.c.h.b16 %v1016
    %v2402 = vunpack.c.l.b16 %v1017
    %v2403 = vunpack.c.h.b16 %v1017
    %v2404 = vunpack.c.l.b16 %v1018
    %v2405 = vunpack.c.h.b16 %v1018
    %v2406 = vunpack.c.l.b16 %v1019
    %v2407 = vunpack.c.h.b16 %v1019
    %v2408 = vunpack.c.l.b16 %v1020
    %v2409 = vunpack.c.h.b16 %v1020
    %v2410 = vunpack.c.l.b16 %v1021
    %v2411 = vunpack.c.h.b16 %v1021
    %v2412 = vunpack.c.l.b16 %v1022
    %v2413 = vunpack.c.h.b16 %v1022
    %v2414 = vunpack.c.l.b16 %v1023
    %v2415 = vunpack.c.h.b16 %v1023
    %v2416 = vunpack.c.l.b16 %v1024
    %v2417 = vunpack.c.h.b16 %v1024
    %v2418 = vunpack.c.l.b16 %v1025
    %v2419 = vunpack.c.h.b16 %v1025
    %v2420 = vunpack.c.l.b16 %v1026
    %v2421 = vunpack.c.h.b16 %v1026
    %v2422 = vunpack.c.l.b16 %v1027
    %v2423 = vunpack.c.h.b16 %v1027
    %v2424 = vunpack.c.l.b16 %v1028
    %v2425 = vunpack.c.h.b16 %v1028
    %v2426 = vunpack.c.l.b16 %v1029
    %v2427 = vunpack.c.h.b16 %v1029
    %v2428 = vunpack.c.l.b16 %v1030
    %v2429 = vunpack.c.h.b16 %v1030
    %v2430 = vunpack.c.l.b16 %v1031
    %v2431 = vunpack.c.h.b16 %v1031
    %v2432 = vunpack.c.l.b16 %v1032
    %v2433 = vunpack.c.h.b16 %v1032
    %v2434 = vunpack.c.l.b16 %v1033
    %v2435 = vunpack.c.h.b16 %v1033
    %v2436 = vunpack.c.l.b16 %v1034
    %v2437 = vunpack.c.h.b16 %v1034
    %v2438 = vunpack.c.l.b16 %v1035
    %v2439 = vunpack.c.h.b16 %v1035
    %v2440 = vunpack.c.l.b16 %v1036
    %v2441 = vunpack.c.h.b16 %v1036
    %v2442 = vunpack.c.l.b16 %v1037
    %v2443 = vunpack.c.h.b16 %v1037
    %v2444 = vunpack.c.l.b16 %v1038
    %v2445 = vunpack.c.h.b16 %v1038
    %v2446 = vunpack.c.l.b16 %v1039
    %v2447 = vunpack.c.h.b16 %v1039
    %v2448 = vunpack.c.l.b16 %v1040
    %v2449 = vunpack.c.h.b16 %v1040
    %v2450 = vunpack.c.l.b16 %v1041
    %v2451 = vunpack.c.h.b16 %v1041
    %v2452 = vunpack.c.l.b16 %v1042
    %v2453 = vunpack.c.h.b16 %v1042
    %v2454 = vunpack.c.l.b16 %v1043
    %v2455 = vunpack.c.h.b16 %v1043
    %v2456 = vunpack.c.l.b16 %v1044
    %v2457 = vunpack.c.h.b16 %v1044
    %v2458 = vunpack.c.l.b16 %v1045
    %v2459 = vunpack.c.h.b16 %v1045
    %v2460 = vunpack.c.l.b16 %v1046
    %v2461 = vunpack.c.h.b16 %v1046
    %v2462 = vunpack.c.l.b16 %v1047
    %v2463 = vunpack.c.h.b16 %v1047
    %v2464 = vunpack.c.l.b16 %v1048
    %v2465 = vunpack.c.h.b16 %v1048
    %v2466 = vunpack.c.l.b16 %v1049
    %v2467 = vunpack.c.h.b16 %v1049
    %v2468 = vunpack.c.l.b16 %v1050
    %v2469 = vunpack.c.h.b16 %v1050
    %v2470 = vunpack.c.l.b16 %v1051
    %v2471 = vunpack.c.h.b16 %v1051
    %v2472 = vunpack.c.l.b16 %v1052
    %v2473 = vunpack.c.h.b16 %v1052
    %v2474 = vunpack.c.l.b16 %v1053
    %v2475 = vunpack.c.h.b16 %v1053
    %v2476 = vunpack.c.l.b16 %v1054
    %v2477 = vunpack.c.h.b16 %v1054
    %v2478 = vunpack.c.l.b16 %v1055
    %v2479 = vunpack.c.h.b16 %v1055
    %v2480 = vunpack.c.l.b16 %v1056
    %v2481 = vunpack.c.h.b16 %v1056
    %v2482 = vunpack.c.l.b16 %v1057
    %v2483 = vunpack.c.h.b16 %v1057
    %v2484 = vunpack.c.l.b16 %v1058
    %v2485 = vunpack.c.h.b16 %v1058
    %v2486 = vunpack.c.l.b16 %v1059
    %v2487 = vunpack.c.h.b16 %v1059
    %v2488 = vunpack.c.l.b16 %v1060
    %v2489 = vunpack.c.h.b16 %v1060
    %v2490 = vunpack.c.l.b16 %v1061
    %v2491 = vunpack.c.h.b16 %v1061
    %v2492 = vunpack.c.l.b16 %v1062
    %v2493 = vunpack.c.h.b16 %v1062
    %v2494 = vunpack.c.l.b16 %v1063
    %v2495 = vunpack.c.h.b16 %v1063
    %v2496 = vunpack.c.l.b16 %v1064
    %v2497 = vunpack.c.h.b16 %v1064
    %v2498 = vunpack.c.l.b16 %v1065
    %v2499 = vunpack.c.h.b16 %v1065
    %v2500 = vunpack.c.l.b16 %v1066
    %v2501 = vunpack.c.h.b16 %v1066
    %v2502 = vunpack.c.l.b16 %v1067
    %v2503 = vunpack.c.h.b16 %v1067
    %v2504 = vunpack.c.l.b16 %v1068
    %v2505 = vunpack.c.h.b16 %v1068
    %v2506 = vunpack.c.l.b16 %v1069
    %v2507 = vunpack.c.h.b16 %v1069
    %v2508 = vunpack.c.l.b16 %v1070
    %v2509 = vunpack.c.h.b16 %v1070
    %v2510 = vunpack.c.l.b16 %v1071
    %v2511 = vunpack.c.h.b16 %v1071
    %v2512 = vunpack.c.l.b16 %v1072
    %v2513 = vunpack.c.h.b16 %v1072
    %v2514 = vunpack.c.l.b16 %v1073
    %v2515 = vunpack.c.h.b16 %v1073
    %v2516 = vunpack.c.l.b16 %v1074
    %v2517 = vunpack.c.h.b16 %v1074
    %v2518 = vunpack.c.l.b16 %v1075
    %v2519 = vunpack.c.h.b16 %v1075
    %v2520 = vunpack.c.l.b16 %v1076
    %v2521 = vunpack.c.h.b16 %v1076
    %v2522 = vunpack.c.l.b16 %v1077
    %v2523 = vunpack.c.h.b16 %v1077
    %v2524 = vunpack.c.l.b16 %v1078
    %v2525 = vunpack.c.h.b16 %v1078
    %v2526 = vunpack.c.l.b16 %v1079
    %v2527 = vunpack.c.h.b16 %v1079
    %v2528 = vunpack.c.l.b16 %v1080
    %v2529 = vunpack.c.h.b16 %v1080
    %v2530 = vunpack.c.l.b16 %v1081
    %v2531 = vunpack.c.h.b16 %v1081
    %v2532 = vunpack.c.l.b16 %v1082
    %v2533 = vunpack.c.h.b16 %v1082
    %v2534 = vunpack.c.l.b16 %v1083
    %v2535 = vunpack.c.h.b16 %v1083
    %v2536 = vunpack.c.l.b16 %v1084
    %v2537 = vunpack.c.h.b16 %v1084
    %v2538 = vunpack.c.l.b16 %v1085
    %v2539 = vunpack.c.h.b16 %v1085
    %v2540 = vunpack.c.l.b16 %v1086
    %v2541 = vunpack.c.h.b16 %v1086
    %v2542 = vunpack.c.l.b16 %v1087
    %v2543 = vunpack.c.h.b16 %v1087
    %v2544 = vunpack.c.l.b16 %v1088
    %v2545 = vunpack.c.h.b16 %v1088
    %v2546 = vunpack.c.l.b16 %v1089
    %v2547 = vunpack.c.h.b16 %v1089
    %v2548 = vunpack.c.l.b16 %v1090
    %v2549 = vunpack.c.h.b16 %v1090
    %v2550 = vunpack.c.l.b16 %v1091
    %v2551 = vunpack.c.h.b16 %v1091
    %v2552 = vunpack.c.l.b16 %v1092
    %v2553 = vunpack.c.h.b16 %v1092
    %v2554 = vunpack.c.l.b16 %v1093
    %v2555 = vunpack.c.h.b16 %v1093
    %v2556 = vunpack.c.l.b16 %v1094
    %v2557 = vunpack.c.h.b16 %v1094
    %v2558 = vunpack.c.l.b16 %v1095
    %v2559 = vunpack.c.h.b16 %v1095
    %v2560 = vunpack.c.l.b16 %v1096
    %v2561 = vunpack.c.h.b16 %v1096
    %v2562 = vunpack.c.l.b16 %v1097
    %v2563 = vunpack.c.h.b16 %v1097
    %v2564 = vunpack.c.l.b16 %v1098
    %v2565 = vunpack.c.h.b16 %v1098
    %v2566 = vunpack.c.l.b16 %v1099
    %v2567 = vunpack.c.h.b16 %v1099
    %v2568 = vunpack.c.l.b16 %v1100
    %v2569 = vunpack.c.h.b16 %v1100
    %v2570 = vunpack.c.l.b16 %v1101
    %v2571 = vunpack.c.h.b16 %v1101
    %v2572 = vunpack.c.l.b16 %v1102
    %v2573 = vunpack.c.h.b16 %v1102
    %v2574 = vunpack.c.l.b16 %v1103
    %v2575 = vunpack.c.h.b16 %v1103
    %v2576 = vunpack.c.l.b16 %v1104
    %v2577 = vunpack.c.h.b16 %v1104
    %v2578 = vunpack.c.l.b16 %v1105
    %v2579 = vunpack.c.h.b16 %v1105
    %v2580 = vunpack.c.l.b16 %v1106
    %v2581 = vunpack.c.h.b16 %v1106
    %v2582 = vunpack.c.l.b16 %v1107
    %v2583 = vunpack.c.h.b16 %v1107
    %v2584 = vunpack.c.l.b16 %v1108
    %v2585 = vunpack.c.h.b16 %v1108
    %v2586 = vunpack.c.l.b16 %v1109
    %v2587 = vunpack.c.h.b16 %v1109
    %v2588 = vunpack.c.l.b16 %v1110
    %v2589 = vunpack.c.h.b16 %v1110
    %v2590 = vunpack.c.l.b16 %v1111
    %v2591 = vunpack.c.h.b16 %v1111
    %v2592 = vunpack.c.l.b16 %v1112
    %v2593 = vunpack.c.h.b16 %v1112
    %v2594 = vunpack.c.l.b16 %v1113
    %v2595 = vunpack.c.h.b16 %v1113
    %v2596 = vunpack.c.l.b16 %v1114
    %v2597 = vunpack.c.h.b16 %v1114
    %v2598 = vunpack.c.l.b16 %v1115
    %v2599 = vunpack.c.h.b16 %v1115
    %v2600 = vunpack.c.l.b16 %v1116
    %v2601 = vunpack.c.h.b16 %v1116
    %v2602 = vunpack.c.l.b16 %v1117
    %v2603 = vunpack.c.h.b16 %v1117
    %v2604 = vunpack.c.l.b16 %v1118
    %v2605 = vunpack.c.h.b16 %v1118
    %v2606 = vunpack.c.l.b16 %v1119
    %v2607 = vunpack.c.h.b16 %v1119
    %v2608 = vpack.c.b16 %v2368, %v2352
    %v2609 = vpack.c.b16 %v2369, %v2353
    %v2610 = vpack.c.b16 %v2370, %v2354
    %v2611 = vpack.c.b16 %v2371, %v2355
    %v2612 = vpack.c.b16 %v2372, %v2356
    %v2613 = vpack.c.b16 %v2373, %v2357
    %v2614 = vpack.c.b16 %v2374, %v2358
    %v2615 = vpack.c.b16 %v2375, %v2359
    %v2616 = vpack.c.b16 %v2376, %v2360
    %v2617 = vpack.c.b16 %v2377, %v2361
    %v2618 = vpack.c.b16 %v2378, %v2362
    %v2619 = vpack.c.b16 %v2379, %v2363
    %v2620 = vpack.c.b16 %v2380, %v2364
    %v2621 = vpack.c.b16 %v2381, %v2365
    %v2622 = vpack.c.b16 %v2382, %v2366
    %v2623 = vpack.c.b16 %v2383, %v2367
    %v2624 = vpack.c.b16 %v2400, %v2384
    %v2625 = vpack.c.b16 %v2401, %v2385
    %v2626 = vpack.c.b16 %v2402, %v2386
    %v2627 = vpack.c.b16 %v2403, %v2387
    %v2628 = vpack.c.b16 %v2404, %v2388
    %v2629 = vpack.c.b16 %v2405, %v2389
    %v2630 = vpack.c.b16 %v2406, %v2390
    %v2631 = vpack.c.b16 %v2407, %v2391
    %v2632 = vpack.c.b16 %v2408, %v2392
    %v2633 = vpack.c.b16 %v2409, %v2393
    %v2634 = vpack.c.b16 %v2410, %v2394
    %v2635 = vpack.c.b16 %v2411, %v2395
    %v2636 = vpack.c.b16 %v2412, %v2396
    %v2637 = vpack.c.b16 %v2413, %v2397
    %v2638 = vpack.c.b16 %v2414, %v2398
    %v2639 = vpack.c.b16 %v2415, %v2399
    %v2640 = vpack.c.b16 %v2432, %v2416
    %v2641 = vpack.c.b16 %v2433, %v2417
    %v2642 = vpack.c.b16 %v2434, %v2418
    %v2643 = vpack.c.b16 %v2435, %v2419
    %v2644 = vpack.c.b16 %v2436, %v2420
    %v2645 = vpack.c.b16 %v2437, %v2421
    %v2646 = vpack.c.b16 %v2438, %v2422
    %v2647 = vpack.c.b16 %v2439, %v2423
    %v2648 = vpack.c.b16 %v2440, %v2424
    %v2649 = vpack.c.b16 %v2441, %v2425
    %v2650 = vpack.c.b16 %v2442, %v2426
    %v2651 = vpack.c.b16 %v2443, %v2427
    %v2652 = vpack.c.b16 %v2444, %v2428
    %v2653 = vpack.c.b16 %v2445, %v2429
    %v2654 = vpack.c.b16 %v2446, %v2430
    %v2655 = vpack.c.b16 %v2447, %v2431
    %v2656 = vpack.c.b16 %v2464, %v2448
    %v2657 = vpack.c.b16 %v2465, %v2449
    %v2658 = vpack.c.b16 %v2466, %v2450
    %v2659 = vpack.c.b16 %v2467, %v2451
    %v2660 = vpack.c.b16 %v2468, %v2452
    %v2661 = vpack.c.b16 %v2469, %v2453
    %v2662 = vpack.c.b16 %v2470, %v2454
    %v2663 = vpack.c.b16 %v2471, %v2455
    %v2664 = vpack.c.b16 %v2472, %v2456
    %v2665 = vpack.c.b16 %v2473, %v2457
    %v2666 = vpack.c.b16 %v2474, %v2458
    %v2667 = vpack.c.b16 %v2475, %v2459
    %v2668 = vpack.c.b16 %v2476, %v2460
    %v2669 = vpack.c.b16 %v2477, %v2461
    %v2670 = vpack.c.b16 %v2478, %v2462
    %v2671 = vpack.c.b16 %v2479, %v2463
    %v2672 = vpack.c.b16 %v2496, %v2480
    %v2673 = vpack.c.b16 %v2497, %v2481
    %v2674 = vpack.c.b16 %v2498, %v2482
    %v2675 = vpack.c.b16 %v2499, %v2483
    %v2676 = vpack.c.b16 %v2500, %v2484
    %v2677 = vpack.c.b16 %v2501, %v2485
    %v2678 = vpack.c.b16 %v2502, %v2486
    %v2679 = vpack.c.b16 %v2503, %v2487
    %v2680 = vpack.c.b16 %v2504, %v2488
    %v2681 = vpack.c.b16 %v2505, %v2489
    %v2682 = vpack.c.b16 %v2506, %v2490
    %v2683 = vpack.c.b16 %v2507, %v2491
    %v2684 = vpack.c.b16 %v2508, %v2492
    %v2685 = vpack.c.b16 %v2509, %v2493
    %v2686 = vpack.c.b16 %v2510, %v2494
    %v2687 = vpack.c.b16 %v2511, %v2495
    %v2688 = vpack.c.b16 %v2528, %v2512
    %v2689 = vpack.c.b16 %v2529, %v2513
    %v2690 = vpack.c.b16 %v2530, %v2514
    %v2691 = vpack.c.b16 %v2531, %v2515
    %v2692 = vpack.c.b16 %v2532, %v2516
    %v2693 = vpack.c.b16 %v2533, %v2517
    %v2694 = vpack.c.b16 %v2534, %v2518
    %v2695 = vpack.c.b16 %v2535, %v2519
    %v2696 = vpack.c.b16 %v2536, %v2520
    %v2697 = vpack.c.b16 %v2537, %v2521
    %v2698 = vpack.c.b16 %v2538, %v2522
    %v2699 = vpack.c.b16 %v2539, %v2523
    %v2700 = vpack.c.b16 %v2540, %v2524
    %v2701 = vpack.c.b16 %v2541, %v2525
    %v2702 = vpack.c.b16 %v2542, %v2526
    %v2703 = vpack.c.b16 %v2543, %v2527
    %v2704 = vpack.c.b16 %v2560, %v2544
    %v2705 = vpack.c.b16 %v2561, %v2545
    %v2706 = vpack.c.b16 %v2562, %v2546
    %v2707 = vpack.c.b16 %v2563, %v2547
    %v2708 = vpack.c.b16 %v2564, %v2548
    %v2709 = vpack.c.b16 %v2565, %v2549
    %v2710 = vpack.c.b16 %v2566, %v2550
    %v2711 = vpack.c.b16 %v2567, %v2551
    %v2712 = vpack.c.b16 %v2568, %v2552
    %v2713 = vpack.c.b16 %v2569, %v2553
    %v2714 = vpack.c.b16 %v2570, %v2554
    %v2715 = vpack.c.b16 %v2571, %v2555
    %v2716 = vpack.c.b16 %v2572, %v2556
    %v2717 = vpack.c.b16 %v2573, %v2557
    %v2718 = vpack.c.b16 %v2574, %v2558
    %v2719 = vpack.c.b16 %v2575, %v2559
    %v2720 = vpack.c.b16 %v2592, %v2576
    %v2721 = vpack.c.b16 %v2593, %v2577
    %v2722 = vpack.c.b16 %v2594, %v2578
    %v2723 = vpack.c.b16 %v2595, %v2579
    %v2724 = vpack.c.b16 %v2596, %v2580
    %v2725 = vpack.c.b16 %v2597, %v2581
    %v2726 = vpack.c.b16 %v2598, %v2582
    %v2727 = vpack.c.b16 %v2599, %v2583
    %v2728 = vpack.c.b16 %v2600, %v2584
    %v2729 = vpack.c.b16 %v2601, %v2585
    %v2730 = vpack.c.b16 %v2602, %v2586
    %v2731 = vpack.c.b16 %v2603, %v2587
    %v2732 = vpack.c.b16 %v2604, %v2588
    %v2733 = vpack.c.b16 %v2605, %v2589
    %v2734 = vpack.c.b16 %v2606, %v2590
    %v2735 = vpack.c.b16 %v2607, %v2591
    %2864 = vmatpush.bf16.msra.mxu0 %v2720
    %2865 = vmatpush.bf16.msra.mxu0 %v2704
    %2866 = vmatpush.bf16.msra.mxu0 %v2688
    %2867 = vmatpush.bf16.msra.mxu0 %v2672
    %2868 = vmatpush.bf16.msra.mxu0 %v2656
    %2869 = vmatpush.bf16.msra.mxu0 %v2640
    %2870 = vmatpush.bf16.msra.mxu0 %v2624
    %2871 = vmatpush.bf16.msra.mxu0 %v2608
    %2872 = vmatmul.bf16.gmra.mxu0 %v836
    %v2873 = vpop.f32.mrf.mxu0
    %v2874 = vadd.f32 0.0, %v2873
    %v2875 = vpop.f32.mrf.mxu0
    %v2876 = vadd.f32 0.0, %v2875
    %2877 = vmatmul.bf16.gmra.mxu0 %v837
    %v2878 = vpop.f32.mrf.mxu0
    %v2879 = vadd.f32 0.0, %v2878
    %v2880 = vpop.f32.mrf.mxu0
    %v2881 = vadd.f32 0.0, %v2880
    %2882 = vmatmul.bf16.gmra.mxu0 %v838
    %v2883 = vpop.f32.mrf.mxu0
    %v2884 = vadd.f32 0.0, %v2883
    %v2885 = vpop.f32.mrf.mxu0
    %v2886 = vadd.f32 0.0, %v2885
    %2887 = vmatmul.bf16.gmra.mxu0 %v839
    %v2888 = vpop.f32.mrf.mxu0
    %v2889 = vadd.f32 0.0, %v2888
    %v2890 = vpop.f32.mrf.mxu0
    %v2891 = vadd.f32 0.0, %v2890
    %2892 = vdwg.mxu0
    %2893 = vmatpush.bf16.msra.mxu0 %v2721
    %2894 = vmatpush.bf16.msra.mxu0 %v2705
    %2895 = vmatpush.bf16.msra.mxu0 %v2689
    %2896 = vmatpush.bf16.msra.mxu0 %v2673
    %2897 = vmatpush.bf16.msra.mxu0 %v2657
    %2898 = vmatpush.bf16.msra.mxu0 %v2641
    %2899 = vmatpush.bf16.msra.mxu0 %v2625
    %2900 = vmatpush.bf16.msra.mxu0 %v2609
    %2901 = vmatmul.bf16.gmra.mxu0 %v836
    %v2902 = vpop.f32.mrf.mxu0
    %v2903 = vadd.f32 0.0, %v2902
    %v2904 = vpop.f32.mrf.mxu0
    %v2905 = vadd.f32 0.0, %v2904
    %2906 = vmatmul.bf16.gmra.mxu0 %v837
    %v2907 = vpop.f32.mrf.mxu0
    %v2908 = vadd.f32 0.0, %v2907
    %v2909 = vpop.f32.mrf.mxu0
    %v2910 = vadd.f32 0.0, %v2909
    %2911 = vmatmul.bf16.gmra.mxu0 %v838
    %v2912 = vpop.f32.mrf.mxu0
    %v2913 = vadd.f32 0.0, %v2912
    %v2914 = vpop.f32.mrf.mxu0
    %v2915 = vadd.f32 0.0, %v2914
    %2916 = vmatmul.bf16.gmra.mxu0 %v839
    %v2917 = vpop.f32.mrf.mxu0
    %v2918 = vadd.f32 0.0, %v2917
    %v2919 = vpop.f32.mrf.mxu0
    %v2920 = vadd.f32 0.0, %v2919
    %2921 = vdwg.mxu0
    %2922 = vmatpush.bf16.msra.mxu0 %v2722
    %2923 = vmatpush.bf16.msra.mxu0 %v2706
    %2924 = vmatpush.bf16.msra.mxu0 %v2690
    %2925 = vmatpush.bf16.msra.mxu0 %v2674
    %2926 = vmatpush.bf16.msra.mxu0 %v2658
    %2927 = vmatpush.bf16.msra.mxu0 %v2642
    %2928 = vmatpush.bf16.msra.mxu0 %v2626
    %2929 = vmatpush.bf16.msra.mxu0 %v2610
    %2930 = vmatmul.bf16.gmra.mxu0 %v836
    %v2931 = vpop.f32.mrf.mxu0
    %v2932 = vadd.f32 0.0, %v2931
    %v2933 = vpop.f32.mrf.mxu0
    %v2934 = vadd.f32 0.0, %v2933
    %2935 = vmatmul.bf16.gmra.mxu0 %v837
    %v2936 = vpop.f32.mrf.mxu0
    %v2937 = vadd.f32 0.0, %v2936
    %v2938 = vpop.f32.mrf.mxu0
    %v2939 = vadd.f32 0.0, %v2938
    %2940 = vmatmul.bf16.gmra.mxu0 %v838
    %v2941 = vpop.f32.mrf.mxu0
    %v2942 = vadd.f32 0.0, %v2941
    %v2943 = vpop.f32.mrf.mxu0
    %v2944 = vadd.f32 0.0, %v2943
    %2945 = vmatmul.bf16.gmra.mxu0 %v839
    %v2946 = vpop.f32.mrf.mxu0
    %v2947 = vadd.f32 0.0, %v2946
    %v2948 = vpop.f32.mrf.mxu0
    %v2949 = vadd.f32 0.0, %v2948
    %2950 = vdwg.mxu0
    %2951 = vmatpush.bf16.msra.mxu0 %v2723
    %2952 = vmatpush.bf16.msra.mxu0 %v2707
    %2953 = vmatpush.bf16.msra.mxu0 %v2691
    %2954 = vmatpush.bf16.msra.mxu0 %v2675
    %2955 = vmatpush.bf16.msra.mxu0 %v2659
    %2956 = vmatpush.bf16.msra.mxu0 %v2643
    %2957 = vmatpush.bf16.msra.mxu0 %v2627
    %2958 = vmatpush.bf16.msra.mxu0 %v2611
    %2959 = vmatmul.bf16.gmra.mxu0 %v836
    %v2960 = vpop.f32.mrf.mxu0
    %v2961 = vadd.f32 0.0, %v2960
    %v2962 = vpop.f32.mrf.mxu0
    %v2963 = vadd.f32 0.0, %v2962
    %2964 = vmatmul.bf16.gmra.mxu0 %v837
    %v2965 = vpop.f32.mrf.mxu0
    %v2966 = vadd.f32 0.0, %v2965
    %v2967 = vpop.f32.mrf.mxu0
    %v2968 = vadd.f32 0.0, %v2967
    %2969 = vmatmul.bf16.gmra.mxu0 %v838
    %v2970 = vpop.f32.mrf.mxu0
    %v2971 = vadd.f32 0.0, %v2970
    %v2972 = vpop.f32.mrf.mxu0
    %v2973 = vadd.f32 0.0, %v2972
    %2974 = vmatmul.bf16.gmra.mxu0 %v839
    %v2975 = vpop.f32.mrf.mxu0
    %v2976 = vadd.f32 0.0, %v2975
    %v2977 = vpop.f32.mrf.mxu0
    %v2978 = vadd.f32 0.0, %v2977
    %2979 = vdwg.mxu0
    %2980 = vmatpush.bf16.msra.mxu0 %v2724
    %2981 = vmatpush.bf16.msra.mxu0 %v2708
    %2982 = vmatpush.bf16.msra.mxu0 %v2692
    %2983 = vmatpush.bf16.msra.mxu0 %v2676
    %2984 = vmatpush.bf16.msra.mxu0 %v2660
    %2985 = vmatpush.bf16.msra.mxu0 %v2644
    %2986 = vmatpush.bf16.msra.mxu0 %v2628
    %2987 = vmatpush.bf16.msra.mxu0 %v2612
    %2988 = vmatmul.bf16.gmra.mxu0 %v836
    %v2989 = vpop.f32.mrf.mxu0
    %v2990 = vadd.f32 0.0, %v2989
    %v2991 = vpop.f32.mrf.mxu0
    %v2992 = vadd.f32 0.0, %v2991
    %2993 = vmatmul.bf16.gmra.mxu0 %v837
    %v2994 = vpop.f32.mrf.mxu0
    %v2995 = vadd.f32 0.0, %v2994
    %v2996 = vpop.f32.mrf.mxu0
    %v2997 = vadd.f32 0.0, %v2996
    %2998 = vmatmul.bf16.gmra.mxu0 %v838
    %v2999 = vpop.f32.mrf.mxu0
    %v3000 = vadd.f32 0.0, %v2999
    %v3001 = vpop.f32.mrf.mxu0
    %v3002 = vadd.f32 0.0, %v3001
    %3003 = vmatmul.bf16.gmra.mxu0 %v839
    %v3004 = vpop.f32.mrf.mxu0
    %v3005 = vadd.f32 0.0, %v3004
    %v3006 = vpop.f32.mrf.mxu0
    %v3007 = vadd.f32 0.0, %v3006
    %3008 = vdwg.mxu0
    %3009 = vmatpush.bf16.msra.mxu0 %v2725
    %3010 = vmatpush.bf16.msra.mxu0 %v2709
    %3011 = vmatpush.bf16.msra.mxu0 %v2693
    %3012 = vmatpush.bf16.msra.mxu0 %v2677
    %3013 = vmatpush.bf16.msra.mxu0 %v2661
    %3014 = vmatpush.bf16.msra.mxu0 %v2645
    %3015 = vmatpush.bf16.msra.mxu0 %v2629
    %3016 = vmatpush.bf16.msra.mxu0 %v2613
    %3017 = vmatmul.bf16.gmra.mxu0 %v836
    %v3018 = vpop.f32.mrf.mxu0
    %v3019 = vadd.f32 0.0, %v3018
    %v3020 = vpop.f32.mrf.mxu0
    %v3021 = vadd.f32 0.0, %v3020
    %3022 = vmatmul.bf16.gmra.mxu0 %v837
    %v3023 = vpop.f32.mrf.mxu0
    %v3024 = vadd.f32 0.0, %v3023
    %v3025 = vpop.f32.mrf.mxu0
    %v3026 = vadd.f32 0.0, %v3025
    %3027 = vmatmul.bf16.gmra.mxu0 %v838
    %v3028 = vpop.f32.mrf.mxu0
    %v3029 = vadd.f32 0.0, %v3028
    %v3030 = vpop.f32.mrf.mxu0
    %v3031 = vadd.f32 0.0, %v3030
    %3032 = vmatmul.bf16.gmra.mxu0 %v839
    %v3033 = vpop.f32.mrf.mxu0
    %v3034 = vadd.f32 0.0, %v3033
    %v3035 = vpop.f32.mrf.mxu0
    %v3036 = vadd.f32 0.0, %v3035
    %3037 = vdwg.mxu0
    %3038 = vmatpush.bf16.msra.mxu0 %v2726
    %3039 = vmatpush.bf16.msra.mxu0 %v2710
    %3040 = vmatpush.bf16.msra.mxu0 %v2694
    %3041 = vmatpush.bf16.msra.mxu0 %v2678
    %3042 = vmatpush.bf16.msra.mxu0 %v2662
    %3043 = vmatpush.bf16.msra.mxu0 %v2646
    %3044 = vmatpush.bf16.msra.mxu0 %v2630
    %3045 = vmatpush.bf16.msra.mxu0 %v2614
    %3046 = vmatmul.bf16.gmra.mxu0 %v836
    %v3047 = vpop.f32.mrf.mxu0
    %v3048 = vadd.f32 0.0, %v3047
    %v3049 = vpop.f32.mrf.mxu0
    %v3050 = vadd.f32 0.0, %v3049
    %3051 = vmatmul.bf16.gmra.mxu0 %v837
    %v3052 = vpop.f32.mrf.mxu0
    %v3053 = vadd.f32 0.0, %v3052
    %v3054 = vpop.f32.mrf.mxu0
    %v3055 = vadd.f32 0.0, %v3054
    %3056 = vmatmul.bf16.gmra.mxu0 %v838
    %v3057 = vpop.f32.mrf.mxu0
    %v3058 = vadd.f32 0.0, %v3057
    %v3059 = vpop.f32.mrf.mxu0
    %v3060 = vadd.f32 0.0, %v3059
    %3061 = vmatmul.bf16.gmra.mxu0 %v839
    %v3062 = vpop.f32.mrf.mxu0
    %v3063 = vadd.f32 0.0, %v3062
    %v3064 = vpop.f32.mrf.mxu0
    %v3065 = vadd.f32 0.0, %v3064
    %3066 = vdwg.mxu0
    %3067 = vmatpush.bf16.msra.mxu0 %v2727
    %3068 = vmatpush.bf16.msra.mxu0 %v2711
    %3069 = vmatpush.bf16.msra.mxu0 %v2695
    %3070 = vmatpush.bf16.msra.mxu0 %v2679
    %3071 = vmatpush.bf16.msra.mxu0 %v2663
    %3072 = vmatpush.bf16.msra.mxu0 %v2647
    %3073 = vmatpush.bf16.msra.mxu0 %v2631
    %3074 = vmatpush.bf16.msra.mxu0 %v2615
    %3075 = vmatmul.bf16.gmra.mxu0 %v836
    %v3076 = vpop.f32.mrf.mxu0
    %v3077 = vadd.f32 0.0, %v3076
    %v3078 = vpop.f32.mrf.mxu0
    %v3079 = vadd.f32 0.0, %v3078
    %3080 = vmatmul.bf16.gmra.mxu0 %v837
    %v3081 = vpop.f32.mrf.mxu0
    %v3082 = vadd.f32 0.0, %v3081
    %v3083 = vpop.f32.mrf.mxu0
    %v3084 = vadd.f32 0.0, %v3083
    %3085 = vmatmul.bf16.gmra.mxu0 %v838
    %v3086 = vpop.f32.mrf.mxu0
    %v3087 = vadd.f32 0.0, %v3086
    %v3088 = vpop.f32.mrf.mxu0
    %v3089 = vadd.f32 0.0, %v3088
    %3090 = vmatmul.bf16.gmra.mxu0 %v839
    %v3091 = vpop.f32.mrf.mxu0
    %v3092 = vadd.f32 0.0, %v3091
    %v3093 = vpop.f32.mrf.mxu0
    %v3094 = vadd.f32 0.0, %v3093
    %3095 = vdwg.mxu0
    %3096 = vmatpush.bf16.msra.mxu0 %v2728
    %3097 = vmatpush.bf16.msra.mxu0 %v2712
    %3098 = vmatpush.bf16.msra.mxu0 %v2696
    %3099 = vmatpush.bf16.msra.mxu0 %v2680
    %3100 = vmatpush.bf16.msra.mxu0 %v2664
    %3101 = vmatpush.bf16.msra.mxu0 %v2648
    %3102 = vmatpush.bf16.msra.mxu0 %v2632
    %3103 = vmatpush.bf16.msra.mxu0 %v2616
    %3104 = vmatmul.bf16.gmra.mxu0 %v836
    %v3105 = vpop.f32.mrf.mxu0
    %v3106 = vadd.f32 0.0, %v3105
    %v3107 = vpop.f32.mrf.mxu0
    %v3108 = vadd.f32 0.0, %v3107
    %3109 = vmatmul.bf16.gmra.mxu0 %v837
    %v3110 = vpop.f32.mrf.mxu0
    %v3111 = vadd.f32 0.0, %v3110
    %v3112 = vpop.f32.mrf.mxu0
    %v3113 = vadd.f32 0.0, %v3112
    %3114 = vmatmul.bf16.gmra.mxu0 %v838
    %v3115 = vpop.f32.mrf.mxu0
    %v3116 = vadd.f32 0.0, %v3115
    %v3117 = vpop.f32.mrf.mxu0
    %v3118 = vadd.f32 0.0, %v3117
    %3119 = vmatmul.bf16.gmra.mxu0 %v839
    %v3120 = vpop.f32.mrf.mxu0
    %v3121 = vadd.f32 0.0, %v3120
    %v3122 = vpop.f32.mrf.mxu0
    %v3123 = vadd.f32 0.0, %v3122
    %3124 = vdwg.mxu0
    %3125 = vmatpush.bf16.msra.mxu0 %v2729
    %3126 = vmatpush.bf16.msra.mxu0 %v2713
    %3127 = vmatpush.bf16.msra.mxu0 %v2697
    %3128 = vmatpush.bf16.msra.mxu0 %v2681
    %3129 = vmatpush.bf16.msra.mxu0 %v2665
    %3130 = vmatpush.bf16.msra.mxu0 %v2649
    %3131 = vmatpush.bf16.msra.mxu0 %v2633
    %3132 = vmatpush.bf16.msra.mxu0 %v2617
    %3133 = vmatmul.bf16.gmra.mxu0 %v836
    %v3134 = vpop.f32.mrf.mxu0
    %v3135 = vadd.f32 0.0, %v3134
    %v3136 = vpop.f32.mrf.mxu0
    %v3137 = vadd.f32 0.0, %v3136
    %3138 = vmatmul.bf16.gmra.mxu0 %v837
    %v3139 = vpop.f32.mrf.mxu0
    %v3140 = vadd.f32 0.0, %v3139
    %v3141 = vpop.f32.mrf.mxu0
    %v3142 = vadd.f32 0.0, %v3141
    %3143 = vmatmul.bf16.gmra.mxu0 %v838
    %v3144 = vpop.f32.mrf.mxu0
    %v3145 = vadd.f32 0.0, %v3144
    %v3146 = vpop.f32.mrf.mxu0
    %v3147 = vadd.f32 0.0, %v3146
    %3148 = vmatmul.bf16.gmra.mxu0 %v839
    %v3149 = vpop.f32.mrf.mxu0
    %v3150 = vadd.f32 0.0, %v3149
    %v3151 = vpop.f32.mrf.mxu0
    %v3152 = vadd.f32 0.0, %v3151
    %3153 = vdwg.mxu0
    %3154 = vmatpush.bf16.msra.mxu0 %v2730
    %3155 = vmatpush.bf16.msra.mxu0 %v2714
    %3156 = vmatpush.bf16.msra.mxu0 %v2698
    %3157 = vmatpush.bf16.msra.mxu0 %v2682
    %3158 = vmatpush.bf16.msra.mxu0 %v2666
    %3159 = vmatpush.bf16.msra.mxu0 %v2650
    %3160 = vmatpush.bf16.msra.mxu0 %v2634
    %3161 = vmatpush.bf16.msra.mxu0 %v2618
    %3162 = vmatmul.bf16.gmra.mxu0 %v836
    %v3163 = vpop.f32.mrf.mxu0
    %v3164 = vadd.f32 0.0, %v3163
    %v3165 = vpop.f32.mrf.mxu0
    %v3166 = vadd.f32 0.0, %v3165
    %3167 = vmatmul.bf16.gmra.mxu0 %v837
    %v3168 = vpop.f32.mrf.mxu0
    %v3169 = vadd.f32 0.0, %v3168
    %v3170 = vpop.f32.mrf.mxu0
    %v3171 = vadd.f32 0.0, %v3170
    %3172 = vmatmul.bf16.gmra.mxu0 %v838
    %v3173 = vpop.f32.mrf.mxu0
    %v3174 = vadd.f32 0.0, %v3173
    %v3175 = vpop.f32.mrf.mxu0
    %v3176 = vadd.f32 0.0, %v3175
    %3177 = vmatmul.bf16.gmra.mxu0 %v839
    %v3178 = vpop.f32.mrf.mxu0
    %v3179 = vadd.f32 0.0, %v3178
    %v3180 = vpop.f32.mrf.mxu0
    %v3181 = vadd.f32 0.0, %v3180
    %3182 = vdwg.mxu0
    %3183 = vmatpush.bf16.msra.mxu0 %v2731
    %3184 = vmatpush.bf16.msra.mxu0 %v2715
    %3185 = vmatpush.bf16.msra.mxu0 %v2699
    %3186 = vmatpush.bf16.msra.mxu0 %v2683
    %3187 = vmatpush.bf16.msra.mxu0 %v2667
    %3188 = vmatpush.bf16.msra.mxu0 %v2651
    %3189 = vmatpush.bf16.msra.mxu0 %v2635
    %3190 = vmatpush.bf16.msra.mxu0 %v2619
    %3191 = vmatmul.bf16.gmra.mxu0 %v836
    %v3192 = vpop.f32.mrf.mxu0
    %v3193 = vadd.f32 0.0, %v3192
    %v3194 = vpop.f32.mrf.mxu0
    %v3195 = vadd.f32 0.0, %v3194
    %3196 = vmatmul.bf16.gmra.mxu0 %v837
    %v3197 = vpop.f32.mrf.mxu0
    %v3198 = vadd.f32 0.0, %v3197
    %v3199 = vpop.f32.mrf.mxu0
    %v3200 = vadd.f32 0.0, %v3199
    %3201 = vmatmul.bf16.gmra.mxu0 %v838
    %v3202 = vpop.f32.mrf.mxu0
    %v3203 = vadd.f32 0.0, %v3202
    %v3204 = vpop.f32.mrf.mxu0
    %v3205 = vadd.f32 0.0, %v3204
    %3206 = vmatmul.bf16.gmra.mxu0 %v839
    %v3207 = vpop.f32.mrf.mxu0
    %v3208 = vadd.f32 0.0, %v3207
    %v3209 = vpop.f32.mrf.mxu0
    %v3210 = vadd.f32 0.0, %v3209
    %3211 = vdwg.mxu0
    %3212 = vmatpush.bf16.msra.mxu0 %v2732
    %3213 = vmatpush.bf16.msra.mxu0 %v2716
    %3214 = vmatpush.bf16.msra.mxu0 %v2700
    %3215 = vmatpush.bf16.msra.mxu0 %v2684
    %3216 = vmatpush.bf16.msra.mxu0 %v2668
    %3217 = vmatpush.bf16.msra.mxu0 %v2652
    %3218 = vmatpush.bf16.msra.mxu0 %v2636
    %3219 = vmatpush.bf16.msra.mxu0 %v2620
    %3220 = vmatmul.bf16.gmra.mxu0 %v836
    %v3221 = vpop.f32.mrf.mxu0
    %v3222 = vadd.f32 0.0, %v3221
    %v3223 = vpop.f32.mrf.mxu0
    %v3224 = vadd.f32 0.0, %v3223
    %3225 = vmatmul.bf16.gmra.mxu0 %v837
    %v3226 = vpop.f32.mrf.mxu0
    %v3227 = vadd.f32 0.0, %v3226
    %v3228 = vpop.f32.mrf.mxu0
    %v3229 = vadd.f32 0.0, %v3228
    %3230 = vmatmul.bf16.gmra.mxu0 %v838
    %v3231 = vpop.f32.mrf.mxu0
    %v3232 = vadd.f32 0.0, %v3231
    %v3233 = vpop.f32.mrf.mxu0
    %v3234 = vadd.f32 0.0, %v3233
    %3235 = vmatmul.bf16.gmra.mxu0 %v839
    %v3236 = vpop.f32.mrf.mxu0
    %v3237 = vadd.f32 0.0, %v3236
    %v3238 = vpop.f32.mrf.mxu0
    %v3239 = vadd.f32 0.0, %v3238
    %3240 = vdwg.mxu0
    %3241 = vmatpush.bf16.msra.mxu0 %v2733
    %3242 = vmatpush.bf16.msra.mxu0 %v2717
    %3243 = vmatpush.bf16.msra.mxu0 %v2701
    %3244 = vmatpush.bf16.msra.mxu0 %v2685
    %3245 = vmatpush.bf16.msra.mxu0 %v2669
    %3246 = vmatpush.bf16.msra.mxu0 %v2653
    %3247 = vmatpush.bf16.msra.mxu0 %v2637
    %3248 = vmatpush.bf16.msra.mxu0 %v2621
    %3249 = vmatmul.bf16.gmra.mxu0 %v836
    %v3250 = vpop.f32.mrf.mxu0
    %v3251 = vadd.f32 0.0, %v3250
    %v3252 = vpop.f32.mrf.mxu0
    %v3253 = vadd.f32 0.0, %v3252
    %3254 = vmatmul.bf16.gmra.mxu0 %v837
    %v3255 = vpop.f32.mrf.mxu0
    %v3256 = vadd.f32 0.0, %v3255
    %v3257 = vpop.f32.mrf.mxu0
    %v3258 = vadd.f32 0.0, %v3257
    %3259 = vmatmul.bf16.gmra.mxu0 %v838
    %v3260 = vpop.f32.mrf.mxu0
    %v3261 = vadd.f32 0.0, %v3260
    %v3262 = vpop.f32.mrf.mxu0
    %v3263 = vadd.f32 0.0, %v3262
    %3264 = vmatmul.bf16.gmra.mxu0 %v839
    %v3265 = vpop.f32.mrf.mxu0
    %v3266 = vadd.f32 0.0, %v3265
    %v3267 = vpop.f32.mrf.mxu0
    %v3268 = vadd.f32 0.0, %v3267
    %3269 = vdwg.mxu0
    %3270 = vmatpush.bf16.msra.mxu0 %v2734
    %3271 = vmatpush.bf16.msra.mxu0 %v2718
    %3272 = vmatpush.bf16.msra.mxu0 %v2702
    %3273 = vmatpush.bf16.msra.mxu0 %v2686
    %3274 = vmatpush.bf16.msra.mxu0 %v2670
    %3275 = vmatpush.bf16.msra.mxu0 %v2654
    %3276 = vmatpush.bf16.msra.mxu0 %v2638
    %3277 = vmatpush.bf16.msra.mxu0 %v2622
    %3278 = vmatmul.bf16.gmra.mxu0 %v836
    %v3279 = vpop.f32.mrf.mxu0
    %v3280 = vadd.f32 0.0, %v3279
    %v3281 = vpop.f32.mrf.mxu0
    %v3282 = vadd.f32 0.0, %v3281
    %3283 = vmatmul.bf16.gmra.mxu0 %v837
    %v3284 = vpop.f32.mrf.mxu0
    %v3285 = vadd.f32 0.0, %v3284
    %v3286 = vpop.f32.mrf.mxu0
    %v3287 = vadd.f32 0.0, %v3286
    %3288 = vmatmul.bf16.gmra.mxu0 %v838
    %v3289 = vpop.f32.mrf.mxu0
    %v3290 = vadd.f32 0.0, %v3289
    %v3291 = vpop.f32.mrf.mxu0
    %v3292 = vadd.f32 0.0, %v3291
    %3293 = vmatmul.bf16.gmra.mxu0 %v839
    %v3294 = vpop.f32.mrf.mxu0
    %v3295 = vadd.f32 0.0, %v3294
    %v3296 = vpop.f32.mrf.mxu0
    %v3297 = vadd.f32 0.0, %v3296
    %3298 = vdwg.mxu0
    %3299 = vmatpush.bf16.msra.mxu0 %v2735
    %3300 = vmatpush.bf16.msra.mxu0 %v2719
    %3301 = vmatpush.bf16.msra.mxu0 %v2703
    %3302 = vmatpush.bf16.msra.mxu0 %v2687
    %3303 = vmatpush.bf16.msra.mxu0 %v2671
    %3304 = vmatpush.bf16.msra.mxu0 %v2655
    %3305 = vmatpush.bf16.msra.mxu0 %v2639
    %3306 = vmatpush.bf16.msra.mxu0 %v2623
    %3307 = vmatmul.bf16.gmra.mxu0 %v836
    %v3308 = vpop.f32.mrf.mxu0
    %v3309 = vadd.f32 0.0, %v3308
    %v3310 = vpop.f32.mrf.mxu0
    %v3311 = vadd.f32 0.0, %v3310
    %3312 = vmatmul.bf16.gmra.mxu0 %v837
    %v3313 = vpop.f32.mrf.mxu0
    %v3314 = vadd.f32 0.0, %v3313
    %v3315 = vpop.f32.mrf.mxu0
    %v3316 = vadd.f32 0.0, %v3315
    %3317 = vmatmul.bf16.gmra.mxu0 %v838
    %v3318 = vpop.f32.mrf.mxu0
    %v3319 = vadd.f32 0.0, %v3318
    %v3320 = vpop.f32.mrf.mxu0
    %v3321 = vadd.f32 0.0, %v3320
    %3322 = vmatmul.bf16.gmra.mxu0 %v839
    %v3323 = vpop.f32.mrf.mxu0
    %v3324 = vadd.f32 0.0, %v3323
    %v3325 = vpop.f32.mrf.mxu0
    %v3326 = vadd.f32 0.0, %v3325
    %3327 = vdwg.mxu0
    %v3328 = vperm.slane %v862, 0
    %v3329 = vmul.f32 %v820, %v3328
    %v3330 = vmul.f32 %v821, %v3328
    %v3331 = vmul.f32 %v822, %v3328
    %v3332 = vmul.f32 %v823, %v3328
    %v3333 = vmul.f32 %v824, %v3328
    %v3334 = vmul.f32 %v825, %v3328
    %v3335 = vmul.f32 %v826, %v3328
    %v3336 = vmul.f32 %v827, %v3328
    %v3337 = vmul.f32 %v3329, 1.442695
    %v3338 = vpow.pop %v3337
    %v3339 = vmul.f32 %v3330, 1.442695
    %v3340 = vpow.pop %v3339
    %v3341 = vmul.f32 %v3331, 1.442695
    %v3342 = vpow.pop %v3341
    %v3343 = vmul.f32 %v3332, 1.442695
    %v3344 = vpow.pop %v3343
    %v3345 = vmul.f32 %v3333, 1.442695
    %v3346 = vpow.pop %v3345
    %v3347 = vmul.f32 %v3334, 1.442695
    %v3348 = vpow.pop %v3347
    %v3349 = vmul.f32 %v3335, 1.442695
    %v3350 = vpow.pop %v3349
    %v3351 = vmul.f32 %v3336, 1.442695
    %v3352 = vpow.pop %v3351
    %3353 = vst [vmem:[#allocation4] sm:$0xff] %v3338
    %3354 = vst [vmem:[#allocation4 + $0x88] sm:$0xff] %v3340
    %3355 = vst [vmem:[#allocation4 + $0x110] sm:$0xff] %v3342
    %3356 = vst [vmem:[#allocation4 + $0x198] sm:$0xff] %v3344
    %3357 = vst [vmem:[#allocation4 + $0x220] sm:$0xff] %v3346
    %3358 = vst [vmem:[#allocation4 + $0x2a8] sm:$0xff] %v3348
    %3359 = vst [vmem:[#allocation4 + $0x330] sm:$0xff] %v3350
    %3360 = vst [vmem:[#allocation4 + $0x3b8] sm:$0xff] %v3352
    %v3361 = vmul.f32 %v1770, %v828
    %v3362 = vmul.f32 %v1772, %v829
    %v3363 = vmul.f32 %v1775, %v830
    %v3364 = vmul.f32 %v1777, %v831
    %v3365 = vmul.f32 %v1780, %v832
    %v3366 = vmul.f32 %v1782, %v833
    %v3367 = vmul.f32 %v1785, %v834
    %v3368 = vmul.f32 %v1787, %v835
    %3369 = vst [vmem:[#allocation5] sm:$0xff] %v3361
    %3370 = vst [vmem:[#allocation5 + $0x88] sm:$0xff] %v3362
    %3371 = vst [vmem:[#allocation5 + $0x110] sm:$0xff] %v3363
    %3372 = vst [vmem:[#allocation5 + $0x198] sm:$0xff] %v3364
    %3373 = vst [vmem:[#allocation5 + $0x220] sm:$0xff] %v3365
    %3374 = vst [vmem:[#allocation5 + $0x2a8] sm:$0xff] %v3366
    %3375 = vst [vmem:[#allocation5 + $0x330] sm:$0xff] %v3367
    %3376 = vst [vmem:[#allocation5 + $0x3b8] sm:$0xff] %v3368
    %3377 = vst [vmem:[#allocation6] sm:$0xff] %v2874
    %3378 = vst [vmem:[#allocation6 + $0x88] sm:$0xff] %v2876
    %3379 = vst [vmem:[#allocation6 + $0x110] sm:$0xff] %v2879
    %3380 = vst [vmem:[#allocation6 + $0x198] sm:$0xff] %v2881
    %3381 = vst [vmem:[#allocation6 + $0x220] sm:$0xff] %v2884
    %3382 = vst [vmem:[#allocation6 + $0x2a8] sm:$0xff] %v2886
    %3383 = vst [vmem:[#allocation6 + $0x330] sm:$0xff] %v2889
    %3384 = vst [vmem:[#allocation6 + $0x3b8] sm:$0xff] %v2891
    %v3385 = vperm.slane %v862, 1
    %v3386 = vmul.f32 %v820, %v3385
    %v3387 = vmul.f32 %v821, %v3385
    %v3388 = vmul.f32 %v822, %v3385
    %v3389 = vmul.f32 %v823, %v3385
    %v3390 = vmul.f32 %v824, %v3385
    %v3391 = vmul.f32 %v825, %v3385
    %v3392 = vmul.f32 %v826, %v3385
    %v3393 = vmul.f32 %v827, %v3385
    %v3394 = vmul.f32 %v3386, 1.442695
    %v3395 = vpow.pop %v3394
    %v3396 = vmul.f32 %v3387, 1.442695
    %v3397 = vpow.pop %v3396
    %v3398 = vmul.f32 %v3388, 1.442695
    %v3399 = vpow.pop %v3398
    %v3400 = vmul.f32 %v3389, 1.442695
    %v3401 = vpow.pop %v3400
    %v3402 = vmul.f32 %v3390, 1.442695
    %v3403 = vpow.pop %v3402
    %v3404 = vmul.f32 %v3391, 1.442695
    %v3405 = vpow.pop %v3404
    %v3406 = vmul.f32 %v3392, 1.442695
    %v3407 = vpow.pop %v3406
    %v3408 = vmul.f32 %v3393, 1.442695
    %v3409 = vpow.pop %v3408
    %s3410 = scalar_lea.vmem [#allocation4], 8
    %3411 = vst [vmem:[%s3410] sm:$0xff] %v3395
    %3412 = vst [vmem:[%s3410 + $0x88] sm:$0xff] %v3397
    %3413 = vst [vmem:[%s3410 + $0x110] sm:$0xff] %v3399
    %3414 = vst [vmem:[%s3410 + $0x198] sm:$0xff] %v3401
    %3415 = vst [vmem:[%s3410 + $0x220] sm:$0xff] %v3403
    %3416 = vst [vmem:[%s3410 + $0x2a8] sm:$0xff] %v3405
    %3417 = vst [vmem:[%s3410 + $0x330] sm:$0xff] %v3407
    %3418 = vst [vmem:[%s3410 + $0x3b8] sm:$0xff] %v3409
    %v3419 = vmul.f32 %v1799, %v828
    %v3420 = vmul.f32 %v1801, %v829
    %v3421 = vmul.f32 %v1804, %v830
    %v3422 = vmul.f32 %v1806, %v831
    %v3423 = vmul.f32 %v1809, %v832
    %v3424 = vmul.f32 %v1811, %v833
    %v3425 = vmul.f32 %v1814, %v834
    %v3426 = vmul.f32 %v1816, %v835
    %s3427 = scalar_lea.vmem [#allocation5], 8
    %3428 = vst [vmem:[%s3427] sm:$0xff] %v3419
    %3429 = vst [vmem:[%s3427 + $0x88] sm:$0xff] %v3420
    %3430 = vst [vmem:[%s3427 + $0x110] sm:$0xff] %v3421
    %3431 = vst [vmem:[%s3427 + $0x198] sm:$0xff] %v3422
    %3432 = vst [vmem:[%s3427 + $0x220] sm:$0xff] %v3423
    %3433 = vst [vmem:[%s3427 + $0x2a8] sm:$0xff] %v3424
    %3434 = vst [vmem:[%s3427 + $0x330] sm:$0xff] %v3425
    %3435 = vst [vmem:[%s3427 + $0x3b8] sm:$0xff] %v3426
    %s3436 = scalar_lea.vmem [#allocation6], 8
    %3437 = vst [vmem:[%s3436] sm:$0xff] %v2903
    %3438 = vst [vmem:[%s3436 + $0x88] sm:$0xff] %v2905
    %3439 = vst [vmem:[%s3436 + $0x110] sm:$0xff] %v2908
    %3440 = vst [vmem:[%s3436 + $0x198] sm:$0xff] %v2910
    %3441 = vst [vmem:[%s3436 + $0x220] sm:$0xff] %v2913
    %3442 = vst [vmem:[%s3436 + $0x2a8] sm:$0xff] %v2915
    %3443 = vst [vmem:[%s3436 + $0x330] sm:$0xff] %v2918
    %3444 = vst [vmem:[%s3436 + $0x3b8] sm:$0xff] %v2920
    %v3445 = vperm.slane %v862, 2
    %v3446 = vmul.f32 %v820, %v3445
    %v3447 = vmul.f32 %v821, %v3445
    %v3448 = vmul.f32 %v822, %v3445
    %v3449 = vmul.f32 %v823, %v3445
    %v3450 = vmul.f32 %v824, %v3445
    %v3451 = vmul.f32 %v825, %v3445
    %v3452 = vmul.f32 %v826, %v3445
    %v3453 = vmul.f32 %v827, %v3445
    %v3454 = vmul.f32 %v3446, 1.442695
    %v3455 = vpow.pop %v3454
    %v3456 = vmul.f32 %v3447, 1.442695
    %v3457 = vpow.pop %v3456
    %v3458 = vmul.f32 %v3448, 1.442695
    %v3459 = vpow.pop %v3458
    %v3460 = vmul.f32 %v3449, 1.442695
    %v3461 = vpow.pop %v3460
    %v3462 = vmul.f32 %v3450, 1.442695
    %v3463 = vpow.pop %v3462
    %v3464 = vmul.f32 %v3451, 1.442695
    %v3465 = vpow.pop %v3464
    %v3466 = vmul.f32 %v3452, 1.442695
    %v3467 = vpow.pop %v3466
    %v3468 = vmul.f32 %v3453, 1.442695
    %v3469 = vpow.pop %v3468
    %s3470 = scalar_lea.vmem [#allocation4], 16
    %3471 = vst [vmem:[%s3470] sm:$0xff] %v3455
    %3472 = vst [vmem:[%s3470 + $0x88] sm:$0xff] %v3457
    %3473 = vst [vmem:[%s3470 + $0x110] sm:$0xff] %v3459
    %3474 = vst [vmem:[%s3470 + $0x198] sm:$0xff] %v3461
    %3475 = vst [vmem:[%s3470 + $0x220] sm:$0xff] %v3463
    %3476 = vst [vmem:[%s3470 + $0x2a8] sm:$0xff] %v3465
    %3477 = vst [vmem:[%s3470 + $0x330] sm:$0xff] %v3467
    %3478 = vst [vmem:[%s3470 + $0x3b8] sm:$0xff] %v3469
    %v3479 = vmul.f32 %v1828, %v828
    %v3480 = vmul.f32 %v1830, %v829
    %v3481 = vmul.f32 %v1833, %v830
    %v3482 = vmul.f32 %v1835, %v831
    %v3483 = vmul.f32 %v1838, %v832
    %v3484 = vmul.f32 %v1840, %v833
    %v3485 = vmul.f32 %v1843, %v834
    %v3486 = vmul.f32 %v1845, %v835
    %s3487 = scalar_lea.vmem [#allocation5], 16
    %3488 = vst [vmem:[%s3487] sm:$0xff] %v3479
    %3489 = vst [vmem:[%s3487 + $0x88] sm:$0xff] %v3480
    %3490 = vst [vmem:[%s3487 + $0x110] sm:$0xff] %v3481
    %3491 = vst [vmem:[%s3487 + $0x198] sm:$0xff] %v3482
    %3492 = vst [vmem:[%s3487 + $0x220] sm:$0xff] %v3483
    %3493 = vst [vmem:[%s3487 + $0x2a8] sm:$0xff] %v3484
    %3494 = vst [vmem:[%s3487 + $0x330] sm:$0xff] %v3485
    %3495 = vst [vmem:[%s3487 + $0x3b8] sm:$0xff] %v3486
    %s3496 = scalar_lea.vmem [#allocation6], 16
    %3497 = vst [vmem:[%s3496] sm:$0xff] %v2932
    %3498 = vst [vmem:[%s3496 + $0x88] sm:$0xff] %v2934
    %3499 = vst [vmem:[%s3496 + $0x110] sm:$0xff] %v2937
    %3500 = vst [vmem:[%s3496 + $0x198] sm:$0xff] %v2939
    %3501 = vst [vmem:[%s3496 + $0x220] sm:$0xff] %v2942
    %3502 = vst [vmem:[%s3496 + $0x2a8] sm:$0xff] %v2944
    %3503 = vst [vmem:[%s3496 + $0x330] sm:$0xff] %v2947
    %3504 = vst [vmem:[%s3496 + $0x3b8] sm:$0xff] %v2949
    %v3505 = vperm.slane %v862, 3
    %v3506 = vmul.f32 %v820, %v3505
    %v3507 = vmul.f32 %v821, %v3505
    %v3508 = vmul.f32 %v822, %v3505
    %v3509 = vmul.f32 %v823, %v3505
    %v3510 = vmul.f32 %v824, %v3505
    %v3511 = vmul.f32 %v825, %v3505
    %v3512 = vmul.f32 %v826, %v3505
    %v3513 = vmul.f32 %v827, %v3505
    %v3514 = vmul.f32 %v3506, 1.442695
    %v3515 = vpow.pop %v3514
    %v3516 = vmul.f32 %v3507, 1.442695
    %v3517 = vpow.pop %v3516
    %v3518 = vmul.f32 %v3508, 1.442695
    %v3519 = vpow.pop %v3518
    %v3520 = vmul.f32 %v3509, 1.442695
    %v3521 = vpow.pop %v3520
    %v3522 = vmul.f32 %v3510, 1.442695
    %v3523 = vpow.pop %v3522
    %v3524 = vmul.f32 %v3511, 1.442695
    %v3525 = vpow.pop %v3524
    %v3526 = vmul.f32 %v3512, 1.442695
    %v3527 = vpow.pop %v3526
    %v3528 = vmul.f32 %v3513, 1.442695
    %v3529 = vpow.pop %v3528
    %s3530 = scalar_lea.vmem [#allocation4], 24
    %3531 = vst [vmem:[%s3530] sm:$0xff] %v3515
    %3532 = vst [vmem:[%s3530 + $0x88] sm:$0xff] %v3517
    %3533 = vst [vmem:[%s3530 + $0x110] sm:$0xff] %v3519
    %3534 = vst [vmem:[%s3530 + $0x198] sm:$0xff] %v3521
    %3535 = vst [vmem:[%s3530 + $0x220] sm:$0xff] %v3523
    %3536 = vst [vmem:[%s3530 + $0x2a8] sm:$0xff] %v3525
    %3537 = vst [vmem:[%s3530 + $0x330] sm:$0xff] %v3527
    %3538 = vst [vmem:[%s3530 + $0x3b8] sm:$0xff] %v3529
    %v3539 = vmul.f32 %v1857, %v828
    %v3540 = vmul.f32 %v1859, %v829
    %v3541 = vmul.f32 %v1862, %v830
    %v3542 = vmul.f32 %v1864, %v831
    %v3543 = vmul.f32 %v1867, %v832
    %v3544 = vmul.f32 %v1869, %v833
    %v3545 = vmul.f32 %v1872, %v834
    %v3546 = vmul.f32 %v1874, %v835
    %s3547 = scalar_lea.vmem [#allocation5], 24
    %3548 = vst [vmem:[%s3547] sm:$0xff] %v3539
    %3549 = vst [vmem:[%s3547 + $0x88] sm:$0xff] %v3540
    %3550 = vst [vmem:[%s3547 + $0x110] sm:$0xff] %v3541
    %3551 = vst [vmem:[%s3547 + $0x198] sm:$0xff] %v3542
    %3552 = vst [vmem:[%s3547 + $0x220] sm:$0xff] %v3543
    %3553 = vst [vmem:[%s3547 + $0x2a8] sm:$0xff] %v3544
    %3554 = vst [vmem:[%s3547 + $0x330] sm:$0xff] %v3545
    %3555 = vst [vmem:[%s3547 + $0x3b8] sm:$0xff] %v3546
    %s3556 = scalar_lea.vmem [#allocation6], 24
    %3557 = vst [vmem:[%s3556] sm:$0xff] %v2961
    %3558 = vst [vmem:[%s3556 + $0x88] sm:$0xff] %v2963
    %3559 = vst [vmem:[%s3556 + $0x110] sm:$0xff] %v2966
    %3560 = vst [vmem:[%s3556 + $0x198] sm:$0xff] %v2968
    %3561 = vst [vmem:[%s3556 + $0x220] sm:$0xff] %v2971
    %3562 = vst [vmem:[%s3556 + $0x2a8] sm:$0xff] %v2973
    %3563 = vst [vmem:[%s3556 + $0x330] sm:$0xff] %v2976
    %3564 = vst [vmem:[%s3556 + $0x3b8] sm:$0xff] %v2978
    %v3565 = vperm.slane %v862, 4
    %v3566 = vmul.f32 %v820, %v3565
    %v3567 = vmul.f32 %v821, %v3565
    %v3568 = vmul.f32 %v822, %v3565
    %v3569 = vmul.f32 %v823, %v3565
    %v3570 = vmul.f32 %v824, %v3565
    %v3571 = vmul.f32 %v825, %v3565
    %v3572 = vmul.f32 %v826, %v3565
    %v3573 = vmul.f32 %v827, %v3565
    %v3574 = vmul.f32 %v3566, 1.442695
    %v3575 = vpow.pop %v3574
    %v3576 = vmul.f32 %v3567, 1.442695
    %v3577 = vpow.pop %v3576
    %v3578 = vmul.f32 %v3568, 1.442695
    %v3579 = vpow.pop %v3578
    %v3580 = vmul.f32 %v3569, 1.442695
    %v3581 = vpow.pop %v3580
    %v3582 = vmul.f32 %v3570, 1.442695
    %v3583 = vpow.pop %v3582
    %v3584 = vmul.f32 %v3571, 1.442695
    %v3585 = vpow.pop %v3584
    %v3586 = vmul.f32 %v3572, 1.442695
    %v3587 = vpow.pop %v3586
    %v3588 = vmul.f32 %v3573, 1.442695
    %v3589 = vpow.pop %v3588
    %s3590 = scalar_lea.vmem [#allocation4], 32
    %3591 = vst [vmem:[%s3590] sm:$0xff] %v3575
    %3592 = vst [vmem:[%s3590 + $0x88] sm:$0xff] %v3577
    %3593 = vst [vmem:[%s3590 + $0x110] sm:$0xff] %v3579
    %3594 = vst [vmem:[%s3590 + $0x198] sm:$0xff] %v3581
    %3595 = vst [vmem:[%s3590 + $0x220] sm:$0xff] %v3583
    %3596 = vst [vmem:[%s3590 + $0x2a8] sm:$0xff] %v3585
    %3597 = vst [vmem:[%s3590 + $0x330] sm:$0xff] %v3587
    %3598 = vst [vmem:[%s3590 + $0x3b8] sm:$0xff] %v3589
    %v3599 = vmul.f32 %v1886, %v828
    %v3600 = vmul.f32 %v1888, %v829
    %v3601 = vmul.f32 %v1891, %v830
    %v3602 = vmul.f32 %v1893, %v831
    %v3603 = vmul.f32 %v1896, %v832
    %v3604 = vmul.f32 %v1898, %v833
    %v3605 = vmul.f32 %v1901, %v834
    %v3606 = vmul.f32 %v1903, %v835
    %s3607 = scalar_lea.vmem [#allocation5], 32
    %3608 = vst [vmem:[%s3607] sm:$0xff] %v3599
    %3609 = vst [vmem:[%s3607 + $0x88] sm:$0xff] %v3600
    %3610 = vst [vmem:[%s3607 + $0x110] sm:$0xff] %v3601
    %3611 = vst [vmem:[%s3607 + $0x198] sm:$0xff] %v3602
    %3612 = vst [vmem:[%s3607 + $0x220] sm:$0xff] %v3603
    %3613 = vst [vmem:[%s3607 + $0x2a8] sm:$0xff] %v3604
    %3614 = vst [vmem:[%s3607 + $0x330] sm:$0xff] %v3605
    %3615 = vst [vmem:[%s3607 + $0x3b8] sm:$0xff] %v3606
    %s3616 = scalar_lea.vmem [#allocation6], 32
    %3617 = vst [vmem:[%s3616] sm:$0xff] %v2990
    %3618 = vst [vmem:[%s3616 + $0x88] sm:$0xff] %v2992
    %3619 = vst [vmem:[%s3616 + $0x110] sm:$0xff] %v2995
    %3620 = vst [vmem:[%s3616 + $0x198] sm:$0xff] %v2997
    %3621 = vst [vmem:[%s3616 + $0x220] sm:$0xff] %v3000
    %3622 = vst [vmem:[%s3616 + $0x2a8] sm:$0xff] %v3002
    %3623 = vst [vmem:[%s3616 + $0x330] sm:$0xff] %v3005
    %3624 = vst [vmem:[%s3616 + $0x3b8] sm:$0xff] %v3007
    %v3625 = vperm.slane %v862, 5
    %v3626 = vmul.f32 %v820, %v3625
    %v3627 = vmul.f32 %v821, %v3625
    %v3628 = vmul.f32 %v822, %v3625
    %v3629 = vmul.f32 %v823, %v3625
    %v3630 = vmul.f32 %v824, %v3625
    %v3631 = vmul.f32 %v825, %v3625
    %v3632 = vmul.f32 %v826, %v3625
    %v3633 = vmul.f32 %v827, %v3625
    %v3634 = vmul.f32 %v3626, 1.442695
    %v3635 = vpow.pop %v3634
    %v3636 = vmul.f32 %v3627, 1.442695
    %v3637 = vpow.pop %v3636
    %v3638 = vmul.f32 %v3628, 1.442695
    %v3639 = vpow.pop %v3638
    %v3640 = vmul.f32 %v3629, 1.442695
    %v3641 = vpow.pop %v3640
    %v3642 = vmul.f32 %v3630, 1.442695
    %v3643 = vpow.pop %v3642
    %v3644 = vmul.f32 %v3631, 1.442695
    %v3645 = vpow.pop %v3644
    %v3646 = vmul.f32 %v3632, 1.442695
    %v3647 = vpow.pop %v3646
    %v3648 = vmul.f32 %v3633, 1.442695
    %v3649 = vpow.pop %v3648
    %s3650 = scalar_lea.vmem [#allocation4], 40
    %3651 = vst [vmem:[%s3650] sm:$0xff] %v3635
    %3652 = vst [vmem:[%s3650 + $0x88] sm:$0xff] %v3637
    %3653 = vst [vmem:[%s3650 + $0x110] sm:$0xff] %v3639
    %3654 = vst [vmem:[%s3650 + $0x198] sm:$0xff] %v3641
    %3655 = vst [vmem:[%s3650 + $0x220] sm:$0xff] %v3643
    %3656 = vst [vmem:[%s3650 + $0x2a8] sm:$0xff] %v3645
    %3657 = vst [vmem:[%s3650 + $0x330] sm:$0xff] %v3647
    %3658 = vst [vmem:[%s3650 + $0x3b8] sm:$0xff] %v3649
    %v3659 = vmul.f32 %v1915, %v828
    %v3660 = vmul.f32 %v1917, %v829
    %v3661 = vmul.f32 %v1920, %v830
    %v3662 = vmul.f32 %v1922, %v831
    %v3663 = vmul.f32 %v1925, %v832
    %v3664 = vmul.f32 %v1927, %v833
    %v3665 = vmul.f32 %v1930, %v834
    %v3666 = vmul.f32 %v1932, %v835
    %s3667 = scalar_lea.vmem [#allocation5], 40
    %3668 = vst [vmem:[%s3667] sm:$0xff] %v3659
    %3669 = vst [vmem:[%s3667 + $0x88] sm:$0xff] %v3660
    %3670 = vst [vmem:[%s3667 + $0x110] sm:$0xff] %v3661
    %3671 = vst [vmem:[%s3667 + $0x198] sm:$0xff] %v3662
    %3672 = vst [vmem:[%s3667 + $0x220] sm:$0xff] %v3663
    %3673 = vst [vmem:[%s3667 + $0x2a8] sm:$0xff] %v3664
    %3674 = vst [vmem:[%s3667 + $0x330] sm:$0xff] %v3665
    %3675 = vst [vmem:[%s3667 + $0x3b8] sm:$0xff] %v3666
    %s3676 = scalar_lea.vmem [#allocation6], 40
    %3677 = vst [vmem:[%s3676] sm:$0xff] %v3019
    %3678 = vst [vmem:[%s3676 + $0x88] sm:$0xff] %v3021
    %3679 = vst [vmem:[%s3676 + $0x110] sm:$0xff] %v3024
    %3680 = vst [vmem:[%s3676 + $0x198] sm:$0xff] %v3026
    %3681 = vst [vmem:[%s3676 + $0x220] sm:$0xff] %v3029
    %3682 = vst [vmem:[%s3676 + $0x2a8] sm:$0xff] %v3031
    %3683 = vst [vmem:[%s3676 + $0x330] sm:$0xff] %v3034
    %3684 = vst [vmem:[%s3676 + $0x3b8] sm:$0xff] %v3036
    %v3685 = vperm.slane %v862, 6
    %v3686 = vmul.f32 %v820, %v3685
    %v3687 = vmul.f32 %v821, %v3685
    %v3688 = vmul.f32 %v822, %v3685
    %v3689 = vmul.f32 %v823, %v3685
    %v3690 = vmul.f32 %v824, %v3685
    %v3691 = vmul.f32 %v825, %v3685
    %v3692 = vmul.f32 %v826, %v3685
    %v3693 = vmul.f32 %v827, %v3685
    %v3694 = vmul.f32 %v3686, 1.442695
    %v3695 = vpow.pop %v3694
    %v3696 = vmul.f32 %v3687, 1.442695
    %v3697 = vpow.pop %v3696
    %v3698 = vmul.f32 %v3688, 1.442695
    %v3699 = vpow.pop %v3698
    %v3700 = vmul.f32 %v3689, 1.442695
    %v3701 = vpow.pop %v3700
    %v3702 = vmul.f32 %v3690, 1.442695
    %v3703 = vpow.pop %v3702
    %v3704 = vmul.f32 %v3691, 1.442695
    %v3705 = vpow.pop %v3704
    %v3706 = vmul.f32 %v3692, 1.442695
    %v3707 = vpow.pop %v3706
    %v3708 = vmul.f32 %v3693, 1.442695
    %v3709 = vpow.pop %v3708
    %s3710 = scalar_lea.vmem [#allocation4], 48
    %3711 = vst [vmem:[%s3710] sm:$0xff] %v3695
    %3712 = vst [vmem:[%s3710 + $0x88] sm:$0xff] %v3697
    %3713 = vst [vmem:[%s3710 + $0x110] sm:$0xff] %v3699
    %3714 = vst [vmem:[%s3710 + $0x198] sm:$0xff] %v3701
    %3715 = vst [vmem:[%s3710 + $0x220] sm:$0xff] %v3703
    %3716 = vst [vmem:[%s3710 + $0x2a8] sm:$0xff] %v3705
    %3717 = vst [vmem:[%s3710 + $0x330] sm:$0xff] %v3707
    %3718 = vst [vmem:[%s3710 + $0x3b8] sm:$0xff] %v3709
    %v3719 = vmul.f32 %v1944, %v828
    %v3720 = vmul.f32 %v1946, %v829
    %v3721 = vmul.f32 %v1949, %v830
    %v3722 = vmul.f32 %v1951, %v831
    %v3723 = vmul.f32 %v1954, %v832
    %v3724 = vmul.f32 %v1956, %v833
    %v3725 = vmul.f32 %v1959, %v834
    %v3726 = vmul.f32 %v1961, %v835
    %s3727 = scalar_lea.vmem [#allocation5], 48
    %3728 = vst [vmem:[%s3727] sm:$0xff] %v3719
    %3729 = vst [vmem:[%s3727 + $0x88] sm:$0xff] %v3720
    %3730 = vst [vmem:[%s3727 + $0x110] sm:$0xff] %v3721
    %3731 = vst [vmem:[%s3727 + $0x198] sm:$0xff] %v3722
    %3732 = vst [vmem:[%s3727 + $0x220] sm:$0xff] %v3723
    %3733 = vst [vmem:[%s3727 + $0x2a8] sm:$0xff] %v3724
    %3734 = vst [vmem:[%s3727 + $0x330] sm:$0xff] %v3725
    %3735 = vst [vmem:[%s3727 + $0x3b8] sm:$0xff] %v3726
    %s3736 = scalar_lea.vmem [#allocation6], 48
    %3737 = vst [vmem:[%s3736] sm:$0xff] %v3048
    %3738 = vst [vmem:[%s3736 + $0x88] sm:$0xff] %v3050
    %3739 = vst [vmem:[%s3736 + $0x110] sm:$0xff] %v3053
    %3740 = vst [vmem:[%s3736 + $0x198] sm:$0xff] %v3055
    %3741 = vst [vmem:[%s3736 + $0x220] sm:$0xff] %v3058
    %3742 = vst [vmem:[%s3736 + $0x2a8] sm:$0xff] %v3060
    %3743 = vst [vmem:[%s3736 + $0x330] sm:$0xff] %v3063
    %3744 = vst [vmem:[%s3736 + $0x3b8] sm:$0xff] %v3065
    %v3745 = vperm.slane %v862, 7
    %v3746 = vmul.f32 %v820, %v3745
    %v3747 = vmul.f32 %v821, %v3745
    %v3748 = vmul.f32 %v822, %v3745
    %v3749 = vmul.f32 %v823, %v3745
    %v3750 = vmul.f32 %v824, %v3745
    %v3751 = vmul.f32 %v825, %v3745
    %v3752 = vmul.f32 %v826, %v3745
    %v3753 = vmul.f32 %v827, %v3745
    %v3754 = vmul.f32 %v3746, 1.442695
    %v3755 = vpow.pop %v3754
    %v3756 = vmul.f32 %v3747, 1.442695
    %v3757 = vpow.pop %v3756
    %v3758 = vmul.f32 %v3748, 1.442695
    %v3759 = vpow.pop %v3758
    %v3760 = vmul.f32 %v3749, 1.442695
    %v3761 = vpow.pop %v3760
    %v3762 = vmul.f32 %v3750, 1.442695
    %v3763 = vpow.pop %v3762
    %v3764 = vmul.f32 %v3751, 1.442695
    %v3765 = vpow.pop %v3764
    %v3766 = vmul.f32 %v3752, 1.442695
    %v3767 = vpow.pop %v3766
    %v3768 = vmul.f32 %v3753, 1.442695
    %v3769 = vpow.pop %v3768
    %s3770 = scalar_lea.vmem [#allocation4], 56
    %3771 = vst [vmem:[%s3770] sm:$0xff] %v3755
    %3772 = vst [vmem:[%s3770 + $0x88] sm:$0xff] %v3757
    %3773 = vst [vmem:[%s3770 + $0x110] sm:$0xff] %v3759
    %3774 = vst [vmem:[%s3770 + $0x198] sm:$0xff] %v3761
    %3775 = vst [vmem:[%s3770 + $0x220] sm:$0xff] %v3763
    %3776 = vst [vmem:[%s3770 + $0x2a8] sm:$0xff] %v3765
    %3777 = vst [vmem:[%s3770 + $0x330] sm:$0xff] %v3767
    %3778 = vst [vmem:[%s3770 + $0x3b8] sm:$0xff] %v3769
    %v3779 = vmul.f32 %v1973, %v828
    %v3780 = vmul.f32 %v1975, %v829
    %v3781 = vmul.f32 %v1978, %v830
    %v3782 = vmul.f32 %v1980, %v831
    %v3783 = vmul.f32 %v1983, %v832
    %v3784 = vmul.f32 %v1985, %v833
    %v3785 = vmul.f32 %v1988, %v834
    %v3786 = vmul.f32 %v1990, %v835
    %s3787 = scalar_lea.vmem [#allocation5], 56
    %3788 = vst [vmem:[%s3787] sm:$0xff] %v3779
    %3789 = vst [vmem:[%s3787 + $0x88] sm:$0xff] %v3780
    %3790 = vst [vmem:[%s3787 + $0x110] sm:$0xff] %v3781
    %3791 = vst [vmem:[%s3787 + $0x198] sm:$0xff] %v3782
    %3792 = vst [vmem:[%s3787 + $0x220] sm:$0xff] %v3783
    %3793 = vst [vmem:[%s3787 + $0x2a8] sm:$0xff] %v3784
    %3794 = vst [vmem:[%s3787 + $0x330] sm:$0xff] %v3785
    %3795 = vst [vmem:[%s3787 + $0x3b8] sm:$0xff] %v3786
    %s3796 = scalar_lea.vmem [#allocation6], 56
    %3797 = vst [vmem:[%s3796] sm:$0xff] %v3077
    %3798 = vst [vmem:[%s3796 + $0x88] sm:$0xff] %v3079
    %3799 = vst [vmem:[%s3796 + $0x110] sm:$0xff] %v3082
    %3800 = vst [vmem:[%s3796 + $0x198] sm:$0xff] %v3084
    %3801 = vst [vmem:[%s3796 + $0x220] sm:$0xff] %v3087
    %3802 = vst [vmem:[%s3796 + $0x2a8] sm:$0xff] %v3089
    %3803 = vst [vmem:[%s3796 + $0x330] sm:$0xff] %v3092
    %3804 = vst [vmem:[%s3796 + $0x3b8] sm:$0xff] %v3094
    %v3805 = vperm.slane %v863, 0
    %v3806 = vmul.f32 %v820, %v3805
    %v3807 = vmul.f32 %v821, %v3805
    %v3808 = vmul.f32 %v822, %v3805
    %v3809 = vmul.f32 %v823, %v3805
    %v3810 = vmul.f32 %v824, %v3805
    %v3811 = vmul.f32 %v825, %v3805
    %v3812 = vmul.f32 %v826, %v3805
    %v3813 = vmul.f32 %v827, %v3805
    %v3814 = vmul.f32 %v3806, 1.442695
    %v3815 = vpow.pop %v3814
    %v3816 = vmul.f32 %v3807, 1.442695
    %v3817 = vpow.pop %v3816
    %v3818 = vmul.f32 %v3808, 1.442695
    %v3819 = vpow.pop %v3818
    %v3820 = vmul.f32 %v3809, 1.442695
    %v3821 = vpow.pop %v3820
    %v3822 = vmul.f32 %v3810, 1.442695
    %v3823 = vpow.pop %v3822
    %v3824 = vmul.f32 %v3811, 1.442695
    %v3825 = vpow.pop %v3824
    %v3826 = vmul.f32 %v3812, 1.442695
    %v3827 = vpow.pop %v3826
    %v3828 = vmul.f32 %v3813, 1.442695
    %v3829 = vpow.pop %v3828
    %s3830 = scalar_lea.vmem [#allocation4], 64
    %3831 = vst [vmem:[%s3830] sm:$0xff] %v3815
    %3832 = vst [vmem:[%s3830 + $0x88] sm:$0xff] %v3817
    %3833 = vst [vmem:[%s3830 + $0x110] sm:$0xff] %v3819
    %3834 = vst [vmem:[%s3830 + $0x198] sm:$0xff] %v3821
    %3835 = vst [vmem:[%s3830 + $0x220] sm:$0xff] %v3823
    %3836 = vst [vmem:[%s3830 + $0x2a8] sm:$0xff] %v3825
    %3837 = vst [vmem:[%s3830 + $0x330] sm:$0xff] %v3827
    %3838 = vst [vmem:[%s3830 + $0x3b8] sm:$0xff] %v3829
    %v3839 = vmul.f32 %v2002, %v828
    %v3840 = vmul.f32 %v2004, %v829
    %v3841 = vmul.f32 %v2007, %v830
    %v3842 = vmul.f32 %v2009, %v831
    %v3843 = vmul.f32 %v2012, %v832
    %v3844 = vmul.f32 %v2014, %v833
    %v3845 = vmul.f32 %v2017, %v834
    %v3846 = vmul.f32 %v2019, %v835
    %s3847 = scalar_lea.vmem [#allocation5], 64
    %3848 = vst [vmem:[%s3847] sm:$0xff] %v3839
    %3849 = vst [vmem:[%s3847 + $0x88] sm:$0xff] %v3840
    %3850 = vst [vmem:[%s3847 + $0x110] sm:$0xff] %v3841
    %3851 = vst [vmem:[%s3847 + $0x198] sm:$0xff] %v3842
    %3852 = vst [vmem:[%s3847 + $0x220] sm:$0xff] %v3843
    %3853 = vst [vmem:[%s3847 + $0x2a8] sm:$0xff] %v3844
    %3854 = vst [vmem:[%s3847 + $0x330] sm:$0xff] %v3845
    %3855 = vst [vmem:[%s3847 + $0x3b8] sm:$0xff] %v3846
    %s3856 = scalar_lea.vmem [#allocation6], 64
    %3857 = vst [vmem:[%s3856] sm:$0xff] %v3106
    %3858 = vst [vmem:[%s3856 + $0x88] sm:$0xff] %v3108
    %3859 = vst [vmem:[%s3856 + $0x110] sm:$0xff] %v3111
    %3860 = vst [vmem:[%s3856 + $0x198] sm:$0xff] %v3113
    %3861 = vst [vmem:[%s3856 + $0x220] sm:$0xff] %v3116
    %3862 = vst [vmem:[%s3856 + $0x2a8] sm:$0xff] %v3118
    %3863 = vst [vmem:[%s3856 + $0x330] sm:$0xff] %v3121
    %3864 = vst [vmem:[%s3856 + $0x3b8] sm:$0xff] %v3123
    %v3865 = vperm.slane %v863, 1
    %v3866 = vmul.f32 %v820, %v3865
    %v3867 = vmul.f32 %v821, %v3865
    %v3868 = vmul.f32 %v822, %v3865
    %v3869 = vmul.f32 %v823, %v3865
    %v3870 = vmul.f32 %v824, %v3865
    %v3871 = vmul.f32 %v825, %v3865
    %v3872 = vmul.f32 %v826, %v3865
    %v3873 = vmul.f32 %v827, %v3865
    %v3874 = vmul.f32 %v3866, 1.442695
    %v3875 = vpow.pop %v3874
    %v3876 = vmul.f32 %v3867, 1.442695
    %v3877 = vpow.pop %v3876
    %v3878 = vmul.f32 %v3868, 1.442695
    %v3879 = vpow.pop %v3878
    %v3880 = vmul.f32 %v3869, 1.442695
    %v3881 = vpow.pop %v3880
    %v3882 = vmul.f32 %v3870, 1.442695
    %v3883 = vpow.pop %v3882
    %v3884 = vmul.f32 %v3871, 1.442695
    %v3885 = vpow.pop %v3884
    %v3886 = vmul.f32 %v3872, 1.442695
    %v3887 = vpow.pop %v3886
    %v3888 = vmul.f32 %v3873, 1.442695
    %v3889 = vpow.pop %v3888
    %s3890 = scalar_lea.vmem [#allocation4], 72
    %3891 = vst [vmem:[%s3890] sm:$0xff] %v3875
    %3892 = vst [vmem:[%s3890 + $0x88] sm:$0xff] %v3877
    %3893 = vst [vmem:[%s3890 + $0x110] sm:$0xff] %v3879
    %3894 = vst [vmem:[%s3890 + $0x198] sm:$0xff] %v3881
    %3895 = vst [vmem:[%s3890 + $0x220] sm:$0xff] %v3883
    %3896 = vst [vmem:[%s3890 + $0x2a8] sm:$0xff] %v3885
    %3897 = vst [vmem:[%s3890 + $0x330] sm:$0xff] %v3887
    %3898 = vst [vmem:[%s3890 + $0x3b8] sm:$0xff] %v3889
    %v3899 = vmul.f32 %v2031, %v828
    %v3900 = vmul.f32 %v2033, %v829
    %v3901 = vmul.f32 %v2036, %v830
    %v3902 = vmul.f32 %v2038, %v831
    %v3903 = vmul.f32 %v2041, %v832
    %v3904 = vmul.f32 %v2043, %v833
    %v3905 = vmul.f32 %v2046, %v834
    %v3906 = vmul.f32 %v2048, %v835
    %s3907 = scalar_lea.vmem [#allocation5], 72
    %3908 = vst [vmem:[%s3907] sm:$0xff] %v3899
    %3909 = vst [vmem:[%s3907 + $0x88] sm:$0xff] %v3900
    %3910 = vst [vmem:[%s3907 + $0x110] sm:$0xff] %v3901
    %3911 = vst [vmem:[%s3907 + $0x198] sm:$0xff] %v3902
    %3912 = vst [vmem:[%s3907 + $0x220] sm:$0xff] %v3903
    %3913 = vst [vmem:[%s3907 + $0x2a8] sm:$0xff] %v3904
    %3914 = vst [vmem:[%s3907 + $0x330] sm:$0xff] %v3905
    %3915 = vst [vmem:[%s3907 + $0x3b8] sm:$0xff] %v3906
    %s3916 = scalar_lea.vmem [#allocation6], 72
    %3917 = vst [vmem:[%s3916] sm:$0xff] %v3135
    %3918 = vst [vmem:[%s3916 + $0x88] sm:$0xff] %v3137
    %3919 = vst [vmem:[%s3916 + $0x110] sm:$0xff] %v3140
    %3920 = vst [vmem:[%s3916 + $0x198] sm:$0xff] %v3142
    %3921 = vst [vmem:[%s3916 + $0x220] sm:$0xff] %v3145
    %3922 = vst [vmem:[%s3916 + $0x2a8] sm:$0xff] %v3147
    %3923 = vst [vmem:[%s3916 + $0x330] sm:$0xff] %v3150
    %3924 = vst [vmem:[%s3916 + $0x3b8] sm:$0xff] %v3152
    %v3925 = vperm.slane %v863, 2
    %v3926 = vmul.f32 %v820, %v3925
    %v3927 = vmul.f32 %v821, %v3925
    %v3928 = vmul.f32 %v822, %v3925
    %v3929 = vmul.f32 %v823, %v3925
    %v3930 = vmul.f32 %v824, %v3925
    %v3931 = vmul.f32 %v825, %v3925
    %v3932 = vmul.f32 %v826, %v3925
    %v3933 = vmul.f32 %v827, %v3925
    %v3934 = vmul.f32 %v3926, 1.442695
    %v3935 = vpow.pop %v3934
    %v3936 = vmul.f32 %v3927, 1.442695
    %v3937 = vpow.pop %v3936
    %v3938 = vmul.f32 %v3928, 1.442695
    %v3939 = vpow.pop %v3938
    %v3940 = vmul.f32 %v3929, 1.442695
    %v3941 = vpow.pop %v3940
    %v3942 = vmul.f32 %v3930, 1.442695
    %v3943 = vpow.pop %v3942
    %v3944 = vmul.f32 %v3931, 1.442695
    %v3945 = vpow.pop %v3944
    %v3946 = vmul.f32 %v3932, 1.442695
    %v3947 = vpow.pop %v3946
    %v3948 = vmul.f32 %v3933, 1.442695
    %v3949 = vpow.pop %v3948
    %s3950 = scalar_lea.vmem [#allocation4], 80
    %3951 = vst [vmem:[%s3950] sm:$0xff] %v3935
    %3952 = vst [vmem:[%s3950 + $0x88] sm:$0xff] %v3937
    %3953 = vst [vmem:[%s3950 + $0x110] sm:$0xff] %v3939
    %3954 = vst [vmem:[%s3950 + $0x198] sm:$0xff] %v3941
    %3955 = vst [vmem:[%s3950 + $0x220] sm:$0xff] %v3943
    %3956 = vst [vmem:[%s3950 + $0x2a8] sm:$0xff] %v3945
    %3957 = vst [vmem:[%s3950 + $0x330] sm:$0xff] %v3947
    %3958 = vst [vmem:[%s3950 + $0x3b8] sm:$0xff] %v3949
    %v3959 = vmul.f32 %v2060, %v828
    %v3960 = vmul.f32 %v2062, %v829
    %v3961 = vmul.f32 %v2065, %v830
    %v3962 = vmul.f32 %v2067, %v831
    %v3963 = vmul.f32 %v2070, %v832
    %v3964 = vmul.f32 %v2072, %v833
    %v3965 = vmul.f32 %v2075, %v834
    %v3966 = vmul.f32 %v2077, %v835
    %s3967 = scalar_lea.vmem [#allocation5], 80
    %3968 = vst [vmem:[%s3967] sm:$0xff] %v3959
    %3969 = vst [vmem:[%s3967 + $0x88] sm:$0xff] %v3960
    %3970 = vst [vmem:[%s3967 + $0x110] sm:$0xff] %v3961
    %3971 = vst [vmem:[%s3967 + $0x198] sm:$0xff] %v3962
    %3972 = vst [vmem:[%s3967 + $0x220] sm:$0xff] %v3963
    %3973 = vst [vmem:[%s3967 + $0x2a8] sm:$0xff] %v3964
    %3974 = vst [vmem:[%s3967 + $0x330] sm:$0xff] %v3965
    %3975 = vst [vmem:[%s3967 + $0x3b8] sm:$0xff] %v3966
    %s3976 = scalar_lea.vmem [#allocation6], 80
    %3977 = vst [vmem:[%s3976] sm:$0xff] %v3164
    %3978 = vst [vmem:[%s3976 + $0x88] sm:$0xff] %v3166
    %3979 = vst [vmem:[%s3976 + $0x110] sm:$0xff] %v3169
    %3980 = vst [vmem:[%s3976 + $0x198] sm:$0xff] %v3171
    %3981 = vst [vmem:[%s3976 + $0x220] sm:$0xff] %v3174
    %3982 = vst [vmem:[%s3976 + $0x2a8] sm:$0xff] %v3176
    %3983 = vst [vmem:[%s3976 + $0x330] sm:$0xff] %v3179
    %3984 = vst [vmem:[%s3976 + $0x3b8] sm:$0xff] %v3181
    %v3985 = vperm.slane %v863, 3
    %v3986 = vmul.f32 %v820, %v3985
    %v3987 = vmul.f32 %v821, %v3985
    %v3988 = vmul.f32 %v822, %v3985
    %v3989 = vmul.f32 %v823, %v3985
    %v3990 = vmul.f32 %v824, %v3985
    %v3991 = vmul.f32 %v825, %v3985
    %v3992 = vmul.f32 %v826, %v3985
    %v3993 = vmul.f32 %v827, %v3985
    %v3994 = vmul.f32 %v3986, 1.442695
    %v3995 = vpow.pop %v3994
    %v3996 = vmul.f32 %v3987, 1.442695
    %v3997 = vpow.pop %v3996
    %v3998 = vmul.f32 %v3988, 1.442695
    %v3999 = vpow.pop %v3998
    %v4000 = vmul.f32 %v3989, 1.442695
    %v4001 = vpow.pop %v4000
    %v4002 = vmul.f32 %v3990, 1.442695
    %v4003 = vpow.pop %v4002
    %v4004 = vmul.f32 %v3991, 1.442695
    %v4005 = vpow.pop %v4004
    %v4006 = vmul.f32 %v3992, 1.442695
    %v4007 = vpow.pop %v4006
    %v4008 = vmul.f32 %v3993, 1.442695
    %v4009 = vpow.pop %v4008
    %s4010 = scalar_lea.vmem [#allocation4], 88
    %4011 = vst [vmem:[%s4010] sm:$0xff] %v3995
    %4012 = vst [vmem:[%s4010 + $0x88] sm:$0xff] %v3997
    %4013 = vst [vmem:[%s4010 + $0x110] sm:$0xff] %v3999
    %4014 = vst [vmem:[%s4010 + $0x198] sm:$0xff] %v4001
    %4015 = vst [vmem:[%s4010 + $0x220] sm:$0xff] %v4003
    %4016 = vst [vmem:[%s4010 + $0x2a8] sm:$0xff] %v4005
    %4017 = vst [vmem:[%s4010 + $0x330] sm:$0xff] %v4007
    %4018 = vst [vmem:[%s4010 + $0x3b8] sm:$0xff] %v4009
    %v4019 = vmul.f32 %v2089, %v828
    %v4020 = vmul.f32 %v2091, %v829
    %v4021 = vmul.f32 %v2094, %v830
    %v4022 = vmul.f32 %v2096, %v831
    %v4023 = vmul.f32 %v2099, %v832
    %v4024 = vmul.f32 %v2101, %v833
    %v4025 = vmul.f32 %v2104, %v834
    %v4026 = vmul.f32 %v2106, %v835
    %s4027 = scalar_lea.vmem [#allocation5], 88
    %4028 = vst [vmem:[%s4027] sm:$0xff] %v4019
    %4029 = vst [vmem:[%s4027 + $0x88] sm:$0xff] %v4020
    %4030 = vst [vmem:[%s4027 + $0x110] sm:$0xff] %v4021
    %4031 = vst [vmem:[%s4027 + $0x198] sm:$0xff] %v4022
    %4032 = vst [vmem:[%s4027 + $0x220] sm:$0xff] %v4023
    %4033 = vst [vmem:[%s4027 + $0x2a8] sm:$0xff] %v4024
    %4034 = vst [vmem:[%s4027 + $0x330] sm:$0xff] %v4025
    %4035 = vst [vmem:[%s4027 + $0x3b8] sm:$0xff] %v4026
    %s4036 = scalar_lea.vmem [#allocation6], 88
    %4037 = vst [vmem:[%s4036] sm:$0xff] %v3193
    %4038 = vst [vmem:[%s4036 + $0x88] sm:$0xff] %v3195
    %4039 = vst [vmem:[%s4036 + $0x110] sm:$0xff] %v3198
    %4040 = vst [vmem:[%s4036 + $0x198] sm:$0xff] %v3200
    %4041 = vst [vmem:[%s4036 + $0x220] sm:$0xff] %v3203
    %4042 = vst [vmem:[%s4036 + $0x2a8] sm:$0xff] %v3205
    %4043 = vst [vmem:[%s4036 + $0x330] sm:$0xff] %v3208
    %4044 = vst [vmem:[%s4036 + $0x3b8] sm:$0xff] %v3210
    %v4045 = vperm.slane %v863, 4
    %v4046 = vmul.f32 %v820, %v4045
    %v4047 = vmul.f32 %v821, %v4045
    %v4048 = vmul.f32 %v822, %v4045
    %v4049 = vmul.f32 %v823, %v4045
    %v4050 = vmul.f32 %v824, %v4045
    %v4051 = vmul.f32 %v825, %v4045
    %v4052 = vmul.f32 %v826, %v4045
    %v4053 = vmul.f32 %v827, %v4045
    %v4054 = vmul.f32 %v4046, 1.442695
    %v4055 = vpow.pop %v4054
    %v4056 = vmul.f32 %v4047, 1.442695
    %v4057 = vpow.pop %v4056
    %v4058 = vmul.f32 %v4048, 1.442695
    %v4059 = vpow.pop %v4058
    %v4060 = vmul.f32 %v4049, 1.442695
    %v4061 = vpow.pop %v4060
    %v4062 = vmul.f32 %v4050, 1.442695
    %v4063 = vpow.pop %v4062
    %v4064 = vmul.f32 %v4051, 1.442695
    %v4065 = vpow.pop %v4064
    %v4066 = vmul.f32 %v4052, 1.442695
    %v4067 = vpow.pop %v4066
    %v4068 = vmul.f32 %v4053, 1.442695
    %v4069 = vpow.pop %v4068
    %s4070 = scalar_lea.vmem [#allocation4], 96
    %4071 = vst [vmem:[%s4070] sm:$0xff] %v4055
    %4072 = vst [vmem:[%s4070 + $0x88] sm:$0xff] %v4057
    %4073 = vst [vmem:[%s4070 + $0x110] sm:$0xff] %v4059
    %4074 = vst [vmem:[%s4070 + $0x198] sm:$0xff] %v4061
    %4075 = vst [vmem:[%s4070 + $0x220] sm:$0xff] %v4063
    %4076 = vst [vmem:[%s4070 + $0x2a8] sm:$0xff] %v4065
    %4077 = vst [vmem:[%s4070 + $0x330] sm:$0xff] %v4067
    %4078 = vst [vmem:[%s4070 + $0x3b8] sm:$0xff] %v4069
    %v4079 = vmul.f32 %v2118, %v828
    %v4080 = vmul.f32 %v2120, %v829
    %v4081 = vmul.f32 %v2123, %v830
    %v4082 = vmul.f32 %v2125, %v831
    %v4083 = vmul.f32 %v2128, %v832
    %v4084 = vmul.f32 %v2130, %v833
    %v4085 = vmul.f32 %v2133, %v834
    %v4086 = vmul.f32 %v2135, %v835
    %s4087 = scalar_lea.vmem [#allocation5], 96
    %4088 = vst [vmem:[%s4087] sm:$0xff] %v4079
    %4089 = vst [vmem:[%s4087 + $0x88] sm:$0xff] %v4080
    %4090 = vst [vmem:[%s4087 + $0x110] sm:$0xff] %v4081
    %4091 = vst [vmem:[%s4087 + $0x198] sm:$0xff] %v4082
    %4092 = vst [vmem:[%s4087 + $0x220] sm:$0xff] %v4083
    %4093 = vst [vmem:[%s4087 + $0x2a8] sm:$0xff] %v4084
    %4094 = vst [vmem:[%s4087 + $0x330] sm:$0xff] %v4085
    %4095 = vst [vmem:[%s4087 + $0x3b8] sm:$0xff] %v4086
    %s4096 = scalar_lea.vmem [#allocation6], 96
    %4097 = vst [vmem:[%s4096] sm:$0xff] %v3222
    %4098 = vst [vmem:[%s4096 + $0x88] sm:$0xff] %v3224
    %4099 = vst [vmem:[%s4096 + $0x110] sm:$0xff] %v3227
    %4100 = vst [vmem:[%s4096 + $0x198] sm:$0xff] %v3229
    %4101 = vst [vmem:[%s4096 + $0x220] sm:$0xff] %v3232
    %4102 = vst [vmem:[%s4096 + $0x2a8] sm:$0xff] %v3234
    %4103 = vst [vmem:[%s4096 + $0x330] sm:$0xff] %v3237
    %4104 = vst [vmem:[%s4096 + $0x3b8] sm:$0xff] %v3239
    %v4105 = vperm.slane %v863, 5
    %v4106 = vmul.f32 %v820, %v4105
    %v4107 = vmul.f32 %v821, %v4105
    %v4108 = vmul.f32 %v822, %v4105
    %v4109 = vmul.f32 %v823, %v4105
    %v4110 = vmul.f32 %v824, %v4105
    %v4111 = vmul.f32 %v825, %v4105
    %v4112 = vmul.f32 %v826, %v4105
    %v4113 = vmul.f32 %v827, %v4105
    %v4114 = vmul.f32 %v4106, 1.442695
    %v4115 = vpow.pop %v4114
    %v4116 = vmul.f32 %v4107, 1.442695
    %v4117 = vpow.pop %v4116
    %v4118 = vmul.f32 %v4108, 1.442695
    %v4119 = vpow.pop %v4118
    %v4120 = vmul.f32 %v4109, 1.442695
    %v4121 = vpow.pop %v4120
    %v4122 = vmul.f32 %v4110, 1.442695
    %v4123 = vpow.pop %v4122
    %v4124 = vmul.f32 %v4111, 1.442695
    %v4125 = vpow.pop %v4124
    %v4126 = vmul.f32 %v4112, 1.442695
    %v4127 = vpow.pop %v4126
    %v4128 = vmul.f32 %v4113, 1.442695
    %v4129 = vpow.pop %v4128
    %s4130 = scalar_lea.vmem [#allocation4], 104
    %4131 = vst [vmem:[%s4130] sm:$0xff] %v4115
    %4132 = vst [vmem:[%s4130 + $0x88] sm:$0xff] %v4117
    %4133 = vst [vmem:[%s4130 + $0x110] sm:$0xff] %v4119
    %4134 = vst [vmem:[%s4130 + $0x198] sm:$0xff] %v4121
    %4135 = vst [vmem:[%s4130 + $0x220] sm:$0xff] %v4123
    %4136 = vst [vmem:[%s4130 + $0x2a8] sm:$0xff] %v4125
    %4137 = vst [vmem:[%s4130 + $0x330] sm:$0xff] %v4127
    %4138 = vst [vmem:[%s4130 + $0x3b8] sm:$0xff] %v4129
    %v4139 = vmul.f32 %v2147, %v828
    %v4140 = vmul.f32 %v2149, %v829
    %v4141 = vmul.f32 %v2152, %v830
    %v4142 = vmul.f32 %v2154, %v831
    %v4143 = vmul.f32 %v2157, %v832
    %v4144 = vmul.f32 %v2159, %v833
    %v4145 = vmul.f32 %v2162, %v834
    %v4146 = vmul.f32 %v2164, %v835
    %s4147 = scalar_lea.vmem [#allocation5], 104
    %4148 = vst [vmem:[%s4147] sm:$0xff] %v4139
    %4149 = vst [vmem:[%s4147 + $0x88] sm:$0xff] %v4140
    %4150 = vst [vmem:[%s4147 + $0x110] sm:$0xff] %v4141
    %4151 = vst [vmem:[%s4147 + $0x198] sm:$0xff] %v4142
    %4152 = vst [vmem:[%s4147 + $0x220] sm:$0xff] %v4143
    %4153 = vst [vmem:[%s4147 + $0x2a8] sm:$0xff] %v4144
    %4154 = vst [vmem:[%s4147 + $0x330] sm:$0xff] %v4145
    %4155 = vst [vmem:[%s4147 + $0x3b8] sm:$0xff] %v4146
    %s4156 = scalar_lea.vmem [#allocation6], 104
    %4157 = vst [vmem:[%s4156] sm:$0xff] %v3251
    %4158 = vst [vmem:[%s4156 + $0x88] sm:$0xff] %v3253
    %4159 = vst [vmem:[%s4156 + $0x110] sm:$0xff] %v3256
    %4160 = vst [vmem:[%s4156 + $0x198] sm:$0xff] %v3258
    %4161 = vst [vmem:[%s4156 + $0x220] sm:$0xff] %v3261
    %4162 = vst [vmem:[%s4156 + $0x2a8] sm:$0xff] %v3263
    %4163 = vst [vmem:[%s4156 + $0x330] sm:$0xff] %v3266
    %4164 = vst [vmem:[%s4156 + $0x3b8] sm:$0xff] %v3268
    %v4165 = vperm.slane %v863, 6
    %v4166 = vmul.f32 %v820, %v4165
    %v4167 = vmul.f32 %v821, %v4165
    %v4168 = vmul.f32 %v822, %v4165
    %v4169 = vmul.f32 %v823, %v4165
    %v4170 = vmul.f32 %v824, %v4165
    %v4171 = vmul.f32 %v825, %v4165
    %v4172 = vmul.f32 %v826, %v4165
    %v4173 = vmul.f32 %v827, %v4165
    %v4174 = vmul.f32 %v4166, 1.442695
    %v4175 = vpow.pop %v4174
    %v4176 = vmul.f32 %v4167, 1.442695
    %v4177 = vpow.pop %v4176
    %v4178 = vmul.f32 %v4168, 1.442695
    %v4179 = vpow.pop %v4178
    %v4180 = vmul.f32 %v4169, 1.442695
    %v4181 = vpow.pop %v4180
    %v4182 = vmul.f32 %v4170, 1.442695
    %v4183 = vpow.pop %v4182
    %v4184 = vmul.f32 %v4171, 1.442695
    %v4185 = vpow.pop %v4184
    %v4186 = vmul.f32 %v4172, 1.442695
    %v4187 = vpow.pop %v4186
    %v4188 = vmul.f32 %v4173, 1.442695
    %v4189 = vpow.pop %v4188
    %s4190 = scalar_lea.vmem [#allocation4], 112
    %4191 = vst [vmem:[%s4190] sm:$0xff] %v4175
    %4192 = vst [vmem:[%s4190 + $0x88] sm:$0xff] %v4177
    %4193 = vst [vmem:[%s4190 + $0x110] sm:$0xff] %v4179
    %4194 = vst [vmem:[%s4190 + $0x198] sm:$0xff] %v4181
    %4195 = vst [vmem:[%s4190 + $0x220] sm:$0xff] %v4183
    %4196 = vst [vmem:[%s4190 + $0x2a8] sm:$0xff] %v4185
    %4197 = vst [vmem:[%s4190 + $0x330] sm:$0xff] %v4187
    %4198 = vst [vmem:[%s4190 + $0x3b8] sm:$0xff] %v4189
    %v4199 = vmul.f32 %v2176, %v828
    %v4200 = vmul.f32 %v2178, %v829
    %v4201 = vmul.f32 %v2181, %v830
    %v4202 = vmul.f32 %v2183, %v831
    %v4203 = vmul.f32 %v2186, %v832
    %v4204 = vmul.f32 %v2188, %v833
    %v4205 = vmul.f32 %v2191, %v834
    %v4206 = vmul.f32 %v2193, %v835
    %s4207 = scalar_lea.vmem [#allocation5], 112
    %4208 = vst [vmem:[%s4207] sm:$0xff] %v4199
    %4209 = vst [vmem:[%s4207 + $0x88] sm:$0xff] %v4200
    %4210 = vst [vmem:[%s4207 + $0x110] sm:$0xff] %v4201
    %4211 = vst [vmem:[%s4207 + $0x198] sm:$0xff] %v4202
    %4212 = vst [vmem:[%s4207 + $0x220] sm:$0xff] %v4203
    %4213 = vst [vmem:[%s4207 + $0x2a8] sm:$0xff] %v4204
    %4214 = vst [vmem:[%s4207 + $0x330] sm:$0xff] %v4205
    %4215 = vst [vmem:[%s4207 + $0x3b8] sm:$0xff] %v4206
    %s4216 = scalar_lea.vmem [#allocation6], 112
    %4217 = vst [vmem:[%s4216] sm:$0xff] %v3280
    %4218 = vst [vmem:[%s4216 + $0x88] sm:$0xff] %v3282
    %4219 = vst [vmem:[%s4216 + $0x110] sm:$0xff] %v3285
    %4220 = vst [vmem:[%s4216 + $0x198] sm:$0xff] %v3287
    %4221 = vst [vmem:[%s4216 + $0x220] sm:$0xff] %v3290
    %4222 = vst [vmem:[%s4216 + $0x2a8] sm:$0xff] %v3292
    %4223 = vst [vmem:[%s4216 + $0x330] sm:$0xff] %v3295
    %4224 = vst [vmem:[%s4216 + $0x3b8] sm:$0xff] %v3297
    %v4225 = vperm.slane %v863, 7
    %v4226 = vmul.f32 %v820, %v4225
    %v4227 = vmul.f32 %v821, %v4225
    %v4228 = vmul.f32 %v822, %v4225
    %v4229 = vmul.f32 %v823, %v4225
    %v4230 = vmul.f32 %v824, %v4225
    %v4231 = vmul.f32 %v825, %v4225
    %v4232 = vmul.f32 %v826, %v4225
    %v4233 = vmul.f32 %v827, %v4225
    %v4234 = vmul.f32 %v4226, 1.442695
    %v4235 = vpow.pop %v4234
    %v4236 = vmul.f32 %v4227, 1.442695
    %v4237 = vpow.pop %v4236
    %v4238 = vmul.f32 %v4228, 1.442695
    %v4239 = vpow.pop %v4238
    %v4240 = vmul.f32 %v4229, 1.442695
    %v4241 = vpow.pop %v4240
    %v4242 = vmul.f32 %v4230, 1.442695
    %v4243 = vpow.pop %v4242
    %v4244 = vmul.f32 %v4231, 1.442695
    %v4245 = vpow.pop %v4244
    %v4246 = vmul.f32 %v4232, 1.442695
    %v4247 = vpow.pop %v4246
    %v4248 = vmul.f32 %v4233, 1.442695
    %v4249 = vpow.pop %v4248
    %s4250 = scalar_lea.vmem [#allocation4], 120
    %4251 = vst [vmem:[%s4250] sm:$0xff] %v4235
    %4252 = vst [vmem:[%s4250 + $0x88] sm:$0xff] %v4237
    %4253 = vst [vmem:[%s4250 + $0x110] sm:$0xff] %v4239
    %4254 = vst [vmem:[%s4250 + $0x198] sm:$0xff] %v4241
    %4255 = vst [vmem:[%s4250 + $0x220] sm:$0xff] %v4243
    %4256 = vst [vmem:[%s4250 + $0x2a8] sm:$0xff] %v4245
    %4257 = vst [vmem:[%s4250 + $0x330] sm:$0xff] %v4247
    %4258 = vst [vmem:[%s4250 + $0x3b8] sm:$0xff] %v4249
    %v4259 = vmul.f32 %v2205, %v828
    %v4260 = vmul.f32 %v2207, %v829
    %v4261 = vmul.f32 %v2210, %v830
    %v4262 = vmul.f32 %v2212, %v831
    %v4263 = vmul.f32 %v2215, %v832
    %v4264 = vmul.f32 %v2217, %v833
    %v4265 = vmul.f32 %v2220, %v834
    %v4266 = vmul.f32 %v2222, %v835
    %s4267 = scalar_lea.vmem [#allocation5], 120
    %4268 = vst [vmem:[%s4267] sm:$0xff] %v4259
    %4269 = vst [vmem:[%s4267 + $0x88] sm:$0xff] %v4260
    %4270 = vst [vmem:[%s4267 + $0x110] sm:$0xff] %v4261
    %4271 = vst [vmem:[%s4267 + $0x198] sm:$0xff] %v4262
    %4272 = vst [vmem:[%s4267 + $0x220] sm:$0xff] %v4263
    %4273 = vst [vmem:[%s4267 + $0x2a8] sm:$0xff] %v4264
    %4274 = vst [vmem:[%s4267 + $0x330] sm:$0xff] %v4265
    %4275 = vst [vmem:[%s4267 + $0x3b8] sm:$0xff] %v4266
    %s4276 = scalar_lea.vmem [#allocation6], 120
    %4277 = vst [vmem:[%s4276] sm:$0xff] %v3309
    %4278 = vst [vmem:[%s4276 + $0x88] sm:$0xff] %v3311
    %4279 = vst [vmem:[%s4276 + $0x110] sm:$0xff] %v3314
    %4280 = vst [vmem:[%s4276 + $0x198] sm:$0xff] %v3316
    %4281 = vst [vmem:[%s4276 + $0x220] sm:$0xff] %v3319
    %4282 = vst [vmem:[%s4276 + $0x2a8] sm:$0xff] %v3321
    %4283 = vst [vmem:[%s4276 + $0x330] sm:$0xff] %v3324
    %4284 = vst [vmem:[%s4276 + $0x3b8] sm:$0xff] %v3326
    %s4285 = scalar_lea.vmem [#allocation5], 128
    %4286 = vst [vmem:[%s4285] sm:$0xff] %v639
    %4287 = vst [vmem:[%s4285 + $0x88] sm:$0xff] %v640
    %4288 = vst [vmem:[%s4285 + $0x110] sm:$0xff] %v641
    %4289 = vst [vmem:[%s4285 + $0x198] sm:$0xff] %v642
    %4290 = vst [vmem:[%s4285 + $0x220] sm:$0xff] %v643
    %4291 = vst [vmem:[%s4285 + $0x2a8] sm:$0xff] %v644
    %4292 = vst [vmem:[%s4285 + $0x330] sm:$0xff] %v645
    %4293 = vst [vmem:[%s4285 + $0x3b8] sm:$0xff] %v646
    %v4294 = vld [vmem:[#allocation4] sm:$0xff]
    %v4295 = vld [vmem:[#allocation4 + $0x8] sm:$0xff]
    %v4296 = vld [vmem:[#allocation4 + $0x10] sm:$0xff]
    %v4297 = vld [vmem:[#allocation4 + $0x18] sm:$0xff]
    %v4298 = vld [vmem:[#allocation4 + $0x20] sm:$0xff]
    %v4299 = vld [vmem:[#allocation4 + $0x28] sm:$0xff]
    %v4300 = vld [vmem:[#allocation4 + $0x30] sm:$0xff]
    %v4301 = vld [vmem:[#allocation4 + $0x38] sm:$0xff]
    %v4302 = vld [vmem:[#allocation4 + $0x40] sm:$0xff]
    %v4303 = vld [vmem:[#allocation4 + $0x48] sm:$0xff]
    %v4304 = vld [vmem:[#allocation4 + $0x50] sm:$0xff]
    %v4305 = vld [vmem:[#allocation4 + $0x58] sm:$0xff]
    %v4306 = vld [vmem:[#allocation4 + $0x60] sm:$0xff]
    %v4307 = vld [vmem:[#allocation4 + $0x68] sm:$0xff]
    %v4308 = vld [vmem:[#allocation4 + $0x70] sm:$0xff]
    %v4309 = vld [vmem:[#allocation4 + $0x78] sm:$0xff]
    %v4310 = vld [vmem:[#allocation4 + $0x80] sm:$0xff]
    %v4311 = vmul.f32 %v4294, 0.0
    %v4312 = vmul.f32 %v4295, 0.0
    %v4313 = vmul.f32 %v4296, 0.0
    %v4314 = vmul.f32 %v4297, 0.0
    %v4315 = vmul.f32 %v4298, 0.0
    %v4316 = vmul.f32 %v4299, 0.0
    %v4317 = vmul.f32 %v4300, 0.0
    %v4318 = vmul.f32 %v4301, 0.0
    %v4319 = vmul.f32 %v4302, 0.0
    %v4320 = vmul.f32 %v4303, 0.0
    %v4321 = vmul.f32 %v4304, 0.0
    %v4322 = vmul.f32 %v4305, 0.0
    %v4323 = vmul.f32 %v4306, 0.0
    %v4324 = vmul.f32 %v4307, 0.0
    %v4325 = vmul.f32 %v4308, 0.0
    %v4326 = vmul.f32 %v4309, 0.0
    %v4327 = vmul.f32 %v4310, 0.0
    %v4328 = vld [vmem:[#allocation5] sm:$0xff]
    %v4329 = vld [vmem:[#allocation5 + $0x8] sm:$0xff]
    %v4330 = vld [vmem:[#allocation5 + $0x10] sm:$0xff]
    %v4331 = vld [vmem:[#allocation5 + $0x18] sm:$0xff]
    %v4332 = vld [vmem:[#allocation5 + $0x20] sm:$0xff]
    %v4333 = vld [vmem:[#allocation5 + $0x28] sm:$0xff]
    %v4334 = vld [vmem:[#allocation5 + $0x30] sm:$0xff]
    %v4335 = vld [vmem:[#allocation5 + $0x38] sm:$0xff]
    %v4336 = vld [vmem:[#allocation5 + $0x40] sm:$0xff]
    %v4337 = vld [vmem:[#allocation5 + $0x48] sm:$0xff]
    %v4338 = vld [vmem:[#allocation5 + $0x50] sm:$0xff]
    %v4339 = vld [vmem:[#allocation5 + $0x58] sm:$0xff]
    %v4340 = vld [vmem:[#allocation5 + $0x60] sm:$0xff]
    %v4341 = vld [vmem:[#allocation5 + $0x68] sm:$0xff]
    %v4342 = vld [vmem:[#allocation5 + $0x70] sm:$0xff]
    %v4343 = vld [vmem:[#allocation5 + $0x78] sm:$0xff]
    %v4344 = vld [vmem:[#allocation5 + $0x80] sm:$0xff]
    %v4345 = vadd.f32 %v4311, %v4328
    %v4346 = vadd.f32 %v4312, %v4329
    %v4347 = vadd.f32 %v4313, %v4330
    %v4348 = vadd.f32 %v4314, %v4331
    %v4349 = vadd.f32 %v4315, %v4332
    %v4350 = vadd.f32 %v4316, %v4333
    %v4351 = vadd.f32 %v4317, %v4334
    %v4352 = vadd.f32 %v4318, %v4335
    %v4353 = vadd.f32 %v4319, %v4336
    %v4354 = vadd.f32 %v4320, %v4337
    %v4355 = vadd.f32 %v4321, %v4338
    %v4356 = vadd.f32 %v4322, %v4339
    %v4357 = vadd.f32 %v4323, %v4340
    %v4358 = vadd.f32 %v4324, %v4341
    %v4359 = vadd.f32 %v4325, %v4342
    %v4360 = vadd.f32 %v4326, %v4343
    %v4361 = vadd.f32 %v4327, %v4344
    %v4362 = vld [vmem:[#allocation6] sm:$0xff]
    %v4363 = vld [vmem:[#allocation6 + $0x8] sm:$0xff]
    %v4364 = vld [vmem:[#allocation6 + $0x10] sm:$0xff]
    %v4365 = vld [vmem:[#allocation6 + $0x18] sm:$0xff]
    %v4366 = vld [vmem:[#allocation6 + $0x20] sm:$0xff]
    %v4367 = vld [vmem:[#allocation6 + $0x28] sm:$0xff]
    %v4368 = vld [vmem:[#allocation6 + $0x30] sm:$0xff]
    %v4369 = vld [vmem:[#allocation6 + $0x38] sm:$0xff]
    %v4370 = vld [vmem:[#allocation6 + $0x40] sm:$0xff]
    %v4371 = vld [vmem:[#allocation6 + $0x48] sm:$0xff]
    %v4372 = vld [vmem:[#allocation6 + $0x50] sm:$0xff]
    %v4373 = vld [vmem:[#allocation6 + $0x58] sm:$0xff]
    %v4374 = vld [vmem:[#allocation6 + $0x60] sm:$0xff]
    %v4375 = vld [vmem:[#allocation6 + $0x68] sm:$0xff]
    %v4376 = vld [vmem:[#allocation6 + $0x70] sm:$0xff]
    %v4377 = vld [vmem:[#allocation6 + $0x78] sm:$0xff]
    %v4378 = vld [vmem:[#allocation6 + $0x80] sm:$0xff]
    %v4379 = vmul.f32 %v4362, %v4345
    %v4380 = vmul.f32 %v4363, %v4346
    %v4381 = vmul.f32 %v4364, %v4347
    %v4382 = vmul.f32 %v4365, %v4348
    %v4383 = vmul.f32 %v4366, %v4349
    %v4384 = vmul.f32 %v4367, %v4350
    %v4385 = vmul.f32 %v4368, %v4351
    %v4386 = vmul.f32 %v4369, %v4352
    %v4387 = vmul.f32 %v4370, %v4353
    %v4388 = vmul.f32 %v4371, %v4354
    %v4389 = vmul.f32 %v4372, %v4355
    %v4390 = vmul.f32 %v4373, %v4356
    %v4391 = vmul.f32 %v4374, %v4357
    %v4392 = vmul.f32 %v4375, %v4358
    %v4393 = vmul.f32 %v4376, %v4359
    %v4394 = vmul.f32 %v4377, %v4360
    %v4395 = vmul.f32 %v4378, %v4361
    %v4396 = vadd.f32 %v4379, %v4380
    %v4397 = vadd.f32 %v4396, %v4381
    %v4398 = vadd.f32 %v4397, %v4382
    %v4399 = vadd.f32 %v4398, %v4383
    %v4400 = vadd.f32 %v4399, %v4384
    %v4401 = vadd.f32 %v4400, %v4385
    %v4402 = vadd.f32 %v4401, %v4386
    %v4403 = vadd.f32 %v4402, %v4387
    %v4404 = vadd.f32 %v4403, %v4388
    %v4405 = vadd.f32 %v4404, %v4389
    %v4406 = vadd.f32 %v4405, %v4390
    %v4407 = vadd.f32 %v4406, %v4391
    %v4408 = vadd.f32 %v4407, %v4392
    %v4409 = vadd.f32 %v4408, %v4393
    %v4410 = vadd.f32 %v4409, %v4394
    %v4411 = vadd.f32 %v4410, %v4395
    %4412 = vst.msk [vmem:[#allocation7] sm:$0xff] %vm349, %v4411
    %4414 = vrot.lane.b32.xlu0 %v4411, 64
    %v4415 = vpop.permute.xlu0 %4414
    %s4417 = scalar_lea.vmem [#allocation8], 56
    %4418 = vst.msk [vmem:[%s4417] sm:$0xff] %vm349, %v4415
    %s4419 = scalar_lea.vmem [#allocation4], 136
    %v4420 = vld [vmem:[%s4419] sm:$0xff]
    %v4421 = vld [vmem:[%s4419 + $0x8] sm:$0xff]
    %v4422 = vld [vmem:[%s4419 + $0x10] sm:$0xff]
    %v4423 = vld [vmem:[%s4419 + $0x18] sm:$0xff]
    %v4424 = vld [vmem:[%s4419 + $0x20] sm:$0xff]
    %v4425 = vld [vmem:[%s4419 + $0x28] sm:$0xff]
    %v4426 = vld [vmem:[%s4419 + $0x30] sm:$0xff]
    %v4427 = vld [vmem:[%s4419 + $0x38] sm:$0xff]
    %v4428 = vld [vmem:[%s4419 + $0x40] sm:$0xff]
    %v4429 = vld [vmem:[%s4419 + $0x48] sm:$0xff]
    %v4430 = vld [vmem:[%s4419 + $0x50] sm:$0xff]
    %v4431 = vld [vmem:[%s4419 + $0x58] sm:$0xff]
    %v4432 = vld [vmem:[%s4419 + $0x60] sm:$0xff]
    %v4433 = vld [vmem:[%s4419 + $0x68] sm:$0xff]
    %v4434 = vld [vmem:[%s4419 + $0x70] sm:$0xff]
    %v4435 = vld [vmem:[%s4419 + $0x78] sm:$0xff]
    %v4436 = vld [vmem:[%s4419 + $0x80] sm:$0xff]
    %v4437 = vmul.f32 %v4345, %v4420
    %v4438 = vmul.f32 %v4346, %v4421
    %v4439 = vmul.f32 %v4347, %v4422
    %v4440 = vmul.f32 %v4348, %v4423
    %v4441 = vmul.f32 %v4349, %v4424
    %v4442 = vmul.f32 %v4350, %v4425
    %v4443 = vmul.f32 %v4351, %v4426
    %v4444 = vmul.f32 %v4352, %v4427
    %v4445 = vmul.f32 %v4353, %v4428
    %v4446 = vmul.f32 %v4354, %v4429
    %v4447 = vmul.f32 %v4355, %v4430
    %v4448 = vmul.f32 %v4356, %v4431
    %v4449 = vmul.f32 %v4357, %v4432
    %v4450 = vmul.f32 %v4358, %v4433
    %v4451 = vmul.f32 %v4359, %v4434
    %v4452 = vmul.f32 %v4360, %v4435
    %v4453 = vmul.f32 %v4361, %v4436
    %s4454 = scalar_lea.vmem [#allocation5], 136
    %v4455 = vld [vmem:[%s4454] sm:$0xff]
    %v4456 = vld [vmem:[%s4454 + $0x8] sm:$0xff]
    %v4457 = vld [vmem:[%s4454 + $0x10] sm:$0xff]
    %v4458 = vld [vmem:[%s4454 + $0x18] sm:$0xff]
    %v4459 = vld [vmem:[%s4454 + $0x20] sm:$0xff]
    %v4460 = vld [vmem:[%s4454 + $0x28] sm:$0xff]
    %v4461 = vld [vmem:[%s4454 + $0x30] sm:$0xff]
    %v4462 = vld [vmem:[%s4454 + $0x38] sm:$0xff]
    %v4463 = vld [vmem:[%s4454 + $0x40] sm:$0xff]
    %v4464 = vld [vmem:[%s4454 + $0x48] sm:$0xff]
    %v4465 = vld [vmem:[%s4454 + $0x50] sm:$0xff]
    %v4466 = vld [vmem:[%s4454 + $0x58] sm:$0xff]
    %v4467 = vld [vmem:[%s4454 + $0x60] sm:$0xff]
    %v4468 = vld [vmem:[%s4454 + $0x68] sm:$0xff]
    %v4469 = vld [vmem:[%s4454 + $0x70] sm:$0xff]
    %v4470 = vld [vmem:[%s4454 + $0x78] sm:$0xff]
    %v4471 = vld [vmem:[%s4454 + $0x80] sm:$0xff]
    %v4472 = vadd.f32 %v4437, %v4455
    %v4473 = vadd.f32 %v4438, %v4456
    %v4474 = vadd.f32 %v4439, %v4457
    %v4475 = vadd.f32 %v4440, %v4458
    %v4476 = vadd.f32 %v4441, %v4459
    %v4477 = vadd.f32 %v4442, %v4460
    %v4478 = vadd.f32 %v4443, %v4461
    %v4479 = vadd.f32 %v4444, %v4462
    %v4480 = vadd.f32 %v4445, %v4463
    %v4481 = vadd.f32 %v4446, %v4464
    %v4482 = vadd.f32 %v4447, %v4465
    %v4483 = vadd.f32 %v4448, %v4466
    %v4484 = vadd.f32 %v4449, %v4467
    %v4485 = vadd.f32 %v4450, %v4468
    %v4486 = vadd.f32 %v4451, %v4469
    %v4487 = vadd.f32 %v4452, %v4470
    %v4488 = vadd.f32 %v4453, %v4471
    %s4489 = scalar_lea.vmem [#allocation6], 136
    %v4490 = vld [vmem:[%s4489] sm:$0xff]
    %v4491 = vld [vmem:[%s4489 + $0x8] sm:$0xff]
    %v4492 = vld [vmem:[%s4489 + $0x10] sm:$0xff]
    %v4493 = vld [vmem:[%s4489 + $0x18] sm:$0xff]
    %v4494 = vld [vmem:[%s4489 + $0x20] sm:$0xff]
    %v4495 = vld [vmem:[%s4489 + $0x28] sm:$0xff]
    %v4496 = vld [vmem:[%s4489 + $0x30] sm:$0xff]
    %v4497 = vld [vmem:[%s4489 + $0x38] sm:$0xff]
    %v4498 = vld [vmem:[%s4489 + $0x40] sm:$0xff]
    %v4499 = vld [vmem:[%s4489 + $0x48] sm:$0xff]
    %v4500 = vld [vmem:[%s4489 + $0x50] sm:$0xff]
    %v4501 = vld [vmem:[%s4489 + $0x58] sm:$0xff]
    %v4502 = vld [vmem:[%s4489 + $0x60] sm:$0xff]
    %v4503 = vld [vmem:[%s4489 + $0x68] sm:$0xff]
    %v4504 = vld [vmem:[%s4489 + $0x70] sm:$0xff]
    %v4505 = vld [vmem:[%s4489 + $0x78] sm:$0xff]
    %v4506 = vld [vmem:[%s4489 + $0x80] sm:$0xff]
    %v4507 = vmul.f32 %v4490, %v4472
    %v4508 = vmul.f32 %v4491, %v4473
    %v4509 = vmul.f32 %v4492, %v4474
    %v4510 = vmul.f32 %v4493, %v4475
    %v4511 = vmul.f32 %v4494, %v4476
    %v4512 = vmul.f32 %v4495, %v4477
    %v4513 = vmul.f32 %v4496, %v4478
    %v4514 = vmul.f32 %v4497, %v4479
    %v4515 = vmul.f32 %v4498, %v4480
    %v4516 = vmul.f32 %v4499, %v4481
    %v4517 = vmul.f32 %v4500, %v4482
    %v4518 = vmul.f32 %v4501, %v4483
    %v4519 = vmul.f32 %v4502, %v4484
    %v4520 = vmul.f32 %v4503, %v4485
    %v4521 = vmul.f32 %v4504, %v4486
    %v4522 = vmul.f32 %v4505, %v4487
    %v4523 = vmul.f32 %v4506, %v4488
    %v4524 = vadd.f32 %v4507, %v4508
    %v4525 = vadd.f32 %v4524, %v4509
    %v4526 = vadd.f32 %v4525, %v4510
    %v4527 = vadd.f32 %v4526, %v4511
    %v4528 = vadd.f32 %v4527, %v4512
    %v4529 = vadd.f32 %v4528, %v4513
    %v4530 = vadd.f32 %v4529, %v4514
    %v4531 = vadd.f32 %v4530, %v4515
    %v4532 = vadd.f32 %v4531, %v4516
    %v4533 = vadd.f32 %v4532, %v4517
    %v4534 = vadd.f32 %v4533, %v4518
    %v4535 = vadd.f32 %v4534, %v4519
    %v4536 = vadd.f32 %v4535, %v4520
    %v4537 = vadd.f32 %v4536, %v4521
    %v4538 = vadd.f32 %v4537, %v4522
    %v4539 = vadd.f32 %v4538, %v4523
    %s4540 = scalar_lea.vmem [#allocation7], 8
    %4541 = vst.msk [vmem:[%s4540] sm:$0xff] %vm349, %v4539
    %4543 = vrot.lane.b32.xlu0 %v4539, 64
    %v4544 = vpop.permute.xlu0 %4543
    %s4546 = scalar_lea.vmem [#allocation8], 48
    %4547 = vst.msk [vmem:[%s4546] sm:$0xff] %vm349, %v4544
    %s4548 = scalar_lea.vmem [#allocation4], 272
    %v4549 = vld [vmem:[%s4548] sm:$0xff]
    %v4550 = vld [vmem:[%s4548 + $0x8] sm:$0xff]
    %v4551 = vld [vmem:[%s4548 + $0x10] sm:$0xff]
    %v4552 = vld [vmem:[%s4548 + $0x18] sm:$0xff]
    %v4553 = vld [vmem:[%s4548 + $0x20] sm:$0xff]
    %v4554 = vld [vmem:[%s4548 + $0x28] sm:$0xff]
    %v4555 = vld [vmem:[%s4548 + $0x30] sm:$0xff]
    %v4556 = vld [vmem:[%s4548 + $0x38] sm:$0xff]
    %v4557 = vld [vmem:[%s4548 + $0x40] sm:$0xff]
    %v4558 = vld [vmem:[%s4548 + $0x48] sm:$0xff]
    %v4559 = vld [vmem:[%s4548 + $0x50] sm:$0xff]
    %v4560 = vld [vmem:[%s4548 + $0x58] sm:$0xff]
    %v4561 = vld [vmem:[%s4548 + $0x60] sm:$0xff]
    %v4562 = vld [vmem:[%s4548 + $0x68] sm:$0xff]
    %v4563 = vld [vmem:[%s4548 + $0x70] sm:$0xff]
    %v4564 = vld [vmem:[%s4548 + $0x78] sm:$0xff]
    %v4565 = vld [vmem:[%s4548 + $0x80] sm:$0xff]
    %v4566 = vmul.f32 %v4472, %v4549
    %v4567 = vmul.f32 %v4473, %v4550
    %v4568 = vmul.f32 %v4474, %v4551
    %v4569 = vmul.f32 %v4475, %v4552
    %v4570 = vmul.f32 %v4476, %v4553
    %v4571 = vmul.f32 %v4477, %v4554
    %v4572 = vmul.f32 %v4478, %v4555
    %v4573 = vmul.f32 %v4479, %v4556
    %v4574 = vmul.f32 %v4480, %v4557
    %v4575 = vmul.f32 %v4481, %v4558
    %v4576 = vmul.f32 %v4482, %v4559
    %v4577 = vmul.f32 %v4483, %v4560
    %v4578 = vmul.f32 %v4484, %v4561
    %v4579 = vmul.f32 %v4485, %v4562
    %v4580 = vmul.f32 %v4486, %v4563
    %v4581 = vmul.f32 %v4487, %v4564
    %v4582 = vmul.f32 %v4488, %v4565
    %s4583 = scalar_lea.vmem [#allocation5], 272
    %v4584 = vld [vmem:[%s4583] sm:$0xff]
    %v4585 = vld [vmem:[%s4583 + $0x8] sm:$0xff]
    %v4586 = vld [vmem:[%s4583 + $0x10] sm:$0xff]
    %v4587 = vld [vmem:[%s4583 + $0x18] sm:$0xff]
    %v4588 = vld [vmem:[%s4583 + $0x20] sm:$0xff]
    %v4589 = vld [vmem:[%s4583 + $0x28] sm:$0xff]
    %v4590 = vld [vmem:[%s4583 + $0x30] sm:$0xff]
    %v4591 = vld [vmem:[%s4583 + $0x38] sm:$0xff]
    %v4592 = vld [vmem:[%s4583 + $0x40] sm:$0xff]
    %v4593 = vld [vmem:[%s4583 + $0x48] sm:$0xff]
    %v4594 = vld [vmem:[%s4583 + $0x50] sm:$0xff]
    %v4595 = vld [vmem:[%s4583 + $0x58] sm:$0xff]
    %v4596 = vld [vmem:[%s4583 + $0x60] sm:$0xff]
    %v4597 = vld [vmem:[%s4583 + $0x68] sm:$0xff]
    %v4598 = vld [vmem:[%s4583 + $0x70] sm:$0xff]
    %v4599 = vld [vmem:[%s4583 + $0x78] sm:$0xff]
    %v4600 = vld [vmem:[%s4583 + $0x80] sm:$0xff]
    %v4601 = vadd.f32 %v4566, %v4584
    %v4602 = vadd.f32 %v4567, %v4585
    %v4603 = vadd.f32 %v4568, %v4586
    %v4604 = vadd.f32 %v4569, %v4587
    %v4605 = vadd.f32 %v4570, %v4588
    %v4606 = vadd.f32 %v4571, %v4589
    %v4607 = vadd.f32 %v4572, %v4590
    %v4608 = vadd.f32 %v4573, %v4591
    %v4609 = vadd.f32 %v4574, %v4592
    %v4610 = vadd.f32 %v4575, %v4593
    %v4611 = vadd.f32 %v4576, %v4594
    %v4612 = vadd.f32 %v4577, %v4595
    %v4613 = vadd.f32 %v4578, %v4596
    %v4614 = vadd.f32 %v4579, %v4597
    %v4615 = vadd.f32 %v4580, %v4598
    %v4616 = vadd.f32 %v4581, %v4599
    %v4617 = vadd.f32 %v4582, %v4600
    %s4618 = scalar_lea.vmem [#allocation6], 272
    %v4619 = vld [vmem:[%s4618] sm:$0xff]
    %v4620 = vld [vmem:[%s4618 + $0x8] sm:$0xff]
    %v4621 = vld [vmem:[%s4618 + $0x10] sm:$0xff]
    %v4622 = vld [vmem:[%s4618 + $0x18] sm:$0xff]
    %v4623 = vld [vmem:[%s4618 + $0x20] sm:$0xff]
    %v4624 = vld [vmem:[%s4618 + $0x28] sm:$0xff]
    %v4625 = vld [vmem:[%s4618 + $0x30] sm:$0xff]
    %v4626 = vld [vmem:[%s4618 + $0x38] sm:$0xff]
    %v4627 = vld [vmem:[%s4618 + $0x40] sm:$0xff]
    %v4628 = vld [vmem:[%s4618 + $0x48] sm:$0xff]
    %v4629 = vld [vmem:[%s4618 + $0x50] sm:$0xff]
    %v4630 = vld [vmem:[%s4618 + $0x58] sm:$0xff]
    %v4631 = vld [vmem:[%s4618 + $0x60] sm:$0xff]
    %v4632 = vld [vmem:[%s4618 + $0x68] sm:$0xff]
    %v4633 = vld [vmem:[%s4618 + $0x70] sm:$0xff]
    %v4634 = vld [vmem:[%s4618 + $0x78] sm:$0xff]
    %v4635 = vld [vmem:[%s4618 + $0x80] sm:$0xff]
    %v4636 = vmul.f32 %v4619, %v4601
    %v4637 = vmul.f32 %v4620, %v4602
    %v4638 = vmul.f32 %v4621, %v4603
    %v4639 = vmul.f32 %v4622, %v4604
    %v4640 = vmul.f32 %v4623, %v4605
    %v4641 = vmul.f32 %v4624, %v4606
    %v4642 = vmul.f32 %v4625, %v4607
    %v4643 = vmul.f32 %v4626, %v4608
    %v4644 = vmul.f32 %v4627, %v4609
    %v4645 = vmul.f32 %v4628, %v4610
    %v4646 = vmul.f32 %v4629, %v4611
    %v4647 = vmul.f32 %v4630, %v4612
    %v4648 = vmul.f32 %v4631, %v4613
    %v4649 = vmul.f32 %v4632, %v4614
    %v4650 = vmul.f32 %v4633, %v4615
    %v4651 = vmul.f32 %v4634, %v4616
    %v4652 = vmul.f32 %v4635, %v4617
    %v4653 = vadd.f32 %v4636, %v4637
    %v4654 = vadd.f32 %v4653, %v4638
    %v4655 = vadd.f32 %v4654, %v4639
    %v4656 = vadd.f32 %v4655, %v4640
    %v4657 = vadd.f32 %v4656, %v4641
    %v4658 = vadd.f32 %v4657, %v4642
    %v4659 = vadd.f32 %v4658, %v4643
    %v4660 = vadd.f32 %v4659, %v4644
    %v4661 = vadd.f32 %v4660, %v4645
    %v4662 = vadd.f32 %v4661, %v4646
    %v4663 = vadd.f32 %v4662, %v4647
    %v4664 = vadd.f32 %v4663, %v4648
    %v4665 = vadd.f32 %v4664, %v4649
    %v4666 = vadd.f32 %v4665, %v4650
    %v4667 = vadd.f32 %v4666, %v4651
    %v4668 = vadd.f32 %v4667, %v4652
    %s4669 = scalar_lea.vmem [#allocation7], 16
    %4670 = vst.msk [vmem:[%s4669] sm:$0xff] %vm349, %v4668
    %4672 = vrot.lane.b32.xlu0 %v4668, 64
    %v4673 = vpop.permute.xlu0 %4672
    %s4675 = scalar_lea.vmem [#allocation8], 40
    %4676 = vst.msk [vmem:[%s4675] sm:$0xff] %vm349, %v4673
    %s4677 = scalar_lea.vmem [#allocation4], 408
    %v4678 = vld [vmem:[%s4677] sm:$0xff]
    %v4679 = vld [vmem:[%s4677 + $0x8] sm:$0xff]
    %v4680 = vld [vmem:[%s4677 + $0x10] sm:$0xff]
    %v4681 = vld [vmem:[%s4677 + $0x18] sm:$0xff]
    %v4682 = vld [vmem:[%s4677 + $0x20] sm:$0xff]
    %v4683 = vld [vmem:[%s4677 + $0x28] sm:$0xff]
    %v4684 = vld [vmem:[%s4677 + $0x30] sm:$0xff]
    %v4685 = vld [vmem:[%s4677 + $0x38] sm:$0xff]
    %v4686 = vld [vmem:[%s4677 + $0x40] sm:$0xff]
    %v4687 = vld [vmem:[%s4677 + $0x48] sm:$0xff]
    %v4688 = vld [vmem:[%s4677 + $0x50] sm:$0xff]
    %v4689 = vld [vmem:[%s4677 + $0x58] sm:$0xff]
    %v4690 = vld [vmem:[%s4677 + $0x60] sm:$0xff]
    %v4691 = vld [vmem:[%s4677 + $0x68] sm:$0xff]
    %v4692 = vld [vmem:[%s4677 + $0x70] sm:$0xff]
    %v4693 = vld [vmem:[%s4677 + $0x78] sm:$0xff]
    %v4694 = vld [vmem:[%s4677 + $0x80] sm:$0xff]
    %v4695 = vmul.f32 %v4601, %v4678
    %v4696 = vmul.f32 %v4602, %v4679
    %v4697 = vmul.f32 %v4603, %v4680
    %v4698 = vmul.f32 %v4604, %v4681
    %v4699 = vmul.f32 %v4605, %v4682
    %v4700 = vmul.f32 %v4606, %v4683
    %v4701 = vmul.f32 %v4607, %v4684
    %v4702 = vmul.f32 %v4608, %v4685
    %v4703 = vmul.f32 %v4609, %v4686
    %v4704 = vmul.f32 %v4610, %v4687
    %v4705 = vmul.f32 %v4611, %v4688
    %v4706 = vmul.f32 %v4612, %v4689
    %v4707 = vmul.f32 %v4613, %v4690
    %v4708 = vmul.f32 %v4614, %v4691
    %v4709 = vmul.f32 %v4615, %v4692
    %v4710 = vmul.f32 %v4616, %v4693
    %v4711 = vmul.f32 %v4617, %v4694
    %s4712 = scalar_lea.vmem [#allocation5], 408
    %v4713 = vld [vmem:[%s4712] sm:$0xff]
    %v4714 = vld [vmem:[%s4712 + $0x8] sm:$0xff]
    %v4715 = vld [vmem:[%s4712 + $0x10] sm:$0xff]
    %v4716 = vld [vmem:[%s4712 + $0x18] sm:$0xff]
    %v4717 = vld [vmem:[%s4712 + $0x20] sm:$0xff]
    %v4718 = vld [vmem:[%s4712 + $0x28] sm:$0xff]
    %v4719 = vld [vmem:[%s4712 + $0x30] sm:$0xff]
    %v4720 = vld [vmem:[%s4712 + $0x38] sm:$0xff]
    %v4721 = vld [vmem:[%s4712 + $0x40] sm:$0xff]
    %v4722 = vld [vmem:[%s4712 + $0x48] sm:$0xff]
    %v4723 = vld [vmem:[%s4712 + $0x50] sm:$0xff]
    %v4724 = vld [vmem:[%s4712 + $0x58] sm:$0xff]
    %v4725 = vld [vmem:[%s4712 + $0x60] sm:$0xff]
    %v4726 = vld [vmem:[%s4712 + $0x68] sm:$0xff]
    %v4727 = vld [vmem:[%s4712 + $0x70] sm:$0xff]
    %v4728 = vld [vmem:[%s4712 + $0x78] sm:$0xff]
    %v4729 = vld [vmem:[%s4712 + $0x80] sm:$0xff]
    %v4730 = vadd.f32 %v4695, %v4713
    %v4731 = vadd.f32 %v4696, %v4714
    %v4732 = vadd.f32 %v4697, %v4715
    %v4733 = vadd.f32 %v4698, %v4716
    %v4734 = vadd.f32 %v4699, %v4717
    %v4735 = vadd.f32 %v4700, %v4718
    %v4736 = vadd.f32 %v4701, %v4719
    %v4737 = vadd.f32 %v4702, %v4720
    %v4738 = vadd.f32 %v4703, %v4721
    %v4739 = vadd.f32 %v4704, %v4722
    %v4740 = vadd.f32 %v4705, %v4723
    %v4741 = vadd.f32 %v4706, %v4724
    %v4742 = vadd.f32 %v4707, %v4725
    %v4743 = vadd.f32 %v4708, %v4726
    %v4744 = vadd.f32 %v4709, %v4727
    %v4745 = vadd.f32 %v4710, %v4728
    %v4746 = vadd.f32 %v4711, %v4729
    %s4747 = scalar_lea.vmem [#allocation6], 408
    %v4748 = vld [vmem:[%s4747] sm:$0xff]
    %v4749 = vld [vmem:[%s4747 + $0x8] sm:$0xff]
    %v4750 = vld [vmem:[%s4747 + $0x10] sm:$0xff]
    %v4751 = vld [vmem:[%s4747 + $0x18] sm:$0xff]
    %v4752 = vld [vmem:[%s4747 + $0x20] sm:$0xff]
    %v4753 = vld [vmem:[%s4747 + $0x28] sm:$0xff]
    %v4754 = vld [vmem:[%s4747 + $0x30] sm:$0xff]
    %v4755 = vld [vmem:[%s4747 + $0x38] sm:$0xff]
    %v4756 = vld [vmem:[%s4747 + $0x40] sm:$0xff]
    %v4757 = vld [vmem:[%s4747 + $0x48] sm:$0xff]
    %v4758 = vld [vmem:[%s4747 + $0x50] sm:$0xff]
    %v4759 = vld [vmem:[%s4747 + $0x58] sm:$0xff]
    %v4760 = vld [vmem:[%s4747 + $0x60] sm:$0xff]
    %v4761 = vld [vmem:[%s4747 + $0x68] sm:$0xff]
    %v4762 = vld [vmem:[%s4747 + $0x70] sm:$0xff]
    %v4763 = vld [vmem:[%s4747 + $0x78] sm:$0xff]
    %v4764 = vld [vmem:[%s4747 + $0x80] sm:$0xff]
    %v4765 = vmul.f32 %v4748, %v4730
    %v4766 = vmul.f32 %v4749, %v4731
    %v4767 = vmul.f32 %v4750, %v4732
    %v4768 = vmul.f32 %v4751, %v4733
    %v4769 = vmul.f32 %v4752, %v4734
    %v4770 = vmul.f32 %v4753, %v4735
    %v4771 = vmul.f32 %v4754, %v4736
    %v4772 = vmul.f32 %v4755, %v4737
    %v4773 = vmul.f32 %v4756, %v4738
    %v4774 = vmul.f32 %v4757, %v4739
    %v4775 = vmul.f32 %v4758, %v4740
    %v4776 = vmul.f32 %v4759, %v4741
    %v4777 = vmul.f32 %v4760, %v4742
    %v4778 = vmul.f32 %v4761, %v4743
    %v4779 = vmul.f32 %v4762, %v4744
    %v4780 = vmul.f32 %v4763, %v4745
    %v4781 = vmul.f32 %v4764, %v4746
    %v4782 = vadd.f32 %v4765, %v4766
    %v4783 = vadd.f32 %v4782, %v4767
    %v4784 = vadd.f32 %v4783, %v4768
    %v4785 = vadd.f32 %v4784, %v4769
    %v4786 = vadd.f32 %v4785, %v4770
    %v4787 = vadd.f32 %v4786, %v4771
    %v4788 = vadd.f32 %v4787, %v4772
    %v4789 = vadd.f32 %v4788, %v4773
    %v4790 = vadd.f32 %v4789, %v4774
    %v4791 = vadd.f32 %v4790, %v4775
    %v4792 = vadd.f32 %v4791, %v4776
    %v4793 = vadd.f32 %v4792, %v4777
    %v4794 = vadd.f32 %v4793, %v4778
    %v4795 = vadd.f32 %v4794, %v4779
    %v4796 = vadd.f32 %v4795, %v4780
    %v4797 = vadd.f32 %v4796, %v4781
    %s4798 = scalar_lea.vmem [#allocation7], 24
    %4799 = vst.msk [vmem:[%s4798] sm:$0xff] %vm349, %v4797
    %4801 = vrot.lane.b32.xlu0 %v4797, 64
    %v4802 = vpop.permute.xlu0 %4801
    %s4804 = scalar_lea.vmem [#allocation8], 32
    %4805 = vst.msk [vmem:[%s4804] sm:$0xff] %vm349, %v4802
    %s4806 = scalar_lea.vmem [#allocation4], 544
    %v4807 = vld [vmem:[%s4806] sm:$0xff]
    %v4808 = vld [vmem:[%s4806 + $0x8] sm:$0xff]
    %v4809 = vld [vmem:[%s4806 + $0x10] sm:$0xff]
    %v4810 = vld [vmem:[%s4806 + $0x18] sm:$0xff]
    %v4811 = vld [vmem:[%s4806 + $0x20] sm:$0xff]
    %v4812 = vld [vmem:[%s4806 + $0x28] sm:$0xff]
    %v4813 = vld [vmem:[%s4806 + $0x30] sm:$0xff]
    %v4814 = vld [vmem:[%s4806 + $0x38] sm:$0xff]
    %v4815 = vld [vmem:[%s4806 + $0x40] sm:$0xff]
    %v4816 = vld [vmem:[%s4806 + $0x48] sm:$0xff]
    %v4817 = vld [vmem:[%s4806 + $0x50] sm:$0xff]
    %v4818 = vld [vmem:[%s4806 + $0x58] sm:$0xff]
    %v4819 = vld [vmem:[%s4806 + $0x60] sm:$0xff]
    %v4820 = vld [vmem:[%s4806 + $0x68] sm:$0xff]
    %v4821 = vld [vmem:[%s4806 + $0x70] sm:$0xff]
    %v4822 = vld [vmem:[%s4806 + $0x78] sm:$0xff]
    %v4823 = vld [vmem:[%s4806 + $0x80] sm:$0xff]
    %v4824 = vmul.f32 %v4730, %v4807
    %v4825 = vmul.f32 %v4731, %v4808
    %v4826 = vmul.f32 %v4732, %v4809
    %v4827 = vmul.f32 %v4733, %v4810
    %v4828 = vmul.f32 %v4734, %v4811
    %v4829 = vmul.f32 %v4735, %v4812
    %v4830 = vmul.f32 %v4736, %v4813
    %v4831 = vmul.f32 %v4737, %v4814
    %v4832 = vmul.f32 %v4738, %v4815
    %v4833 = vmul.f32 %v4739, %v4816
    %v4834 = vmul.f32 %v4740, %v4817
    %v4835 = vmul.f32 %v4741, %v4818
    %v4836 = vmul.f32 %v4742, %v4819
    %v4837 = vmul.f32 %v4743, %v4820
    %v4838 = vmul.f32 %v4744, %v4821
    %v4839 = vmul.f32 %v4745, %v4822
    %v4840 = vmul.f32 %v4746, %v4823
    %s4841 = scalar_lea.vmem [#allocation5], 544
    %v4842 = vld [vmem:[%s4841] sm:$0xff]
    %v4843 = vld [vmem:[%s4841 + $0x8] sm:$0xff]
    %v4844 = vld [vmem:[%s4841 + $0x10] sm:$0xff]
    %v4845 = vld [vmem:[%s4841 + $0x18] sm:$0xff]
    %v4846 = vld [vmem:[%s4841 + $0x20] sm:$0xff]
    %v4847 = vld [vmem:[%s4841 + $0x28] sm:$0xff]
    %v4848 = vld [vmem:[%s4841 + $0x30] sm:$0xff]
    %v4849 = vld [vmem:[%s4841 + $0x38] sm:$0xff]
    %v4850 = vld [vmem:[%s4841 + $0x40] sm:$0xff]
    %v4851 = vld [vmem:[%s4841 + $0x48] sm:$0xff]
    %v4852 = vld [vmem:[%s4841 + $0x50] sm:$0xff]
    %v4853 = vld [vmem:[%s4841 + $0x58] sm:$0xff]
    %v4854 = vld [vmem:[%s4841 + $0x60] sm:$0xff]
    %v4855 = vld [vmem:[%s4841 + $0x68] sm:$0xff]
    %v4856 = vld [vmem:[%s4841 + $0x70] sm:$0xff]
    %v4857 = vld [vmem:[%s4841 + $0x78] sm:$0xff]
    %v4858 = vld [vmem:[%s4841 + $0x80] sm:$0xff]
    %v4859 = vadd.f32 %v4824, %v4842
    %v4860 = vadd.f32 %v4825, %v4843
    %v4861 = vadd.f32 %v4826, %v4844
    %v4862 = vadd.f32 %v4827, %v4845
    %v4863 = vadd.f32 %v4828, %v4846
    %v4864 = vadd.f32 %v4829, %v4847
    %v4865 = vadd.f32 %v4830, %v4848
    %v4866 = vadd.f32 %v4831, %v4849
    %v4867 = vadd.f32 %v4832, %v4850
    %v4868 = vadd.f32 %v4833, %v4851
    %v4869 = vadd.f32 %v4834, %v4852
    %v4870 = vadd.f32 %v4835, %v4853
    %v4871 = vadd.f32 %v4836, %v4854
    %v4872 = vadd.f32 %v4837, %v4855
    %v4873 = vadd.f32 %v4838, %v4856
    %v4874 = vadd.f32 %v4839, %v4857
    %v4875 = vadd.f32 %v4840, %v4858
    %s4876 = scalar_lea.vmem [#allocation6], 544
    %v4877 = vld [vmem:[%s4876] sm:$0xff]
    %v4878 = vld [vmem:[%s4876 + $0x8] sm:$0xff]
    %v4879 = vld [vmem:[%s4876 + $0x10] sm:$0xff]
    %v4880 = vld [vmem:[%s4876 + $0x18] sm:$0xff]
    %v4881 = vld [vmem:[%s4876 + $0x20] sm:$0xff]
    %v4882 = vld [vmem:[%s4876 + $0x28] sm:$0xff]
    %v4883 = vld [vmem:[%s4876 + $0x30] sm:$0xff]
    %v4884 = vld [vmem:[%s4876 + $0x38] sm:$0xff]
    %v4885 = vld [vmem:[%s4876 + $0x40] sm:$0xff]
    %v4886 = vld [vmem:[%s4876 + $0x48] sm:$0xff]
    %v4887 = vld [vmem:[%s4876 + $0x50] sm:$0xff]
    %v4888 = vld [vmem:[%s4876 + $0x58] sm:$0xff]
    %v4889 = vld [vmem:[%s4876 + $0x60] sm:$0xff]
    %v4890 = vld [vmem:[%s4876 + $0x68] sm:$0xff]
    %v4891 = vld [vmem:[%s4876 + $0x70] sm:$0xff]
    %v4892 = vld [vmem:[%s4876 + $0x78] sm:$0xff]
    %v4893 = vld [vmem:[%s4876 + $0x80] sm:$0xff]
    %v4894 = vmul.f32 %v4877, %v4859
    %v4895 = vmul.f32 %v4878, %v4860
    %v4896 = vmul.f32 %v4879, %v4861
    %v4897 = vmul.f32 %v4880, %v4862
    %v4898 = vmul.f32 %v4881, %v4863
    %v4899 = vmul.f32 %v4882, %v4864
    %v4900 = vmul.f32 %v4883, %v4865
    %v4901 = vmul.f32 %v4884, %v4866
    %v4902 = vmul.f32 %v4885, %v4867
    %v4903 = vmul.f32 %v4886, %v4868
    %v4904 = vmul.f32 %v4887, %v4869
    %v4905 = vmul.f32 %v4888, %v4870
    %v4906 = vmul.f32 %v4889, %v4871
    %v4907 = vmul.f32 %v4890, %v4872
    %v4908 = vmul.f32 %v4891, %v4873
    %v4909 = vmul.f32 %v4892, %v4874
    %v4910 = vmul.f32 %v4893, %v4875
    %v4911 = vadd.f32 %v4894, %v4895
    %v4912 = vadd.f32 %v4911, %v4896
    %v4913 = vadd.f32 %v4912, %v4897
    %v4914 = vadd.f32 %v4913, %v4898
    %v4915 = vadd.f32 %v4914, %v4899
    %v4916 = vadd.f32 %v4915, %v4900
    %v4917 = vadd.f32 %v4916, %v4901
    %v4918 = vadd.f32 %v4917, %v4902
    %v4919 = vadd.f32 %v4918, %v4903
    %v4920 = vadd.f32 %v4919, %v4904
    %v4921 = vadd.f32 %v4920, %v4905
    %v4922 = vadd.f32 %v4921, %v4906
    %v4923 = vadd.f32 %v4922, %v4907
    %v4924 = vadd.f32 %v4923, %v4908
    %v4925 = vadd.f32 %v4924, %v4909
    %v4926 = vadd.f32 %v4925, %v4910
    %s4927 = scalar_lea.vmem [#allocation7], 32
    %4928 = vst.msk [vmem:[%s4927] sm:$0xff] %vm349, %v4926
    %4930 = vrot.lane.b32.xlu0 %v4926, 64
    %v4931 = vpop.permute.xlu0 %4930
    %s4933 = scalar_lea.vmem [#allocation8], 24
    %4934 = vst.msk [vmem:[%s4933] sm:$0xff] %vm349, %v4931
    %s4935 = scalar_lea.vmem [#allocation4], 680
    %v4936 = vld [vmem:[%s4935] sm:$0xff]
    %v4937 = vld [vmem:[%s4935 + $0x8] sm:$0xff]
    %v4938 = vld [vmem:[%s4935 + $0x10] sm:$0xff]
    %v4939 = vld [vmem:[%s4935 + $0x18] sm:$0xff]
    %v4940 = vld [vmem:[%s4935 + $0x20] sm:$0xff]
    %v4941 = vld [vmem:[%s4935 + $0x28] sm:$0xff]
    %v4942 = vld [vmem:[%s4935 + $0x30] sm:$0xff]
    %v4943 = vld [vmem:[%s4935 + $0x38] sm:$0xff]
    %v4944 = vld [vmem:[%s4935 + $0x40] sm:$0xff]
    %v4945 = vld [vmem:[%s4935 + $0x48] sm:$0xff]
    %v4946 = vld [vmem:[%s4935 + $0x50] sm:$0xff]
    %v4947 = vld [vmem:[%s4935 + $0x58] sm:$0xff]
    %v4948 = vld [vmem:[%s4935 + $0x60] sm:$0xff]
    %v4949 = vld [vmem:[%s4935 + $0x68] sm:$0xff]
    %v4950 = vld [vmem:[%s4935 + $0x70] sm:$0xff]
    %v4951 = vld [vmem:[%s4935 + $0x78] sm:$0xff]
    %v4952 = vld [vmem:[%s4935 + $0x80] sm:$0xff]
    %v4953 = vmul.f32 %v4859, %v4936
    %v4954 = vmul.f32 %v4860, %v4937
    %v4955 = vmul.f32 %v4861, %v4938
    %v4956 = vmul.f32 %v4862, %v4939
    %v4957 = vmul.f32 %v4863, %v4940
    %v4958 = vmul.f32 %v4864, %v4941
    %v4959 = vmul.f32 %v4865, %v4942
    %v4960 = vmul.f32 %v4866, %v4943
    %v4961 = vmul.f32 %v4867, %v4944
    %v4962 = vmul.f32 %v4868, %v4945
    %v4963 = vmul.f32 %v4869, %v4946
    %v4964 = vmul.f32 %v4870, %v4947
    %v4965 = vmul.f32 %v4871, %v4948
    %v4966 = vmul.f32 %v4872, %v4949
    %v4967 = vmul.f32 %v4873, %v4950
    %v4968 = vmul.f32 %v4874, %v4951
    %v4969 = vmul.f32 %v4875, %v4952
    %s4970 = scalar_lea.vmem [#allocation5], 680
    %v4971 = vld [vmem:[%s4970] sm:$0xff]
    %v4972 = vld [vmem:[%s4970 + $0x8] sm:$0xff]
    %v4973 = vld [vmem:[%s4970 + $0x10] sm:$0xff]
    %v4974 = vld [vmem:[%s4970 + $0x18] sm:$0xff]
    %v4975 = vld [vmem:[%s4970 + $0x20] sm:$0xff]
    %v4976 = vld [vmem:[%s4970 + $0x28] sm:$0xff]
    %v4977 = vld [vmem:[%s4970 + $0x30] sm:$0xff]
    %v4978 = vld [vmem:[%s4970 + $0x38] sm:$0xff]
    %v4979 = vld [vmem:[%s4970 + $0x40] sm:$0xff]
    %v4980 = vld [vmem:[%s4970 + $0x48] sm:$0xff]
    %v4981 = vld [vmem:[%s4970 + $0x50] sm:$0xff]
    %v4982 = vld [vmem:[%s4970 + $0x58] sm:$0xff]
    %v4983 = vld [vmem:[%s4970 + $0x60] sm:$0xff]
    %v4984 = vld [vmem:[%s4970 + $0x68] sm:$0xff]
    %v4985 = vld [vmem:[%s4970 + $0x70] sm:$0xff]
    %v4986 = vld [vmem:[%s4970 + $0x78] sm:$0xff]
    %v4987 = vld [vmem:[%s4970 + $0x80] sm:$0xff]
    %v4988 = vadd.f32 %v4953, %v4971
    %v4989 = vadd.f32 %v4954, %v4972
    %v4990 = vadd.f32 %v4955, %v4973
    %v4991 = vadd.f32 %v4956, %v4974
    %v4992 = vadd.f32 %v4957, %v4975
    %v4993 = vadd.f32 %v4958, %v4976
    %v4994 = vadd.f32 %v4959, %v4977
    %v4995 = vadd.f32 %v4960, %v4978
    %v4996 = vadd.f32 %v4961, %v4979
    %v4997 = vadd.f32 %v4962, %v4980
    %v4998 = vadd.f32 %v4963, %v4981
    %v4999 = vadd.f32 %v4964, %v4982
    %v5000 = vadd.f32 %v4965, %v4983
    %v5001 = vadd.f32 %v4966, %v4984
    %v5002 = vadd.f32 %v4967, %v4985
    %v5003 = vadd.f32 %v4968, %v4986
    %v5004 = vadd.f32 %v4969, %v4987
    %s5005 = scalar_lea.vmem [#allocation6], 680
    %v5006 = vld [vmem:[%s5005] sm:$0xff]
    %v5007 = vld [vmem:[%s5005 + $0x8] sm:$0xff]
    %v5008 = vld [vmem:[%s5005 + $0x10] sm:$0xff]
    %v5009 = vld [vmem:[%s5005 + $0x18] sm:$0xff]
    %v5010 = vld [vmem:[%s5005 + $0x20] sm:$0xff]
    %v5011 = vld [vmem:[%s5005 + $0x28] sm:$0xff]
    %v5012 = vld [vmem:[%s5005 + $0x30] sm:$0xff]
    %v5013 = vld [vmem:[%s5005 + $0x38] sm:$0xff]
    %v5014 = vld [vmem:[%s5005 + $0x40] sm:$0xff]
    %v5015 = vld [vmem:[%s5005 + $0x48] sm:$0xff]
    %v5016 = vld [vmem:[%s5005 + $0x50] sm:$0xff]
    %v5017 = vld [vmem:[%s5005 + $0x58] sm:$0xff]
    %v5018 = vld [vmem:[%s5005 + $0x60] sm:$0xff]
    %v5019 = vld [vmem:[%s5005 + $0x68] sm:$0xff]
    %v5020 = vld [vmem:[%s5005 + $0x70] sm:$0xff]
    %v5021 = vld [vmem:[%s5005 + $0x78] sm:$0xff]
    %v5022 = vld [vmem:[%s5005 + $0x80] sm:$0xff]
    %v5023 = vmul.f32 %v5006, %v4988
    %v5024 = vmul.f32 %v5007, %v4989
    %v5025 = vmul.f32 %v5008, %v4990
    %v5026 = vmul.f32 %v5009, %v4991
    %v5027 = vmul.f32 %v5010, %v4992
    %v5028 = vmul.f32 %v5011, %v4993
    %v5029 = vmul.f32 %v5012, %v4994
    %v5030 = vmul.f32 %v5013, %v4995
    %v5031 = vmul.f32 %v5014, %v4996
    %v5032 = vmul.f32 %v5015, %v4997
    %v5033 = vmul.f32 %v5016, %v4998
    %v5034 = vmul.f32 %v5017, %v4999
    %v5035 = vmul.f32 %v5018, %v5000
    %v5036 = vmul.f32 %v5019, %v5001
    %v5037 = vmul.f32 %v5020, %v5002
    %v5038 = vmul.f32 %v5021, %v5003
    %v5039 = vmul.f32 %v5022, %v5004
    %v5040 = vadd.f32 %v5023, %v5024
    %v5041 = vadd.f32 %v5040, %v5025
    %v5042 = vadd.f32 %v5041, %v5026
    %v5043 = vadd.f32 %v5042, %v5027
    %v5044 = vadd.f32 %v5043, %v5028
    %v5045 = vadd.f32 %v5044, %v5029
    %v5046 = vadd.f32 %v5045, %v5030
    %v5047 = vadd.f32 %v5046, %v5031
    %v5048 = vadd.f32 %v5047, %v5032
    %v5049 = vadd.f32 %v5048, %v5033
    %v5050 = vadd.f32 %v5049, %v5034
    %v5051 = vadd.f32 %v5050, %v5035
    %v5052 = vadd.f32 %v5051, %v5036
    %v5053 = vadd.f32 %v5052, %v5037
    %v5054 = vadd.f32 %v5053, %v5038
    %v5055 = vadd.f32 %v5054, %v5039
    %s5056 = scalar_lea.vmem [#allocation7], 40
    %5057 = vst.msk [vmem:[%s5056] sm:$0xff] %vm349, %v5055
    %5059 = vrot.lane.b32.xlu0 %v5055, 64
    %v5060 = vpop.permute.xlu0 %5059
    %s5062 = scalar_lea.vmem [#allocation8], 16
    %5063 = vst.msk [vmem:[%s5062] sm:$0xff] %vm349, %v5060
    %s5064 = scalar_lea.vmem [#allocation4], 816
    %v5065 = vld [vmem:[%s5064] sm:$0xff]
    %v5066 = vld [vmem:[%s5064 + $0x8] sm:$0xff]
    %v5067 = vld [vmem:[%s5064 + $0x10] sm:$0xff]
    %v5068 = vld [vmem:[%s5064 + $0x18] sm:$0xff]
    %v5069 = vld [vmem:[%s5064 + $0x20] sm:$0xff]
    %v5070 = vld [vmem:[%s5064 + $0x28] sm:$0xff]
    %v5071 = vld [vmem:[%s5064 + $0x30] sm:$0xff]
    %v5072 = vld [vmem:[%s5064 + $0x38] sm:$0xff]
    %v5073 = vld [vmem:[%s5064 + $0x40] sm:$0xff]
    %v5074 = vld [vmem:[%s5064 + $0x48] sm:$0xff]
    %v5075 = vld [vmem:[%s5064 + $0x50] sm:$0xff]
    %v5076 = vld [vmem:[%s5064 + $0x58] sm:$0xff]
    %v5077 = vld [vmem:[%s5064 + $0x60] sm:$0xff]
    %v5078 = vld [vmem:[%s5064 + $0x68] sm:$0xff]
    %v5079 = vld [vmem:[%s5064 + $0x70] sm:$0xff]
    %v5080 = vld [vmem:[%s5064 + $0x78] sm:$0xff]
    %v5081 = vld [vmem:[%s5064 + $0x80] sm:$0xff]
    %v5082 = vmul.f32 %v4988, %v5065
    %v5083 = vmul.f32 %v4989, %v5066
    %v5084 = vmul.f32 %v4990, %v5067
    %v5085 = vmul.f32 %v4991, %v5068
    %v5086 = vmul.f32 %v4992, %v5069
    %v5087 = vmul.f32 %v4993, %v5070
    %v5088 = vmul.f32 %v4994, %v5071
    %v5089 = vmul.f32 %v4995, %v5072
    %v5090 = vmul.f32 %v4996, %v5073
    %v5091 = vmul.f32 %v4997, %v5074
    %v5092 = vmul.f32 %v4998, %v5075
    %v5093 = vmul.f32 %v4999, %v5076
    %v5094 = vmul.f32 %v5000, %v5077
    %v5095 = vmul.f32 %v5001, %v5078
    %v5096 = vmul.f32 %v5002, %v5079
    %v5097 = vmul.f32 %v5003, %v5080
    %v5098 = vmul.f32 %v5004, %v5081
    %s5099 = scalar_lea.vmem [#allocation5], 816
    %v5100 = vld [vmem:[%s5099] sm:$0xff]
    %v5101 = vld [vmem:[%s5099 + $0x8] sm:$0xff]
    %v5102 = vld [vmem:[%s5099 + $0x10] sm:$0xff]
    %v5103 = vld [vmem:[%s5099 + $0x18] sm:$0xff]
    %v5104 = vld [vmem:[%s5099 + $0x20] sm:$0xff]
    %v5105 = vld [vmem:[%s5099 + $0x28] sm:$0xff]
    %v5106 = vld [vmem:[%s5099 + $0x30] sm:$0xff]
    %v5107 = vld [vmem:[%s5099 + $0x38] sm:$0xff]
    %v5108 = vld [vmem:[%s5099 + $0x40] sm:$0xff]
    %v5109 = vld [vmem:[%s5099 + $0x48] sm:$0xff]
    %v5110 = vld [vmem:[%s5099 + $0x50] sm:$0xff]
    %v5111 = vld [vmem:[%s5099 + $0x58] sm:$0xff]
    %v5112 = vld [vmem:[%s5099 + $0x60] sm:$0xff]
    %v5113 = vld [vmem:[%s5099 + $0x68] sm:$0xff]
    %v5114 = vld [vmem:[%s5099 + $0x70] sm:$0xff]
    %v5115 = vld [vmem:[%s5099 + $0x78] sm:$0xff]
    %v5116 = vld [vmem:[%s5099 + $0x80] sm:$0xff]
    %v5117 = vadd.f32 %v5082, %v5100
    %v5118 = vadd.f32 %v5083, %v5101
    %v5119 = vadd.f32 %v5084, %v5102
    %v5120 = vadd.f32 %v5085, %v5103
    %v5121 = vadd.f32 %v5086, %v5104
    %v5122 = vadd.f32 %v5087, %v5105
    %v5123 = vadd.f32 %v5088, %v5106
    %v5124 = vadd.f32 %v5089, %v5107
    %v5125 = vadd.f32 %v5090, %v5108
    %v5126 = vadd.f32 %v5091, %v5109
    %v5127 = vadd.f32 %v5092, %v5110
    %v5128 = vadd.f32 %v5093, %v5111
    %v5129 = vadd.f32 %v5094, %v5112
    %v5130 = vadd.f32 %v5095, %v5113
    %v5131 = vadd.f32 %v5096, %v5114
    %v5132 = vadd.f32 %v5097, %v5115
    %v5133 = vadd.f32 %v5098, %v5116
    %s5134 = scalar_lea.vmem [#allocation6], 816
    %v5135 = vld [vmem:[%s5134] sm:$0xff]
    %v5136 = vld [vmem:[%s5134 + $0x8] sm:$0xff]
    %v5137 = vld [vmem:[%s5134 + $0x10] sm:$0xff]
    %v5138 = vld [vmem:[%s5134 + $0x18] sm:$0xff]
    %v5139 = vld [vmem:[%s5134 + $0x20] sm:$0xff]
    %v5140 = vld [vmem:[%s5134 + $0x28] sm:$0xff]
    %v5141 = vld [vmem:[%s5134 + $0x30] sm:$0xff]
    %v5142 = vld [vmem:[%s5134 + $0x38] sm:$0xff]
    %v5143 = vld [vmem:[%s5134 + $0x40] sm:$0xff]
    %v5144 = vld [vmem:[%s5134 + $0x48] sm:$0xff]
    %v5145 = vld [vmem:[%s5134 + $0x50] sm:$0xff]
    %v5146 = vld [vmem:[%s5134 + $0x58] sm:$0xff]
    %v5147 = vld [vmem:[%s5134 + $0x60] sm:$0xff]
    %v5148 = vld [vmem:[%s5134 + $0x68] sm:$0xff]
    %v5149 = vld [vmem:[%s5134 + $0x70] sm:$0xff]
    %v5150 = vld [vmem:[%s5134 + $0x78] sm:$0xff]
    %v5151 = vld [vmem:[%s5134 + $0x80] sm:$0xff]
    %v5152 = vmul.f32 %v5135, %v5117
    %v5153 = vmul.f32 %v5136, %v5118
    %v5154 = vmul.f32 %v5137, %v5119
    %v5155 = vmul.f32 %v5138, %v5120
    %v5156 = vmul.f32 %v5139, %v5121
    %v5157 = vmul.f32 %v5140, %v5122
    %v5158 = vmul.f32 %v5141, %v5123
    %v5159 = vmul.f32 %v5142, %v5124
    %v5160 = vmul.f32 %v5143, %v5125
    %v5161 = vmul.f32 %v5144, %v5126
    %v5162 = vmul.f32 %v5145, %v5127
    %v5163 = vmul.f32 %v5146, %v5128
    %v5164 = vmul.f32 %v5147, %v5129
    %v5165 = vmul.f32 %v5148, %v5130
    %v5166 = vmul.f32 %v5149, %v5131
    %v5167 = vmul.f32 %v5150, %v5132
    %v5168 = vmul.f32 %v5151, %v5133
    %v5169 = vadd.f32 %v5152, %v5153
    %v5170 = vadd.f32 %v5169, %v5154
    %v5171 = vadd.f32 %v5170, %v5155
    %v5172 = vadd.f32 %v5171, %v5156
    %v5173 = vadd.f32 %v5172, %v5157
    %v5174 = vadd.f32 %v5173, %v5158
    %v5175 = vadd.f32 %v5174, %v5159
    %v5176 = vadd.f32 %v5175, %v5160
    %v5177 = vadd.f32 %v5176, %v5161
    %v5178 = vadd.f32 %v5177, %v5162
    %v5179 = vadd.f32 %v5178, %v5163
    %v5180 = vadd.f32 %v5179, %v5164
    %v5181 = vadd.f32 %v5180, %v5165
    %v5182 = vadd.f32 %v5181, %v5166
    %v5183 = vadd.f32 %v5182, %v5167
    %v5184 = vadd.f32 %v5183, %v5168
    %s5185 = scalar_lea.vmem [#allocation7], 48
    %5186 = vst.msk [vmem:[%s5185] sm:$0xff] %vm349, %v5184
    %5188 = vrot.lane.b32.xlu0 %v5184, 64
    %v5189 = vpop.permute.xlu0 %5188
    %s5191 = scalar_lea.vmem [#allocation8], 8
    %5192 = vst.msk [vmem:[%s5191] sm:$0xff] %vm349, %v5189
    %s5193 = scalar_lea.vmem [#allocation4], 952
    %v5194 = vld [vmem:[%s5193] sm:$0xff]
    %v5195 = vld [vmem:[%s5193 + $0x8] sm:$0xff]
    %v5196 = vld [vmem:[%s5193 + $0x10] sm:$0xff]
    %v5197 = vld [vmem:[%s5193 + $0x18] sm:$0xff]
    %v5198 = vld [vmem:[%s5193 + $0x20] sm:$0xff]
    %v5199 = vld [vmem:[%s5193 + $0x28] sm:$0xff]
    %v5200 = vld [vmem:[%s5193 + $0x30] sm:$0xff]
    %v5201 = vld [vmem:[%s5193 + $0x38] sm:$0xff]
    %v5202 = vld [vmem:[%s5193 + $0x40] sm:$0xff]
    %v5203 = vld [vmem:[%s5193 + $0x48] sm:$0xff]
    %v5204 = vld [vmem:[%s5193 + $0x50] sm:$0xff]
    %v5205 = vld [vmem:[%s5193 + $0x58] sm:$0xff]
    %v5206 = vld [vmem:[%s5193 + $0x60] sm:$0xff]
    %v5207 = vld [vmem:[%s5193 + $0x68] sm:$0xff]
    %v5208 = vld [vmem:[%s5193 + $0x70] sm:$0xff]
    %v5209 = vld [vmem:[%s5193 + $0x78] sm:$0xff]
    %v5210 = vld [vmem:[%s5193 + $0x80] sm:$0xff]
    %v5211 = vmul.f32 %v5117, %v5194
    %v5212 = vmul.f32 %v5118, %v5195
    %v5213 = vmul.f32 %v5119, %v5196
    %v5214 = vmul.f32 %v5120, %v5197
    %v5215 = vmul.f32 %v5121, %v5198
    %v5216 = vmul.f32 %v5122, %v5199
    %v5217 = vmul.f32 %v5123, %v5200
    %v5218 = vmul.f32 %v5124, %v5201
    %v5219 = vmul.f32 %v5125, %v5202
    %v5220 = vmul.f32 %v5126, %v5203
    %v5221 = vmul.f32 %v5127, %v5204
    %v5222 = vmul.f32 %v5128, %v5205
    %v5223 = vmul.f32 %v5129, %v5206
    %v5224 = vmul.f32 %v5130, %v5207
    %v5225 = vmul.f32 %v5131, %v5208
    %v5226 = vmul.f32 %v5132, %v5209
    %v5227 = vmul.f32 %v5133, %v5210
    %s5228 = scalar_lea.vmem [#allocation5], 952
    %v5229 = vld [vmem:[%s5228] sm:$0xff]
    %v5230 = vld [vmem:[%s5228 + $0x8] sm:$0xff]
    %v5231 = vld [vmem:[%s5228 + $0x10] sm:$0xff]
    %v5232 = vld [vmem:[%s5228 + $0x18] sm:$0xff]
    %v5233 = vld [vmem:[%s5228 + $0x20] sm:$0xff]
    %v5234 = vld [vmem:[%s5228 + $0x28] sm:$0xff]
    %v5235 = vld [vmem:[%s5228 + $0x30] sm:$0xff]
    %v5236 = vld [vmem:[%s5228 + $0x38] sm:$0xff]
    %v5237 = vld [vmem:[%s5228 + $0x40] sm:$0xff]
    %v5238 = vld [vmem:[%s5228 + $0x48] sm:$0xff]
    %v5239 = vld [vmem:[%s5228 + $0x50] sm:$0xff]
    %v5240 = vld [vmem:[%s5228 + $0x58] sm:$0xff]
    %v5241 = vld [vmem:[%s5228 + $0x60] sm:$0xff]
    %v5242 = vld [vmem:[%s5228 + $0x68] sm:$0xff]
    %v5243 = vld [vmem:[%s5228 + $0x70] sm:$0xff]
    %v5244 = vld [vmem:[%s5228 + $0x78] sm:$0xff]
    %v5245 = vld [vmem:[%s5228 + $0x80] sm:$0xff]
    %v5246 = vadd.f32 %v5211, %v5229
    %v5247 = vadd.f32 %v5212, %v5230
    %v5248 = vadd.f32 %v5213, %v5231
    %v5249 = vadd.f32 %v5214, %v5232
    %v5250 = vadd.f32 %v5215, %v5233
    %v5251 = vadd.f32 %v5216, %v5234
    %v5252 = vadd.f32 %v5217, %v5235
    %v5253 = vadd.f32 %v5218, %v5236
    %v5254 = vadd.f32 %v5219, %v5237
    %v5255 = vadd.f32 %v5220, %v5238
    %v5256 = vadd.f32 %v5221, %v5239
    %v5257 = vadd.f32 %v5222, %v5240
    %v5258 = vadd.f32 %v5223, %v5241
    %v5259 = vadd.f32 %v5224, %v5242
    %v5260 = vadd.f32 %v5225, %v5243
    %v5261 = vadd.f32 %v5226, %v5244
    %v5262 = vadd.f32 %v5227, %v5245
    %s5263 = scalar_lea.vmem [#allocation6], 952
    %v5264 = vld [vmem:[%s5263] sm:$0xff]
    %v5265 = vld [vmem:[%s5263 + $0x8] sm:$0xff]
    %v5266 = vld [vmem:[%s5263 + $0x10] sm:$0xff]
    %v5267 = vld [vmem:[%s5263 + $0x18] sm:$0xff]
    %v5268 = vld [vmem:[%s5263 + $0x20] sm:$0xff]
    %v5269 = vld [vmem:[%s5263 + $0x28] sm:$0xff]
    %v5270 = vld [vmem:[%s5263 + $0x30] sm:$0xff]
    %v5271 = vld [vmem:[%s5263 + $0x38] sm:$0xff]
    %v5272 = vld [vmem:[%s5263 + $0x40] sm:$0xff]
    %v5273 = vld [vmem:[%s5263 + $0x48] sm:$0xff]
    %v5274 = vld [vmem:[%s5263 + $0x50] sm:$0xff]
    %v5275 = vld [vmem:[%s5263 + $0x58] sm:$0xff]
    %v5276 = vld [vmem:[%s5263 + $0x60] sm:$0xff]
    %v5277 = vld [vmem:[%s5263 + $0x68] sm:$0xff]
    %v5278 = vld [vmem:[%s5263 + $0x70] sm:$0xff]
    %v5279 = vld [vmem:[%s5263 + $0x78] sm:$0xff]
    %v5280 = vld [vmem:[%s5263 + $0x80] sm:$0xff]
    %v5281 = vmul.f32 %v5264, %v5246
    %v5282 = vmul.f32 %v5265, %v5247
    %v5283 = vmul.f32 %v5266, %v5248
    %v5284 = vmul.f32 %v5267, %v5249
    %v5285 = vmul.f32 %v5268, %v5250
    %v5286 = vmul.f32 %v5269, %v5251
    %v5287 = vmul.f32 %v5270, %v5252
    %v5288 = vmul.f32 %v5271, %v5253
    %v5289 = vmul.f32 %v5272, %v5254
    %v5290 = vmul.f32 %v5273, %v5255
    %v5291 = vmul.f32 %v5274, %v5256
    %v5292 = vmul.f32 %v5275, %v5257
    %v5293 = vmul.f32 %v5276, %v5258
    %v5294 = vmul.f32 %v5277, %v5259
    %v5295 = vmul.f32 %v5278, %v5260
    %v5296 = vmul.f32 %v5279, %v5261
    %v5297 = vmul.f32 %v5280, %v5262
    %v5298 = vadd.f32 %v5281, %v5282
    %v5299 = vadd.f32 %v5298, %v5283
    %v5300 = vadd.f32 %v5299, %v5284
    %v5301 = vadd.f32 %v5300, %v5285
    %v5302 = vadd.f32 %v5301, %v5286
    %v5303 = vadd.f32 %v5302, %v5287
    %v5304 = vadd.f32 %v5303, %v5288
    %v5305 = vadd.f32 %v5304, %v5289
    %v5306 = vadd.f32 %v5305, %v5290
    %v5307 = vadd.f32 %v5306, %v5291
    %v5308 = vadd.f32 %v5307, %v5292
    %v5309 = vadd.f32 %v5308, %v5293
    %v5310 = vadd.f32 %v5309, %v5294
    %v5311 = vadd.f32 %v5310, %v5295
    %v5312 = vadd.f32 %v5311, %v5296
    %v5313 = vadd.f32 %v5312, %v5297
    %s5314 = scalar_lea.vmem [#allocation7], 56
    %5315 = vst.msk [vmem:[%s5314] sm:$0xff] %vm349, %v5313
    %5317 = vrot.lane.b32.xlu0 %v5313, 64
    %v5318 = vpop.permute.xlu0 %5317
    %5320 = vst.msk [vmem:[#allocation8] sm:$0xff] %vm349, %v5318
    %v5321 = vld [vmem:[#allocation7] sm:$0xff]
    %v5322 = vld [vmem:[#allocation7 + $0x8] sm:$0xff]
    %v5323 = vld [vmem:[#allocation7 + $0x10] sm:$0xff]
    %v5324 = vld [vmem:[#allocation7 + $0x18] sm:$0xff]
    %v5325 = vld [vmem:[#allocation7 + $0x20] sm:$0xff]
    %v5326 = vld [vmem:[#allocation7 + $0x28] sm:$0xff]
    %v5327 = vld [vmem:[#allocation7 + $0x30] sm:$0xff]
    %v5328 = vld [vmem:[#allocation7 + $0x38] sm:$0xff]
    %v5329 = vld [vmem:[#allocation8] sm:$0xff]
    %v5330 = vld [vmem:[#allocation8 + $0x8] sm:$0xff]
    %v5331 = vld [vmem:[#allocation8 + $0x10] sm:$0xff]
    %v5332 = vld [vmem:[#allocation8 + $0x18] sm:$0xff]
    %v5333 = vld [vmem:[#allocation8 + $0x20] sm:$0xff]
    %v5334 = vld [vmem:[#allocation8 + $0x28] sm:$0xff]
    %v5335 = vld [vmem:[#allocation8 + $0x30] sm:$0xff]
    %v5336 = vld [vmem:[#allocation8 + $0x38] sm:$0xff]
    %v5337 = vadd.f32 %v5321, %v5329
    %v5338 = vadd.f32 %v5322, %v5330
    %v5339 = vadd.f32 %v5323, %v5331
    %v5340 = vadd.f32 %v5324, %v5332
    %v5341 = vadd.f32 %v5325, %v5333
    %v5342 = vadd.f32 %v5326, %v5334
    %v5343 = vadd.f32 %v5327, %v5335
    %v5344 = vadd.f32 %v5328, %v5336
    %v5345 = vmul.f32 %v330, 0.5
    %v5346 = vmul.f32 %v332, 0.5
    %v5347 = vmul.f32 %v335, 0.5
    %v5348 = vmul.f32 %v337, 0.5
    %v5349 = vmul.f32 %v340, 0.5
    %v5350 = vmul.f32 %v342, 0.5
    %v5351 = vmul.f32 %v345, 0.5
    %v5352 = vmul.f32 %v347, 0.5
    %v5353 = vtanh.pop %v5345
    %v5354 = vtanh.pop %v5346
    %v5355 = vtanh.pop %v5347
    %v5356 = vtanh.pop %v5348
    %v5357 = vtanh.pop %v5349
    %v5358 = vtanh.pop %v5350
    %v5359 = vtanh.pop %v5351
    %v5360 = vtanh.pop %v5352
    %v5361 = vadd.f32 %v5353, 1.0
    %v5362 = vadd.f32 %v5354, 1.0
    %v5363 = vadd.f32 %v5355, 1.0
    %v5364 = vadd.f32 %v5356, 1.0
    %v5365 = vadd.f32 %v5357, 1.0
    %v5366 = vadd.f32 %v5358, 1.0
    %v5367 = vadd.f32 %v5359, 1.0
    %v5368 = vadd.f32 %v5360, 1.0
    %v5369 = vmul.f32 %v5361, 0.5
    %v5370 = vmul.f32 %v5362, 0.5
    %v5371 = vmul.f32 %v5363, 0.5
    %v5372 = vmul.f32 %v5364, 0.5
    %v5373 = vmul.f32 %v5365, 0.5
    %v5374 = vmul.f32 %v5366, 0.5
    %v5375 = vmul.f32 %v5367, 0.5
    %v5376 = vmul.f32 %v5368, 0.5
    %v5377 = vmul.f32 %v330, %v5369
    %v5378 = vmul.f32 %v332, %v5370
    %v5379 = vmul.f32 %v335, %v5371
    %v5380 = vmul.f32 %v337, %v5372
    %v5381 = vmul.f32 %v340, %v5373
    %v5382 = vmul.f32 %v342, %v5374
    %v5383 = vmul.f32 %v345, %v5375
    %v5384 = vmul.f32 %v347, %v5376
    %5393 = vrot.lane.b32.xlu0 %v5377, 64
    %v5394 = vpop.permute.xlu0 %5393
    %5395 = vrot.lane.b32.xlu0 %v5378, 64
    %v5396 = vpop.permute.xlu0 %5395
    %5397 = vrot.lane.b32.xlu0 %v5379, 64
    %v5398 = vpop.permute.xlu0 %5397
    %5399 = vrot.lane.b32.xlu0 %v5380, 64
    %v5400 = vpop.permute.xlu0 %5399
    %5401 = vrot.lane.b32.xlu0 %v5381, 64
    %v5402 = vpop.permute.xlu0 %5401
    %5403 = vrot.lane.b32.xlu0 %v5382, 64
    %v5404 = vpop.permute.xlu0 %5403
    %5405 = vrot.lane.b32.xlu0 %v5383, 64
    %v5406 = vpop.permute.xlu0 %5405
    %5407 = vrot.lane.b32.xlu0 %v5384, 64
    %v5408 = vpop.permute.xlu0 %5407
    %v5417 = vmul.f32 %v5337, %v5394
    %v5418 = vmul.f32 %v5338, %v5396
    %v5419 = vmul.f32 %v5339, %v5398
    %v5420 = vmul.f32 %v5340, %v5400
    %v5421 = vmul.f32 %v5341, %v5402
    %v5422 = vmul.f32 %v5342, %v5404
    %v5423 = vmul.f32 %v5343, %v5406
    %v5424 = vmul.f32 %v5344, %v5408
    %v5425 = vpack.c.bf16 %v5418, %v5417
    %v5426 = vpack.c.bf16 %v5420, %v5419
    %v5427 = vpack.c.bf16 %v5422, %v5421
    %v5428 = vpack.c.bf16 %v5424, %v5423
    %v5429 = vld [vmem:[%s11] sm:$0xf]
    %v5430 = vld [vmem:[%s11 + $0x4] sm:$0xf]
    %v5431 = vld [vmem:[%s11 + $0x8] sm:$0xf]
    %v5432 = vld [vmem:[%s11 + $0xc] sm:$0xf]
    %v5433 = vld [vmem:[%s11 + $0x10] sm:$0xf]
    %v5434 = vld [vmem:[%s11 + $0x14] sm:$0xf]
    %v5435 = vld [vmem:[%s11 + $0x18] sm:$0xf]
    %v5436 = vld [vmem:[%s11 + $0x1c] sm:$0xf]
    %v5445 = vunpack.c.l.b16 %v5429
    %v5446 = vunpack.c.l.b16 %v5430
    %v5447 = vunpack.c.l.b16 %v5431
    %v5448 = vunpack.c.l.b16 %v5432
    %v5449 = vunpack.c.l.b16 %v5433
    %v5450 = vunpack.c.l.b16 %v5434
    %v5451 = vunpack.c.l.b16 %v5435
    %v5452 = vunpack.c.l.b16 %v5436
    %v5453 = vpack.c.b16 %v5446, %v5445
    %v5454 = vpack.c.b16 %v5448, %v5447
    %v5455 = vpack.c.b16 %v5450, %v5449
    %v5456 = vpack.c.b16 %v5452, %v5451
    %v5462 = vsel %vm349, %v5425, 0
    %v5465 = vsel %vm349, %v5426, 0
    %v5468 = vsel %vm349, %v5427, 0
    %v5471 = vsel %vm349, %v5428, 0
    %5473 = vmatpush.bf16.msra.mxu0 0
    %5474 = vmatpush.bf16.msra.mxu0 0
    %5475 = vmatpush.bf16.msra.mxu0 0
    %5476 = vmatpush.bf16.msra.mxu0 0
    %5477 = vmatpush.bf16.msra.mxu0 %v5456
    %5478 = vmatpush.bf16.msra.mxu0 %v5455
    %5479 = vmatpush.bf16.msra.mxu0 %v5454
    %5480 = vmatpush.bf16.msra.mxu0 %v5453
    %5481 = vmatmul.bf16.gmra.mxu0 %v5462
    %v5482 = vpop.f32.mrf.mxu0
    %v5483 = vadd.f32 %v92, %v5482
    %v5484 = vpop.f32.mrf.mxu0
    %v5485 = vadd.f32 %v93, %v5484
    %5486 = vmatmul.bf16.gmra.mxu0 %v5465
    %v5487 = vpop.f32.mrf.mxu0
    %v5488 = vadd.f32 %v94, %v5487
    %v5489 = vpop.f32.mrf.mxu0
    %v5490 = vadd.f32 %v95, %v5489
    %5491 = vmatmul.bf16.gmra.mxu0 %v5468
    %v5492 = vpop.f32.mrf.mxu0
    %v5493 = vadd.f32 %v96, %v5492
    %v5494 = vpop.f32.mrf.mxu0
    %v5495 = vadd.f32 %v97, %v5494
    %5496 = vmatmul.bf16.gmra.mxu0 %v5471
    %v5497 = vpop.f32.mrf.mxu0
    %v5498 = vadd.f32 %v98, %v5497
    %v5499 = vpop.f32.mrf.mxu0
    %v5500 = vadd.f32 %v99, %v5499
    %5501 = vdwg.mxu0
    %v5502 = vmul.f32 %v5483, %v5483
    %v5503 = vmul.f32 %v5485, %v5485
    %v5504 = vmul.f32 %v5488, %v5488
    %v5505 = vmul.f32 %v5490, %v5490
    %v5506 = vmul.f32 %v5493, %v5493
    %v5507 = vmul.f32 %v5495, %v5495
    %v5508 = vmul.f32 %v5498, %v5498
    %v5509 = vmul.f32 %v5500, %v5500
    %v5510 = vsel %vm100, %v5502, 0.0
    %5511 = vadd.xlane.f32.xlu0 %v5510
    %v5512 = vpop.xlane.xlu0 %5511
    %v5513 = vsel %vm100, %v5503, 0.0
    %5514 = vadd.xlane.f32.xlu0 %v5513
    %v5515 = vpop.xlane.xlu0 %5514
    %v5516 = vsel %vm100, %v5504, 0.0
    %5517 = vadd.xlane.f32.xlu0 %v5516
    %v5518 = vpop.xlane.xlu0 %5517
    %v5519 = vsel %vm100, %v5505, 0.0
    %5520 = vadd.xlane.f32.xlu0 %v5519
    %v5521 = vpop.xlane.xlu0 %5520
    %v5522 = vsel %vm100, %v5506, 0.0
    %5523 = vadd.xlane.f32.xlu0 %v5522
    %v5524 = vpop.xlane.xlu0 %5523
    %v5525 = vsel %vm100, %v5507, 0.0
    %5526 = vadd.xlane.f32.xlu0 %v5525
    %v5527 = vpop.xlane.xlu0 %5526
    %v5528 = vsel %vm100, %v5508, 0.0
    %5529 = vadd.xlane.f32.xlu0 %v5528
    %v5530 = vpop.xlane.xlu0 %5529
    %v5531 = vsel %vm100, %v5509, 0.0
    %5532 = vadd.xlane.f32.xlu0 %v5531
    %v5533 = vpop.xlane.xlu0 %5532
    %v5534 = vmul.f32 %v5512, %v131
    %v5535 = vmul.f32 %v5515, %v131
    %v5536 = vmul.f32 %v5518, %v131
    %v5537 = vmul.f32 %v5521, %v131
    %v5538 = vmul.f32 %v5524, %v131
    %v5539 = vmul.f32 %v5527, %v131
    %v5540 = vmul.f32 %v5530, %v131
    %v5541 = vmul.f32 %v5533, %v131
    %v5542 = vadd.f32 %v5534, 1e-05
    %v5543 = vadd.f32 %v5535, 1e-05
    %v5544 = vadd.f32 %v5536, 1e-05
    %v5545 = vadd.f32 %v5537, 1e-05
    %v5546 = vadd.f32 %v5538, 1e-05
    %v5547 = vadd.f32 %v5539, 1e-05
    %v5548 = vadd.f32 %v5540, 1e-05
    %v5549 = vadd.f32 %v5541, 1e-05
    %v5550 = vrsqrt.pop %v5542
    %v5551 = vmul.f32 %v5550, %v5542
    %v5552 = vmul.f32 %v5551, %v5550
    %v5553 = vmul.f32 0.5, %v5552
    %v5554 = vsub.f32 1.5, %v5553
    %v5555 = vmul.f32 %v5550, %v5554
    %vm5556 = vweird.f32 %v5542
    %vm5557 = vweird.f32 %v5550
    %vm5558 = vmor %vm5556, %vm5557
    %v5559 = vsel %vm5558, %v5550, %v5555
    %v5560 = vrsqrt.pop %v5543
    %v5561 = vmul.f32 %v5560, %v5543
    %v5562 = vmul.f32 %v5561, %v5560
    %v5563 = vmul.f32 0.5, %v5562
    %v5564 = vsub.f32 1.5, %v5563
    %v5565 = vmul.f32 %v5560, %v5564
    %vm5566 = vweird.f32 %v5543
    %vm5567 = vweird.f32 %v5560
    %vm5568 = vmor %vm5566, %vm5567
    %v5569 = vsel %vm5568, %v5560, %v5565
    %v5570 = vrsqrt.pop %v5544
    %v5571 = vmul.f32 %v5570, %v5544
    %v5572 = vmul.f32 %v5571, %v5570
    %v5573 = vmul.f32 0.5, %v5572
    %v5574 = vsub.f32 1.5, %v5573
    %v5575 = vmul.f32 %v5570, %v5574
    %vm5576 = vweird.f32 %v5544
    %vm5577 = vweird.f32 %v5570
    %vm5578 = vmor %vm5576, %vm5577
    %v5579 = vsel %vm5578, %v5570, %v5575
    %v5580 = vrsqrt.pop %v5545
    %v5581 = vmul.f32 %v5580, %v5545
    %v5582 = vmul.f32 %v5581, %v5580
    %v5583 = vmul.f32 0.5, %v5582
    %v5584 = vsub.f32 1.5, %v5583
    %v5585 = vmul.f32 %v5580, %v5584
    %vm5586 = vweird.f32 %v5545
    %vm5587 = vweird.f32 %v5580
    %vm5588 = vmor %vm5586, %vm5587
    %v5589 = vsel %vm5588, %v5580, %v5585
    %v5590 = vrsqrt.pop %v5546
    %v5591 = vmul.f32 %v5590, %v5546
    %v5592 = vmul.f32 %v5591, %v5590
    %v5593 = vmul.f32 0.5, %v5592
    %v5594 = vsub.f32 1.5, %v5593
    %v5595 = vmul.f32 %v5590, %v5594
    %vm5596 = vweird.f32 %v5546
    %vm5597 = vweird.f32 %v5590
    %vm5598 = vmor %vm5596, %vm5597
    %v5599 = vsel %vm5598, %v5590, %v5595
    %v5600 = vrsqrt.pop %v5547
    %v5601 = vmul.f32 %v5600, %v5547
    %v5602 = vmul.f32 %v5601, %v5600
    %v5603 = vmul.f32 0.5, %v5602
    %v5604 = vsub.f32 1.5, %v5603
    %v5605 = vmul.f32 %v5600, %v5604
    %vm5606 = vweird.f32 %v5547
    %vm5607 = vweird.f32 %v5600
    %vm5608 = vmor %vm5606, %vm5607
    %v5609 = vsel %vm5608, %v5600, %v5605
    %v5610 = vrsqrt.pop %v5548
    %v5611 = vmul.f32 %v5610, %v5548
    %v5612 = vmul.f32 %v5611, %v5610
    %v5613 = vmul.f32 0.5, %v5612
    %v5614 = vsub.f32 1.5, %v5613
    %v5615 = vmul.f32 %v5610, %v5614
    %vm5616 = vweird.f32 %v5548
    %vm5617 = vweird.f32 %v5610
    %vm5618 = vmor %vm5616, %vm5617
    %v5619 = vsel %vm5618, %v5610, %v5615
    %v5620 = vrsqrt.pop %v5549
    %v5621 = vmul.f32 %v5620, %v5549
    %v5622 = vmul.f32 %v5621, %v5620
    %v5623 = vmul.f32 0.5, %v5622
    %v5624 = vsub.f32 1.5, %v5623
    %v5625 = vmul.f32 %v5620, %v5624
    %vm5626 = vweird.f32 %v5549
    %vm5627 = vweird.f32 %v5620
    %vm5628 = vmor %vm5626, %vm5627
    %v5629 = vsel %vm5628, %v5620, %v5625
    %v5630 = vmul.f32 %v5483, %v5559
    %v5631 = vmul.f32 %v5485, %v5569
    %v5632 = vmul.f32 %v5488, %v5579
    %v5633 = vmul.f32 %v5490, %v5589
    %v5634 = vmul.f32 %v5493, %v5599
    %v5635 = vmul.f32 %v5495, %v5609
    %v5636 = vmul.f32 %v5498, %v5619
    %v5637 = vmul.f32 %v5500, %v5629
    %v5638 = vld [vmem:[%s12] sm:$0x1]
    %v5640 = vperm.slane %v5638, 0
    %v5642 = vmul.f32 %v5630, %v5640
    %v5643 = vmul.f32 %v5631, %v5640
    %v5644 = vmul.f32 %v5632, %v5640
    %v5645 = vmul.f32 %v5633, %v5640
    %v5646 = vmul.f32 %v5634, %v5640
    %v5647 = vmul.f32 %v5635, %v5640
    %v5648 = vmul.f32 %v5636, %v5640
    %v5649 = vmul.f32 %v5637, %v5640
    %5650 = vst.msk [vmem:[%s13] sm:$0xff] %vm100, %v5642
    %5651 = vst.msk [vmem:[%s13 + $0x8] sm:$0xff] %vm100, %v5643
    %5652 = vst.msk [vmem:[%s13 + $0x10] sm:$0xff] %vm100, %v5644
    %5653 = vst.msk [vmem:[%s13 + $0x18] sm:$0xff] %vm100, %v5645
    %5654 = vst.msk [vmem:[%s13 + $0x20] sm:$0xff] %vm100, %v5646
    %5655 = vst.msk [vmem:[%s13 + $0x28] sm:$0xff] %vm100, %v5647
    %5656 = vst.msk [vmem:[%s13 + $0x30] sm:$0xff] %vm100, %v5648
    %5657 = vst.msk [vmem:[%s13 + $0x38] sm:$0xff] %vm100, %v5649
    // Predicated region
    $region66: #{tpu_custom_call.1} parent=1 // pred_check
      _
    $region67: #{tpu_custom_call.1} parent=1 // pred_check_branch
      %5659 = sbr.rel (0) target = $region69
    $region68: #{tpu_custom_call.1} parent=1 // pred_region
      _
    $region69: #{tpu_custom_call.1} parent=1 // pred_fallthru
      _
    // Predicated region
    $region70: #{tpu_custom_call.1} parent=1 // pred_check
      _
    $region71: #{tpu_custom_call.1} parent=1 // pred_check_branch
      %5661 = sbr.rel (0) target = $region73
    $region72: #{tpu_custom_call.1} parent=1 // pred_region
      _
    $region73: #{tpu_custom_call.1} parent=1 // pred_fallthru
      _
    %5662 = vsyncpa [#allocation10], 1
    %5663 = vsyncpa [#allocation12], 1

</llo_original>
